<compile_context>
chip_gen: v7x
topology: tpu7x:2x2x1
jax: 0.10.0
libtpu: 0.0.40
codegen_flags: <defaults>
</compile_context>

<pallas_src>
import jax
import jax.numpy as jnp
from jax.experimental import pallas as pl
from jax.experimental.pallas import tpu as pltpu

_EPS = 1e-5

# Generation-aware VMEM budgeting: v7x has 64 MiB/TC, v5e/v6e 128 MiB.
try:
    _VMEM_CAP = int(pltpu.get_tpu_info().vmem_capacity_bytes)
except Exception:  # pragma: no cover - conservative (v7x-safe) fallback
    _VMEM_CAP = 64 * 1024 * 1024
_VMEM_LIMIT = max(32 * 1024 * 1024, min(int(_VMEM_CAP * 0.6), 96 * 1024 * 1024))
_TILE_BUDGET = int(_VMEM_LIMIT * 0.55)

# Output parity a in {0,1}: kernel taps (kh for dh=0, kh for dh=1); same for kw.
_KTAPS = {0: (3, 1), 1: (2, 0)}


# ------------------------------- small helpers ------------------------------ #
def _round_up(x, m):
    return (x + m - 1) // m * m


def _pick_tile(m, per_row_bytes, resident_bytes=0):
    """Largest row tile (multiple of 8, <=4096) whose double-buffered footprint
    fits the budget; prefers an exact divisor of m to avoid padding copies."""
    budget = max(_TILE_BUDGET - resident_bytes, 2 * 1024 * 1024)
    cap = min(budget // max(per_row_bytes, 1), 4096)
    cap = max(8, cap - cap % 8)
    if m <= cap:
        return _round_up(max(m, 1), 8)
    if m % 8 != 0:
        return cap                      # rare: fall back to row padding
    tile = 8
    while tile * 2 <= cap and m % (tile * 2) == 0:
        tile *= 2
    return tile


def _cparams(n_axes):
    return pltpu.CompilerParams(dimension_semantics=("parallel",) * n_axes,
                                vmem_limit_bytes=_VMEM_LIMIT)


# ------------------------------- Pallas kernels ----------------------------- #
def _gemm_stats_kernel(p_ref, w_ref, y_ref, s_ref):
    # p: (1, TILE_M, Kp) bf16, w: (1, Kp, Cop) bf16 (VMEM-resident per parity)
    # y: (1, TILE_M, Cop) bf16, s: (1, 1, 2, Cop) f32 [sum, sumsq] partials.
    y = jnp.dot(p_ref[0], w_ref[0], preferred_element_type=jnp.float32)
    y_ref[0] = y.astype(y_ref.dtype)
    st = jnp.concatenate([jnp.sum(y, axis=0, keepdims=True),
                          jnp.sum(y * y, axis=0, keepdims=True)], axis=0)
    s_ref[...] = st[None, None]


def _gemm_tanh_kernel(p_ref, w_ref, o_ref):
    y = jnp.dot(p_ref[0], w_ref[0], preferred_element_type=jnp.float32)
    o_ref[0] = jnp.tanh(y).astype(o_ref.dtype)


def _bn_relu_kernel(y_ref, scale_ref, shift_ref, o_ref):
    # y: (1, TILE_M, C) bf16; scale/shift: (1, C) f32; pure FMA + ReLU.
    z = y_ref[0].astype(jnp.float32) * scale_ref[...] + shift_ref[...]
    o_ref[0] = jnp.maximum(z, 0.0).astype(o_ref.dtype)


# ------------------------------ kernel wrappers ------------------------------ #
def _gemm_stats(pstack, wstack):
    """pstack: (G, M, Kp) bf16, wstack: (G, Kp, Cop) bf16 ->
       y: (G, Mp, Cop) bf16, stats: (2, Cop) f32 (padded rows contribute 0)."""
    g, m, kp = pstack.shape
    cop = wstack.shape[2]
    tile = _pick_tile(m, per_row_bytes=4 * (kp + cop), resident_bytes=4 * kp * cop)
    mp = _round_up(m, tile)
    if mp != m:
        pstack = jnp.pad(pstack, ((0, 0), (0, mp - m), (0, 0)))
    nt = mp // tile
    y, stats = pl.pallas_call(
        _gemm_stats_kernel,
        out_shape=(jax.ShapeDtypeStruct((g, mp, cop), jnp.bfloat16),
                   jax.ShapeDtypeStruct((g, nt, 2, cop), jnp.float32)),
        grid=(g, nt),
        in_specs=[pl.BlockSpec((1, tile, kp), lambda p, i: (p, i, 0)),
                  pl.BlockSpec((1, kp, cop), lambda p, i: (p, 0, 0))],
        out_specs=(pl.BlockSpec((1, tile, cop), lambda p, i: (p, i, 0)),
                   pl.BlockSpec((1, 1, 2, cop), lambda p, i: (p, i, 0, 0))),
        compiler_params=_cparams(2),
    )(pstack, wstack)
    return y, stats.sum(axis=(0, 1))


def _gemm_tanh(pstack, wstack):
    g, m, kp = pstack.shape
    cop = wstack.shape[2]
    tile = _pick_tile(m, per_row_bytes=4 * (kp + cop), resident_bytes=4 * kp * cop)
    mp = _round_up(m, tile)
    if mp != m:
        pstack = jnp.pad(pstack, ((0, 0), (0, mp - m), (0, 0)))
    out = pl.pallas_call(
        _gemm_tanh_kernel,
        out_shape=jax.ShapeDtypeStruct((g, mp, cop), jnp.bfloat16),
        grid=(g, mp // tile),
        in_specs=[pl.BlockSpec((1, tile, kp), lambda p, i: (p, i, 0)),
                  pl.BlockSpec((1, kp, cop), lambda p, i: (p, 0, 0))],
        out_specs=pl.BlockSpec((1, tile, cop), lambda p, i: (p, i, 0)),
        compiler_params=_cparams(2),
    )(pstack, wstack)
    return out


def _bn_relu(y, scale, shift):
    """y: (G, M, C) bf16, scale/shift: (1, C) f32 -> (G, Mp, C) bf16."""
    g, m, c = y.shape
    tile = _pick_tile(m, per_row_bytes=8 * c)
    mp = _round_up(m, tile)
    if mp != m:
        y = jnp.pad(y, ((0, 0), (0, mp - m), (0, 0)))
    out = pl.pallas_call(
        _bn_relu_kernel,
        out_shape=jax.ShapeDtypeStruct((g, mp, c), jnp.bfloat16),
        grid=(g, mp // tile),
        in_specs=[pl.BlockSpec((1, tile, c), lambda p, i: (p, i, 0)),
                  pl.BlockSpec((1, c), lambda p, i: (0, 0)),
                  pl.BlockSpec((1, c), lambda p, i: (0, 0))],
        out_specs=pl.BlockSpec((1, tile, c), lambda p, i: (p, i, 0)),
        compiler_params=_cparams(2),
    )(y, scale, shift)
    return out


# ------------------- ConvTranspose2d(k=4,s=2,p=1) as parity GEMMs ------------ #
def _pack_subpixel_weight(w, cop, kp):
    """w: (Ci, Co, 4, 4) PyTorch ConvT weight -> (4, Kp, Cop) bf16, parity p=a*2+b,
       K ordered tap-major (dh, dw, ci)."""
    ci, co = w.shape[0], w.shape[1]
    mats = []
    for a in range(2):
        for b in range(2):
            taps = [w[:, :, _KTAPS[a][dh], _KTAPS[b][dw]]
                    for dh in range(2) for dw in range(2)]       # each (Ci, Co)
            wm = jnp.concatenate(taps, axis=0)                   # (4*Ci, Co)
            mats.append(jnp.pad(wm, ((0, kp - 4 * ci), (0, cop - co))))
    return jnp.stack(mats, axis=0).astype(jnp.bfloat16)


def _subpixel_patches_stacked(x, kp):
    """x: (N, H, W, Ci) bf16 -> (4, N*H*W, Kp) bf16 patches, parity p=a*2+b."""
    n, h, w, ci = x.shape
    xp = jnp.pad(x, ((0, 0), (1, 1), (1, 1), (0, 0)))
    parities = []
    for a in range(2):
        for b in range(2):
            wins = [xp[:, a + dh:a + dh + h, b + dw:b + dw + w, :]
                    for dh in range(2) for dw in range(2)]
            parities.append(jnp.concatenate(wins, axis=-1).reshape(n * h * w, 4 * ci))
    p = jnp.stack(parities, axis=0)
    if kp > 4 * ci:
        p = jnp.pad(p, ((0, 0), (0, 0), (0, kp - 4 * ci)))
    return p


def _interleave_parity(y4, n, h, w, c):
    """y4: (4, N*H*W, C) (parity p=a*2+b) -> (N, 2H, 2W, C) NHWC (bf16)."""
    y = y4.reshape(2, 2, n, h, w, c)
    y = jnp.transpose(y, (2, 3, 0, 4, 1, 5))                     # (N, H, a, W, b, C)
    return y.reshape(n, 2 * h, 2 * w, c)


def _bn_scale_shift(stats, gamma_p, beta_p, count):
    """Fold training-mode batch stats + affine params into per-channel FMA."""
    inv_n = 1.0 / float(count)
    mean = stats[0] * inv_n
    var = jnp.maximum(stats[1] * inv_n - mean * mean, 0.0)
    scale = gamma_p * jax.lax.rsqrt(var + _EPS)
    shift = beta_p - mean * scale
    return (scale.reshape(1, -1).astype(jnp.float32),
            shift.reshape(1, -1).astype(jnp.float32))


# --------------------------------- layers ----------------------------------- #
def _upsample_block(x, layer):
    """ConvT(k=4, s=2, p=1) + BatchNorm2d(batch stats) + ReLU; NHWC bf16."""
    n, h, w, _ = x.shape
    wstack = layer["w"]
    kp, cop = wstack.shape[1], wstack.shape[2]
    co = layer["gamma"].shape[0]
    pstack = _subpixel_patches_stacked(x, kp)
    y4, stats = _gemm_stats(pstack, wstack)                      # bf16 y, f32 stats
    m = n * h * w
    g = jnp.pad(layer["gamma"], (0, cop - co))
    b = jnp.pad(layer["beta"], (0, cop - co))
    scale, shift = _bn_scale_shift(stats, g, b, count=4 * m)
    act = _bn_relu(y4, scale, shift)
    return _interleave_parity(act[:, :m, :co], n, h, w, co)


def _upsample_tanh(x, layer, co):
    """Final ConvT(k=4, s=2, p=1) + tanh; NHWC bf16 output."""
    n, h, w, _ = x.shape
    wstack = layer["w"]
    kp = wstack.shape[1]
    pstack = _subpixel_patches_stacked(x, kp)
    y4 = _gemm_tanh(pstack, wstack)
    m = n * h * w
    return _interleave_parity(y4[:, :m, :co], n, h, w, co)


# -------------------------------- Generator --------------------------------- #
def init_generator_params(key, size_latent, g_featuremaps, num_channels):
    """DCGAN-style init: weights ~ N(0, 0.02), gamma ~ N(1, 0.02), beta = 0."""
    ngf = g_featuremaps
    layer_defs = [
        (size_latent, ngf * 8, True),
        (ngf * 8, ngf * 4, True),
        (ngf * 4, ngf * 2, True),
        (ngf * 2, ngf, True),
        (ngf, num_channels, False),
    ]
    params = []
    for (ci, co, has_bn) in layer_defs:
        key, kw_, kg_ = jax.random.split(key, 3)
        w = 0.02 * jax.random.normal(kw_, (ci, co, 4, 4), jnp.float32)
        if has_bn:
            gamma = 1.0 + 0.02 * jax.random.normal(kg_, (co,), jnp.float32)
            beta = jnp.zeros((co,), jnp.float32)
        else:
            gamma, beta = None, None
        params.append(dict(w=w, gamma=gamma, beta=beta))
    return params


def prepare_generator_params(params):
    """One-time packing of weights / BN params (outside the per-step forward)."""
    layers = []
    # Layer 0: projection ConvT(k=4, s=1, p=0) on 1x1 input -> (Kp0, 16*Cop0).
    w0 = params[0]["w"]
    ci0, co0 = w0.shape[0], w0.shape[1]
    cop0 = _round_up(max(co0, 128), 128)
    kp0 = _round_up(ci0, 128)
    wm = jnp.transpose(w0, (0, 2, 3, 1))                         # (Ci, 4, 4, Co)
    wm = jnp.pad(wm, ((0, kp0 - ci0), (0, 0), (0, 0), (0, cop0 - co0)))
    wm = wm.reshape(kp0, 16 * cop0).astype(jnp.bfloat16)[None]   # (1, Kp0, 16*Cop0)
    layers.append(dict(w=wm,
                       gamma=params[0]["gamma"].astype(jnp.float32),
                       beta=params[0]["beta"].astype(jnp.float32)))
    # Layers 1..4: sub-pixel parity-packed weights (4, Kp, Cop).
    for li in range(1, 5):
        w = params[li]["w"]
        ci, co = w.shape[0], w.shape[1]
        cop = _round_up(max(co, 128), 128)
        kp = _round_up(4 * ci, 128)
        gamma = params[li]["gamma"]
        beta = params[li]["beta"]
        layers.append(dict(
            w=_pack_subpixel_weight(w, cop, kp),
            gamma=None if gamma is None else gamma.astype(jnp.float32),
            beta=None if beta is None else beta.astype(jnp.float32)))
    return dict(layers=layers)


def _generator_forward_impl(z, prep, num_channels):
    """z: (N, size_latent, 1, 1) NCHW -> (N, num_channels, 64, 64) NCHW f32."""
    n = z.shape[0]
    layers = prep["layers"]

    # --- Layer 0: latent projection to (N, 4, 4, ngf*8), BN + ReLU ---
    l0 = layers[0]
    kp0 = l0["w"].shape[1]
    cop0 = l0["w"].shape[2] // 16
    co0 = l0["gamma"].shape[0]
    zf = z.reshape(n, -1).astype(jnp.bfloat16)
    zf = jnp.pad(zf, ((0, 0), (0, kp0 - zf.shape[1])))
    y0, s16 = _gemm_stats(zf[None], l0["w"])                     # (1, Np, 16*Cop0)
    stats0 = s16.reshape(2, 16, cop0).sum(axis=1)                # per-channel (2, Cop0)
    g0 = jnp.pad(l0["gamma"], (0, cop0 - co0))
    b0 = jnp.pad(l0["beta"], (0, cop0 - co0))
    scale0, shift0 = _bn_scale_shift(stats0, g0, b0, count=n * 16)
    act0 = _bn_relu(y0, jnp.tile(scale0, (1, 16)), jnp.tile(shift0, (1, 16)))
    x = act0[0, :n].reshape(n, 4, 4, cop0)[..., :co0]            # NHWC bf16

    # --- Upsample + BN + ReLU layers ---
    for li in (1, 2, 3):
        x = _upsample_block(x, layers[li])

    # --- Final upsample + tanh ---
    out = _upsample_tanh(x, layers[4], num_channels)             # (N, 64, 64, C) bf16
    return jnp.transpose(out, (0, 3, 1, 2)).astype(jnp.float32)  # NCHW boundary


generator_forward = jax.jit(_generator_forward_impl, static_argnums=(2,))


if __name__ == "__main__":
    # Small config consistent with the module:
    #   size_latent=16, g_featuremaps=8, num_channels=3, batch=2
    size_latent, g_featuremaps, num_channels, batch = 16, 8, 3, 2

    key = jax.random.PRNGKey(0)
    k_z, k_p = jax.random.split(key)
    z = jax.random.normal(k_z, (batch, size_latent, 1, 1), jnp.float32)
    params = init_generator_params(k_p, size_latent, g_featuremaps, num_channels)
    prep = prepare_generator_params(params)

    out = generator_forward(z, prep, num_channels)
    out = jax.block_until_ready(out)

    assert out.shape == (batch, num_channels, 64, 64), out.shape
    assert bool(jnp.all(jnp.isfinite(out)))
    assert bool(jnp.all(jnp.abs(out) <= 1.0))  # tanh output range
    print("KERNEL_OK")
</pallas_src>

<mosaic_0001>
module attributes {stable_mosaic.version = 11 : i64} {
  func.func @_gemm_stats_kernel(%arg0: i32, %arg1: i32, %arg2: memref<1x8x128xbf16, #tpu.memory_space<vmem>>, %arg3: memref<1x128x2048xbf16, #tpu.memory_space<vmem>>, %arg4: memref<1x8x2048xbf16, #tpu.memory_space<vmem>>, %arg5: memref<1x1x2x2048xf32, #tpu.memory_space<vmem>>) attributes {dimension_semantics = [#tpu.dimension_semantics<parallel>, #tpu.dimension_semantics<parallel>], iteration_bounds = array<i64: 1, 1>, scalar_prefetch = 0 : i64, scratch_operands = 0 : i64, tpu.core_type = #tpu.core_type<tc>, window_params = [{transform_indices = @transform_0, window_bounds = array<i64: 1, 8, 128>}, {transform_indices = @transform_1, window_bounds = array<i64: 1, 128, 2048>}, {transform_indices = @transform_2, window_bounds = array<i64: 1, 8, 2048>}, {transform_indices = @transform_3, window_bounds = array<i64: 1, 1, 2, 2048>}]} {
    %c0 = arith.constant 0 : index
    %c0_0 = arith.constant 0 : index
    %c0_1 = arith.constant 0 : index
    %0 = vector.load %arg2[%c0, %c0_0, %c0_1] : memref<1x8x128xbf16, #tpu.memory_space<vmem>>, vector<1x8x128xbf16>
    %1 = vector.shape_cast %0 : vector<1x8x128xbf16> to vector<8x128xbf16>
    %c0_2 = arith.constant 0 : index
    %c0_3 = arith.constant 0 : index
    %c0_4 = arith.constant 0 : index
    %2 = vector.load %arg3[%c0_2, %c0_3, %c0_4] : memref<1x128x2048xbf16, #tpu.memory_space<vmem>>, vector<1x128x2048xbf16>
    %3 = vector.shape_cast %2 : vector<1x128x2048xbf16> to vector<128x2048xbf16>
    %cst = arith.constant dense<0.000000e+00> : vector<8x2048xf32>
    %4 = tpu.matmul %1, %3, %cst {dimension_numbers = #tpu.dot_dimension_numbers<[1], [0], [0], [1], [0, 0, 1, 1], [], []>} : vector<8x128xbf16>, vector<128x2048xbf16>, vector<8x2048xf32> -> vector<8x2048xf32>
    %5 = arith.truncf %4 : vector<8x2048xf32> to vector<8x2048xbf16>
    %c0_5 = arith.constant 0 : index
    %c0_6 = arith.constant 0 : index
    %c0_7 = arith.constant 0 : index
    %6 = vector.load %arg4[%c0_5, %c0_6, %c0_7] : memref<1x8x2048xbf16, #tpu.memory_space<vmem>>, vector<1x8x2048xbf16>
    %7 = vector.shape_cast %6 : vector<1x8x2048xbf16> to vector<8x2048xbf16>
    %8 = vector.shape_cast %5 : vector<8x2048xbf16> to vector<1x8x2048xbf16>
    tpu.vector_store %arg4[%c0_5, %c0_6, %c0_7], %8 {strides = array<i32>} : memref<1x8x2048xbf16, #tpu.memory_space<vmem>>, vector<1x8x2048xbf16>,
    %cst_8 = arith.constant dense<0.000000e+00> : vector<2048xf32>
    %9 = vector.multi_reduction <add>, %4, %cst_8 [0] : vector<8x2048xf32> to vector<2048xf32>
    %10 = vector.shape_cast %9 : vector<2048xf32> to vector<1x2048xf32>
    %11 = arith.mulf %4, %4 : vector<8x2048xf32>
    %cst_9 = arith.constant dense<0.000000e+00> : vector<2048xf32>
    %12 = vector.multi_reduction <add>, %11, %cst_9 [0] : vector<8x2048xf32> to vector<2048xf32>
    %13 = vector.shape_cast %12 : vector<2048xf32> to vector<1x2048xf32>
    %14 = tpu.concatenate %10, %13 in 0 : vector<1x2048xf32>, vector<1x2048xf32> -> vector<2x2048xf32>
    %15 = vector.shape_cast %14 : vector<2x2048xf32> to vector<1x1x2x2048xf32>
    %c0_10 = arith.constant 0 : index
    %c0_11 = arith.constant 0 : index
    %c0_12 = arith.constant 0 : index
    %c0_13 = arith.constant 0 : index
    %16 = vector.load %arg5[%c0_10, %c0_11, %c0_12, %c0_13] : memref<1x1x2x2048xf32, #tpu.memory_space<vmem>>, vector<1x1x2x2048xf32>
    tpu.vector_store %arg5[%c0_10, %c0_11, %c0_12, %c0_13], %15 {strides = array<i32>} : memref<1x1x2x2048xf32, #tpu.memory_space<vmem>>, vector<1x1x2x2048xf32>,
    return
  }
  func.func @transform_0(%arg0: i32, %arg1: i32) -> (i32, i32, i32) {
    %c0_i32 = arith.constant 0 : i32
    %c0_i32_0 = arith.constant 0 : i32
    return %arg0, %arg1, %c0_i32 : i32, i32, i32
  }
  func.func @transform_1(%arg0: i32, %arg1: i32) -> (i32, i32, i32) {
    %c0_i32 = arith.constant 0 : i32
    %c0_i32_0 = arith.constant 0 : i32
    %c0_i32_1 = arith.constant 0 : i32
    return %arg0, %c0_i32, %c0_i32_0 : i32, i32, i32
  }
  func.func @transform_2(%arg0: i32, %arg1: i32) -> (i32, i32, i32) {
    %c0_i32 = arith.constant 0 : i32
    %c0_i32_0 = arith.constant 0 : i32
    return %arg0, %arg1, %c0_i32 : i32, i32, i32
  }
  func.func @transform_3(%arg0: i32, %arg1: i32) -> (i32, i32, i32, i32) {
    %c0_i32 = arith.constant 0 : i32
    %c0_i32_0 = arith.constant 0 : i32
    %c0_i32_1 = arith.constant 0 : i32
    return %arg0, %arg1, %c0_i32, %c0_i32_0 : i32, i32, i32, i32
  }
}

module attributes {stable_mosaic.version = 11 : i64} {
  func.func @_bn_relu_kernel(%arg0: i32, %arg1: i32, %arg2: memref<1x8x2048xbf16, #tpu.memory_space<vmem>>, %arg3: memref<1x2048xf32, #tpu.memory_space<vmem>>, %arg4: memref<1x2048xf32, #tpu.memory_space<vmem>>, %arg5: memref<1x8x2048xbf16, #tpu.memory_space<vmem>>) attributes {dimension_semantics = [#tpu.dimension_semantics<parallel>, #tpu.dimension_semantics<parallel>], iteration_bounds = array<i64: 1, 1>, scalar_prefetch = 0 : i64, scratch_operands = 0 : i64, tpu.core_type = #tpu.core_type<tc>, window_params = [{transform_indices = @transform_0, window_bounds = array<i64: 1, 8, 2048>}, {pipeline_mode = #tpu.pipeline_mode<synchronous>, transform_indices = @transform_1, window_bounds = array<i64: 1, 2048>}, {pipeline_mode = #tpu.pipeline_mode<synchronous>, transform_indices = @transform_2, window_bounds = array<i64: 1, 2048>}, {transform_indices = @transform_3, window_bounds = array<i64: 1, 8, 2048>}]} {
    %c0 = arith.constant 0 : index
    %c0_0 = arith.constant 0 : index
    %c0_1 = arith.constant 0 : index
    %0 = vector.load %arg2[%c0, %c0_0, %c0_1] : memref<1x8x2048xbf16, #tpu.memory_space<vmem>>, vector<1x8x2048xbf16>
    %1 = vector.shape_cast %0 : vector<1x8x2048xbf16> to vector<8x2048xbf16>
    %2 = arith.extf %1 : vector<8x2048xbf16> to vector<8x2048xf32>
    %c0_2 = arith.constant 0 : index
    %c0_3 = arith.constant 0 : index
    %3 = vector.load %arg3[%c0_2, %c0_3] : memref<1x2048xf32, #tpu.memory_space<vmem>>, vector<1x2048xf32>
    %4 = vector.broadcast %3 : vector<1x2048xf32> to vector<8x2048xf32>
    %5 = arith.mulf %2, %4 : vector<8x2048xf32>
    %c0_4 = arith.constant 0 : index
    %c0_5 = arith.constant 0 : index
    %6 = vector.load %arg4[%c0_4, %c0_5] : memref<1x2048xf32, #tpu.memory_space<vmem>>, vector<1x2048xf32>
    %7 = vector.broadcast %6 : vector<1x2048xf32> to vector<8x2048xf32>
    %8 = arith.addf %5, %7 : vector<8x2048xf32>
    %cst = arith.constant 0.000000e+00 : f32
    %9 = vector.broadcast %cst : f32 to vector<8x2048xf32>
    %10 = arith.maximumf %8, %9 : vector<8x2048xf32>
    %11 = arith.truncf %10 : vector<8x2048xf32> to vector<8x2048xbf16>
    %c0_6 = arith.constant 0 : index
    %c0_7 = arith.constant 0 : index
    %c0_8 = arith.constant 0 : index
    %12 = vector.load %arg5[%c0_6, %c0_7, %c0_8] : memref<1x8x2048xbf16, #tpu.memory_space<vmem>>, vector<1x8x2048xbf16>
    %13 = vector.shape_cast %12 : vector<1x8x2048xbf16> to vector<8x2048xbf16>
    %14 = vector.shape_cast %11 : vector<8x2048xbf16> to vector<1x8x2048xbf16>
    tpu.vector_store %arg5[%c0_6, %c0_7, %c0_8], %14 {strides = array<i32>} : memref<1x8x2048xbf16, #tpu.memory_space<vmem>>, vector<1x8x2048xbf16>,
    return
  }
  func.func @transform_0(%arg0: i32, %arg1: i32) -> (i32, i32, i32) {
    %c0_i32 = arith.constant 0 : i32
    %c0_i32_0 = arith.constant 0 : i32
    return %arg0, %arg1, %c0_i32 : i32, i32, i32
  }
  func.func @transform_1(%arg0: i32, %arg1: i32) -> (i32, i32) {
    %c0_i32 = arith.constant 0 : i32
    %c0_i32_0 = arith.constant 0 : i32
    %c0_i32_1 = arith.constant 0 : i32
    return %c0_i32, %c0_i32_0 : i32, i32
  }
  func.func @transform_2(%arg0: i32, %arg1: i32) -> (i32, i32) {
    %c0_i32 = arith.constant 0 : i32
    %c0_i32_0 = arith.constant 0 : i32
    %c0_i32_1 = arith.constant 0 : i32
    return %c0_i32, %c0_i32_0 : i32, i32
  }
  func.func @transform_3(%arg0: i32, %arg1: i32) -> (i32, i32, i32) {
    %c0_i32 = arith.constant 0 : i32
    %c0_i32_0 = arith.constant 0 : i32
    return %arg0, %arg1, %c0_i32 : i32, i32, i32
  }
}

module attributes {stable_mosaic.version = 11 : i64} {
  func.func @_gemm_stats_kernel(%arg0: i32, %arg1: i32, %arg2: memref<1x32x256xbf16, #tpu.memory_space<vmem>>, %arg3: memref<1x256x128xbf16, #tpu.memory_space<vmem>>, %arg4: memref<1x32x128xbf16, #tpu.memory_space<vmem>>, %arg5: memref<1x1x2x128xf32, #tpu.memory_space<vmem>>) attributes {dimension_semantics = [#tpu.dimension_semantics<parallel>, #tpu.dimension_semantics<parallel>], iteration_bounds = array<i64: 4, 1>, scalar_prefetch = 0 : i64, scratch_operands = 0 : i64, tpu.core_type = #tpu.core_type<tc>, window_params = [{transform_indices = @transform_0, window_bounds = array<i64: 1, 32, 256>}, {transform_indices = @transform_1, window_bounds = array<i64: 1, 256, 128>}, {transform_indices = @transform_2, window_bounds = array<i64: 1, 32, 128>}, {transform_indices = @transform_3, window_bounds = array<i64: 1, 1, 2, 128>}]} {
    %c0 = arith.constant 0 : index
    %c0_0 = arith.constant 0 : index
    %c0_1 = arith.constant 0 : index
    %0 = vector.load %arg2[%c0, %c0_0, %c0_1] : memref<1x32x256xbf16, #tpu.memory_space<vmem>>, vector<1x32x256xbf16>
    %1 = vector.shape_cast %0 : vector<1x32x256xbf16> to vector<32x256xbf16>
    %c0_2 = arith.constant 0 : index
    %c0_3 = arith.constant 0 : index
    %c0_4 = arith.constant 0 : index
    %2 = vector.load %arg3[%c0_2, %c0_3, %c0_4] : memref<1x256x128xbf16, #tpu.memory_space<vmem>>, vector<1x256x128xbf16>
    %3 = vector.shape_cast %2 : vector<1x256x128xbf16> to vector<256x128xbf16>
    %cst = arith.constant dense<0.000000e+00> : vector<32x128xf32>
    %4 = tpu.matmul %1, %3, %cst {dimension_numbers = #tpu.dot_dimension_numbers<[1], [0], [0], [1], [0, 0, 1, 1], [], []>} : vector<32x256xbf16>, vector<256x128xbf16>, vector<32x128xf32> -> vector<32x128xf32>
    %5 = arith.truncf %4 : vector<32x128xf32> to vector<32x128xbf16>
    %c0_5 = arith.constant 0 : index
    %c0_6 = arith.constant 0 : index
    %c0_7 = arith.constant 0 : index
    %6 = vector.load %arg4[%c0_5, %c0_6, %c0_7] : memref<1x32x128xbf16, #tpu.memory_space<vmem>>, vector<1x32x128xbf16>
    %7 = vector.shape_cast %6 : vector<1x32x128xbf16> to vector<32x128xbf16>
    %8 = vector.shape_cast %5 : vector<32x128xbf16> to vector<1x32x128xbf16>
    tpu.vector_store %arg4[%c0_5, %c0_6, %c0_7], %8 {strides = array<i32>} : memref<1x32x128xbf16, #tpu.memory_space<vmem>>, vector<1x32x128xbf16>,
    %cst_8 = arith.constant dense<0.000000e+00> : vector<128xf32>
    %9 = vector.multi_reduction <add>, %4, %cst_8 [0] : vector<32x128xf32> to vector<128xf32>
    %10 = vector.shape_cast %9 : vector<128xf32> to vector<1x128xf32>
    %11 = arith.mulf %4, %4 : vector<32x128xf32>
    %cst_9 = arith.constant dense<0.000000e+00> : vector<128xf32>
    %12 = vector.multi_reduction <add>, %11, %cst_9 [0] : vector<32x128xf32> to vector<128xf32>
    %13 = vector.shape_cast %12 : vector<128xf32> to vector<1x128xf32>
    %14 = tpu.concatenate %10, %13 in 0 : vector<1x128xf32>, vector<1x128xf32> -> vector<2x128xf32>
    %15 = vector.shape_cast %14 : vector<2x128xf32> to vector<1x1x2x128xf32>
    %c0_10 = arith.constant 0 : index
    %c0_11 = arith.constant 0 : index
    %c0_12 = arith.constant 0 : index
    %c0_13 = arith.constant 0 : index
    %16 = vector.load %arg5[%c0_10, %c0_11, %c0_12, %c0_13] : memref<1x1x2x128xf32, #tpu.memory_space<vmem>>, vector<1x1x2x128xf32>
    tpu.vector_store %arg5[%c0_10, %c0_11, %c0_12, %c0_13], %15 {strides = array<i32>} : memref<1x1x2x128xf32, #tpu.memory_space<vmem>>, vector<1x1x2x128xf32>,
    return
  }
  func.func @transform_0(%arg0: i32, %arg1: i32) -> (i32, i32, i32) {
    %c0_i32 = arith.constant 0 : i32
    %c0_i32_0 = arith.constant 0 : i32
    return %arg0, %arg1, %c0_i32 : i32, i32, i32
  }
  func.func @transform_1(%arg0: i32, %arg1: i32) -> (i32, i32, i32) {
    %c0_i32 = arith.constant 0 : i32
    %c0_i32_0 = arith.constant 0 : i32
    %c0_i32_1 = arith.constant 0 : i32
    return %arg0, %c0_i32, %c0_i32_0 : i32, i32, i32
  }
  func.func @transform_2(%arg0: i32, %arg1: i32) -> (i32, i32, i32) {
    %c0_i32 = arith.constant 0 : i32
    %c0_i32_0 = arith.constant 0 : i32
    return %arg0, %arg1, %c0_i32 : i32, i32, i32
  }
  func.func @transform_3(%arg0: i32, %arg1: i32) -> (i32, i32, i32, i32) {
    %c0_i32 = arith.constant 0 : i32
    %c0_i32_0 = arith.constant 0 : i32
    %c0_i32_1 = arith.constant 0 : i32
    return %arg0, %arg1, %c0_i32, %c0_i32_0 : i32, i32, i32, i32
  }
}

module attributes {stable_mosaic.version = 11 : i64} {
  func.func @_bn_relu_kernel(%arg0: i32, %arg1: i32, %arg2: memref<1x32x128xbf16, #tpu.memory_space<vmem>>, %arg3: memref<1x128xf32, #tpu.memory_space<vmem>>, %arg4: memref<1x128xf32, #tpu.memory_space<vmem>>, %arg5: memref<1x32x128xbf16, #tpu.memory_space<vmem>>) attributes {dimension_semantics = [#tpu.dimension_semantics<parallel>, #tpu.dimension_semantics<parallel>], iteration_bounds = array<i64: 4, 1>, scalar_prefetch = 0 : i64, scratch_operands = 0 : i64, tpu.core_type = #tpu.core_type<tc>, window_params = [{transform_indices = @transform_0, window_bounds = array<i64: 1, 32, 128>}, {pipeline_mode = #tpu.pipeline_mode<synchronous>, transform_indices = @transform_1, window_bounds = array<i64: 1, 128>}, {pipeline_mode = #tpu.pipeline_mode<synchronous>, transform_indices = @transform_2, window_bounds = array<i64: 1, 128>}, {transform_indices = @transform_3, window_bounds = array<i64: 1, 32, 128>}]} {
    %c0 = arith.constant 0 : index
    %c0_0 = arith.constant 0 : index
    %c0_1 = arith.constant 0 : index
    %0 = vector.load %arg2[%c0, %c0_0, %c0_1] : memref<1x32x128xbf16, #tpu.memory_space<vmem>>, vector<1x32x128xbf16>
    %1 = vector.shape_cast %0 : vector<1x32x128xbf16> to vector<32x128xbf16>
    %2 = arith.extf %1 : vector<32x128xbf16> to vector<32x128xf32>
    %c0_2 = arith.constant 0 : index
    %c0_3 = arith.constant 0 : index
    %3 = vector.load %arg3[%c0_2, %c0_3] : memref<1x128xf32, #tpu.memory_space<vmem>>, vector<1x128xf32>
    %4 = vector.broadcast %3 : vector<1x128xf32> to vector<32x128xf32>
    %5 = arith.mulf %2, %4 : vector<32x128xf32>
    %c0_4 = arith.constant 0 : index
    %c0_5 = arith.constant 0 : index
    %6 = vector.load %arg4[%c0_4, %c0_5] : memref<1x128xf32, #tpu.memory_space<vmem>>, vector<1x128xf32>
    %7 = vector.broadcast %6 : vector<1x128xf32> to vector<32x128xf32>
    %8 = arith.addf %5, %7 : vector<32x128xf32>
    %cst = arith.constant 0.000000e+00 : f32
    %9 = vector.broadcast %cst : f32 to vector<32x128xf32>
    %10 = arith.maximumf %8, %9 : vector<32x128xf32>
    %11 = arith.truncf %10 : vector<32x128xf32> to vector<32x128xbf16>
    %c0_6 = arith.constant 0 : index
    %c0_7 = arith.constant 0 : index
    %c0_8 = arith.constant 0 : index
    %12 = vector.load %arg5[%c0_6, %c0_7, %c0_8] : memref<1x32x128xbf16, #tpu.memory_space<vmem>>, vector<1x32x128xbf16>
    %13 = vector.shape_cast %12 : vector<1x32x128xbf16> to vector<32x128xbf16>
    %14 = vector.shape_cast %11 : vector<32x128xbf16> to vector<1x32x128xbf16>
    tpu.vector_store %arg5[%c0_6, %c0_7, %c0_8], %14 {strides = array<i32>} : memref<1x32x128xbf16, #tpu.memory_space<vmem>>, vector<1x32x128xbf16>,
    return
  }
  func.func @transform_0(%arg0: i32, %arg1: i32) -> (i32, i32, i32) {
    %c0_i32 = arith.constant 0 : i32
    %c0_i32_0 = arith.constant 0 : i32
    return %arg0, %arg1, %c0_i32 : i32, i32, i32
  }
  func.func @transform_1(%arg0: i32, %arg1: i32) -> (i32, i32) {
    %c0_i32 = arith.constant 0 : i32
    %c0_i32_0 = arith.constant 0 : i32
    %c0_i32_1 = arith.constant 0 : i32
    return %c0_i32, %c0_i32_0 : i32, i32
  }
  func.func @transform_2(%arg0: i32, %arg1: i32) -> (i32, i32) {
    %c0_i32 = arith.constant 0 : i32
    %c0_i32_0 = arith.constant 0 : i32
    %c0_i32_1 = arith.constant 0 : i32
    return %c0_i32, %c0_i32_0 : i32, i32
  }
  func.func @transform_3(%arg0: i32, %arg1: i32) -> (i32, i32, i32) {
    %c0_i32 = arith.constant 0 : i32
    %c0_i32_0 = arith.constant 0 : i32
    return %arg0, %arg1, %c0_i32 : i32, i32, i32
  }
}

module attributes {stable_mosaic.version = 11 : i64} {
  func.func @_gemm_stats_kernel(%arg0: i32, %arg1: i32, %arg2: memref<1x128x128xbf16, #tpu.memory_space<vmem>>, %arg3: memref<1x128x128xbf16, #tpu.memory_space<vmem>>, %arg4: memref<1x128x128xbf16, #tpu.memory_space<vmem>>, %arg5: memref<1x1x2x128xf32, #tpu.memory_space<vmem>>) attributes {dimension_semantics = [#tpu.dimension_semantics<parallel>, #tpu.dimension_semantics<parallel>], iteration_bounds = array<i64: 4, 1>, scalar_prefetch = 0 : i64, scratch_operands = 0 : i64, tpu.core_type = #tpu.core_type<tc>, window_params = [{transform_indices = @transform_0, window_bounds = array<i64: 1, 128, 128>}, {transform_indices = @transform_1, window_bounds = array<i64: 1, 128, 128>}, {transform_indices = @transform_2, window_bounds = array<i64: 1, 128, 128>}, {transform_indices = @transform_3, window_bounds = array<i64: 1, 1, 2, 128>}]} {
    %c0 = arith.constant 0 : index
    %c0_0 = arith.constant 0 : index
    %c0_1 = arith.constant 0 : index
    %0 = vector.load %arg2[%c0, %c0_0, %c0_1] : memref<1x128x128xbf16, #tpu.memory_space<vmem>>, vector<1x128x128xbf16>
    %1 = vector.shape_cast %0 : vector<1x128x128xbf16> to vector<128x128xbf16>
    %c0_2 = arith.constant 0 : index
    %c0_3 = arith.constant 0 : index
    %c0_4 = arith.constant 0 : index
    %2 = vector.load %arg3[%c0_2, %c0_3, %c0_4] : memref<1x128x128xbf16, #tpu.memory_space<vmem>>, vector<1x128x128xbf16>
    %3 = vector.shape_cast %2 : vector<1x128x128xbf16> to vector<128x128xbf16>
    %cst = arith.constant dense<0.000000e+00> : vector<128x128xf32>
    %4 = tpu.matmul %1, %3, %cst {dimension_numbers = #tpu.dot_dimension_numbers<[1], [0], [0], [1], [0, 0, 1, 1], [], []>} : vector<128x128xbf16>, vector<128x128xbf16>, vector<128x128xf32> -> vector<128x128xf32>
    %5 = arith.truncf %4 : vector<128x128xf32> to vector<128x128xbf16>
    %c0_5 = arith.constant 0 : index
    %c0_6 = arith.constant 0 : index
    %c0_7 = arith.constant 0 : index
    %6 = vector.load %arg4[%c0_5, %c0_6, %c0_7] : memref<1x128x128xbf16, #tpu.memory_space<vmem>>, vector<1x128x128xbf16>
    %7 = vector.shape_cast %6 : vector<1x128x128xbf16> to vector<128x128xbf16>
    %8 = vector.shape_cast %5 : vector<128x128xbf16> to vector<1x128x128xbf16>
    tpu.vector_store %arg4[%c0_5, %c0_6, %c0_7], %8 {strides = array<i32>} : memref<1x128x128xbf16, #tpu.memory_space<vmem>>, vector<1x128x128xbf16>,
    %cst_8 = arith.constant dense<0.000000e+00> : vector<128xf32>
    %9 = vector.multi_reduction <add>, %4, %cst_8 [0] : vector<128x128xf32> to vector<128xf32>
    %10 = vector.shape_cast %9 : vector<128xf32> to vector<1x128xf32>
    %11 = arith.mulf %4, %4 : vector<128x128xf32>
    %cst_9 = arith.constant dense<0.000000e+00> : vector<128xf32>
    %12 = vector.multi_reduction <add>, %11, %cst_9 [0] : vector<128x128xf32> to vector<128xf32>
    %13 = vector.shape_cast %12 : vector<128xf32> to vector<1x128xf32>
    %14 = tpu.concatenate %10, %13 in 0 : vector<1x128xf32>, vector<1x128xf32> -> vector<2x128xf32>
    %15 = vector.shape_cast %14 : vector<2x128xf32> to vector<1x1x2x128xf32>
    %c0_10 = arith.constant 0 : index
    %c0_11 = arith.constant 0 : index
    %c0_12 = arith.constant 0 : index
    %c0_13 = arith.constant 0 : index
    %16 = vector.load %arg5[%c0_10, %c0_11, %c0_12, %c0_13] : memref<1x1x2x128xf32, #tpu.memory_space<vmem>>, vector<1x1x2x128xf32>
    tpu.vector_store %arg5[%c0_10, %c0_11, %c0_12, %c0_13], %15 {strides = array<i32>} : memref<1x1x2x128xf32, #tpu.memory_space<vmem>>, vector<1x1x2x128xf32>,
    return
  }
  func.func @transform_0(%arg0: i32, %arg1: i32) -> (i32, i32, i32) {
    %c0_i32 = arith.constant 0 : i32
    %c0_i32_0 = arith.constant 0 : i32
    return %arg0, %arg1, %c0_i32 : i32, i32, i32
  }
  func.func @transform_1(%arg0: i32, %arg1: i32) -> (i32, i32, i32) {
    %c0_i32 = arith.constant 0 : i32
    %c0_i32_0 = arith.constant 0 : i32
    %c0_i32_1 = arith.constant 0 : i32
    return %arg0, %c0_i32, %c0_i32_0 : i32, i32, i32
  }
  func.func @transform_2(%arg0: i32, %arg1: i32) -> (i32, i32, i32) {
    %c0_i32 = arith.constant 0 : i32
    %c0_i32_0 = arith.constant 0 : i32
    return %arg0, %arg1, %c0_i32 : i32, i32, i32
  }
  func.func @transform_3(%arg0: i32, %arg1: i32) -> (i32, i32, i32, i32) {
    %c0_i32 = arith.constant 0 : i32
    %c0_i32_0 = arith.constant 0 : i32
    %c0_i32_1 = arith.constant 0 : i32
    return %arg0, %arg1, %c0_i32, %c0_i32_0 : i32, i32, i32, i32
  }
}

module attributes {stable_mosaic.version = 11 : i64} {
  func.func @_bn_relu_kernel(%arg0: i32, %arg1: i32, %arg2: memref<1x128x128xbf16, #tpu.memory_space<vmem>>, %arg3: memref<1x128xf32, #tpu.memory_space<vmem>>, %arg4: memref<1x128xf32, #tpu.memory_space<vmem>>, %arg5: memref<1x128x128xbf16, #tpu.memory_space<vmem>>) attributes {dimension_semantics = [#tpu.dimension_semantics<parallel>, #tpu.dimension_semantics<parallel>], iteration_bounds = array<i64: 4, 1>, scalar_prefetch = 0 : i64, scratch_operands = 0 : i64, tpu.core_type = #tpu.core_type<tc>, window_params = [{transform_indices = @transform_0, window_bounds = array<i64: 1, 128, 128>}, {pipeline_mode = #tpu.pipeline_mode<synchronous>, transform_indices = @transform_1, window_bounds = array<i64: 1, 128>}, {pipeline_mode = #tpu.pipeline_mode<synchronous>, transform_indices = @transform_2, window_bounds = array<i64: 1, 128>}, {transform_indices = @transform_3, window_bounds = array<i64: 1, 128, 128>}]} {
    %c0 = arith.constant 0 : index
    %c0_0 = arith.constant 0 : index
    %c0_1 = arith.constant 0 : index
    %0 = vector.load %arg2[%c0, %c0_0, %c0_1] : memref<1x128x128xbf16, #tpu.memory_space<vmem>>, vector<1x128x128xbf16>
    %1 = vector.shape_cast %0 : vector<1x128x128xbf16> to vector<128x128xbf16>
    %2 = arith.extf %1 : vector<128x128xbf16> to vector<128x128xf32>
    %c0_2 = arith.constant 0 : index
    %c0_3 = arith.constant 0 : index
    %3 = vector.load %arg3[%c0_2, %c0_3] : memref<1x128xf32, #tpu.memory_space<vmem>>, vector<1x128xf32>
    %4 = vector.broadcast %3 : vector<1x128xf32> to vector<128x128xf32>
    %5 = arith.mulf %2, %4 : vector<128x128xf32>
    %c0_4 = arith.constant 0 : index
    %c0_5 = arith.constant 0 : index
    %6 = vector.load %arg4[%c0_4, %c0_5] : memref<1x128xf32, #tpu.memory_space<vmem>>, vector<1x128xf32>
    %7 = vector.broadcast %6 : vector<1x128xf32> to vector<128x128xf32>
    %8 = arith.addf %5, %7 : vector<128x128xf32>
    %cst = arith.constant 0.000000e+00 : f32
    %9 = vector.broadcast %cst : f32 to vector<128x128xf32>
    %10 = arith.maximumf %8, %9 : vector<128x128xf32>
    %11 = arith.truncf %10 : vector<128x128xf32> to vector<128x128xbf16>
    %c0_6 = arith.constant 0 : index
    %c0_7 = arith.constant 0 : index
    %c0_8 = arith.constant 0 : index
    %12 = vector.load %arg5[%c0_6, %c0_7, %c0_8] : memref<1x128x128xbf16, #tpu.memory_space<vmem>>, vector<1x128x128xbf16>
    %13 = vector.shape_cast %12 : vector<1x128x128xbf16> to vector<128x128xbf16>
    %14 = vector.shape_cast %11 : vector<128x128xbf16> to vector<1x128x128xbf16>
    tpu.vector_store %arg5[%c0_6, %c0_7, %c0_8], %14 {strides = array<i32>} : memref<1x128x128xbf16, #tpu.memory_space<vmem>>, vector<1x128x128xbf16>,
    return
  }
  func.func @transform_0(%arg0: i32, %arg1: i32) -> (i32, i32, i32) {
    %c0_i32 = arith.constant 0 : i32
    %c0_i32_0 = arith.constant 0 : i32
    return %arg0, %arg1, %c0_i32 : i32, i32, i32
  }
  func.func @transform_1(%arg0: i32, %arg1: i32) -> (i32, i32) {
    %c0_i32 = arith.constant 0 : i32
    %c0_i32_0 = arith.constant 0 : i32
    %c0_i32_1 = arith.constant 0 : i32
    return %c0_i32, %c0_i32_0 : i32, i32
  }
  func.func @transform_2(%arg0: i32, %arg1: i32) -> (i32, i32) {
    %c0_i32 = arith.constant 0 : i32
    %c0_i32_0 = arith.constant 0 : i32
    %c0_i32_1 = arith.constant 0 : i32
    return %c0_i32, %c0_i32_0 : i32, i32
  }
  func.func @transform_3(%arg0: i32, %arg1: i32) -> (i32, i32, i32) {
    %c0_i32 = arith.constant 0 : i32
    %c0_i32_0 = arith.constant 0 : i32
    return %arg0, %arg1, %c0_i32 : i32, i32, i32
  }
}

module attributes {stable_mosaic.version = 11 : i64} {
  func.func @_gemm_stats_kernel(%arg0: i32, %arg1: i32, %arg2: memref<1x512x128xbf16, #tpu.memory_space<vmem>>, %arg3: memref<1x128x128xbf16, #tpu.memory_space<vmem>>, %arg4: memref<1x512x128xbf16, #tpu.memory_space<vmem>>, %arg5: memref<1x1x2x128xf32, #tpu.memory_space<vmem>>) attributes {dimension_semantics = [#tpu.dimension_semantics<parallel>, #tpu.dimension_semantics<parallel>], iteration_bounds = array<i64: 4, 1>, scalar_prefetch = 0 : i64, scratch_operands = 0 : i64, tpu.core_type = #tpu.core_type<tc>, window_params = [{transform_indices = @transform_0, window_bounds = array<i64: 1, 512, 128>}, {transform_indices = @transform_1, window_bounds = array<i64: 1, 128, 128>}, {transform_indices = @transform_2, window_bounds = array<i64: 1, 512, 128>}, {transform_indices = @transform_3, window_bounds = array<i64: 1, 1, 2, 128>}]} {
    %c0 = arith.constant 0 : index
    %c0_0 = arith.constant 0 : index
    %c0_1 = arith.constant 0 : index
    %0 = vector.load %arg2[%c0, %c0_0, %c0_1] : memref<1x512x128xbf16, #tpu.memory_space<vmem>>, vector<1x512x128xbf16>
    %1 = vector.shape_cast %0 : vector<1x512x128xbf16> to vector<512x128xbf16>
    %c0_2 = arith.constant 0 : index
    %c0_3 = arith.constant 0 : index
    %c0_4 = arith.constant 0 : index
    %2 = vector.load %arg3[%c0_2, %c0_3, %c0_4] : memref<1x128x128xbf16, #tpu.memory_space<vmem>>, vector<1x128x128xbf16>
    %3 = vector.shape_cast %2 : vector<1x128x128xbf16> to vector<128x128xbf16>
    %cst = arith.constant dense<0.000000e+00> : vector<512x128xf32>
    %4 = tpu.matmul %1, %3, %cst {dimension_numbers = #tpu.dot_dimension_numbers<[1], [0], [0], [1], [0, 0, 1, 1], [], []>} : vector<512x128xbf16>, vector<128x128xbf16>, vector<512x128xf32> -> vector<512x128xf32>
    %5 = arith.truncf %4 : vector<512x128xf32> to vector<512x128xbf16>
    %c0_5 = arith.constant 0 : index
    %c0_6 = arith.constant 0 : index
    %c0_7 = arith.constant 0 : index
    %6 = vector.load %arg4[%c0_5, %c0_6, %c0_7] : memref<1x512x128xbf16, #tpu.memory_space<vmem>>, vector<1x512x128xbf16>
    %7 = vector.shape_cast %6 : vector<1x512x128xbf16> to vector<512x128xbf16>
    %8 = vector.shape_cast %5 : vector<512x128xbf16> to vector<1x512x128xbf16>
    tpu.vector_store %arg4[%c0_5, %c0_6, %c0_7], %8 {strides = array<i32>} : memref<1x512x128xbf16, #tpu.memory_space<vmem>>, vector<1x512x128xbf16>,
    %cst_8 = arith.constant dense<0.000000e+00> : vector<128xf32>
    %9 = vector.multi_reduction <add>, %4, %cst_8 [0] : vector<512x128xf32> to vector<128xf32>
    %10 = vector.shape_cast %9 : vector<128xf32> to vector<1x128xf32>
    %11 = arith.mulf %4, %4 : vector<512x128xf32>
    %cst_9 = arith.constant dense<0.000000e+00> : vector<128xf32>
    %12 = vector.multi_reduction <add>, %11, %cst_9 [0] : vector<512x128xf32> to vector<128xf32>
    %13 = vector.shape_cast %12 : vector<128xf32> to vector<1x128xf32>
    %14 = tpu.concatenate %10, %13 in 0 : vector<1x128xf32>, vector<1x128xf32> -> vector<2x128xf32>
    %15 = vector.shape_cast %14 : vector<2x128xf32> to vector<1x1x2x128xf32>
    %c0_10 = arith.constant 0 : index
    %c0_11 = arith.constant 0 : index
    %c0_12 = arith.constant 0 : index
    %c0_13 = arith.constant 0 : index
    %16 = vector.load %arg5[%c0_10, %c0_11, %c0_12, %c0_13] : memref<1x1x2x128xf32, #tpu.memory_space<vmem>>, vector<1x1x2x128xf32>
    tpu.vector_store %arg5[%c0_10, %c0_11, %c0_12, %c0_13], %15 {strides = array<i32>} : memref<1x1x2x128xf32, #tpu.memory_space<vmem>>, vector<1x1x2x128xf32>,
    return
  }
  func.func @transform_0(%arg0: i32, %arg1: i32) -> (i32, i32, i32) {
    %c0_i32 = arith.constant 0 : i32
    %c0_i32_0 = arith.constant 0 : i32
    return %arg0, %arg1, %c0_i32 : i32, i32, i32
  }
  func.func @transform_1(%arg0: i32, %arg1: i32) -> (i32, i32, i32) {
    %c0_i32 = arith.constant 0 : i32
    %c0_i32_0 = arith.constant 0 : i32
    %c0_i32_1 = arith.constant 0 : i32
    return %arg0, %c0_i32, %c0_i32_0 : i32, i32, i32
  }
  func.func @transform_2(%arg0: i32, %arg1: i32) -> (i32, i32, i32) {
    %c0_i32 = arith.constant 0 : i32
    %c0_i32_0 = arith.constant 0 : i32
    return %arg0, %arg1, %c0_i32 : i32, i32, i32
  }
  func.func @transform_3(%arg0: i32, %arg1: i32) -> (i32, i32, i32, i32) {
    %c0_i32 = arith.constant 0 : i32
    %c0_i32_0 = arith.constant 0 : i32
    %c0_i32_1 = arith.constant 0 : i32
    return %arg0, %arg1, %c0_i32, %c0_i32_0 : i32, i32, i32, i32
  }
}

module attributes {stable_mosaic.version = 11 : i64} {
  func.func @_bn_relu_kernel(%arg0: i32, %arg1: i32, %arg2: memref<1x512x128xbf16, #tpu.memory_space<vmem>>, %arg3: memref<1x128xf32, #tpu.memory_space<vmem>>, %arg4: memref<1x128xf32, #tpu.memory_space<vmem>>, %arg5: memref<1x512x128xbf16, #tpu.memory_space<vmem>>) attributes {dimension_semantics = [#tpu.dimension_semantics<parallel>, #tpu.dimension_semantics<parallel>], iteration_bounds = array<i64: 4, 1>, scalar_prefetch = 0 : i64, scratch_operands = 0 : i64, tpu.core_type = #tpu.core_type<tc>, window_params = [{transform_indices = @transform_0, window_bounds = array<i64: 1, 512, 128>}, {pipeline_mode = #tpu.pipeline_mode<synchronous>, transform_indices = @transform_1, window_bounds = array<i64: 1, 128>}, {pipeline_mode = #tpu.pipeline_mode<synchronous>, transform_indices = @transform_2, window_bounds = array<i64: 1, 128>}, {transform_indices = @transform_3, window_bounds = array<i64: 1, 512, 128>}]} {
    %c0 = arith.constant 0 : index
    %c0_0 = arith.constant 0 : index
    %c0_1 = arith.constant 0 : index
    %0 = vector.load %arg2[%c0, %c0_0, %c0_1] : memref<1x512x128xbf16, #tpu.memory_space<vmem>>, vector<1x512x128xbf16>
    %1 = vector.shape_cast %0 : vector<1x512x128xbf16> to vector<512x128xbf16>
    %2 = arith.extf %1 : vector<512x128xbf16> to vector<512x128xf32>
    %c0_2 = arith.constant 0 : index
    %c0_3 = arith.constant 0 : index
    %3 = vector.load %arg3[%c0_2, %c0_3] : memref<1x128xf32, #tpu.memory_space<vmem>>, vector<1x128xf32>
    %4 = vector.broadcast %3 : vector<1x128xf32> to vector<512x128xf32>
    %5 = arith.mulf %2, %4 : vector<512x128xf32>
    %c0_4 = arith.constant 0 : index
    %c0_5 = arith.constant 0 : index
    %6 = vector.load %arg4[%c0_4, %c0_5] : memref<1x128xf32, #tpu.memory_space<vmem>>, vector<1x128xf32>
    %7 = vector.broadcast %6 : vector<1x128xf32> to vector<512x128xf32>
    %8 = arith.addf %5, %7 : vector<512x128xf32>
    %cst = arith.constant 0.000000e+00 : f32
    %9 = vector.broadcast %cst : f32 to vector<512x128xf32>
    %10 = arith.maximumf %8, %9 : vector<512x128xf32>
    %11 = arith.truncf %10 : vector<512x128xf32> to vector<512x128xbf16>
    %c0_6 = arith.constant 0 : index
    %c0_7 = arith.constant 0 : index
    %c0_8 = arith.constant 0 : index
    %12 = vector.load %arg5[%c0_6, %c0_7, %c0_8] : memref<1x512x128xbf16, #tpu.memory_space<vmem>>, vector<1x512x128xbf16>
    %13 = vector.shape_cast %12 : vector<1x512x128xbf16> to vector<512x128xbf16>
    %14 = vector.shape_cast %11 : vector<512x128xbf16> to vector<1x512x128xbf16>
    tpu.vector_store %arg5[%c0_6, %c0_7, %c0_8], %14 {strides = array<i32>} : memref<1x512x128xbf16, #tpu.memory_space<vmem>>, vector<1x512x128xbf16>,
    return
  }
  func.func @transform_0(%arg0: i32, %arg1: i32) -> (i32, i32, i32) {
    %c0_i32 = arith.constant 0 : i32
    %c0_i32_0 = arith.constant 0 : i32
    return %arg0, %arg1, %c0_i32 : i32, i32, i32
  }
  func.func @transform_1(%arg0: i32, %arg1: i32) -> (i32, i32) {
    %c0_i32 = arith.constant 0 : i32
    %c0_i32_0 = arith.constant 0 : i32
    %c0_i32_1 = arith.constant 0 : i32
    return %c0_i32, %c0_i32_0 : i32, i32
  }
  func.func @transform_2(%arg0: i32, %arg1: i32) -> (i32, i32) {
    %c0_i32 = arith.constant 0 : i32
    %c0_i32_0 = arith.constant 0 : i32
    %c0_i32_1 = arith.constant 0 : i32
    return %c0_i32, %c0_i32_0 : i32, i32
  }
  func.func @transform_3(%arg0: i32, %arg1: i32) -> (i32, i32, i32) {
    %c0_i32 = arith.constant 0 : i32
    %c0_i32_0 = arith.constant 0 : i32
    return %arg0, %arg1, %c0_i32 : i32, i32, i32
  }
}

module attributes {stable_mosaic.version = 11 : i64} {
  func.func @_gemm_tanh_kernel(%arg0: i32, %arg1: i32, %arg2: memref<1x2048x128xbf16, #tpu.memory_space<vmem>>, %arg3: memref<1x128x128xbf16, #tpu.memory_space<vmem>>, %arg4: memref<1x2048x128xbf16, #tpu.memory_space<vmem>>) attributes {dimension_semantics = [#tpu.dimension_semantics<parallel>, #tpu.dimension_semantics<parallel>], iteration_bounds = array<i64: 4, 1>, scalar_prefetch = 0 : i64, scratch_operands = 0 : i64, tpu.core_type = #tpu.core_type<tc>, window_params = [{transform_indices = @transform_0, window_bounds = array<i64: 1, 2048, 128>}, {transform_indices = @transform_1, window_bounds = array<i64: 1, 128, 128>}, {transform_indices = @transform_2, window_bounds = array<i64: 1, 2048, 128>}]} {
    %c0 = arith.constant 0 : index
    %c0_0 = arith.constant 0 : index
    %c0_1 = arith.constant 0 : index
    %0 = vector.load %arg2[%c0, %c0_0, %c0_1] : memref<1x2048x128xbf16, #tpu.memory_space<vmem>>, vector<1x2048x128xbf16>
    %1 = vector.shape_cast %0 : vector<1x2048x128xbf16> to vector<2048x128xbf16>
    %c0_2 = arith.constant 0 : index
    %c0_3 = arith.constant 0 : index
    %c0_4 = arith.constant 0 : index
    %2 = vector.load %arg3[%c0_2, %c0_3, %c0_4] : memref<1x128x128xbf16, #tpu.memory_space<vmem>>, vector<1x128x128xbf16>
    %3 = vector.shape_cast %2 : vector<1x128x128xbf16> to vector<128x128xbf16>
    %cst = arith.constant dense<0.000000e+00> : vector<2048x128xf32>
    %4 = tpu.matmul %1, %3, %cst {dimension_numbers = #tpu.dot_dimension_numbers<[1], [0], [0], [1], [0, 0, 1, 1], [], []>} : vector<2048x128xbf16>, vector<128x128xbf16>, vector<2048x128xf32> -> vector<2048x128xf32>
    %5 = math.tanh %4 : vector<2048x128xf32>
    %6 = arith.truncf %5 : vector<2048x128xf32> to vector<2048x128xbf16>
    %c0_5 = arith.constant 0 : index
    %c0_6 = arith.constant 0 : index
    %c0_7 = arith.constant 0 : index
    %7 = vector.load %arg4[%c0_5, %c0_6, %c0_7] : memref<1x2048x128xbf16, #tpu.memory_space<vmem>>, vector<1x2048x128xbf16>
    %8 = vector.shape_cast %7 : vector<1x2048x128xbf16> to vector<2048x128xbf16>
    %9 = vector.shape_cast %6 : vector<2048x128xbf16> to vector<1x2048x128xbf16>
    tpu.vector_store %arg4[%c0_5, %c0_6, %c0_7], %9 {strides = array<i32>} : memref<1x2048x128xbf16, #tpu.memory_space<vmem>>, vector<1x2048x128xbf16>,
    return
  }
  func.func @transform_0(%arg0: i32, %arg1: i32) -> (i32, i32, i32) {
    %c0_i32 = arith.constant 0 : i32
    %c0_i32_0 = arith.constant 0 : i32
    return %arg0, %arg1, %c0_i32 : i32, i32, i32
  }
  func.func @transform_1(%arg0: i32, %arg1: i32) -> (i32, i32, i32) {
    %c0_i32 = arith.constant 0 : i32
    %c0_i32_0 = arith.constant 0 : i32
    %c0_i32_1 = arith.constant 0 : i32
    return %arg0, %c0_i32, %c0_i32_0 : i32, i32, i32
  }
  func.func @transform_2(%arg0: i32, %arg1: i32) -> (i32, i32, i32) {
    %c0_i32 = arith.constant 0 : i32
    %c0_i32_0 = arith.constant 0 : i32
    return %arg0, %arg1, %c0_i32 : i32, i32, i32
  }
}

</mosaic_0001>

<llo_original>
// kernel: squeeze.11
$region0: #{squeeze.11}
  %s0 = inlined_call_operand.vmem [shape: bf16[1,2,2048], index: 0, kind: input, shape index: {}]
  %s1 = inlined_call_operand.vmem [shape: bf16[2,4,4,128], index: 1, kind: output, shape index: {}]
  $region1: #{squeeze.11} parent=0
    #allocation0 [shape = 'u8[32768]{0}', space=vmem, size = 0x8000, scoped, tag = 'scoped mem for output reshape']
    #allocation1 [shape = 'u8[65536]{0}', space=vmem, size = 0x10000, scoped, tag = 'scoped mem for input reshape']
    %s3 = smul.u32 1, 2
    %s4 = sshllo.u32 0, %s3
    %s5 = smul.addr 1, 15
    %s6 = scalar_lea.vmem %s0, %s5
    %s7 = sshrl.u32 %s4, 1
    %s8 = sor.u32 %s4, %s7
    %s9 = sand.u32 %s8, 85
    %s10 = sshrl.u32 %s9, 1
    %s11 = sor.u32 %s9, %s10
    %s12 = sand.u32 51, %s11
    %s13 = sshrl.u32 %s12, 2
    %s14 = sor.u32 %s12, %s13
    %s15 = sand.u32 15, %s14
    %v16 = vld [vmem:[%s6] sm:%s15]
    %v17 = vunpack.c.l.bf16 %v16
    %v18 = vunpack.c.h.bf16 %v16
    %s19 = scalar_lea.vmem [#allocation1], 120
    %20 = vst [vmem:[%s19] sm:%s4] %v17
    %s21 = smul.addr 1, 14
    %s22 = scalar_lea.vmem %s0, %s21
    %s23 = sshrl.u32 %s4, 1
    %s24 = sor.u32 %s4, %s23
    %s25 = sand.u32 %s24, 85
    %s26 = sshrl.u32 %s25, 1
    %s27 = sor.u32 %s25, %s26
    %s28 = sand.u32 51, %s27
    %s29 = sshrl.u32 %s28, 2
    %s30 = sor.u32 %s28, %s29
    %s31 = sand.u32 15, %s30
    %v32 = vld [vmem:[%s22] sm:%s31]
    %v33 = vunpack.c.l.bf16 %v32
    %v34 = vunpack.c.h.bf16 %v32
    %s35 = scalar_lea.vmem [#allocation1], 112
    %36 = vst [vmem:[%s35] sm:%s4] %v33
    %s37 = smul.addr 1, 13
    %s38 = scalar_lea.vmem %s0, %s37
    %s39 = sshrl.u32 %s4, 1
    %s40 = sor.u32 %s4, %s39
    %s41 = sand.u32 %s40, 85
    %s42 = sshrl.u32 %s41, 1
    %s43 = sor.u32 %s41, %s42
    %s44 = sand.u32 51, %s43
    %s45 = sshrl.u32 %s44, 2
    %s46 = sor.u32 %s44, %s45
    %s47 = sand.u32 15, %s46
    %v48 = vld [vmem:[%s38] sm:%s47]
    %v49 = vunpack.c.l.bf16 %v48
    %v50 = vunpack.c.h.bf16 %v48
    %s51 = scalar_lea.vmem [#allocation1], 104
    %52 = vst [vmem:[%s51] sm:%s4] %v49
    %s53 = smul.addr 1, 12
    %s54 = scalar_lea.vmem %s0, %s53
    %s55 = sshrl.u32 %s4, 1
    %s56 = sor.u32 %s4, %s55
    %s57 = sand.u32 %s56, 85
    %s58 = sshrl.u32 %s57, 1
    %s59 = sor.u32 %s57, %s58
    %s60 = sand.u32 51, %s59
    %s61 = sshrl.u32 %s60, 2
    %s62 = sor.u32 %s60, %s61
    %s63 = sand.u32 15, %s62
    %v64 = vld [vmem:[%s54] sm:%s63]
    %v65 = vunpack.c.l.bf16 %v64
    %v66 = vunpack.c.h.bf16 %v64
    %s67 = scalar_lea.vmem [#allocation1], 96
    %68 = vst [vmem:[%s67] sm:%s4] %v65
    %s69 = smul.addr 1, 11
    %s70 = scalar_lea.vmem %s0, %s69
    %s71 = sshrl.u32 %s4, 1
    %s72 = sor.u32 %s4, %s71
    %s73 = sand.u32 %s72, 85
    %s74 = sshrl.u32 %s73, 1
    %s75 = sor.u32 %s73, %s74
    %s76 = sand.u32 51, %s75
    %s77 = sshrl.u32 %s76, 2
    %s78 = sor.u32 %s76, %s77
    %s79 = sand.u32 15, %s78
    %v80 = vld [vmem:[%s70] sm:%s79]
    %v81 = vunpack.c.l.bf16 %v80
    %v82 = vunpack.c.h.bf16 %v80
    %s83 = scalar_lea.vmem [#allocation1], 88
    %84 = vst [vmem:[%s83] sm:%s4] %v81
    %s85 = smul.addr 1, 10
    %s86 = scalar_lea.vmem %s0, %s85
    %s87 = sshrl.u32 %s4, 1
    %s88 = sor.u32 %s4, %s87
    %s89 = sand.u32 %s88, 85
    %s90 = sshrl.u32 %s89, 1
    %s91 = sor.u32 %s89, %s90
    %s92 = sand.u32 51, %s91
    %s93 = sshrl.u32 %s92, 2
    %s94 = sor.u32 %s92, %s93
    %s95 = sand.u32 15, %s94
    %v96 = vld [vmem:[%s86] sm:%s95]
    %v97 = vunpack.c.l.bf16 %v96
    %v98 = vunpack.c.h.bf16 %v96
    %s99 = scalar_lea.vmem [#allocation1], 80
    %100 = vst [vmem:[%s99] sm:%s4] %v97
    %s101 = smul.addr 1, 9
    %s102 = scalar_lea.vmem %s0, %s101
    %s103 = sshrl.u32 %s4, 1
    %s104 = sor.u32 %s4, %s103
    %s105 = sand.u32 %s104, 85
    %s106 = sshrl.u32 %s105, 1
    %s107 = sor.u32 %s105, %s106
    %s108 = sand.u32 51, %s107
    %s109 = sshrl.u32 %s108, 2
    %s110 = sor.u32 %s108, %s109
    %s111 = sand.u32 15, %s110
    %v112 = vld [vmem:[%s102] sm:%s111]
    %v113 = vunpack.c.l.bf16 %v112
    %v114 = vunpack.c.h.bf16 %v112
    %s115 = scalar_lea.vmem [#allocation1], 72
    %116 = vst [vmem:[%s115] sm:%s4] %v113
    %s117 = smul.addr 1, 8
    %s118 = scalar_lea.vmem %s0, %s117
    %s119 = sshrl.u32 %s4, 1
    %s120 = sor.u32 %s4, %s119
    %s121 = sand.u32 %s120, 85
    %s122 = sshrl.u32 %s121, 1
    %s123 = sor.u32 %s121, %s122
    %s124 = sand.u32 51, %s123
    %s125 = sshrl.u32 %s124, 2
    %s126 = sor.u32 %s124, %s125
    %s127 = sand.u32 15, %s126
    %v128 = vld [vmem:[%s118] sm:%s127]
    %v129 = vunpack.c.l.bf16 %v128
    %v130 = vunpack.c.h.bf16 %v128
    %s131 = scalar_lea.vmem [#allocation1], 64
    %132 = vst [vmem:[%s131] sm:%s4] %v129
    %s133 = smul.addr 1, 7
    %s134 = scalar_lea.vmem %s0, %s133
    %s135 = sshrl.u32 %s4, 1
    %s136 = sor.u32 %s4, %s135
    %s137 = sand.u32 %s136, 85
    %s138 = sshrl.u32 %s137, 1
    %s139 = sor.u32 %s137, %s138
    %s140 = sand.u32 51, %s139
    %s141 = sshrl.u32 %s140, 2
    %s142 = sor.u32 %s140, %s141
    %s143 = sand.u32 15, %s142
    %v144 = vld [vmem:[%s134] sm:%s143]
    %v145 = vunpack.c.l.bf16 %v144
    %v146 = vunpack.c.h.bf16 %v144
    %s147 = scalar_lea.vmem [#allocation1], 56
    %148 = vst [vmem:[%s147] sm:%s4] %v145
    %s149 = smul.addr 1, 6
    %s150 = scalar_lea.vmem %s0, %s149
    %s151 = sshrl.u32 %s4, 1
    %s152 = sor.u32 %s4, %s151
    %s153 = sand.u32 %s152, 85
    %s154 = sshrl.u32 %s153, 1
    %s155 = sor.u32 %s153, %s154
    %s156 = sand.u32 51, %s155
    %s157 = sshrl.u32 %s156, 2
    %s158 = sor.u32 %s156, %s157
    %s159 = sand.u32 15, %s158
    %v160 = vld [vmem:[%s150] sm:%s159]
    %v161 = vunpack.c.l.bf16 %v160
    %v162 = vunpack.c.h.bf16 %v160
    %s163 = scalar_lea.vmem [#allocation1], 48
    %164 = vst [vmem:[%s163] sm:%s4] %v161
    %s165 = smul.addr 1, 5
    %s166 = scalar_lea.vmem %s0, %s165
    %s167 = sshrl.u32 %s4, 1
    %s168 = sor.u32 %s4, %s167
    %s169 = sand.u32 %s168, 85
    %s170 = sshrl.u32 %s169, 1
    %s171 = sor.u32 %s169, %s170
    %s172 = sand.u32 51, %s171
    %s173 = sshrl.u32 %s172, 2
    %s174 = sor.u32 %s172, %s173
    %s175 = sand.u32 15, %s174
    %v176 = vld [vmem:[%s166] sm:%s175]
    %v177 = vunpack.c.l.bf16 %v176
    %v178 = vunpack.c.h.bf16 %v176
    %s179 = scalar_lea.vmem [#allocation1], 40
    %180 = vst [vmem:[%s179] sm:%s4] %v177
    %s181 = smul.addr 1, 4
    %s182 = scalar_lea.vmem %s0, %s181
    %s183 = sshrl.u32 %s4, 1
    %s184 = sor.u32 %s4, %s183
    %s185 = sand.u32 %s184, 85
    %s186 = sshrl.u32 %s185, 1
    %s187 = sor.u32 %s185, %s186
    %s188 = sand.u32 51, %s187
    %s189 = sshrl.u32 %s188, 2
    %s190 = sor.u32 %s188, %s189
    %s191 = sand.u32 15, %s190
    %v192 = vld [vmem:[%s182] sm:%s191]
    %v193 = vunpack.c.l.bf16 %v192
    %v194 = vunpack.c.h.bf16 %v192
    %s195 = scalar_lea.vmem [#allocation1], 32
    %196 = vst [vmem:[%s195] sm:%s4] %v193
    %s197 = smul.addr 1, 3
    %s198 = scalar_lea.vmem %s0, %s197
    %s199 = sshrl.u32 %s4, 1
    %s200 = sor.u32 %s4, %s199
    %s201 = sand.u32 %s200, 85
    %s202 = sshrl.u32 %s201, 1
    %s203 = sor.u32 %s201, %s202
    %s204 = sand.u32 51, %s203
    %s205 = sshrl.u32 %s204, 2
    %s206 = sor.u32 %s204, %s205
    %s207 = sand.u32 15, %s206
    %v208 = vld [vmem:[%s198] sm:%s207]
    %v209 = vunpack.c.l.bf16 %v208
    %v210 = vunpack.c.h.bf16 %v208
    %s211 = scalar_lea.vmem [#allocation1], 24
    %212 = vst [vmem:[%s211] sm:%s4] %v209
    %s213 = smul.addr 1, 2
    %s214 = scalar_lea.vmem %s0, %s213
    %s215 = sshrl.u32 %s4, 1
    %s216 = sor.u32 %s4, %s215
    %s217 = sand.u32 %s216, 85
    %s218 = sshrl.u32 %s217, 1
    %s219 = sor.u32 %s217, %s218
    %s220 = sand.u32 51, %s219
    %s221 = sshrl.u32 %s220, 2
    %s222 = sor.u32 %s220, %s221
    %s223 = sand.u32 15, %s222
    %v224 = vld [vmem:[%s214] sm:%s223]
    %v225 = vunpack.c.l.bf16 %v224
    %v226 = vunpack.c.h.bf16 %v224
    %s227 = scalar_lea.vmem [#allocation1], 16
    %228 = vst [vmem:[%s227] sm:%s4] %v225
    %s229 = scalar_lea.vmem %s0, 1
    %s230 = sshrl.u32 %s4, 1
    %s231 = sor.u32 %s4, %s230
    %s232 = sand.u32 %s231, 85
    %s233 = sshrl.u32 %s232, 1
    %s234 = sor.u32 %s232, %s233
    %s235 = sand.u32 51, %s234
    %s236 = sshrl.u32 %s235, 2
    %s237 = sor.u32 %s235, %s236
    %s238 = sand.u32 15, %s237
    %v239 = vld [vmem:[%s229] sm:%s238]
    %v240 = vunpack.c.l.bf16 %v239
    %v241 = vunpack.c.h.bf16 %v239
    %s242 = scalar_lea.vmem [#allocation1], 8
    %243 = vst [vmem:[%s242] sm:%s4] %v240
    %s244 = sshrl.u32 %s4, 1
    %s245 = sor.u32 %s4, %s244
    %s246 = sand.u32 %s245, 85
    %s247 = sshrl.u32 %s246, 1
    %s248 = sor.u32 %s246, %s247
    %s249 = sand.u32 51, %s248
    %s250 = sshrl.u32 %s249, 2
    %s251 = sor.u32 %s249, %s250
    %s252 = sand.u32 15, %s251
    %v253 = vld [vmem:[%s0] sm:%s252]
    %v254 = vunpack.c.l.bf16 %v253
    %v255 = vunpack.c.h.bf16 %v253
    %256 = vst [vmem:[#allocation1] sm:%s4] %v254
    %v257 = vld [vmem:[#allocation1] sm:$0x3]
    %258 = vst [vmem:[#allocation0] sm:$0x1] %v257
    %s259 = scalar_lea.vmem [#allocation0], 31
    %260 = vst [vmem:[%s259] sm:$0x2] %v257
    %s261 = scalar_lea.vmem [#allocation1], 8
    %v262 = vld [vmem:[%s261] sm:$0x3]
    %s263 = scalar_lea.vmem [#allocation0], 1
    %264 = vst [vmem:[%s263] sm:$0x1] %v262
    %s265 = scalar_lea.vmem [#allocation0], 32
    %266 = vst [vmem:[%s265] sm:$0x2] %v262
    %s267 = scalar_lea.vmem [#allocation1], 16
    %v268 = vld [vmem:[%s267] sm:$0x3]
    %s269 = scalar_lea.vmem [#allocation0], 2
    %270 = vst [vmem:[%s269] sm:$0x1] %v268
    %s271 = scalar_lea.vmem [#allocation0], 33
    %272 = vst [vmem:[%s271] sm:$0x2] %v268
    %s273 = scalar_lea.vmem [#allocation1], 24
    %v274 = vld [vmem:[%s273] sm:$0x3]
    %s275 = scalar_lea.vmem [#allocation0], 3
    %276 = vst [vmem:[%s275] sm:$0x1] %v274
    %s277 = scalar_lea.vmem [#allocation0], 34
    %278 = vst [vmem:[%s277] sm:$0x2] %v274
    %s279 = scalar_lea.vmem [#allocation1], 32
    %v280 = vld [vmem:[%s279] sm:$0x3]
    %s281 = scalar_lea.vmem [#allocation0], 8
    %282 = vst [vmem:[%s281] sm:$0x1] %v280
    %s283 = scalar_lea.vmem [#allocation0], 39
    %284 = vst [vmem:[%s283] sm:$0x2] %v280
    %s285 = scalar_lea.vmem [#allocation1], 40
    %v286 = vld [vmem:[%s285] sm:$0x3]
    %s287 = scalar_lea.vmem [#allocation0], 9
    %288 = vst [vmem:[%s287] sm:$0x1] %v286
    %s289 = scalar_lea.vmem [#allocation0], 40
    %290 = vst [vmem:[%s289] sm:$0x2] %v286
    %s291 = scalar_lea.vmem [#allocation1], 48
    %v292 = vld [vmem:[%s291] sm:$0x3]
    %s293 = scalar_lea.vmem [#allocation0], 10
    %294 = vst [vmem:[%s293] sm:$0x1] %v292
    %s295 = scalar_lea.vmem [#allocation0], 41
    %296 = vst [vmem:[%s295] sm:$0x2] %v292
    %s297 = scalar_lea.vmem [#allocation1], 56
    %v298 = vld [vmem:[%s297] sm:$0x3]
    %s299 = scalar_lea.vmem [#allocation0], 11
    %300 = vst [vmem:[%s299] sm:$0x1] %v298
    %s301 = scalar_lea.vmem [#allocation0], 42
    %302 = vst [vmem:[%s301] sm:$0x2] %v298
    %s303 = scalar_lea.vmem [#allocation1], 64
    %v304 = vld [vmem:[%s303] sm:$0x3]
    %s305 = scalar_lea.vmem [#allocation0], 16
    %306 = vst [vmem:[%s305] sm:$0x1] %v304
    %s307 = scalar_lea.vmem [#allocation0], 47
    %308 = vst [vmem:[%s307] sm:$0x2] %v304
    %s309 = scalar_lea.vmem [#allocation1], 72
    %v310 = vld [vmem:[%s309] sm:$0x3]
    %s311 = scalar_lea.vmem [#allocation0], 17
    %312 = vst [vmem:[%s311] sm:$0x1] %v310
    %s313 = scalar_lea.vmem [#allocation0], 48
    %314 = vst [vmem:[%s313] sm:$0x2] %v310
    %s315 = scalar_lea.vmem [#allocation1], 80
    %v316 = vld [vmem:[%s315] sm:$0x3]
    %s317 = scalar_lea.vmem [#allocation0], 18
    %318 = vst [vmem:[%s317] sm:$0x1] %v316
    %s319 = scalar_lea.vmem [#allocation0], 49
    %320 = vst [vmem:[%s319] sm:$0x2] %v316
    %s321 = scalar_lea.vmem [#allocation1], 88
    %v322 = vld [vmem:[%s321] sm:$0x3]
    %s323 = scalar_lea.vmem [#allocation0], 19
    %324 = vst [vmem:[%s323] sm:$0x1] %v322
    %s325 = scalar_lea.vmem [#allocation0], 50
    %326 = vst [vmem:[%s325] sm:$0x2] %v322
    %s327 = scalar_lea.vmem [#allocation1], 96
    %v328 = vld [vmem:[%s327] sm:$0x3]
    %s329 = scalar_lea.vmem [#allocation0], 24
    %330 = vst [vmem:[%s329] sm:$0x1] %v328
    %s331 = scalar_lea.vmem [#allocation0], 55
    %332 = vst [vmem:[%s331] sm:$0x2] %v328
    %s333 = scalar_lea.vmem [#allocation1], 104
    %v334 = vld [vmem:[%s333] sm:$0x3]
    %s335 = scalar_lea.vmem [#allocation0], 25
    %336 = vst [vmem:[%s335] sm:$0x1] %v334
    %s337 = scalar_lea.vmem [#allocation0], 56
    %338 = vst [vmem:[%s337] sm:$0x2] %v334
    %s339 = scalar_lea.vmem [#allocation1], 112
    %v340 = vld [vmem:[%s339] sm:$0x3]
    %s341 = scalar_lea.vmem [#allocation0], 26
    %342 = vst [vmem:[%s341] sm:$0x1] %v340
    %s343 = scalar_lea.vmem [#allocation0], 57
    %344 = vst [vmem:[%s343] sm:$0x2] %v340
    %s345 = scalar_lea.vmem [#allocation1], 120
    %v346 = vld [vmem:[%s345] sm:$0x3]
    %s347 = scalar_lea.vmem [#allocation0], 27
    %348 = vst [vmem:[%s347] sm:$0x1] %v346
    %s349 = scalar_lea.vmem [#allocation0], 58
    %350 = vst [vmem:[%s349] sm:$0x2] %v346
    %s352 = smul.u32 2, 2
    %s353 = sshllo.u32 0, %s352
    %s354 = sshrl.u32 %s352, 1
    %v355 = vld [vmem:[#allocation0] sm:%s353]
    %v356 = vpack.c.bf16 0.0, %v355
    %s357 = sshllo.u32 0, %s354
    %358 = vst [vmem:[%s1] sm:%s357] %v356
    %s359 = scalar_lea.vmem [#allocation0], 8
    %v360 = vld [vmem:[%s359] sm:%s353]
    %v361 = vpack.c.bf16 0.0, %v360
    %s362 = sshllo.u32 0, %s354
    %s363 = scalar_lea.vmem %s1, 2
    %364 = vst [vmem:[%s363] sm:%s362] %v361
    %s365 = scalar_lea.vmem [#allocation0], 16
    %v366 = vld [vmem:[%s365] sm:%s353]
    %v367 = vpack.c.bf16 0.0, %v366
    %s368 = sshllo.u32 0, %s354
    %s369 = smul.addr 2, 2
    %s370 = scalar_lea.vmem %s1, %s369
    %371 = vst [vmem:[%s370] sm:%s368] %v367
    %s372 = scalar_lea.vmem [#allocation0], 24
    %v373 = vld [vmem:[%s372] sm:%s353]
    %v374 = vpack.c.bf16 0.0, %v373
    %s375 = sshllo.u32 0, %s354
    %s376 = smul.addr 2, 3
    %s377 = scalar_lea.vmem %s1, %s376
    %378 = vst [vmem:[%s377] sm:%s375] %v374
    %s379 = scalar_lea.vmem [#allocation0], 32
    %v380 = vld [vmem:[%s379] sm:%s353]
    %v381 = vpack.c.bf16 0.0, %v380
    %s382 = sshllo.u32 0, %s354
    %s383 = smul.addr 2, 4
    %s384 = scalar_lea.vmem %s1, %s383
    %385 = vst [vmem:[%s384] sm:%s382] %v381
    %s386 = scalar_lea.vmem [#allocation0], 40
    %v387 = vld [vmem:[%s386] sm:%s353]
    %v388 = vpack.c.bf16 0.0, %v387
    %s389 = sshllo.u32 0, %s354
    %s390 = smul.addr 2, 5
    %s391 = scalar_lea.vmem %s1, %s390
    %392 = vst [vmem:[%s391] sm:%s389] %v388
    %s393 = scalar_lea.vmem [#allocation0], 48
    %v394 = vld [vmem:[%s393] sm:%s353]
    %v395 = vpack.c.bf16 0.0, %v394
    %s396 = sshllo.u32 0, %s354
    %s397 = smul.addr 2, 6
    %s398 = scalar_lea.vmem %s1, %s397
    %399 = vst [vmem:[%s398] sm:%s396] %v395
    %s400 = scalar_lea.vmem [#allocation0], 56
    %v401 = vld [vmem:[%s400] sm:%s353]
    %v402 = vpack.c.bf16 0.0, %v401
    %s403 = sshllo.u32 0, %s354
    %s404 = smul.addr 2, 7
    %s405 = scalar_lea.vmem %s1, %s404
    %406 = vst [vmem:[%s405] sm:%s403] %v402

// kernel: _generator_forward_impl.10
$region0: #{_generator_forward_impl.10}
  #allocation0 [shape = 'u32[]', space=smem, size = 0x4, offset = 0x4, fixed_abs, tag = 'smem constant byte address 0x4 - core index']
  #allocation1 [shape = 'u32[144,128]{1,0:T(1,128)}', space=vmem, size = 0x12000, scoped, tag = 'internal scratch']
  %s0 = inlined_call_operand.vmem [shape: bf16[1,8,2048], index: 0, kind: input, shape index: {}]
  %s1 = inlined_call_operand.vmem [shape: f32[1,2048], index: 1, kind: input, shape index: {}]
  %s2 = inlined_call_operand.vmem [shape: f32[1,2048], index: 2, kind: input, shape index: {}]
  %s3 = inlined_call_operand.vmem [shape: bf16[1,8,2048], index: 3, kind: output, shape index: {}]
  %s4 = sld [smem:[#allocation0]]
  $region22: #{_generator_forward_impl.10} parent=0
    _
  %s6 = ssub.s32 1, %s4
  %s7 = scalar_select 0, %s6, %s4
  // Predicated region
  $region2: #{_generator_forward_impl.10} parent=0 // pred_check
    _
  $region3: #{_generator_forward_impl.10} parent=0 // pred_check_branch
    %9 = sbr.rel (0) target = $region5
  $region4: #{_generator_forward_impl.10} parent=0 // pred_region
    _
  $region5: #{_generator_forward_impl.10} parent=0 // pred_fallthru
    _
  // Predicated region
  $region6: #{_generator_forward_impl.10} parent=0 // pred_check
    _
  $region7: #{_generator_forward_impl.10} parent=0 // pred_check_branch
    %11 = sbr.rel (0) target = $region9
  $region8: #{_generator_forward_impl.10} parent=0 // pred_region
    _
  $region9: #{_generator_forward_impl.10} parent=0 // pred_fallthru
    _
  // Predicated region
  $region10: #{_generator_forward_impl.10} parent=0 // pred_check
    _
  $region11: #{_generator_forward_impl.10} parent=0 // pred_check_branch
    %13 = sbr.rel (0) target = $region13
  $region12: #{_generator_forward_impl.10} parent=0 // pred_region
    _
  $region13: #{_generator_forward_impl.10} parent=0 // pred_fallthru
    _
  %v14 = vld [vmem:[%s0] sm:$0xff]
  %v15 = vld [vmem:[%s0 + $0x8] sm:$0xff]
  %v16 = vld [vmem:[%s0 + $0x10] sm:$0xff]
  %v17 = vld [vmem:[%s0 + $0x18] sm:$0xff]
  %v18 = vld [vmem:[%s0 + $0x20] sm:$0xff]
  %v19 = vld [vmem:[%s0 + $0x28] sm:$0xff]
  %v20 = vld [vmem:[%s0 + $0x30] sm:$0xff]
  %v21 = vld [vmem:[%s0 + $0x38] sm:$0xff]
  %v22 = vunpack.c.l.bf16 %v14
  %v23 = vunpack.c.h.bf16 %v14
  %v24 = vunpack.c.l.bf16 %v15
  %v25 = vunpack.c.h.bf16 %v15
  %v26 = vunpack.c.l.bf16 %v16
  %v27 = vunpack.c.h.bf16 %v16
  %v28 = vunpack.c.l.bf16 %v17
  %v29 = vunpack.c.h.bf16 %v17
  %v30 = vunpack.c.l.bf16 %v18
  %v31 = vunpack.c.h.bf16 %v18
  %v32 = vunpack.c.l.bf16 %v19
  %v33 = vunpack.c.h.bf16 %v19
  %v34 = vunpack.c.l.bf16 %v20
  %v35 = vunpack.c.h.bf16 %v20
  %v36 = vunpack.c.l.bf16 %v21
  %v37 = vunpack.c.h.bf16 %v21
  %v38 = vld [vmem:[%s1] sm:$0xff]
  %v39 = vld [vmem:[%s1 + $0x8] sm:$0xff]
  %v42 = vlaneseq
  %v43 = vshrl.u32 %v42, 7
  %v44 = vsub.s32 0, %v43
  %v45 = vrot.slane %v38, %v44
  %v46 = vlaneseq
  %v47 = vshrl.u32 %v46, 7
  %v48 = vsub.s32 1, %v47
  %v49 = vrot.slane %v38, %v48
  %v50 = vlaneseq
  %v51 = vshrl.u32 %v50, 7
  %v52 = vsub.s32 2, %v51
  %v53 = vrot.slane %v38, %v52
  %v54 = vlaneseq
  %v55 = vshrl.u32 %v54, 7
  %v56 = vsub.s32 3, %v55
  %v57 = vrot.slane %v38, %v56
  %v58 = vlaneseq
  %v59 = vshrl.u32 %v58, 7
  %v60 = vsub.s32 4, %v59
  %v61 = vrot.slane %v38, %v60
  %v62 = vlaneseq
  %v63 = vshrl.u32 %v62, 7
  %v64 = vsub.s32 5, %v63
  %v65 = vrot.slane %v38, %v64
  %v66 = vlaneseq
  %v67 = vshrl.u32 %v66, 7
  %v68 = vsub.s32 6, %v67
  %v69 = vrot.slane %v38, %v68
  %v70 = vlaneseq
  %v71 = vshrl.u32 %v70, 7
  %v72 = vsub.s32 7, %v71
  %v73 = vrot.slane %v38, %v72
  %v74 = vlaneseq
  %v75 = vshrl.u32 %v74, 7
  %v76 = vsub.s32 0, %v75
  %v77 = vrot.slane %v39, %v76
  %v78 = vlaneseq
  %v79 = vshrl.u32 %v78, 7
  %v80 = vsub.s32 1, %v79
  %v81 = vrot.slane %v39, %v80
  %v82 = vlaneseq
  %v83 = vshrl.u32 %v82, 7
  %v84 = vsub.s32 2, %v83
  %v85 = vrot.slane %v39, %v84
  %v86 = vlaneseq
  %v87 = vshrl.u32 %v86, 7
  %v88 = vsub.s32 3, %v87
  %v89 = vrot.slane %v39, %v88
  %v90 = vlaneseq
  %v91 = vshrl.u32 %v90, 7
  %v92 = vsub.s32 4, %v91
  %v93 = vrot.slane %v39, %v92
  %v94 = vlaneseq
  %v95 = vshrl.u32 %v94, 7
  %v96 = vsub.s32 5, %v95
  %v97 = vrot.slane %v39, %v96
  %v98 = vlaneseq
  %v99 = vshrl.u32 %v98, 7
  %v100 = vsub.s32 6, %v99
  %v101 = vrot.slane %v39, %v100
  %v102 = vlaneseq
  %v103 = vshrl.u32 %v102, 7
  %v104 = vsub.s32 7, %v103
  %v105 = vrot.slane %v39, %v104
  %v122 = vmul.f32 %v22, %v45
  %v123 = vmul.f32 %v23, %v49
  %v124 = vmul.f32 %v24, %v53
  %v125 = vmul.f32 %v25, %v57
  %v126 = vmul.f32 %v26, %v61
  %v127 = vmul.f32 %v27, %v65
  %v128 = vmul.f32 %v28, %v69
  %v129 = vmul.f32 %v29, %v73
  %v130 = vmul.f32 %v30, %v77
  %v131 = vmul.f32 %v31, %v81
  %v132 = vmul.f32 %v32, %v85
  %v133 = vmul.f32 %v33, %v89
  %v134 = vmul.f32 %v34, %v93
  %v135 = vmul.f32 %v35, %v97
  %v136 = vmul.f32 %v36, %v101
  %v137 = vmul.f32 %v37, %v105
  %v138 = vld [vmem:[%s2] sm:$0xff]
  %v139 = vld [vmem:[%s2 + $0x8] sm:$0xff]
  %v142 = vlaneseq
  %v143 = vshrl.u32 %v142, 7
  %v144 = vsub.s32 0, %v143
  %v145 = vrot.slane %v138, %v144
  %v146 = vlaneseq
  %v147 = vshrl.u32 %v146, 7
  %v148 = vsub.s32 1, %v147
  %v149 = vrot.slane %v138, %v148
  %v150 = vlaneseq
  %v151 = vshrl.u32 %v150, 7
  %v152 = vsub.s32 2, %v151
  %v153 = vrot.slane %v138, %v152
  %v154 = vlaneseq
  %v155 = vshrl.u32 %v154, 7
  %v156 = vsub.s32 3, %v155
  %v157 = vrot.slane %v138, %v156
  %v158 = vlaneseq
  %v159 = vshrl.u32 %v158, 7
  %v160 = vsub.s32 4, %v159
  %v161 = vrot.slane %v138, %v160
  %v162 = vlaneseq
  %v163 = vshrl.u32 %v162, 7
  %v164 = vsub.s32 5, %v163
  %v165 = vrot.slane %v138, %v164
  %v166 = vlaneseq
  %v167 = vshrl.u32 %v166, 7
  %v168 = vsub.s32 6, %v167
  %v169 = vrot.slane %v138, %v168
  %v170 = vlaneseq
  %v171 = vshrl.u32 %v170, 7
  %v172 = vsub.s32 7, %v171
  %v173 = vrot.slane %v138, %v172
  %v174 = vlaneseq
  %v175 = vshrl.u32 %v174, 7
  %v176 = vsub.s32 0, %v175
  %v177 = vrot.slane %v139, %v176
  %v178 = vlaneseq
  %v179 = vshrl.u32 %v178, 7
  %v180 = vsub.s32 1, %v179
  %v181 = vrot.slane %v139, %v180
  %v182 = vlaneseq
  %v183 = vshrl.u32 %v182, 7
  %v184 = vsub.s32 2, %v183
  %v185 = vrot.slane %v139, %v184
  %v186 = vlaneseq
  %v187 = vshrl.u32 %v186, 7
  %v188 = vsub.s32 3, %v187
  %v189 = vrot.slane %v139, %v188
  %v190 = vlaneseq
  %v191 = vshrl.u32 %v190, 7
  %v192 = vsub.s32 4, %v191
  %v193 = vrot.slane %v139, %v192
  %v194 = vlaneseq
  %v195 = vshrl.u32 %v194, 7
  %v196 = vsub.s32 5, %v195
  %v197 = vrot.slane %v139, %v196
  %v198 = vlaneseq
  %v199 = vshrl.u32 %v198, 7
  %v200 = vsub.s32 6, %v199
  %v201 = vrot.slane %v139, %v200
  %v202 = vlaneseq
  %v203 = vshrl.u32 %v202, 7
  %v204 = vsub.s32 7, %v203
  %v205 = vrot.slane %v139, %v204
  %v222 = vadd.f32 %v122, %v145
  %v223 = vadd.f32 %v123, %v149
  %v224 = vadd.f32 %v124, %v153
  %v225 = vadd.f32 %v125, %v157
  %v226 = vadd.f32 %v126, %v161
  %v227 = vadd.f32 %v127, %v165
  %v228 = vadd.f32 %v128, %v169
  %v229 = vadd.f32 %v129, %v173
  %v230 = vadd.f32 %v130, %v177
  %v231 = vadd.f32 %v131, %v181
  %v232 = vadd.f32 %v132, %v185
  %v233 = vadd.f32 %v133, %v189
  %v234 = vadd.f32 %v134, %v193
  %v235 = vadd.f32 %v135, %v197
  %v236 = vadd.f32 %v136, %v201
  %v237 = vadd.f32 %v137, %v205
  %v238 = vmax.f32 %v222, 0.0
  %v239 = vmax.f32 %v223, 0.0
  %v240 = vmax.f32 %v224, 0.0
  %v241 = vmax.f32 %v225, 0.0
  %v242 = vmax.f32 %v226, 0.0
  %v243 = vmax.f32 %v227, 0.0
  %v244 = vmax.f32 %v228, 0.0
  %v245 = vmax.f32 %v229, 0.0
  %v246 = vmax.f32 %v230, 0.0
  %v247 = vmax.f32 %v231, 0.0
  %v248 = vmax.f32 %v232, 0.0
  %v249 = vmax.f32 %v233, 0.0
  %v250 = vmax.f32 %v234, 0.0
  %v251 = vmax.f32 %v235, 0.0
  %v252 = vmax.f32 %v236, 0.0
  %v253 = vmax.f32 %v237, 0.0
  %v254 = vpack.c.bf16 %v238, %v238
  %v255 = vpack.c.bf16 %v239, %v239
  %v256 = vpack.c.bf16 %v240, %v240
  %v257 = vpack.c.bf16 %v241, %v241
  %v258 = vpack.c.bf16 %v242, %v242
  %v259 = vpack.c.bf16 %v243, %v243
  %v260 = vpack.c.bf16 %v244, %v244
  %v261 = vpack.c.bf16 %v245, %v245
  %v262 = vpack.c.bf16 %v246, %v246
  %v263 = vpack.c.bf16 %v247, %v247
  %v264 = vpack.c.bf16 %v248, %v248
  %v265 = vpack.c.bf16 %v249, %v249
  %v266 = vpack.c.bf16 %v250, %v250
  %v267 = vpack.c.bf16 %v251, %v251
  %v268 = vpack.c.bf16 %v252, %v252
  %v269 = vpack.c.bf16 %v253, %v253
  %v286 = vunpack.c.l.b16 %v254
  %v287 = vunpack.c.l.b16 %v255
  %v288 = vunpack.c.l.b16 %v256
  %v289 = vunpack.c.l.b16 %v257
  %v290 = vunpack.c.l.b16 %v258
  %v291 = vunpack.c.l.b16 %v259
  %v292 = vunpack.c.l.b16 %v260
  %v293 = vunpack.c.l.b16 %v261
  %v294 = vunpack.c.l.b16 %v262
  %v295 = vunpack.c.l.b16 %v263
  %v296 = vunpack.c.l.b16 %v264
  %v297 = vunpack.c.l.b16 %v265
  %v298 = vunpack.c.l.b16 %v266
  %v299 = vunpack.c.l.b16 %v267
  %v300 = vunpack.c.l.b16 %v268
  %v301 = vunpack.c.l.b16 %v269
  %v302 = vpack.c.b16 %v287, %v286
  %v303 = vpack.c.b16 %v289, %v288
  %v304 = vpack.c.b16 %v291, %v290
  %v305 = vpack.c.b16 %v293, %v292
  %v306 = vpack.c.b16 %v295, %v294
  %v307 = vpack.c.b16 %v297, %v296
  %v308 = vpack.c.b16 %v299, %v298
  %v309 = vpack.c.b16 %v301, %v300
  %318 = vst [vmem:[%s3] sm:$0xff] %v302
  %319 = vst [vmem:[%s3 + $0x8] sm:$0xff] %v303
  %320 = vst [vmem:[%s3 + $0x10] sm:$0xff] %v304
  %321 = vst [vmem:[%s3 + $0x18] sm:$0xff] %v305
  %322 = vst [vmem:[%s3 + $0x20] sm:$0xff] %v306
  %323 = vst [vmem:[%s3 + $0x28] sm:$0xff] %v307
  %324 = vst [vmem:[%s3 + $0x30] sm:$0xff] %v308
  %325 = vst [vmem:[%s3 + $0x38] sm:$0xff] %v309
  // Predicated region
  $region14: #{_generator_forward_impl.10} parent=0 // pred_check
    _
  $region15: #{_generator_forward_impl.10} parent=0 // pred_check_branch
    %327 = sbr.rel (0) target = $region17
  $region16: #{_generator_forward_impl.10} parent=0 // pred_region
    _
  $region17: #{_generator_forward_impl.10} parent=0 // pred_fallthru
    _
  // Predicated region
  $region18: #{_generator_forward_impl.10} parent=0 // pred_check
    _
  $region19: #{_generator_forward_impl.10} parent=0 // pred_check_branch
    %329 = sbr.rel (0) target = $region21
  $region20: #{_generator_forward_impl.10} parent=0 // pred_region
    _
  $region21: #{_generator_forward_impl.10} parent=0 // pred_fallthru
    _

// kernel: _generator_forward_impl.9
$region0: #{_generator_forward_impl.9}
  #allocation0 [shape = 'u32[]', space=smem, size = 0x4, offset = 0x4, fixed_abs, tag = 'smem constant byte address 0x4 - core index']
  #allocation1 [shape = 'u32[144,128]{1,0:T(1,128)}', space=vmem, size = 0x12000, scoped, tag = 'internal scratch']
  %s0 = inlined_call_operand.vmem [shape: bf16[1,8,128], index: 0, kind: input, shape index: {}]
  %s1 = inlined_call_operand.hbm [shape: bf16[1,128,2048], index: 1, kind: input, shape index: {}]
  %s2 = inlined_call_operand.vmem [shape: bf16[1,8,2048], index: 2, kind: output, shape index: {0}]
  %s3 = inlined_call_operand.vmem [shape: f32[1,1,2,2048], index: 3, kind: output, shape index: {1}]
  %4 = xla_tuple %s2, %s3
  %s5 = sld [smem:[#allocation0]]
  $region30: #{_generator_forward_impl.9} parent=0
    _
  %s7 = ssub.s32 1, %s5
  %s8 = scalar_select 0, %s7, %s5
  $region1: #{_generator_forward_impl.9} parent=0
    #allocation2 [shape = 'u8[524288]{0}', space=vmem, size = 0x80000, scoped, tag = 'input window, operand 1, single buffered']
    #allocation3 [shape = 's32[1]{0}', space=sflag, size = 0x4, scoped, tag = 'scoped memory for _generator_forward_impl.9']
    %9 = vsyncpa [#allocation3], 0
    // Predicated region
    $region2: #{_generator_forward_impl.9} parent=1 // pred_check
      _
    $region3: #{_generator_forward_impl.9} parent=1 // pred_check_branch
      %11 = sbr.rel (0) target = $region5
    $region4: #{_generator_forward_impl.9} parent=1 // pred_region
      _
    $region5: #{_generator_forward_impl.9} parent=1 // pred_fallthru
      _
    // Predicated region
    $region6: #{_generator_forward_impl.9} parent=1 // pred_check
      _
    $region7: #{_generator_forward_impl.9} parent=1 // pred_check_branch
      %13 = sbr.rel (0) target = $region9
    $region8: #{_generator_forward_impl.9} parent=1 // pred_region
      %s15 = ssub.s32 16384, 16384
      %16 = vsyncadd [#allocation3], %s15
      %s17 = sshll.u32 [#allocation2], 4
      %s18 = int_to_ptr.vmem [resolvable:$true] %s17
      %23 = dma.hbm_to_vmem [thread:$0]  %s1, 16384, %s18, [#allocation3], 1024, 1024, 64
    $region9: #{_generator_forward_impl.9} parent=1 // pred_fallthru
      _
    // Predicated region
    $region10: #{_generator_forward_impl.9} parent=1 // pred_check
      _
    $region11: #{_generator_forward_impl.9} parent=1 // pred_check_branch
      %25 = sbr.rel (0) target = $region13
    $region12: #{_generator_forward_impl.9} parent=1 // pred_region
      %26 = dma.done [#allocation3], 16384
    $region13: #{_generator_forward_impl.9} parent=1 // pred_fallthru
      _
    %v28 = vld [vmem:[%s0] sm:$0xf]
    %v29 = vld [vmem:[#allocation2] sm:$0xff]
    %v30 = vld [vmem:[#allocation2 + $0x8] sm:$0xff]
    %v31 = vld [vmem:[#allocation2 + $0x10] sm:$0xff]
    %v32 = vld [vmem:[#allocation2 + $0x18] sm:$0xff]
    %v33 = vld [vmem:[#allocation2 + $0x20] sm:$0xff]
    %v34 = vld [vmem:[#allocation2 + $0x28] sm:$0xff]
    %v35 = vld [vmem:[#allocation2 + $0x30] sm:$0xff]
    %v36 = vld [vmem:[#allocation2 + $0x38] sm:$0xff]
    %v37 = vld [vmem:[#allocation2 + $0x40] sm:$0xff]
    %v38 = vld [vmem:[#allocation2 + $0x48] sm:$0xff]
    %v39 = vld [vmem:[#allocation2 + $0x50] sm:$0xff]
    %v40 = vld [vmem:[#allocation2 + $0x58] sm:$0xff]
    %v41 = vld [vmem:[#allocation2 + $0x60] sm:$0xff]
    %v42 = vld [vmem:[#allocation2 + $0x68] sm:$0xff]
    %v43 = vld [vmem:[#allocation2 + $0x70] sm:$0xff]
    %v44 = vld [vmem:[#allocation2 + $0x78] sm:$0xff]
    %v45 = vld [vmem:[#allocation2 + $0x80] sm:$0xff]
    %v46 = vld [vmem:[#allocation2 + $0x88] sm:$0xff]
    %v47 = vld [vmem:[#allocation2 + $0x90] sm:$0xff]
    %v48 = vld [vmem:[#allocation2 + $0x98] sm:$0xff]
    %v49 = vld [vmem:[#allocation2 + $0xa0] sm:$0xff]
    %v50 = vld [vmem:[#allocation2 + $0xa8] sm:$0xff]
    %v51 = vld [vmem:[#allocation2 + $0xb0] sm:$0xff]
    %v52 = vld [vmem:[#allocation2 + $0xb8] sm:$0xff]
    %v53 = vld [vmem:[#allocation2 + $0xc0] sm:$0xff]
    %v54 = vld [vmem:[#allocation2 + $0xc8] sm:$0xff]
    %v55 = vld [vmem:[#allocation2 + $0xd0] sm:$0xff]
    %v56 = vld [vmem:[#allocation2 + $0xd8] sm:$0xff]
    %v57 = vld [vmem:[#allocation2 + $0xe0] sm:$0xff]
    %v58 = vld [vmem:[#allocation2 + $0xe8] sm:$0xff]
    %v59 = vld [vmem:[#allocation2 + $0xf0] sm:$0xff]
    %v60 = vld [vmem:[#allocation2 + $0xf8] sm:$0xff]
    %v61 = vld [vmem:[#allocation2 + $0x100] sm:$0xff]
    %v62 = vld [vmem:[#allocation2 + $0x108] sm:$0xff]
    %v63 = vld [vmem:[#allocation2 + $0x110] sm:$0xff]
    %v64 = vld [vmem:[#allocation2 + $0x118] sm:$0xff]
    %v65 = vld [vmem:[#allocation2 + $0x120] sm:$0xff]
    %v66 = vld [vmem:[#allocation2 + $0x128] sm:$0xff]
    %v67 = vld [vmem:[#allocation2 + $0x130] sm:$0xff]
    %v68 = vld [vmem:[#allocation2 + $0x138] sm:$0xff]
    %v69 = vld [vmem:[#allocation2 + $0x140] sm:$0xff]
    %v70 = vld [vmem:[#allocation2 + $0x148] sm:$0xff]
    %v71 = vld [vmem:[#allocation2 + $0x150] sm:$0xff]
    %v72 = vld [vmem:[#allocation2 + $0x158] sm:$0xff]
    %v73 = vld [vmem:[#allocation2 + $0x160] sm:$0xff]
    %v74 = vld [vmem:[#allocation2 + $0x168] sm:$0xff]
    %v75 = vld [vmem:[#allocation2 + $0x170] sm:$0xff]
    %v76 = vld [vmem:[#allocation2 + $0x178] sm:$0xff]
    %v77 = vld [vmem:[#allocation2 + $0x180] sm:$0xff]
    %v78 = vld [vmem:[#allocation2 + $0x188] sm:$0xff]
    %v79 = vld [vmem:[#allocation2 + $0x190] sm:$0xff]
    %v80 = vld [vmem:[#allocation2 + $0x198] sm:$0xff]
    %v81 = vld [vmem:[#allocation2 + $0x1a0] sm:$0xff]
    %v82 = vld [vmem:[#allocation2 + $0x1a8] sm:$0xff]
    %v83 = vld [vmem:[#allocation2 + $0x1b0] sm:$0xff]
    %v84 = vld [vmem:[#allocation2 + $0x1b8] sm:$0xff]
    %v85 = vld [vmem:[#allocation2 + $0x1c0] sm:$0xff]
    %v86 = vld [vmem:[#allocation2 + $0x1c8] sm:$0xff]
    %v87 = vld [vmem:[#allocation2 + $0x1d0] sm:$0xff]
    %v88 = vld [vmem:[#allocation2 + $0x1d8] sm:$0xff]
    %v89 = vld [vmem:[#allocation2 + $0x1e0] sm:$0xff]
    %v90 = vld [vmem:[#allocation2 + $0x1e8] sm:$0xff]
    %v91 = vld [vmem:[#allocation2 + $0x1f0] sm:$0xff]
    %v92 = vld [vmem:[#allocation2 + $0x1f8] sm:$0xff]
    %v93 = vld [vmem:[#allocation2 + $0x200] sm:$0xff]
    %v94 = vld [vmem:[#allocation2 + $0x208] sm:$0xff]
    %v95 = vld [vmem:[#allocation2 + $0x210] sm:$0xff]
    %v96 = vld [vmem:[#allocation2 + $0x218] sm:$0xff]
    %v97 = vld [vmem:[#allocation2 + $0x220] sm:$0xff]
    %v98 = vld [vmem:[#allocation2 + $0x228] sm:$0xff]
    %v99 = vld [vmem:[#allocation2 + $0x230] sm:$0xff]
    %v100 = vld [vmem:[#allocation2 + $0x238] sm:$0xff]
    %v101 = vld [vmem:[#allocation2 + $0x240] sm:$0xff]
    %v102 = vld [vmem:[#allocation2 + $0x248] sm:$0xff]
    %v103 = vld [vmem:[#allocation2 + $0x250] sm:$0xff]
    %v104 = vld [vmem:[#allocation2 + $0x258] sm:$0xff]
    %v105 = vld [vmem:[#allocation2 + $0x260] sm:$0xff]
    %v106 = vld [vmem:[#allocation2 + $0x268] sm:$0xff]
    %v107 = vld [vmem:[#allocation2 + $0x270] sm:$0xff]
    %v108 = vld [vmem:[#allocation2 + $0x278] sm:$0xff]
    %v109 = vld [vmem:[#allocation2 + $0x280] sm:$0xff]
    %v110 = vld [vmem:[#allocation2 + $0x288] sm:$0xff]
    %v111 = vld [vmem:[#allocation2 + $0x290] sm:$0xff]
    %v112 = vld [vmem:[#allocation2 + $0x298] sm:$0xff]
    %v113 = vld [vmem:[#allocation2 + $0x2a0] sm:$0xff]
    %v114 = vld [vmem:[#allocation2 + $0x2a8] sm:$0xff]
    %v115 = vld [vmem:[#allocation2 + $0x2b0] sm:$0xff]
    %v116 = vld [vmem:[#allocation2 + $0x2b8] sm:$0xff]
    %v117 = vld [vmem:[#allocation2 + $0x2c0] sm:$0xff]
    %v118 = vld [vmem:[#allocation2 + $0x2c8] sm:$0xff]
    %v119 = vld [vmem:[#allocation2 + $0x2d0] sm:$0xff]
    %v120 = vld [vmem:[#allocation2 + $0x2d8] sm:$0xff]
    %v121 = vld [vmem:[#allocation2 + $0x2e0] sm:$0xff]
    %v122 = vld [vmem:[#allocation2 + $0x2e8] sm:$0xff]
    %v123 = vld [vmem:[#allocation2 + $0x2f0] sm:$0xff]
    %v124 = vld [vmem:[#allocation2 + $0x2f8] sm:$0xff]
    %v125 = vld [vmem:[#allocation2 + $0x300] sm:$0xff]
    %v126 = vld [vmem:[#allocation2 + $0x308] sm:$0xff]
    %v127 = vld [vmem:[#allocation2 + $0x310] sm:$0xff]
    %v128 = vld [vmem:[#allocation2 + $0x318] sm:$0xff]
    %v129 = vld [vmem:[#allocation2 + $0x320] sm:$0xff]
    %v130 = vld [vmem:[#allocation2 + $0x328] sm:$0xff]
    %v131 = vld [vmem:[#allocation2 + $0x330] sm:$0xff]
    %v132 = vld [vmem:[#allocation2 + $0x338] sm:$0xff]
    %v133 = vld [vmem:[#allocation2 + $0x340] sm:$0xff]
    %v134 = vld [vmem:[#allocation2 + $0x348] sm:$0xff]
    %v135 = vld [vmem:[#allocation2 + $0x350] sm:$0xff]
    %v136 = vld [vmem:[#allocation2 + $0x358] sm:$0xff]
    %v137 = vld [vmem:[#allocation2 + $0x360] sm:$0xff]
    %v138 = vld [vmem:[#allocation2 + $0x368] sm:$0xff]
    %v139 = vld [vmem:[#allocation2 + $0x370] sm:$0xff]
    %v140 = vld [vmem:[#allocation2 + $0x378] sm:$0xff]
    %v141 = vld [vmem:[#allocation2 + $0x380] sm:$0xff]
    %v142 = vld [vmem:[#allocation2 + $0x388] sm:$0xff]
    %v143 = vld [vmem:[#allocation2 + $0x390] sm:$0xff]
    %v144 = vld [vmem:[#allocation2 + $0x398] sm:$0xff]
    %v145 = vld [vmem:[#allocation2 + $0x3a0] sm:$0xff]
    %v146 = vld [vmem:[#allocation2 + $0x3a8] sm:$0xff]
    %v147 = vld [vmem:[#allocation2 + $0x3b0] sm:$0xff]
    %v148 = vld [vmem:[#allocation2 + $0x3b8] sm:$0xff]
    %v149 = vld [vmem:[#allocation2 + $0x3c0] sm:$0xff]
    %v150 = vld [vmem:[#allocation2 + $0x3c8] sm:$0xff]
    %v151 = vld [vmem:[#allocation2 + $0x3d0] sm:$0xff]
    %v152 = vld [vmem:[#allocation2 + $0x3d8] sm:$0xff]
    %v153 = vld [vmem:[#allocation2 + $0x3e0] sm:$0xff]
    %v154 = vld [vmem:[#allocation2 + $0x3e8] sm:$0xff]
    %v155 = vld [vmem:[#allocation2 + $0x3f0] sm:$0xff]
    %v156 = vld [vmem:[#allocation2 + $0x3f8] sm:$0xff]
    %v285 = vunpack.c.l.b16 %v29
    %v286 = vunpack.c.h.b16 %v29
    %v287 = vunpack.c.l.b16 %v30
    %v288 = vunpack.c.h.b16 %v30
    %v289 = vunpack.c.l.b16 %v31
    %v290 = vunpack.c.h.b16 %v31
    %v291 = vunpack.c.l.b16 %v32
    %v292 = vunpack.c.h.b16 %v32
    %v293 = vunpack.c.l.b16 %v33
    %v294 = vunpack.c.h.b16 %v33
    %v295 = vunpack.c.l.b16 %v34
    %v296 = vunpack.c.h.b16 %v34
    %v297 = vunpack.c.l.b16 %v35
    %v298 = vunpack.c.h.b16 %v35
    %v299 = vunpack.c.l.b16 %v36
    %v300 = vunpack.c.h.b16 %v36
    %v301 = vunpack.c.l.b16 %v37
    %v302 = vunpack.c.h.b16 %v37
    %v303 = vunpack.c.l.b16 %v38
    %v304 = vunpack.c.h.b16 %v38
    %v305 = vunpack.c.l.b16 %v39
    %v306 = vunpack.c.h.b16 %v39
    %v307 = vunpack.c.l.b16 %v40
    %v308 = vunpack.c.h.b16 %v40
    %v309 = vunpack.c.l.b16 %v41
    %v310 = vunpack.c.h.b16 %v41
    %v311 = vunpack.c.l.b16 %v42
    %v312 = vunpack.c.h.b16 %v42
    %v313 = vunpack.c.l.b16 %v43
    %v314 = vunpack.c.h.b16 %v43
    %v315 = vunpack.c.l.b16 %v44
    %v316 = vunpack.c.h.b16 %v44
    %v317 = vunpack.c.l.b16 %v45
    %v318 = vunpack.c.h.b16 %v45
    %v319 = vunpack.c.l.b16 %v46
    %v320 = vunpack.c.h.b16 %v46
    %v321 = vunpack.c.l.b16 %v47
    %v322 = vunpack.c.h.b16 %v47
    %v323 = vunpack.c.l.b16 %v48
    %v324 = vunpack.c.h.b16 %v48
    %v325 = vunpack.c.l.b16 %v49
    %v326 = vunpack.c.h.b16 %v49
    %v327 = vunpack.c.l.b16 %v50
    %v328 = vunpack.c.h.b16 %v50
    %v329 = vunpack.c.l.b16 %v51
    %v330 = vunpack.c.h.b16 %v51
    %v331 = vunpack.c.l.b16 %v52
    %v332 = vunpack.c.h.b16 %v52
    %v333 = vunpack.c.l.b16 %v53
    %v334 = vunpack.c.h.b16 %v53
    %v335 = vunpack.c.l.b16 %v54
    %v336 = vunpack.c.h.b16 %v54
    %v337 = vunpack.c.l.b16 %v55
    %v338 = vunpack.c.h.b16 %v55
    %v339 = vunpack.c.l.b16 %v56
    %v340 = vunpack.c.h.b16 %v56
    %v341 = vunpack.c.l.b16 %v57
    %v342 = vunpack.c.h.b16 %v57
    %v343 = vunpack.c.l.b16 %v58
    %v344 = vunpack.c.h.b16 %v58
    %v345 = vunpack.c.l.b16 %v59
    %v346 = vunpack.c.h.b16 %v59
    %v347 = vunpack.c.l.b16 %v60
    %v348 = vunpack.c.h.b16 %v60
    %v349 = vunpack.c.l.b16 %v61
    %v350 = vunpack.c.h.b16 %v61
    %v351 = vunpack.c.l.b16 %v62
    %v352 = vunpack.c.h.b16 %v62
    %v353 = vunpack.c.l.b16 %v63
    %v354 = vunpack.c.h.b16 %v63
    %v355 = vunpack.c.l.b16 %v64
    %v356 = vunpack.c.h.b16 %v64
    %v357 = vunpack.c.l.b16 %v65
    %v358 = vunpack.c.h.b16 %v65
    %v359 = vunpack.c.l.b16 %v66
    %v360 = vunpack.c.h.b16 %v66
    %v361 = vunpack.c.l.b16 %v67
    %v362 = vunpack.c.h.b16 %v67
    %v363 = vunpack.c.l.b16 %v68
    %v364 = vunpack.c.h.b16 %v68
    %v365 = vunpack.c.l.b16 %v69
    %v366 = vunpack.c.h.b16 %v69
    %v367 = vunpack.c.l.b16 %v70
    %v368 = vunpack.c.h.b16 %v70
    %v369 = vunpack.c.l.b16 %v71
    %v370 = vunpack.c.h.b16 %v71
    %v371 = vunpack.c.l.b16 %v72
    %v372 = vunpack.c.h.b16 %v72
    %v373 = vunpack.c.l.b16 %v73
    %v374 = vunpack.c.h.b16 %v73
    %v375 = vunpack.c.l.b16 %v74
    %v376 = vunpack.c.h.b16 %v74
    %v377 = vunpack.c.l.b16 %v75
    %v378 = vunpack.c.h.b16 %v75
    %v379 = vunpack.c.l.b16 %v76
    %v380 = vunpack.c.h.b16 %v76
    %v381 = vunpack.c.l.b16 %v77
    %v382 = vunpack.c.h.b16 %v77
    %v383 = vunpack.c.l.b16 %v78
    %v384 = vunpack.c.h.b16 %v78
    %v385 = vunpack.c.l.b16 %v79
    %v386 = vunpack.c.h.b16 %v79
    %v387 = vunpack.c.l.b16 %v80
    %v388 = vunpack.c.h.b16 %v80
    %v389 = vunpack.c.l.b16 %v81
    %v390 = vunpack.c.h.b16 %v81
    %v391 = vunpack.c.l.b16 %v82
    %v392 = vunpack.c.h.b16 %v82
    %v393 = vunpack.c.l.b16 %v83
    %v394 = vunpack.c.h.b16 %v83
    %v395 = vunpack.c.l.b16 %v84
    %v396 = vunpack.c.h.b16 %v84
    %v397 = vunpack.c.l.b16 %v85
    %v398 = vunpack.c.h.b16 %v85
    %v399 = vunpack.c.l.b16 %v86
    %v400 = vunpack.c.h.b16 %v86
    %v401 = vunpack.c.l.b16 %v87
    %v402 = vunpack.c.h.b16 %v87
    %v403 = vunpack.c.l.b16 %v88
    %v404 = vunpack.c.h.b16 %v88
    %v405 = vunpack.c.l.b16 %v89
    %v406 = vunpack.c.h.b16 %v89
    %v407 = vunpack.c.l.b16 %v90
    %v408 = vunpack.c.h.b16 %v90
    %v409 = vunpack.c.l.b16 %v91
    %v410 = vunpack.c.h.b16 %v91
    %v411 = vunpack.c.l.b16 %v92
    %v412 = vunpack.c.h.b16 %v92
    %v413 = vunpack.c.l.b16 %v93
    %v414 = vunpack.c.h.b16 %v93
    %v415 = vunpack.c.l.b16 %v94
    %v416 = vunpack.c.h.b16 %v94
    %v417 = vunpack.c.l.b16 %v95
    %v418 = vunpack.c.h.b16 %v95
    %v419 = vunpack.c.l.b16 %v96
    %v420 = vunpack.c.h.b16 %v96
    %v421 = vunpack.c.l.b16 %v97
    %v422 = vunpack.c.h.b16 %v97
    %v423 = vunpack.c.l.b16 %v98
    %v424 = vunpack.c.h.b16 %v98
    %v425 = vunpack.c.l.b16 %v99
    %v426 = vunpack.c.h.b16 %v99
    %v427 = vunpack.c.l.b16 %v100
    %v428 = vunpack.c.h.b16 %v100
    %v429 = vunpack.c.l.b16 %v101
    %v430 = vunpack.c.h.b16 %v101
    %v431 = vunpack.c.l.b16 %v102
    %v432 = vunpack.c.h.b16 %v102
    %v433 = vunpack.c.l.b16 %v103
    %v434 = vunpack.c.h.b16 %v103
    %v435 = vunpack.c.l.b16 %v104
    %v436 = vunpack.c.h.b16 %v104
    %v437 = vunpack.c.l.b16 %v105
    %v438 = vunpack.c.h.b16 %v105
    %v439 = vunpack.c.l.b16 %v106
    %v440 = vunpack.c.h.b16 %v106
    %v441 = vunpack.c.l.b16 %v107
    %v442 = vunpack.c.h.b16 %v107
    %v443 = vunpack.c.l.b16 %v108
    %v444 = vunpack.c.h.b16 %v108
    %v445 = vunpack.c.l.b16 %v109
    %v446 = vunpack.c.h.b16 %v109
    %v447 = vunpack.c.l.b16 %v110
    %v448 = vunpack.c.h.b16 %v110
    %v449 = vunpack.c.l.b16 %v111
    %v450 = vunpack.c.h.b16 %v111
    %v451 = vunpack.c.l.b16 %v112
    %v452 = vunpack.c.h.b16 %v112
    %v453 = vunpack.c.l.b16 %v113
    %v454 = vunpack.c.h.b16 %v113
    %v455 = vunpack.c.l.b16 %v114
    %v456 = vunpack.c.h.b16 %v114
    %v457 = vunpack.c.l.b16 %v115
    %v458 = vunpack.c.h.b16 %v115
    %v459 = vunpack.c.l.b16 %v116
    %v460 = vunpack.c.h.b16 %v116
    %v461 = vunpack.c.l.b16 %v117
    %v462 = vunpack.c.h.b16 %v117
    %v463 = vunpack.c.l.b16 %v118
    %v464 = vunpack.c.h.b16 %v118
    %v465 = vunpack.c.l.b16 %v119
    %v466 = vunpack.c.h.b16 %v119
    %v467 = vunpack.c.l.b16 %v120
    %v468 = vunpack.c.h.b16 %v120
    %v469 = vunpack.c.l.b16 %v121
    %v470 = vunpack.c.h.b16 %v121
    %v471 = vunpack.c.l.b16 %v122
    %v472 = vunpack.c.h.b16 %v122
    %v473 = vunpack.c.l.b16 %v123
    %v474 = vunpack.c.h.b16 %v123
    %v475 = vunpack.c.l.b16 %v124
    %v476 = vunpack.c.h.b16 %v124
    %v477 = vunpack.c.l.b16 %v125
    %v478 = vunpack.c.h.b16 %v125
    %v479 = vunpack.c.l.b16 %v126
    %v480 = vunpack.c.h.b16 %v126
    %v481 = vunpack.c.l.b16 %v127
    %v482 = vunpack.c.h.b16 %v127
    %v483 = vunpack.c.l.b16 %v128
    %v484 = vunpack.c.h.b16 %v128
    %v485 = vunpack.c.l.b16 %v129
    %v486 = vunpack.c.h.b16 %v129
    %v487 = vunpack.c.l.b16 %v130
    %v488 = vunpack.c.h.b16 %v130
    %v489 = vunpack.c.l.b16 %v131
    %v490 = vunpack.c.h.b16 %v131
    %v491 = vunpack.c.l.b16 %v132
    %v492 = vunpack.c.h.b16 %v132
    %v493 = vunpack.c.l.b16 %v133
    %v494 = vunpack.c.h.b16 %v133
    %v495 = vunpack.c.l.b16 %v134
    %v496 = vunpack.c.h.b16 %v134
    %v497 = vunpack.c.l.b16 %v135
    %v498 = vunpack.c.h.b16 %v135
    %v499 = vunpack.c.l.b16 %v136
    %v500 = vunpack.c.h.b16 %v136
    %v501 = vunpack.c.l.b16 %v137
    %v502 = vunpack.c.h.b16 %v137
    %v503 = vunpack.c.l.b16 %v138
    %v504 = vunpack.c.h.b16 %v138
    %v505 = vunpack.c.l.b16 %v139
    %v506 = vunpack.c.h.b16 %v139
    %v507 = vunpack.c.l.b16 %v140
    %v508 = vunpack.c.h.b16 %v140
    %v509 = vunpack.c.l.b16 %v141
    %v510 = vunpack.c.h.b16 %v141
    %v511 = vunpack.c.l.b16 %v142
    %v512 = vunpack.c.h.b16 %v142
    %v513 = vunpack.c.l.b16 %v143
    %v514 = vunpack.c.h.b16 %v143
    %v515 = vunpack.c.l.b16 %v144
    %v516 = vunpack.c.h.b16 %v144
    %v517 = vunpack.c.l.b16 %v145
    %v518 = vunpack.c.h.b16 %v145
    %v519 = vunpack.c.l.b16 %v146
    %v520 = vunpack.c.h.b16 %v146
    %v521 = vunpack.c.l.b16 %v147
    %v522 = vunpack.c.h.b16 %v147
    %v523 = vunpack.c.l.b16 %v148
    %v524 = vunpack.c.h.b16 %v148
    %v525 = vunpack.c.l.b16 %v149
    %v526 = vunpack.c.h.b16 %v149
    %v527 = vunpack.c.l.b16 %v150
    %v528 = vunpack.c.h.b16 %v150
    %v529 = vunpack.c.l.b16 %v151
    %v530 = vunpack.c.h.b16 %v151
    %v531 = vunpack.c.l.b16 %v152
    %v532 = vunpack.c.h.b16 %v152
    %v533 = vunpack.c.l.b16 %v153
    %v534 = vunpack.c.h.b16 %v153
    %v535 = vunpack.c.l.b16 %v154
    %v536 = vunpack.c.h.b16 %v154
    %v537 = vunpack.c.l.b16 %v155
    %v538 = vunpack.c.h.b16 %v155
    %v539 = vunpack.c.l.b16 %v156
    %v540 = vunpack.c.h.b16 %v156
    %v541 = vpack.c.b16 %v301, %v285
    %v542 = vpack.c.b16 %v302, %v286
    %v543 = vpack.c.b16 %v303, %v287
    %v544 = vpack.c.b16 %v304, %v288
    %v545 = vpack.c.b16 %v305, %v289
    %v546 = vpack.c.b16 %v306, %v290
    %v547 = vpack.c.b16 %v307, %v291
    %v548 = vpack.c.b16 %v308, %v292
    %v549 = vpack.c.b16 %v309, %v293
    %v550 = vpack.c.b16 %v310, %v294
    %v551 = vpack.c.b16 %v311, %v295
    %v552 = vpack.c.b16 %v312, %v296
    %v553 = vpack.c.b16 %v313, %v297
    %v554 = vpack.c.b16 %v314, %v298
    %v555 = vpack.c.b16 %v315, %v299
    %v556 = vpack.c.b16 %v316, %v300
    %v557 = vpack.c.b16 %v333, %v317
    %v558 = vpack.c.b16 %v334, %v318
    %v559 = vpack.c.b16 %v335, %v319
    %v560 = vpack.c.b16 %v336, %v320
    %v561 = vpack.c.b16 %v337, %v321
    %v562 = vpack.c.b16 %v338, %v322
    %v563 = vpack.c.b16 %v339, %v323
    %v564 = vpack.c.b16 %v340, %v324
    %v565 = vpack.c.b16 %v341, %v325
    %v566 = vpack.c.b16 %v342, %v326
    %v567 = vpack.c.b16 %v343, %v327
    %v568 = vpack.c.b16 %v344, %v328
    %v569 = vpack.c.b16 %v345, %v329
    %v570 = vpack.c.b16 %v346, %v330
    %v571 = vpack.c.b16 %v347, %v331
    %v572 = vpack.c.b16 %v348, %v332
    %v573 = vpack.c.b16 %v365, %v349
    %v574 = vpack.c.b16 %v366, %v350
    %v575 = vpack.c.b16 %v367, %v351
    %v576 = vpack.c.b16 %v368, %v352
    %v577 = vpack.c.b16 %v369, %v353
    %v578 = vpack.c.b16 %v370, %v354
    %v579 = vpack.c.b16 %v371, %v355
    %v580 = vpack.c.b16 %v372, %v356
    %v581 = vpack.c.b16 %v373, %v357
    %v582 = vpack.c.b16 %v374, %v358
    %v583 = vpack.c.b16 %v375, %v359
    %v584 = vpack.c.b16 %v376, %v360
    %v585 = vpack.c.b16 %v377, %v361
    %v586 = vpack.c.b16 %v378, %v362
    %v587 = vpack.c.b16 %v379, %v363
    %v588 = vpack.c.b16 %v380, %v364
    %v589 = vpack.c.b16 %v397, %v381
    %v590 = vpack.c.b16 %v398, %v382
    %v591 = vpack.c.b16 %v399, %v383
    %v592 = vpack.c.b16 %v400, %v384
    %v593 = vpack.c.b16 %v401, %v385
    %v594 = vpack.c.b16 %v402, %v386
    %v595 = vpack.c.b16 %v403, %v387
    %v596 = vpack.c.b16 %v404, %v388
    %v597 = vpack.c.b16 %v405, %v389
    %v598 = vpack.c.b16 %v406, %v390
    %v599 = vpack.c.b16 %v407, %v391
    %v600 = vpack.c.b16 %v408, %v392
    %v601 = vpack.c.b16 %v409, %v393
    %v602 = vpack.c.b16 %v410, %v394
    %v603 = vpack.c.b16 %v411, %v395
    %v604 = vpack.c.b16 %v412, %v396
    %v605 = vpack.c.b16 %v429, %v413
    %v606 = vpack.c.b16 %v430, %v414
    %v607 = vpack.c.b16 %v431, %v415
    %v608 = vpack.c.b16 %v432, %v416
    %v609 = vpack.c.b16 %v433, %v417
    %v610 = vpack.c.b16 %v434, %v418
    %v611 = vpack.c.b16 %v435, %v419
    %v612 = vpack.c.b16 %v436, %v420
    %v613 = vpack.c.b16 %v437, %v421
    %v614 = vpack.c.b16 %v438, %v422
    %v615 = vpack.c.b16 %v439, %v423
    %v616 = vpack.c.b16 %v440, %v424
    %v617 = vpack.c.b16 %v441, %v425
    %v618 = vpack.c.b16 %v442, %v426
    %v619 = vpack.c.b16 %v443, %v427
    %v620 = vpack.c.b16 %v444, %v428
    %v621 = vpack.c.b16 %v461, %v445
    %v622 = vpack.c.b16 %v462, %v446
    %v623 = vpack.c.b16 %v463, %v447
    %v624 = vpack.c.b16 %v464, %v448
    %v625 = vpack.c.b16 %v465, %v449
    %v626 = vpack.c.b16 %v466, %v450
    %v627 = vpack.c.b16 %v467, %v451
    %v628 = vpack.c.b16 %v468, %v452
    %v629 = vpack.c.b16 %v469, %v453
    %v630 = vpack.c.b16 %v470, %v454
    %v631 = vpack.c.b16 %v471, %v455
    %v632 = vpack.c.b16 %v472, %v456
    %v633 = vpack.c.b16 %v473, %v457
    %v634 = vpack.c.b16 %v474, %v458
    %v635 = vpack.c.b16 %v475, %v459
    %v636 = vpack.c.b16 %v476, %v460
    %v637 = vpack.c.b16 %v493, %v477
    %v638 = vpack.c.b16 %v494, %v478
    %v639 = vpack.c.b16 %v495, %v479
    %v640 = vpack.c.b16 %v496, %v480
    %v641 = vpack.c.b16 %v497, %v481
    %v642 = vpack.c.b16 %v498, %v482
    %v643 = vpack.c.b16 %v499, %v483
    %v644 = vpack.c.b16 %v500, %v484
    %v645 = vpack.c.b16 %v501, %v485
    %v646 = vpack.c.b16 %v502, %v486
    %v647 = vpack.c.b16 %v503, %v487
    %v648 = vpack.c.b16 %v504, %v488
    %v649 = vpack.c.b16 %v505, %v489
    %v650 = vpack.c.b16 %v506, %v490
    %v651 = vpack.c.b16 %v507, %v491
    %v652 = vpack.c.b16 %v508, %v492
    %v653 = vpack.c.b16 %v525, %v509
    %v654 = vpack.c.b16 %v526, %v510
    %v655 = vpack.c.b16 %v527, %v511
    %v656 = vpack.c.b16 %v528, %v512
    %v657 = vpack.c.b16 %v529, %v513
    %v658 = vpack.c.b16 %v530, %v514
    %v659 = vpack.c.b16 %v531, %v515
    %v660 = vpack.c.b16 %v532, %v516
    %v661 = vpack.c.b16 %v533, %v517
    %v662 = vpack.c.b16 %v534, %v518
    %v663 = vpack.c.b16 %v535, %v519
    %v664 = vpack.c.b16 %v536, %v520
    %v665 = vpack.c.b16 %v537, %v521
    %v666 = vpack.c.b16 %v538, %v522
    %v667 = vpack.c.b16 %v539, %v523
    %v668 = vpack.c.b16 %v540, %v524
    %797 = vmatprep.subr.bf16.mxu0 %v542
    %798 = vmatpush1.bf16.msra.mxu0 %v541
    %799 = vmatprep.subr.bf16.mxu0 %v558
    %800 = vmatpush1.bf16.msra.mxu0 %v557
    %801 = vmatprep.subr.bf16.mxu0 %v574
    %802 = vmatpush1.bf16.msra.mxu0 %v573
    %803 = vmatprep.subr.bf16.mxu0 %v590
    %804 = vmatpush1.bf16.msra.mxu0 %v589
    %805 = vmatprep.subr.bf16.mxu0 %v606
    %806 = vmatpush1.bf16.msra.mxu0 %v605
    %807 = vmatprep.subr.bf16.mxu0 %v622
    %808 = vmatpush1.bf16.msra.mxu0 %v621
    %809 = vmatprep.subr.bf16.mxu0 %v638
    %810 = vmatpush1.bf16.msra.mxu0 %v637
    %811 = vmatprep.subr.bf16.mxu0 %v654
    %812 = vmatpush1.bf16.msra.mxu0 %v653
    %813 = vmatprep.subr.bf16.mxu0 0
    %814 = vmatpush1.bf16.msra.mxu0 0
    %815 = vmatprep.subr.bf16.mxu0 0
    %816 = vmatpush1.bf16.msra.mxu0 0
    %817 = vmatprep.subr.bf16.mxu0 0
    %818 = vmatpush1.bf16.msra.mxu0 0
    %819 = vmatprep.subr.bf16.mxu0 0
    %820 = vmatpush1.bf16.msra.mxu0 0
    %821 = vmatprep.subr.bf16.mxu0 0
    %822 = vmatpush1.bf16.msra.mxu0 0
    %823 = vmatprep.subr.bf16.mxu0 0
    %824 = vmatpush1.bf16.msra.mxu0 0
    %825 = vmatprep.subr.bf16.mxu0 0
    %826 = vmatpush1.bf16.msra.mxu0 0
    %827 = vmatprep.subr.bf16.mxu0 0
    %828 = vmatpush1.bf16.msra.mxu0 0
    %829 = vmatprep.mubr.bf16.mxu0 0
    %830 = vmatmul.mubr.bf16.gmra.mrb[0].mxu0 %v28
    %v831 = vpop.f32.mrb[0].mxu0
    %v832 = vadd.f32 0.0, %v831
    %v833 = vpop.f32.mrb[0].mxu0
    %v834 = vadd.f32 0.0, %v833
    %v835 = vpop.f32.mrb[0].mxu0
    %v836 = vpop.f32.mrb[0].mxu0
    %837 = vdwg.mxu0
    %838 = vmatprep.subr.bf16.mxu0 %v544
    %839 = vmatpush1.bf16.msra.mxu0 %v543
    %840 = vmatprep.subr.bf16.mxu0 %v560
    %841 = vmatpush1.bf16.msra.mxu0 %v559
    %842 = vmatprep.subr.bf16.mxu0 %v576
    %843 = vmatpush1.bf16.msra.mxu0 %v575
    %844 = vmatprep.subr.bf16.mxu0 %v592
    %845 = vmatpush1.bf16.msra.mxu0 %v591
    %846 = vmatprep.subr.bf16.mxu0 %v608
    %847 = vmatpush1.bf16.msra.mxu0 %v607
    %848 = vmatprep.subr.bf16.mxu0 %v624
    %849 = vmatpush1.bf16.msra.mxu0 %v623
    %850 = vmatprep.subr.bf16.mxu0 %v640
    %851 = vmatpush1.bf16.msra.mxu0 %v639
    %852 = vmatprep.subr.bf16.mxu0 %v656
    %853 = vmatpush1.bf16.msra.mxu0 %v655
    %854 = vmatprep.subr.bf16.mxu0 0
    %855 = vmatpush1.bf16.msra.mxu0 0
    %856 = vmatprep.subr.bf16.mxu0 0
    %857 = vmatpush1.bf16.msra.mxu0 0
    %858 = vmatprep.subr.bf16.mxu0 0
    %859 = vmatpush1.bf16.msra.mxu0 0
    %860 = vmatprep.subr.bf16.mxu0 0
    %861 = vmatpush1.bf16.msra.mxu0 0
    %862 = vmatprep.subr.bf16.mxu0 0
    %863 = vmatpush1.bf16.msra.mxu0 0
    %864 = vmatprep.subr.bf16.mxu0 0
    %865 = vmatpush1.bf16.msra.mxu0 0
    %866 = vmatprep.subr.bf16.mxu0 0
    %867 = vmatpush1.bf16.msra.mxu0 0
    %868 = vmatprep.subr.bf16.mxu0 0
    %869 = vmatpush1.bf16.msra.mxu0 0
    %870 = vmatprep.mubr.bf16.mxu0 0
    %871 = vmatmul.mubr.bf16.gmra.mrb[0].mxu0 %v28
    %v872 = vpop.f32.mrb[0].mxu0
    %v873 = vadd.f32 0.0, %v872
    %v874 = vpop.f32.mrb[0].mxu0
    %v875 = vadd.f32 0.0, %v874
    %v876 = vpop.f32.mrb[0].mxu0
    %v877 = vpop.f32.mrb[0].mxu0
    %878 = vdwg.mxu0
    %879 = vmatprep.subr.bf16.mxu0 %v546
    %880 = vmatpush1.bf16.msra.mxu0 %v545
    %881 = vmatprep.subr.bf16.mxu0 %v562
    %882 = vmatpush1.bf16.msra.mxu0 %v561
    %883 = vmatprep.subr.bf16.mxu0 %v578
    %884 = vmatpush1.bf16.msra.mxu0 %v577
    %885 = vmatprep.subr.bf16.mxu0 %v594
    %886 = vmatpush1.bf16.msra.mxu0 %v593
    %887 = vmatprep.subr.bf16.mxu0 %v610
    %888 = vmatpush1.bf16.msra.mxu0 %v609
    %889 = vmatprep.subr.bf16.mxu0 %v626
    %890 = vmatpush1.bf16.msra.mxu0 %v625
    %891 = vmatprep.subr.bf16.mxu0 %v642
    %892 = vmatpush1.bf16.msra.mxu0 %v641
    %893 = vmatprep.subr.bf16.mxu0 %v658
    %894 = vmatpush1.bf16.msra.mxu0 %v657
    %895 = vmatprep.subr.bf16.mxu0 0
    %896 = vmatpush1.bf16.msra.mxu0 0
    %897 = vmatprep.subr.bf16.mxu0 0
    %898 = vmatpush1.bf16.msra.mxu0 0
    %899 = vmatprep.subr.bf16.mxu0 0
    %900 = vmatpush1.bf16.msra.mxu0 0
    %901 = vmatprep.subr.bf16.mxu0 0
    %902 = vmatpush1.bf16.msra.mxu0 0
    %903 = vmatprep.subr.bf16.mxu0 0
    %904 = vmatpush1.bf16.msra.mxu0 0
    %905 = vmatprep.subr.bf16.mxu0 0
    %906 = vmatpush1.bf16.msra.mxu0 0
    %907 = vmatprep.subr.bf16.mxu0 0
    %908 = vmatpush1.bf16.msra.mxu0 0
    %909 = vmatprep.subr.bf16.mxu0 0
    %910 = vmatpush1.bf16.msra.mxu0 0
    %911 = vmatprep.mubr.bf16.mxu0 0
    %912 = vmatmul.mubr.bf16.gmra.mrb[0].mxu0 %v28
    %v913 = vpop.f32.mrb[0].mxu0
    %v914 = vadd.f32 0.0, %v913
    %v915 = vpop.f32.mrb[0].mxu0
    %v916 = vadd.f32 0.0, %v915
    %v917 = vpop.f32.mrb[0].mxu0
    %v918 = vpop.f32.mrb[0].mxu0
    %919 = vdwg.mxu0
    %920 = vmatprep.subr.bf16.mxu0 %v548
    %921 = vmatpush1.bf16.msra.mxu0 %v547
    %922 = vmatprep.subr.bf16.mxu0 %v564
    %923 = vmatpush1.bf16.msra.mxu0 %v563
    %924 = vmatprep.subr.bf16.mxu0 %v580
    %925 = vmatpush1.bf16.msra.mxu0 %v579
    %926 = vmatprep.subr.bf16.mxu0 %v596
    %927 = vmatpush1.bf16.msra.mxu0 %v595
    %928 = vmatprep.subr.bf16.mxu0 %v612
    %929 = vmatpush1.bf16.msra.mxu0 %v611
    %930 = vmatprep.subr.bf16.mxu0 %v628
    %931 = vmatpush1.bf16.msra.mxu0 %v627
    %932 = vmatprep.subr.bf16.mxu0 %v644
    %933 = vmatpush1.bf16.msra.mxu0 %v643
    %934 = vmatprep.subr.bf16.mxu0 %v660
    %935 = vmatpush1.bf16.msra.mxu0 %v659
    %936 = vmatprep.subr.bf16.mxu0 0
    %937 = vmatpush1.bf16.msra.mxu0 0
    %938 = vmatprep.subr.bf16.mxu0 0
    %939 = vmatpush1.bf16.msra.mxu0 0
    %940 = vmatprep.subr.bf16.mxu0 0
    %941 = vmatpush1.bf16.msra.mxu0 0
    %942 = vmatprep.subr.bf16.mxu0 0
    %943 = vmatpush1.bf16.msra.mxu0 0
    %944 = vmatprep.subr.bf16.mxu0 0
    %945 = vmatpush1.bf16.msra.mxu0 0
    %946 = vmatprep.subr.bf16.mxu0 0
    %947 = vmatpush1.bf16.msra.mxu0 0
    %948 = vmatprep.subr.bf16.mxu0 0
    %949 = vmatpush1.bf16.msra.mxu0 0
    %950 = vmatprep.subr.bf16.mxu0 0
    %951 = vmatpush1.bf16.msra.mxu0 0
    %952 = vmatprep.mubr.bf16.mxu0 0
    %953 = vmatmul.mubr.bf16.gmra.mrb[0].mxu0 %v28
    %v954 = vpop.f32.mrb[0].mxu0
    %v955 = vadd.f32 0.0, %v954
    %v956 = vpop.f32.mrb[0].mxu0
    %v957 = vadd.f32 0.0, %v956
    %v958 = vpop.f32.mrb[0].mxu0
    %v959 = vpop.f32.mrb[0].mxu0
    %960 = vdwg.mxu0
    %961 = vmatprep.subr.bf16.mxu0 %v550
    %962 = vmatpush1.bf16.msra.mxu0 %v549
    %963 = vmatprep.subr.bf16.mxu0 %v566
    %964 = vmatpush1.bf16.msra.mxu0 %v565
    %965 = vmatprep.subr.bf16.mxu0 %v582
    %966 = vmatpush1.bf16.msra.mxu0 %v581
    %967 = vmatprep.subr.bf16.mxu0 %v598
    %968 = vmatpush1.bf16.msra.mxu0 %v597
    %969 = vmatprep.subr.bf16.mxu0 %v614
    %970 = vmatpush1.bf16.msra.mxu0 %v613
    %971 = vmatprep.subr.bf16.mxu0 %v630
    %972 = vmatpush1.bf16.msra.mxu0 %v629
    %973 = vmatprep.subr.bf16.mxu0 %v646
    %974 = vmatpush1.bf16.msra.mxu0 %v645
    %975 = vmatprep.subr.bf16.mxu0 %v662
    %976 = vmatpush1.bf16.msra.mxu0 %v661
    %977 = vmatprep.subr.bf16.mxu0 0
    %978 = vmatpush1.bf16.msra.mxu0 0
    %979 = vmatprep.subr.bf16.mxu0 0
    %980 = vmatpush1.bf16.msra.mxu0 0
    %981 = vmatprep.subr.bf16.mxu0 0
    %982 = vmatpush1.bf16.msra.mxu0 0
    %983 = vmatprep.subr.bf16.mxu0 0
    %984 = vmatpush1.bf16.msra.mxu0 0
    %985 = vmatprep.subr.bf16.mxu0 0
    %986 = vmatpush1.bf16.msra.mxu0 0
    %987 = vmatprep.subr.bf16.mxu0 0
    %988 = vmatpush1.bf16.msra.mxu0 0
    %989 = vmatprep.subr.bf16.mxu0 0
    %990 = vmatpush1.bf16.msra.mxu0 0
    %991 = vmatprep.subr.bf16.mxu0 0
    %992 = vmatpush1.bf16.msra.mxu0 0
    %993 = vmatprep.mubr.bf16.mxu0 0
    %994 = vmatmul.mubr.bf16.gmra.mrb[0].mxu0 %v28
    %v995 = vpop.f32.mrb[0].mxu0
    %v996 = vadd.f32 0.0, %v995
    %v997 = vpop.f32.mrb[0].mxu0
    %v998 = vadd.f32 0.0, %v997
    %v999 = vpop.f32.mrb[0].mxu0
    %v1000 = vpop.f32.mrb[0].mxu0
    %1001 = vdwg.mxu0
    %1002 = vmatprep.subr.bf16.mxu0 %v552
    %1003 = vmatpush1.bf16.msra.mxu0 %v551
    %1004 = vmatprep.subr.bf16.mxu0 %v568
    %1005 = vmatpush1.bf16.msra.mxu0 %v567
    %1006 = vmatprep.subr.bf16.mxu0 %v584
    %1007 = vmatpush1.bf16.msra.mxu0 %v583
    %1008 = vmatprep.subr.bf16.mxu0 %v600
    %1009 = vmatpush1.bf16.msra.mxu0 %v599
    %1010 = vmatprep.subr.bf16.mxu0 %v616
    %1011 = vmatpush1.bf16.msra.mxu0 %v615
    %1012 = vmatprep.subr.bf16.mxu0 %v632
    %1013 = vmatpush1.bf16.msra.mxu0 %v631
    %1014 = vmatprep.subr.bf16.mxu0 %v648
    %1015 = vmatpush1.bf16.msra.mxu0 %v647
    %1016 = vmatprep.subr.bf16.mxu0 %v664
    %1017 = vmatpush1.bf16.msra.mxu0 %v663
    %1018 = vmatprep.subr.bf16.mxu0 0
    %1019 = vmatpush1.bf16.msra.mxu0 0
    %1020 = vmatprep.subr.bf16.mxu0 0
    %1021 = vmatpush1.bf16.msra.mxu0 0
    %1022 = vmatprep.subr.bf16.mxu0 0
    %1023 = vmatpush1.bf16.msra.mxu0 0
    %1024 = vmatprep.subr.bf16.mxu0 0
    %1025 = vmatpush1.bf16.msra.mxu0 0
    %1026 = vmatprep.subr.bf16.mxu0 0
    %1027 = vmatpush1.bf16.msra.mxu0 0
    %1028 = vmatprep.subr.bf16.mxu0 0
    %1029 = vmatpush1.bf16.msra.mxu0 0
    %1030 = vmatprep.subr.bf16.mxu0 0
    %1031 = vmatpush1.bf16.msra.mxu0 0
    %1032 = vmatprep.subr.bf16.mxu0 0
    %1033 = vmatpush1.bf16.msra.mxu0 0
    %1034 = vmatprep.mubr.bf16.mxu0 0
    %1035 = vmatmul.mubr.bf16.gmra.mrb[0].mxu0 %v28
    %v1036 = vpop.f32.mrb[0].mxu0
    %v1037 = vadd.f32 0.0, %v1036
    %v1038 = vpop.f32.mrb[0].mxu0
    %v1039 = vadd.f32 0.0, %v1038
    %v1040 = vpop.f32.mrb[0].mxu0
    %v1041 = vpop.f32.mrb[0].mxu0
    %1042 = vdwg.mxu0
    %1043 = vmatprep.subr.bf16.mxu0 %v554
    %1044 = vmatpush1.bf16.msra.mxu0 %v553
    %1045 = vmatprep.subr.bf16.mxu0 %v570
    %1046 = vmatpush1.bf16.msra.mxu0 %v569
    %1047 = vmatprep.subr.bf16.mxu0 %v586
    %1048 = vmatpush1.bf16.msra.mxu0 %v585
    %1049 = vmatprep.subr.bf16.mxu0 %v602
    %1050 = vmatpush1.bf16.msra.mxu0 %v601
    %1051 = vmatprep.subr.bf16.mxu0 %v618
    %1052 = vmatpush1.bf16.msra.mxu0 %v617
    %1053 = vmatprep.subr.bf16.mxu0 %v634
    %1054 = vmatpush1.bf16.msra.mxu0 %v633
    %1055 = vmatprep.subr.bf16.mxu0 %v650
    %1056 = vmatpush1.bf16.msra.mxu0 %v649
    %1057 = vmatprep.subr.bf16.mxu0 %v666
    %1058 = vmatpush1.bf16.msra.mxu0 %v665
    %1059 = vmatprep.subr.bf16.mxu0 0
    %1060 = vmatpush1.bf16.msra.mxu0 0
    %1061 = vmatprep.subr.bf16.mxu0 0
    %1062 = vmatpush1.bf16.msra.mxu0 0
    %1063 = vmatprep.subr.bf16.mxu0 0
    %1064 = vmatpush1.bf16.msra.mxu0 0
    %1065 = vmatprep.subr.bf16.mxu0 0
    %1066 = vmatpush1.bf16.msra.mxu0 0
    %1067 = vmatprep.subr.bf16.mxu0 0
    %1068 = vmatpush1.bf16.msra.mxu0 0
    %1069 = vmatprep.subr.bf16.mxu0 0
    %1070 = vmatpush1.bf16.msra.mxu0 0
    %1071 = vmatprep.subr.bf16.mxu0 0
    %1072 = vmatpush1.bf16.msra.mxu0 0
    %1073 = vmatprep.subr.bf16.mxu0 0
    %1074 = vmatpush1.bf16.msra.mxu0 0
    %1075 = vmatprep.mubr.bf16.mxu0 0
    %1076 = vmatmul.mubr.bf16.gmra.mrb[0].mxu0 %v28
    %v1077 = vpop.f32.mrb[0].mxu0
    %v1078 = vadd.f32 0.0, %v1077
    %v1079 = vpop.f32.mrb[0].mxu0
    %v1080 = vadd.f32 0.0, %v1079
    %v1081 = vpop.f32.mrb[0].mxu0
    %v1082 = vpop.f32.mrb[0].mxu0
    %1083 = vdwg.mxu0
    %1084 = vmatprep.subr.bf16.mxu0 %v556
    %1085 = vmatpush1.bf16.msra.mxu0 %v555
    %1086 = vmatprep.subr.bf16.mxu0 %v572
    %1087 = vmatpush1.bf16.msra.mxu0 %v571
    %1088 = vmatprep.subr.bf16.mxu0 %v588
    %1089 = vmatpush1.bf16.msra.mxu0 %v587
    %1090 = vmatprep.subr.bf16.mxu0 %v604
    %1091 = vmatpush1.bf16.msra.mxu0 %v603
    %1092 = vmatprep.subr.bf16.mxu0 %v620
    %1093 = vmatpush1.bf16.msra.mxu0 %v619
    %1094 = vmatprep.subr.bf16.mxu0 %v636
    %1095 = vmatpush1.bf16.msra.mxu0 %v635
    %1096 = vmatprep.subr.bf16.mxu0 %v652
    %1097 = vmatpush1.bf16.msra.mxu0 %v651
    %1098 = vmatprep.subr.bf16.mxu0 %v668
    %1099 = vmatpush1.bf16.msra.mxu0 %v667
    %1100 = vmatprep.subr.bf16.mxu0 0
    %1101 = vmatpush1.bf16.msra.mxu0 0
    %1102 = vmatprep.subr.bf16.mxu0 0
    %1103 = vmatpush1.bf16.msra.mxu0 0
    %1104 = vmatprep.subr.bf16.mxu0 0
    %1105 = vmatpush1.bf16.msra.mxu0 0
    %1106 = vmatprep.subr.bf16.mxu0 0
    %1107 = vmatpush1.bf16.msra.mxu0 0
    %1108 = vmatprep.subr.bf16.mxu0 0
    %1109 = vmatpush1.bf16.msra.mxu0 0
    %1110 = vmatprep.subr.bf16.mxu0 0
    %1111 = vmatpush1.bf16.msra.mxu0 0
    %1112 = vmatprep.subr.bf16.mxu0 0
    %1113 = vmatpush1.bf16.msra.mxu0 0
    %1114 = vmatprep.subr.bf16.mxu0 0
    %1115 = vmatpush1.bf16.msra.mxu0 0
    %1116 = vmatprep.mubr.bf16.mxu0 0
    %1117 = vmatmul.mubr.bf16.gmra.mrb[0].mxu0 %v28
    %v1118 = vpop.f32.mrb[0].mxu0
    %v1119 = vadd.f32 0.0, %v1118
    %v1120 = vpop.f32.mrb[0].mxu0
    %v1121 = vadd.f32 0.0, %v1120
    %v1122 = vpop.f32.mrb[0].mxu0
    %v1123 = vpop.f32.mrb[0].mxu0
    %1124 = vdwg.mxu0
    %v1125 = vpack.c.bf16 %v832, %v832
    %v1126 = vpack.c.bf16 %v834, %v834
    %v1127 = vpack.c.bf16 %v873, %v873
    %v1128 = vpack.c.bf16 %v875, %v875
    %v1129 = vpack.c.bf16 %v914, %v914
    %v1130 = vpack.c.bf16 %v916, %v916
    %v1131 = vpack.c.bf16 %v955, %v955
    %v1132 = vpack.c.bf16 %v957, %v957
    %v1133 = vpack.c.bf16 %v996, %v996
    %v1134 = vpack.c.bf16 %v998, %v998
    %v1135 = vpack.c.bf16 %v1037, %v1037
    %v1136 = vpack.c.bf16 %v1039, %v1039
    %v1137 = vpack.c.bf16 %v1078, %v1078
    %v1138 = vpack.c.bf16 %v1080, %v1080
    %v1139 = vpack.c.bf16 %v1119, %v1119
    %v1140 = vpack.c.bf16 %v1121, %v1121
    %v1157 = vunpack.c.l.b16 %v1125
    %v1158 = vunpack.c.l.b16 %v1126
    %v1159 = vunpack.c.l.b16 %v1127
    %v1160 = vunpack.c.l.b16 %v1128
    %v1161 = vunpack.c.l.b16 %v1129
    %v1162 = vunpack.c.l.b16 %v1130
    %v1163 = vunpack.c.l.b16 %v1131
    %v1164 = vunpack.c.l.b16 %v1132
    %v1165 = vunpack.c.l.b16 %v1133
    %v1166 = vunpack.c.l.b16 %v1134
    %v1167 = vunpack.c.l.b16 %v1135
    %v1168 = vunpack.c.l.b16 %v1136
    %v1169 = vunpack.c.l.b16 %v1137
    %v1170 = vunpack.c.l.b16 %v1138
    %v1171 = vunpack.c.l.b16 %v1139
    %v1172 = vunpack.c.l.b16 %v1140
    %v1173 = vpack.c.b16 %v1158, %v1157
    %v1174 = vpack.c.b16 %v1160, %v1159
    %v1175 = vpack.c.b16 %v1162, %v1161
    %v1176 = vpack.c.b16 %v1164, %v1163
    %v1177 = vpack.c.b16 %v1166, %v1165
    %v1178 = vpack.c.b16 %v1168, %v1167
    %v1179 = vpack.c.b16 %v1170, %v1169
    %v1180 = vpack.c.b16 %v1172, %v1171
    %1189 = vst [vmem:[%s2] sm:$0xff] %v1173
    %1190 = vst [vmem:[%s2 + $0x8] sm:$0xff] %v1174
    %1191 = vst [vmem:[%s2 + $0x10] sm:$0xff] %v1175
    %1192 = vst [vmem:[%s2 + $0x18] sm:$0xff] %v1176
    %1193 = vst [vmem:[%s2 + $0x20] sm:$0xff] %v1177
    %1194 = vst [vmem:[%s2 + $0x28] sm:$0xff] %v1178
    %1195 = vst [vmem:[%s2 + $0x30] sm:$0xff] %v1179
    %1196 = vst [vmem:[%s2 + $0x38] sm:$0xff] %v1180
    %v1197 = vrot.slane %v832, 4
    %v1198 = vadd.f32 %v832, %v1197
    %v1199 = vrot.slane %v1198, 2
    %v1200 = vadd.f32 %v1198, %v1199
    %v1201 = vrot.slane %v1200, 1
    %v1202 = vadd.f32 %v1200, %v1201
    %v1203 = vrot.slane %v834, 4
    %v1204 = vadd.f32 %v834, %v1203
    %v1205 = vrot.slane %v1204, 2
    %v1206 = vadd.f32 %v1204, %v1205
    %v1207 = vrot.slane %v1206, 1
    %v1208 = vadd.f32 %v1206, %v1207
    %v1209 = vrot.slane %v873, 4
    %v1210 = vadd.f32 %v873, %v1209
    %v1211 = vrot.slane %v1210, 2
    %v1212 = vadd.f32 %v1210, %v1211
    %v1213 = vrot.slane %v1212, 1
    %v1214 = vadd.f32 %v1212, %v1213
    %v1215 = vrot.slane %v875, 4
    %v1216 = vadd.f32 %v875, %v1215
    %v1217 = vrot.slane %v1216, 2
    %v1218 = vadd.f32 %v1216, %v1217
    %v1219 = vrot.slane %v1218, 1
    %v1220 = vadd.f32 %v1218, %v1219
    %v1221 = vrot.slane %v914, 4
    %v1222 = vadd.f32 %v914, %v1221
    %v1223 = vrot.slane %v1222, 2
    %v1224 = vadd.f32 %v1222, %v1223
    %v1225 = vrot.slane %v1224, 1
    %v1226 = vadd.f32 %v1224, %v1225
    %v1227 = vrot.slane %v916, 4
    %v1228 = vadd.f32 %v916, %v1227
    %v1229 = vrot.slane %v1228, 2
    %v1230 = vadd.f32 %v1228, %v1229
    %v1231 = vrot.slane %v1230, 1
    %v1232 = vadd.f32 %v1230, %v1231
    %v1233 = vrot.slane %v955, 4
    %v1234 = vadd.f32 %v955, %v1233
    %v1235 = vrot.slane %v1234, 2
    %v1236 = vadd.f32 %v1234, %v1235
    %v1237 = vrot.slane %v1236, 1
    %v1238 = vadd.f32 %v1236, %v1237
    %v1239 = vrot.slane %v957, 4
    %v1240 = vadd.f32 %v957, %v1239
    %v1241 = vrot.slane %v1240, 2
    %v1242 = vadd.f32 %v1240, %v1241
    %v1243 = vrot.slane %v1242, 1
    %v1244 = vadd.f32 %v1242, %v1243
    %v1245 = vrot.slane %v996, 4
    %v1246 = vadd.f32 %v996, %v1245
    %v1247 = vrot.slane %v1246, 2
    %v1248 = vadd.f32 %v1246, %v1247
    %v1249 = vrot.slane %v1248, 1
    %v1250 = vadd.f32 %v1248, %v1249
    %v1251 = vrot.slane %v998, 4
    %v1252 = vadd.f32 %v998, %v1251
    %v1253 = vrot.slane %v1252, 2
    %v1254 = vadd.f32 %v1252, %v1253
    %v1255 = vrot.slane %v1254, 1
    %v1256 = vadd.f32 %v1254, %v1255
    %v1257 = vrot.slane %v1037, 4
    %v1258 = vadd.f32 %v1037, %v1257
    %v1259 = vrot.slane %v1258, 2
    %v1260 = vadd.f32 %v1258, %v1259
    %v1261 = vrot.slane %v1260, 1
    %v1262 = vadd.f32 %v1260, %v1261
    %v1263 = vrot.slane %v1039, 4
    %v1264 = vadd.f32 %v1039, %v1263
    %v1265 = vrot.slane %v1264, 2
    %v1266 = vadd.f32 %v1264, %v1265
    %v1267 = vrot.slane %v1266, 1
    %v1268 = vadd.f32 %v1266, %v1267
    %v1269 = vrot.slane %v1078, 4
    %v1270 = vadd.f32 %v1078, %v1269
    %v1271 = vrot.slane %v1270, 2
    %v1272 = vadd.f32 %v1270, %v1271
    %v1273 = vrot.slane %v1272, 1
    %v1274 = vadd.f32 %v1272, %v1273
    %v1275 = vrot.slane %v1080, 4
    %v1276 = vadd.f32 %v1080, %v1275
    %v1277 = vrot.slane %v1276, 2
    %v1278 = vadd.f32 %v1276, %v1277
    %v1279 = vrot.slane %v1278, 1
    %v1280 = vadd.f32 %v1278, %v1279
    %v1281 = vrot.slane %v1119, 4
    %v1282 = vadd.f32 %v1119, %v1281
    %v1283 = vrot.slane %v1282, 2
    %v1284 = vadd.f32 %v1282, %v1283
    %v1285 = vrot.slane %v1284, 1
    %v1286 = vadd.f32 %v1284, %v1285
    %v1287 = vrot.slane %v1121, 4
    %v1288 = vadd.f32 %v1121, %v1287
    %v1289 = vrot.slane %v1288, 2
    %v1290 = vadd.f32 %v1288, %v1289
    %v1291 = vrot.slane %v1290, 1
    %v1292 = vadd.f32 %v1290, %v1291
    %v1293 = vmul.f32 %v832, %v832
    %v1294 = vmul.f32 %v834, %v834
    %v1295 = vmul.f32 %v873, %v873
    %v1296 = vmul.f32 %v875, %v875
    %v1297 = vmul.f32 %v914, %v914
    %v1298 = vmul.f32 %v916, %v916
    %v1299 = vmul.f32 %v955, %v955
    %v1300 = vmul.f32 %v957, %v957
    %v1301 = vmul.f32 %v996, %v996
    %v1302 = vmul.f32 %v998, %v998
    %v1303 = vmul.f32 %v1037, %v1037
    %v1304 = vmul.f32 %v1039, %v1039
    %v1305 = vmul.f32 %v1078, %v1078
    %v1306 = vmul.f32 %v1080, %v1080
    %v1307 = vmul.f32 %v1119, %v1119
    %v1308 = vmul.f32 %v1121, %v1121
    %v1309 = vrot.slane %v1293, 4
    %v1310 = vadd.f32 %v1293, %v1309
    %v1311 = vrot.slane %v1310, 2
    %v1312 = vadd.f32 %v1310, %v1311
    %v1313 = vrot.slane %v1312, 1
    %v1314 = vadd.f32 %v1312, %v1313
    %v1315 = vrot.slane %v1294, 4
    %v1316 = vadd.f32 %v1294, %v1315
    %v1317 = vrot.slane %v1316, 2
    %v1318 = vadd.f32 %v1316, %v1317
    %v1319 = vrot.slane %v1318, 1
    %v1320 = vadd.f32 %v1318, %v1319
    %v1321 = vrot.slane %v1295, 4
    %v1322 = vadd.f32 %v1295, %v1321
    %v1323 = vrot.slane %v1322, 2
    %v1324 = vadd.f32 %v1322, %v1323
    %v1325 = vrot.slane %v1324, 1
    %v1326 = vadd.f32 %v1324, %v1325
    %v1327 = vrot.slane %v1296, 4
    %v1328 = vadd.f32 %v1296, %v1327
    %v1329 = vrot.slane %v1328, 2
    %v1330 = vadd.f32 %v1328, %v1329
    %v1331 = vrot.slane %v1330, 1
    %v1332 = vadd.f32 %v1330, %v1331
    %v1333 = vrot.slane %v1297, 4
    %v1334 = vadd.f32 %v1297, %v1333
    %v1335 = vrot.slane %v1334, 2
    %v1336 = vadd.f32 %v1334, %v1335
    %v1337 = vrot.slane %v1336, 1
    %v1338 = vadd.f32 %v1336, %v1337
    %v1339 = vrot.slane %v1298, 4
    %v1340 = vadd.f32 %v1298, %v1339
    %v1341 = vrot.slane %v1340, 2
    %v1342 = vadd.f32 %v1340, %v1341
    %v1343 = vrot.slane %v1342, 1
    %v1344 = vadd.f32 %v1342, %v1343
    %v1345 = vrot.slane %v1299, 4
    %v1346 = vadd.f32 %v1299, %v1345
    %v1347 = vrot.slane %v1346, 2
    %v1348 = vadd.f32 %v1346, %v1347
    %v1349 = vrot.slane %v1348, 1
    %v1350 = vadd.f32 %v1348, %v1349
    %v1351 = vrot.slane %v1300, 4
    %v1352 = vadd.f32 %v1300, %v1351
    %v1353 = vrot.slane %v1352, 2
    %v1354 = vadd.f32 %v1352, %v1353
    %v1355 = vrot.slane %v1354, 1
    %v1356 = vadd.f32 %v1354, %v1355
    %v1357 = vrot.slane %v1301, 4
    %v1358 = vadd.f32 %v1301, %v1357
    %v1359 = vrot.slane %v1358, 2
    %v1360 = vadd.f32 %v1358, %v1359
    %v1361 = vrot.slane %v1360, 1
    %v1362 = vadd.f32 %v1360, %v1361
    %v1363 = vrot.slane %v1302, 4
    %v1364 = vadd.f32 %v1302, %v1363
    %v1365 = vrot.slane %v1364, 2
    %v1366 = vadd.f32 %v1364, %v1365
    %v1367 = vrot.slane %v1366, 1
    %v1368 = vadd.f32 %v1366, %v1367
    %v1369 = vrot.slane %v1303, 4
    %v1370 = vadd.f32 %v1303, %v1369
    %v1371 = vrot.slane %v1370, 2
    %v1372 = vadd.f32 %v1370, %v1371
    %v1373 = vrot.slane %v1372, 1
    %v1374 = vadd.f32 %v1372, %v1373
    %v1375 = vrot.slane %v1304, 4
    %v1376 = vadd.f32 %v1304, %v1375
    %v1377 = vrot.slane %v1376, 2
    %v1378 = vadd.f32 %v1376, %v1377
    %v1379 = vrot.slane %v1378, 1
    %v1380 = vadd.f32 %v1378, %v1379
    %v1381 = vrot.slane %v1305, 4
    %v1382 = vadd.f32 %v1305, %v1381
    %v1383 = vrot.slane %v1382, 2
    %v1384 = vadd.f32 %v1382, %v1383
    %v1385 = vrot.slane %v1384, 1
    %v1386 = vadd.f32 %v1384, %v1385
    %v1387 = vrot.slane %v1306, 4
    %v1388 = vadd.f32 %v1306, %v1387
    %v1389 = vrot.slane %v1388, 2
    %v1390 = vadd.f32 %v1388, %v1389
    %v1391 = vrot.slane %v1390, 1
    %v1392 = vadd.f32 %v1390, %v1391
    %v1393 = vrot.slane %v1307, 4
    %v1394 = vadd.f32 %v1307, %v1393
    %v1395 = vrot.slane %v1394, 2
    %v1396 = vadd.f32 %v1394, %v1395
    %v1397 = vrot.slane %v1396, 1
    %v1398 = vadd.f32 %v1396, %v1397
    %v1399 = vrot.slane %v1308, 4
    %v1400 = vadd.f32 %v1308, %v1399
    %v1401 = vrot.slane %v1400, 2
    %v1402 = vadd.f32 %v1400, %v1401
    %v1403 = vrot.slane %v1402, 1
    %v1404 = vadd.f32 %v1402, %v1403
    %vm1405 = vcmask 1040384
    %v1406 = vsel %vm1405, %v1202, %v1314
    %v1407 = vsel %vm1405, %v1208, %v1320
    %v1408 = vsel %vm1405, %v1214, %v1326
    %v1409 = vsel %vm1405, %v1220, %v1332
    %v1410 = vsel %vm1405, %v1226, %v1338
    %v1411 = vsel %vm1405, %v1232, %v1344
    %v1412 = vsel %vm1405, %v1238, %v1350
    %v1413 = vsel %vm1405, %v1244, %v1356
    %v1414 = vsel %vm1405, %v1250, %v1362
    %v1415 = vsel %vm1405, %v1256, %v1368
    %v1416 = vsel %vm1405, %v1262, %v1374
    %v1417 = vsel %vm1405, %v1268, %v1380
    %v1418 = vsel %vm1405, %v1274, %v1386
    %v1419 = vsel %vm1405, %v1280, %v1392
    %v1420 = vsel %vm1405, %v1286, %v1398
    %v1421 = vsel %vm1405, %v1292, %v1404
    %v1438 = vcombine.low %v1406, %v1407
    %v1439 = vcombine.low %v1408, %v1409
    %v1441 = vunpack.c.l.s4 1983009808
    %v1442 = vunpack.c.0.s8 %v1441
    %v1443 = vlaneseq
    %v1444 = vshrl.u32 %v1443, 7
    %v1445 = vsub.s32 %v1442, %v1444
    %v1446 = vrot.slane %v1438, %v1445
    %v1448 = vunpack.c.l.s4 1983009808
    %v1449 = vunpack.c.0.s8 %v1448
    %v1450 = vlaneseq
    %v1451 = vshrl.u32 %v1450, 7
    %v1452 = vsub.s32 %v1449, %v1451
    %v1453 = vrot.slane %v1439, %v1452
    %v1454 = vcombine.low %v1446, %v1453
    %v1455 = vcombine.low %v1410, %v1411
    %v1456 = vcombine.low %v1412, %v1413
    %v1458 = vunpack.c.l.s4 1983009808
    %v1459 = vunpack.c.0.s8 %v1458
    %v1460 = vlaneseq
    %v1461 = vshrl.u32 %v1460, 7
    %v1462 = vsub.s32 %v1459, %v1461
    %v1463 = vrot.slane %v1455, %v1462
    %v1465 = vunpack.c.l.s4 1983009808
    %v1466 = vunpack.c.0.s8 %v1465
    %v1467 = vlaneseq
    %v1468 = vshrl.u32 %v1467, 7
    %v1469 = vsub.s32 %v1466, %v1468
    %v1470 = vrot.slane %v1456, %v1469
    %v1471 = vcombine.low %v1463, %v1470
    %v1472 = vcombine.low %v1414, %v1415
    %v1473 = vcombine.low %v1416, %v1417
    %v1475 = vunpack.c.l.s4 1983009808
    %v1476 = vunpack.c.0.s8 %v1475
    %v1477 = vlaneseq
    %v1478 = vshrl.u32 %v1477, 7
    %v1479 = vsub.s32 %v1476, %v1478
    %v1480 = vrot.slane %v1472, %v1479
    %v1482 = vunpack.c.l.s4 1983009808
    %v1483 = vunpack.c.0.s8 %v1482
    %v1484 = vlaneseq
    %v1485 = vshrl.u32 %v1484, 7
    %v1486 = vsub.s32 %v1483, %v1485
    %v1487 = vrot.slane %v1473, %v1486
    %v1488 = vcombine.low %v1480, %v1487
    %v1489 = vcombine.low %v1418, %v1419
    %v1490 = vcombine.low %v1420, %v1421
    %v1492 = vunpack.c.l.s4 1983009808
    %v1493 = vunpack.c.0.s8 %v1492
    %v1494 = vlaneseq
    %v1495 = vshrl.u32 %v1494, 7
    %v1496 = vsub.s32 %v1493, %v1495
    %v1497 = vrot.slane %v1489, %v1496
    %v1499 = vunpack.c.l.s4 1983009808
    %v1500 = vunpack.c.0.s8 %v1499
    %v1501 = vlaneseq
    %v1502 = vshrl.u32 %v1501, 7
    %v1503 = vsub.s32 %v1500, %v1502
    %v1504 = vrot.slane %v1490, %v1503
    %v1505 = vcombine.low %v1497, %v1504
    %1510 = vst [vmem:[%s3] sm:$0xff] %v1454
    %1511 = vst [vmem:[%s3 + $0x8] sm:$0xff] %v1471
    %1512 = vst [vmem:[%s3 + $0x10] sm:$0xff] %v1488
    %1513 = vst [vmem:[%s3 + $0x18] sm:$0xff] %v1505
    // Predicated region
    $region14: #{_generator_forward_impl.9} parent=1 // pred_check
      _
    $region15: #{_generator_forward_impl.9} parent=1 // pred_check_branch
      %1515 = sbr.rel (0) target = $region17
    $region16: #{_generator_forward_impl.9} parent=1 // pred_region
      _
    $region17: #{_generator_forward_impl.9} parent=1 // pred_fallthru
      _
    // Predicated region
    $region18: #{_generator_forward_impl.9} parent=1 // pred_check
      _
    $region19: #{_generator_forward_impl.9} parent=1 // pred_check_branch
      %1517 = sbr.rel (0) target = $region21
    $region20: #{_generator_forward_impl.9} parent=1 // pred_region
      _
    $region21: #{_generator_forward_impl.9} parent=1 // pred_fallthru
      _
    // Predicated region
    $region22: #{_generator_forward_impl.9} parent=1 // pred_check
      _
    $region23: #{_generator_forward_impl.9} parent=1 // pred_check_branch
      %1519 = sbr.rel (0) target = $region25
    $region24: #{_generator_forward_impl.9} parent=1 // pred_region
      _
    $region25: #{_generator_forward_impl.9} parent=1 // pred_fallthru
      _
    // Predicated region
    $region26: #{_generator_forward_impl.9} parent=1 // pred_check
      _
    $region27: #{_generator_forward_impl.9} parent=1 // pred_check_branch
      %1521 = sbr.rel (0) target = $region29
    $region28: #{_generator_forward_impl.9} parent=1 // pred_region
      _
    $region29: #{_generator_forward_impl.9} parent=1 // pred_fallthru
      _
    %1522 = vsyncpa [#allocation3], 1

// kernel: _generator_forward_impl.11
$region0: #{_generator_forward_impl.11}
  #allocation0 [shape = 'u32[]', space=smem, size = 0x4, offset = 0x4, fixed_abs, tag = 'smem constant byte address 0x4 - core index']
  #allocation1 [shape = 'u32[144,128]{1,0:T(1,128)}', space=vmem, size = 0x12000, scoped, tag = 'internal scratch']
  %s0 = inlined_call_operand.vmem [shape: bf16[4,32,256], index: 0, kind: input, shape index: {}]
  %s1 = inlined_call_operand.hbm [shape: bf16[4,256,128], index: 1, kind: input, shape index: {}]
  %s2 = inlined_call_operand.vmem [shape: bf16[4,32,128], index: 2, kind: output, shape index: {0}]
  %s3 = inlined_call_operand.vmem [shape: f32[4,1,2,128], index: 3, kind: output, shape index: {1}]
  %4 = xla_tuple %s2, %s3
  %s5 = sld [smem:[#allocation0]]
  $region53: #{_generator_forward_impl.11} parent=0
    _
  %s7 = ssub.s32 1, %s5
  %s8 = scalar_select 0, %s7, %s5
  $region1: #{_generator_forward_impl.11} parent=0
    #allocation2 [shape = 'u8[131072]{0}', space=vmem, size = 0x20000, scoped, tag = 'input window, operand 1']
    #allocation3 [shape = 's32[2]{0}', space=sflag, size = 0x8, scoped, tag = 'scoped memory for _generator_forward_impl.11']
    %9 = vsyncpa [#allocation3], 0
    %s10 = scalar_lea.sflag [#allocation3], 1
    %11 = vsyncpa %s10, 0
    loop: start=0, step=1, limit=6
    $region2: #{_generator_forward_impl.11} parent=1 // loop_pre_header
      _
    $region3: #{_generator_forward_impl.11} parent=1 // loop_header
      %s13 = sphi 0, %s17
      %p14 = scmp.ge.s32.totalorder %s13, 6
      %s20 = sphi 0, %s32
      %s21 = sphi 0, %s28
      %s22 = sphi 0, %s20
      %s23 = sphi 0, %s21
      %s24 = sphi 0, %s22
      %s25 = sphi 0, %s23
      %s37 = sphi 0, %s39
      %s40 = sphi 0, %s37
      %s41 = sphi 0, %s40
      %s57 = sphi 0, %s41
      %s63 = sphi 0, %s65
      %s66 = sphi 0, %s63
      %s67 = sphi 0, %s66
      %s83 = sphi 0, %s67
      %s91 = sphi 0, %s93
      %s94 = sphi 0, %s91
      %s95 = sphi 0, %s94
      %s111 = sphi 0, %s95
      %s119 = sphi 0, %s121
      %s122 = sphi 0, %s119
      %s123 = sphi 0, %s122
      %s139 = sphi 0, %s123
    $region4: #{_generator_forward_impl.11} parent=1 // loop_header_branch
      %16 = sbr.rel (%p14) target = $region8
    $region5: #{_generator_forward_impl.11} parent=1 // loop_body
      %s18 = ssub.s32 %s13, 1
      %s19 = ssub.s32 %s13, 2
      %s26 = sadd.s32 1, %s21
      %p27 = scmp.ge.s32.totalorder %s26, 1
      %s28 = scalar_select %p27, 0, %s26
      %s29 = sadd.s32 1, %s20
      %s30 = scalar_select %p27, %s29, %s20
      %p31 = scmp.ge.s32.totalorder %s30, 4
      %s32 = scalar_select %p31, 0, %s30
      %s33 = ssub.s32 %s20, %s32
      %s34 = ssub.s32 %s21, %s28
      %s35 = sor.u32 %s33, %s34
      %p36 = scmp.eq.s32.totalorder %s35, 0
      %s38 = sadd.s32 %s37, 1
      %s39 = scalar_select %p36, %s37, %s38
      %p42 = pneg %p36
      %p43 = scmp.eq.s32.totalorder %s13, 3
      %p44 = por %p42, %p43
      %p45 = scmp.ne.s32.totalorder %s37, %s40
      %p46 = scmp.eq.s32.totalorder %s13, 0
      %p47 = por %p45, %p46
      %p48 = scmp.ne.s32.totalorder %s37, %s40
      %p49 = scmp.eq.s32.totalorder %s18, 3
      %p50 = por %p48, %p49
      %p51 = scmp.ne.s32.totalorder %s40, %s41
      %p52 = scmp.eq.s32.totalorder %s18, 0
      %p53 = por %p51, %p52
      %p54 = scmp.ne.s32.totalorder %s40, %s41
      %p55 = scmp.eq.s32.totalorder %s19, 3
      %p56 = por %p54, %p55
      %p58 = scmp.ne.s32.totalorder %s41, %s57
      %p59 = scmp.eq.s32.totalorder %s19, 0
      %p60 = por %p58, %p59
      %s61 = ssub.s32 %s20, %s32
      %p62 = scmp.eq.s32.totalorder %s61, 0
      %s64 = sadd.s32 %s63, 1
      %s65 = scalar_select %p62, %s63, %s64
      %p68 = pneg %p62
      %p69 = scmp.eq.s32.totalorder %s13, 3
      %p70 = por %p68, %p69
      %p71 = scmp.ne.s32.totalorder %s63, %s66
      %p72 = scmp.eq.s32.totalorder %s13, 0
      %p73 = por %p71, %p72
      %p74 = scmp.ne.s32.totalorder %s63, %s66
      %p75 = scmp.eq.s32.totalorder %s18, 3
      %p76 = por %p74, %p75
      %p77 = scmp.ne.s32.totalorder %s66, %s67
      %p78 = scmp.eq.s32.totalorder %s18, 0
      %p79 = por %p77, %p78
      %p80 = scmp.ne.s32.totalorder %s66, %s67
      %p81 = scmp.eq.s32.totalorder %s19, 3
      %p82 = por %p80, %p81
      %p84 = scmp.ne.s32.totalorder %s67, %s83
      %p85 = scmp.eq.s32.totalorder %s19, 0
      %p86 = por %p84, %p85
      %s87 = ssub.s32 %s20, %s32
      %s88 = ssub.s32 %s21, %s28
      %s89 = sor.u32 %s87, %s88
      %p90 = scmp.eq.s32.totalorder %s89, 0
      %s92 = sadd.s32 %s91, 1
      %s93 = scalar_select %p90, %s91, %s92
      %p96 = pneg %p90
      %p97 = scmp.eq.s32.totalorder %s13, 3
      %p98 = por %p96, %p97
      %p99 = scmp.ne.s32.totalorder %s91, %s94
      %p100 = scmp.eq.s32.totalorder %s13, 0
      %p101 = por %p99, %p100
      %p102 = scmp.ne.s32.totalorder %s91, %s94
      %p103 = scmp.eq.s32.totalorder %s18, 3
      %p104 = por %p102, %p103
      %p105 = scmp.ne.s32.totalorder %s94, %s95
      %p106 = scmp.eq.s32.totalorder %s18, 0
      %p107 = por %p105, %p106
      %p108 = scmp.ne.s32.totalorder %s94, %s95
      %p109 = scmp.eq.s32.totalorder %s19, 3
      %p110 = por %p108, %p109
      %p112 = scmp.ne.s32.totalorder %s95, %s111
      %p113 = scmp.eq.s32.totalorder %s19, 0
      %p114 = por %p112, %p113
      %s115 = ssub.s32 %s20, %s32
      %s116 = ssub.s32 %s21, %s28
      %s117 = sor.u32 %s115, %s116
      %p118 = scmp.eq.s32.totalorder %s117, 0
      %s120 = sadd.s32 %s119, 1
      %s121 = scalar_select %p118, %s119, %s120
      %p124 = pneg %p118
      %p125 = scmp.eq.s32.totalorder %s13, 3
      %p126 = por %p124, %p125
      %p127 = scmp.ne.s32.totalorder %s119, %s122
      %p128 = scmp.eq.s32.totalorder %s13, 0
      %p129 = por %p127, %p128
      %p130 = scmp.ne.s32.totalorder %s119, %s122
      %p131 = scmp.eq.s32.totalorder %s18, 3
      %p132 = por %p130, %p131
      %p133 = scmp.ne.s32.totalorder %s122, %s123
      %p134 = scmp.eq.s32.totalorder %s18, 0
      %p135 = por %p133, %p134
      %p136 = scmp.ne.s32.totalorder %s122, %s123
      %p137 = scmp.eq.s32.totalorder %s19, 3
      %p138 = por %p136, %p137
      %p140 = scmp.ne.s32.totalorder %s123, %s139
      %p141 = scmp.eq.s32.totalorder %s19, 0
      %p142 = por %p140, %p141
      %p143 = scmp.le.s32.totalorder 1, %s13
      %p144 = scmp.lt.s32.totalorder %s13, 5
      %p145 = pnand %p143, %p144
      %p146 = pneg %p145
      // Predicated region
      $region9: #{_generator_forward_impl.11} parent=5 // pred_check
        _
      $region10: #{_generator_forward_impl.11} parent=5 // pred_check_branch
        %148 = sbr.rel (%p145) target = $region12
      $region11: #{_generator_forward_impl.11} parent=5 // pred_region
        %s149 = ssub.s32 %s13, 1
      $region12: #{_generator_forward_impl.11} parent=5 // pred_fallthru
        _
      %p150 = scmp.lt.s32.totalorder %s13, 4
      // Predicated region
      $region13: #{_generator_forward_impl.11} parent=5 // pred_check
        %p151 = pneg %p150
      $region14: #{_generator_forward_impl.11} parent=5 // pred_check_branch
        %153 = sbr.rel (%p151) target = $region16
      $region15: #{_generator_forward_impl.11} parent=5 // pred_region
        // Predicated region
        $region17: #{_generator_forward_impl.11} parent=15 // pred_check
          %p154 = pneg %p47
        $region18: #{_generator_forward_impl.11} parent=15 // pred_check_branch
          %156 = sbr.rel (%p154) target = $region20
        $region19: #{_generator_forward_impl.11} parent=15 // pred_region
          %s157 = smul.u32 4, %s21
          %p158 = scmp.lt.s32.totalorder %s20, 3
          %s159 = scalar_select %p158, %s20, 3
          %p160 = scmp.lt.s32.totalorder %s157, 3
          %s161 = scalar_select %p160, %s157, 3
          %s162 = smul.addr %s161, 2
          %s163 = smul.addr %s159, 8
          %s164 = sadd.s32 %s162, %s163
          %s165 = smul.addr %s164, 4
          %s166 = scalar_lea.vmem %s0, %s165
          %s167 = smul.u32 4, %s21
        $region20: #{_generator_forward_impl.11} parent=15 // pred_fallthru
          _
        // Predicated region
        $region21: #{_generator_forward_impl.11} parent=15 // pred_check
          %p168 = pneg %p73
        $region22: #{_generator_forward_impl.11} parent=15 // pred_check_branch
          %170 = sbr.rel (%p168) target = $region24
        $region23: #{_generator_forward_impl.11} parent=15 // pred_region
          %s171 = sand.u32 %s63, 1
          %s172 = scalar_lea.sflag [#allocation3], %s171
          %s173 = sand.u32 %s63, 1
          %s174 = smul.addr %s173, 128
          %s175 = scalar_lea.vmem [#allocation2], %s174
          %s177 = ssub.s32 2048, 2048
          %178 = vsyncadd %s172, %s177
          %s179 = smul.addr %s20, 32
          %s180 = smul.addr %s179, 64
          %s181 = scalar_lea.hbm %s1, %s180
          %s182 = sshll.u32 %s175, 4
          %s183 = int_to_ptr.vmem [resolvable:$true] %s182
          %188 = dma.hbm_to_vmem [thread:$0]  %s181, 2048, %s183, %s172, 64, 64, 4
        $region24: #{_generator_forward_impl.11} parent=15 // pred_fallthru
          _
      $region16: #{_generator_forward_impl.11} parent=5 // pred_fallthru
        _
      %p189 = scmp.le.s32.totalorder 1, %s13
      %p190 = scmp.lt.s32.totalorder %s13, 5
      %p191 = pnand %p189, %p190
      %p192 = pneg %p191
      // Predicated region
      $region25: #{_generator_forward_impl.11} parent=5 // pred_check
        _
      $region26: #{_generator_forward_impl.11} parent=5 // pred_check_branch
        %194 = sbr.rel (%p191) target = $region28
      $region27: #{_generator_forward_impl.11} parent=5 // pred_region
        %s195 = ssub.s32 %s13, 1
        %s196 = sand.u32 %s66, 1
        %s197 = scalar_lea.sflag [#allocation3], %s196
        %s198 = sand.u32 %s66, 1
        %s199 = smul.addr %s198, 128
        %s200 = scalar_lea.vmem [#allocation2], %s199
        // Predicated region
        $region29: #{_generator_forward_impl.11} parent=27 // pred_check
          %p201 = pneg %p79
        $region30: #{_generator_forward_impl.11} parent=27 // pred_check_branch
          %203 = sbr.rel (%p201) target = $region32
        $region31: #{_generator_forward_impl.11} parent=27 // pred_region
          %204 = dma.done %s197, 2048
        $region32: #{_generator_forward_impl.11} parent=27 // pred_fallthru
          _
        %s205 = smul.u32 4, %s23
        %p206 = scmp.lt.s32.totalorder %s22, 3
        %s207 = scalar_select %p206, %s22, 3
        %p208 = scmp.lt.s32.totalorder %s205, 3
        %s209 = scalar_select %p208, %s205, 3
        %s210 = smul.addr %s209, 2
        %s211 = smul.addr %s207, 8
        %s212 = sadd.s32 %s210, %s211
        %s213 = smul.addr %s212, 4
        %s214 = scalar_lea.vmem %s0, %s213
        %p215 = pneg %p53
        %p216 = pneg %p50
        %s217 = sand.u32 %s66, 1
        %s218 = scalar_lea.sflag [#allocation3], %s217
        %s219 = sand.u32 %s66, 1
        %s220 = smul.addr %s219, 128
        %s221 = scalar_lea.vmem [#allocation2], %s220
        %p222 = pneg %p79
        %p223 = pneg %p76
        %p224 = pneg %p107
        %p225 = pneg %p104
        %s226 = smul.u32 4, %s23
        %p227 = scmp.lt.s32.totalorder %s22, 3
        %s228 = scalar_select %p227, %s22, 3
        %p229 = scmp.lt.s32.totalorder %s226, 3
        %s230 = scalar_select %p229, %s226, 3
        %s231 = smul.addr %s228, 4
        %s232 = sadd.s32 %s230, %s231
        %s233 = smul.addr %s232, 4
        %s234 = scalar_lea.vmem %s2, %s233
        %p235 = pneg %p135
        %p236 = pneg %p132
        %p237 = scmp.lt.s32.totalorder %s22, 3
        %s238 = scalar_select %p237, %s22, 3
        %p239 = scmp.lt.s32.totalorder %s23, 0
        %s240 = scalar_select %p239, %s23, 0
        %s241 = sadd.s32 %s240, %s238
        %s242 = smul.addr %s241, 2
        %s243 = scalar_lea.vmem %s3, %s242
        %s244 = smul.u32 4, %s23
        %p245 = scmp.lt.s32.totalorder %s22, 3
        %s246 = scalar_select %p245, %s22, 3
        %p247 = scmp.lt.s32.totalorder %s244, 3
        %s248 = scalar_select %p247, %s244, 3
        %s249 = smul.addr %s248, 2
        %s250 = smul.addr %s246, 8
        %s251 = sadd.s32 %s249, %s250
        %s252 = smul.addr %s251, 4
        %s253 = scalar_lea.vmem %s0, %s252
        %s254 = smul.u32 4, %s23
        %s255 = smul.u32 4, %s23
        %p256 = scmp.lt.s32.totalorder %s22, 3
        %s257 = scalar_select %p256, %s22, 3
        %p258 = scmp.lt.s32.totalorder %s255, 3
        %s259 = scalar_select %p258, %s255, 3
        %s260 = smul.addr %s257, 4
        %s261 = sadd.s32 %s259, %s260
        %s262 = smul.addr %s261, 4
        %s263 = scalar_lea.vmem %s2, %s262
        %s264 = smul.u32 4, %s23
        %p265 = scmp.lt.s32.totalorder %s22, 3
        %s266 = scalar_select %p265, %s22, 3
        %p267 = scmp.lt.s32.totalorder %s23, 0
        %s268 = scalar_select %p267, %s23, 0
        %s269 = sadd.s32 %s268, %s266
        %s270 = smul.addr %s269, 2
        %s271 = scalar_lea.vmem %s3, %s270
        %v273 = vld [vmem:[%s253] sm:$0xff]
        %v274 = vld [vmem:[%s253 + $0x8] sm:$0xff]
        %v275 = vld [vmem:[%s253 + $0x10] sm:$0xff]
        %v276 = vld [vmem:[%s253 + $0x18] sm:$0xff]
        %v277 = vld [vmem:[%s200] sm:$0xf]
        %v278 = vld [vmem:[%s200 + $0x4] sm:$0xf]
        %v279 = vld [vmem:[%s200 + $0x8] sm:$0xf]
        %v280 = vld [vmem:[%s200 + $0xc] sm:$0xf]
        %v281 = vld [vmem:[%s200 + $0x10] sm:$0xf]
        %v282 = vld [vmem:[%s200 + $0x14] sm:$0xf]
        %v283 = vld [vmem:[%s200 + $0x18] sm:$0xf]
        %v284 = vld [vmem:[%s200 + $0x1c] sm:$0xf]
        %v285 = vld [vmem:[%s200 + $0x20] sm:$0xf]
        %v286 = vld [vmem:[%s200 + $0x24] sm:$0xf]
        %v287 = vld [vmem:[%s200 + $0x28] sm:$0xf]
        %v288 = vld [vmem:[%s200 + $0x2c] sm:$0xf]
        %v289 = vld [vmem:[%s200 + $0x30] sm:$0xf]
        %v290 = vld [vmem:[%s200 + $0x34] sm:$0xf]
        %v291 = vld [vmem:[%s200 + $0x38] sm:$0xf]
        %v292 = vld [vmem:[%s200 + $0x3c] sm:$0xf]
        %v293 = vld [vmem:[%s200 + $0x40] sm:$0xf]
        %v294 = vld [vmem:[%s200 + $0x44] sm:$0xf]
        %v295 = vld [vmem:[%s200 + $0x48] sm:$0xf]
        %v296 = vld [vmem:[%s200 + $0x4c] sm:$0xf]
        %v297 = vld [vmem:[%s200 + $0x50] sm:$0xf]
        %v298 = vld [vmem:[%s200 + $0x54] sm:$0xf]
        %v299 = vld [vmem:[%s200 + $0x58] sm:$0xf]
        %v300 = vld [vmem:[%s200 + $0x5c] sm:$0xf]
        %v301 = vld [vmem:[%s200 + $0x60] sm:$0xf]
        %v302 = vld [vmem:[%s200 + $0x64] sm:$0xf]
        %v303 = vld [vmem:[%s200 + $0x68] sm:$0xf]
        %v304 = vld [vmem:[%s200 + $0x6c] sm:$0xf]
        %v305 = vld [vmem:[%s200 + $0x70] sm:$0xf]
        %v306 = vld [vmem:[%s200 + $0x74] sm:$0xf]
        %v307 = vld [vmem:[%s200 + $0x78] sm:$0xf]
        %v308 = vld [vmem:[%s200 + $0x7c] sm:$0xf]
        %v313 = vunpack.c.l.b16 %v273
        %v314 = vunpack.c.h.b16 %v273
        %v315 = vunpack.c.l.b16 %v274
        %v316 = vunpack.c.h.b16 %v274
        %v317 = vunpack.c.l.b16 %v275
        %v318 = vunpack.c.h.b16 %v275
        %v319 = vunpack.c.l.b16 %v276
        %v320 = vunpack.c.h.b16 %v276
        %v321 = vpack.c.b16 %v315, %v313
        %v322 = vpack.c.b16 %v316, %v314
        %v323 = vpack.c.b16 %v319, %v317
        %v324 = vpack.c.b16 %v320, %v318
        %v361 = vunpack.c.l.b16 %v277
        %v362 = vunpack.c.l.b16 %v278
        %v363 = vunpack.c.l.b16 %v279
        %v364 = vunpack.c.l.b16 %v280
        %v365 = vunpack.c.l.b16 %v281
        %v366 = vunpack.c.l.b16 %v282
        %v367 = vunpack.c.l.b16 %v283
        %v368 = vunpack.c.l.b16 %v284
        %v369 = vunpack.c.l.b16 %v285
        %v370 = vunpack.c.l.b16 %v286
        %v371 = vunpack.c.l.b16 %v287
        %v372 = vunpack.c.l.b16 %v288
        %v373 = vunpack.c.l.b16 %v289
        %v374 = vunpack.c.l.b16 %v290
        %v375 = vunpack.c.l.b16 %v291
        %v376 = vunpack.c.l.b16 %v292
        %v377 = vunpack.c.l.b16 %v293
        %v378 = vunpack.c.l.b16 %v294
        %v379 = vunpack.c.l.b16 %v295
        %v380 = vunpack.c.l.b16 %v296
        %v381 = vunpack.c.l.b16 %v297
        %v382 = vunpack.c.l.b16 %v298
        %v383 = vunpack.c.l.b16 %v299
        %v384 = vunpack.c.l.b16 %v300
        %v385 = vunpack.c.l.b16 %v301
        %v386 = vunpack.c.l.b16 %v302
        %v387 = vunpack.c.l.b16 %v303
        %v388 = vunpack.c.l.b16 %v304
        %v389 = vunpack.c.l.b16 %v305
        %v390 = vunpack.c.l.b16 %v306
        %v391 = vunpack.c.l.b16 %v307
        %v392 = vunpack.c.l.b16 %v308
        %v393 = vpack.c.b16 %v362, %v361
        %v394 = vpack.c.b16 %v364, %v363
        %v395 = vpack.c.b16 %v366, %v365
        %v396 = vpack.c.b16 %v368, %v367
        %v397 = vpack.c.b16 %v370, %v369
        %v398 = vpack.c.b16 %v372, %v371
        %v399 = vpack.c.b16 %v374, %v373
        %v400 = vpack.c.b16 %v376, %v375
        %v401 = vpack.c.b16 %v378, %v377
        %v402 = vpack.c.b16 %v380, %v379
        %v403 = vpack.c.b16 %v382, %v381
        %v404 = vpack.c.b16 %v384, %v383
        %v405 = vpack.c.b16 %v386, %v385
        %v406 = vpack.c.b16 %v388, %v387
        %v407 = vpack.c.b16 %v390, %v389
        %v408 = vpack.c.b16 %v392, %v391
        %425 = vmatprep.subr.bf16.mxu0 0
        %426 = vmatpush1.bf16.msra.mxu0 %v393
        %427 = vmatprep.subr.bf16.mxu0 0
        %428 = vmatpush1.bf16.msra.mxu0 %v394
        %429 = vmatprep.subr.bf16.mxu0 0
        %430 = vmatpush1.bf16.msra.mxu0 %v395
        %431 = vmatprep.subr.bf16.mxu0 0
        %432 = vmatpush1.bf16.msra.mxu0 %v396
        %433 = vmatprep.subr.bf16.mxu0 0
        %434 = vmatpush1.bf16.msra.mxu0 %v397
        %435 = vmatprep.subr.bf16.mxu0 0
        %436 = vmatpush1.bf16.msra.mxu0 %v398
        %437 = vmatprep.subr.bf16.mxu0 0
        %438 = vmatpush1.bf16.msra.mxu0 %v399
        %439 = vmatprep.subr.bf16.mxu0 0
        %440 = vmatpush1.bf16.msra.mxu0 %v400
        %441 = vmatprep.subr.bf16.mxu0 0
        %442 = vmatpush1.bf16.msra.mxu0 %v401
        %443 = vmatprep.subr.bf16.mxu0 0
        %444 = vmatpush1.bf16.msra.mxu0 %v402
        %445 = vmatprep.subr.bf16.mxu0 0
        %446 = vmatpush1.bf16.msra.mxu0 %v403
        %447 = vmatprep.subr.bf16.mxu0 0
        %448 = vmatpush1.bf16.msra.mxu0 %v404
        %449 = vmatprep.subr.bf16.mxu0 0
        %450 = vmatpush1.bf16.msra.mxu0 %v405
        %451 = vmatprep.subr.bf16.mxu0 0
        %452 = vmatpush1.bf16.msra.mxu0 %v406
        %453 = vmatprep.subr.bf16.mxu0 0
        %454 = vmatpush1.bf16.msra.mxu0 %v407
        %455 = vmatprep.subr.bf16.mxu0 0
        %456 = vmatpush1.bf16.msra.mxu0 %v408
        %457 = vmatprep.mubr.bf16.mxu0 %v322
        %458 = vmatmul.mubr.bf16.gmra.mrb[0].mxu0 %v321
        %v459 = vpop.f32.mrb[0].mxu0
        %v460 = vadd.f32 0.0, %v459
        %v461 = vpop.f32.mrb[0].mxu0
        %v462 = vpop.f32.mrb[0].mxu0
        %v463 = vadd.f32 0.0, %v462
        %v464 = vpop.f32.mrb[0].mxu0
        %465 = vmatprep.mubr.bf16.mxu0 %v324
        %466 = vmatmul.mubr.bf16.gmra.mrb[0].mxu0 %v323
        %v467 = vpop.f32.mrb[0].mxu0
        %v468 = vadd.f32 0.0, %v467
        %v469 = vpop.f32.mrb[0].mxu0
        %v470 = vpop.f32.mrb[0].mxu0
        %v471 = vadd.f32 0.0, %v470
        %v472 = vpop.f32.mrb[0].mxu0
        %473 = vdwg.mxu0
        %v474 = vpack.c.bf16 %v463, %v460
        %v475 = vpack.c.bf16 %v471, %v468
        %v478 = vunpack.c.l.b16 %v474
        %v479 = vunpack.c.h.b16 %v474
        %v480 = vunpack.c.l.b16 %v475
        %v481 = vunpack.c.h.b16 %v475
        %v482 = vpack.c.b16 %v478, %v478
        %v483 = vpack.c.b16 %v479, %v479
        %v484 = vpack.c.b16 %v480, %v480
        %v485 = vpack.c.b16 %v481, %v481
        %490 = vst [vmem:[%s263] sm:$0xf] %v482
        %491 = vst [vmem:[%s263 + $0x4] sm:$0xf] %v483
        %492 = vst [vmem:[%s263 + $0x8] sm:$0xf] %v484
        %493 = vst [vmem:[%s263 + $0xc] sm:$0xf] %v485
        %v494 = vadd.f32 %v460, %v463
        %v495 = vadd.f32 %v494, %v468
        %v496 = vadd.f32 %v495, %v471
        %v497 = vrot.slane %v496, 4
        %v498 = vadd.f32 %v496, %v497
        %v499 = vrot.slane %v498, 2
        %v500 = vadd.f32 %v498, %v499
        %v501 = vrot.slane %v500, 1
        %v502 = vadd.f32 %v500, %v501
        %v503 = vmul.f32 %v460, %v460
        %v504 = vmul.f32 %v463, %v463
        %v505 = vmul.f32 %v468, %v468
        %v506 = vmul.f32 %v471, %v471
        %v507 = vadd.f32 %v503, %v504
        %v508 = vadd.f32 %v507, %v505
        %v509 = vadd.f32 %v508, %v506
        %v510 = vrot.slane %v509, 4
        %v511 = vadd.f32 %v509, %v510
        %v512 = vrot.slane %v511, 2
        %v513 = vadd.f32 %v511, %v512
        %v514 = vrot.slane %v513, 1
        %v515 = vadd.f32 %v513, %v514
        %vm516 = vcmask 1040384
        %v517 = vsel %vm516, %v502, %v515
        %518 = vst [vmem:[%s271] sm:$0x3] %v517
        %s519 = smul.u32 4, %s23
        %p520 = scmp.lt.s32.totalorder %s22, 3
        %s521 = scalar_select %p520, %s22, 3
        %p522 = scmp.lt.s32.totalorder %s519, 3
        %s523 = scalar_select %p522, %s519, 3
        %s524 = smul.addr %s521, 4
        %s525 = sadd.s32 %s523, %s524
        %s526 = smul.addr %s525, 4
        %s527 = scalar_lea.vmem %s2, %s526
        %p528 = scmp.lt.s32.totalorder %s22, 3
        %s529 = scalar_select %p528, %s22, 3
        %p530 = scmp.lt.s32.totalorder %s23, 0
        %s531 = scalar_select %p530, %s23, 0
        %s532 = sadd.s32 %s531, %s529
        %s533 = smul.addr %s532, 2
        %s534 = scalar_lea.vmem %s3, %s533
        // Predicated region
        $region33: #{_generator_forward_impl.11} parent=27 // pred_check
          %p535 = pneg %p104
        $region34: #{_generator_forward_impl.11} parent=27 // pred_check_branch
          %537 = sbr.rel (%p535) target = $region36
        $region35: #{_generator_forward_impl.11} parent=27 // pred_region
          %s538 = smul.u32 4, %s23
        $region36: #{_generator_forward_impl.11} parent=27 // pred_fallthru
          _
        // Predicated region
        $region37: #{_generator_forward_impl.11} parent=27 // pred_check
          %p539 = pneg %p132
        $region38: #{_generator_forward_impl.11} parent=27 // pred_check_branch
          %541 = sbr.rel (%p539) target = $region40
        $region39: #{_generator_forward_impl.11} parent=27 // pred_region
          _
        $region40: #{_generator_forward_impl.11} parent=27 // pred_fallthru
          _
      $region28: #{_generator_forward_impl.11} parent=5 // pred_fallthru
        _
      %p542 = scmp.le.s32.totalorder 2, %s13
      // Predicated region
      $region41: #{_generator_forward_impl.11} parent=5 // pred_check
        %p543 = pneg %p542
      $region42: #{_generator_forward_impl.11} parent=5 // pred_check_branch
        %545 = sbr.rel (%p543) target = $region44
      $region43: #{_generator_forward_impl.11} parent=5 // pred_region
        %s546 = ssub.s32 %s13, 2
        // Predicated region
        $region45: #{_generator_forward_impl.11} parent=43 // pred_check
          %p547 = pneg %p110
        $region46: #{_generator_forward_impl.11} parent=43 // pred_check_branch
          %549 = sbr.rel (%p547) target = $region48
        $region47: #{_generator_forward_impl.11} parent=43 // pred_region
          %s550 = smul.u32 4, %s25
          %p551 = scmp.lt.s32.totalorder %s24, 3
          %s552 = scalar_select %p551, %s24, 3
          %p553 = scmp.lt.s32.totalorder %s550, 3
          %s554 = scalar_select %p553, %s550, 3
          %s555 = smul.addr %s552, 4
          %s556 = sadd.s32 %s554, %s555
          %s557 = smul.addr %s556, 4
          %s558 = scalar_lea.vmem %s2, %s557
        $region48: #{_generator_forward_impl.11} parent=43 // pred_fallthru
          _
        // Predicated region
        $region49: #{_generator_forward_impl.11} parent=43 // pred_check
          %p559 = pneg %p138
        $region50: #{_generator_forward_impl.11} parent=43 // pred_check_branch
          %561 = sbr.rel (%p559) target = $region52
        $region51: #{_generator_forward_impl.11} parent=43 // pred_region
          %p562 = scmp.lt.s32.totalorder %s24, 3
          %s563 = scalar_select %p562, %s24, 3
          %p564 = scmp.lt.s32.totalorder %s25, 0
          %s565 = scalar_select %p564, %s25, 0
          %s566 = sadd.s32 %s565, %s563
          %s567 = smul.addr %s566, 2
          %s568 = scalar_lea.vmem %s3, %s567
        $region52: #{_generator_forward_impl.11} parent=43 // pred_fallthru
          _
      $region44: #{_generator_forward_impl.11} parent=5 // pred_fallthru
        _
    $region6: #{_generator_forward_impl.11} parent=1 // loop_footer
      %s17 = sadd.s32 1, %s13
    $region7: #{_generator_forward_impl.11} parent=1 // loop_footer_branch
      %12 = sbr.rel target = $region3
    $region8: #{_generator_forward_impl.11} parent=1 // loop_exit
      _
    %569 = vsyncpa [#allocation3], 1
    %s570 = scalar_lea.sflag [#allocation3], 1
    %571 = vsyncpa %s570, 1

// kernel: _generator_forward_impl.12
$region0: #{_generator_forward_impl.12}
  #allocation0 [shape = 'u32[]', space=smem, size = 0x4, offset = 0x4, fixed_abs, tag = 'smem constant byte address 0x4 - core index']
  #allocation1 [shape = 'u32[144,128]{1,0:T(1,128)}', space=vmem, size = 0x12000, scoped, tag = 'internal scratch']
  %s0 = inlined_call_operand.vmem [shape: bf16[4,32,128], index: 0, kind: input, shape index: {}]
  %s1 = inlined_call_operand.vmem [shape: f32[1,128], index: 1, kind: input, shape index: {}]
  %s2 = inlined_call_operand.vmem [shape: f32[1,128], index: 2, kind: input, shape index: {}]
  %s3 = inlined_call_operand.vmem [shape: bf16[4,32,128], index: 3, kind: output, shape index: {}]
  %s4 = sld [smem:[#allocation0]]
  $region45: #{_generator_forward_impl.12} parent=0
    _
  %s6 = ssub.s32 1, %s4
  %s7 = scalar_select 0, %s6, %s4
  loop: start=0, step=1, limit=6
  $region2: #{_generator_forward_impl.12} parent=0 // loop_pre_header
    _
  $region3: #{_generator_forward_impl.12} parent=0 // loop_header
    %s9 = sphi 0, %s13
    %p10 = scmp.ge.s32.totalorder %s9, 6
    %s16 = sphi 0, %s28
    %s17 = sphi 0, %s24
    %s18 = sphi 0, %s16
    %s19 = sphi 0, %s17
    %s20 = sphi 0, %s18
    %s21 = sphi 0, %s19
    %s33 = sphi 0, %s35
    %s36 = sphi 0, %s33
    %s37 = sphi 0, %s36
    %s53 = sphi 0, %s37
    %s57 = sphi 0, %s57
    %s59 = sphi 0, %s57
    %s60 = sphi 0, %s59
    %s74 = sphi 0, %s60
    %s78 = sphi 0, %s78
    %s80 = sphi 0, %s78
    %s81 = sphi 0, %s80
    %s95 = sphi 0, %s81
    %s103 = sphi 0, %s105
    %s106 = sphi 0, %s103
    %s107 = sphi 0, %s106
    %s123 = sphi 0, %s107
  $region4: #{_generator_forward_impl.12} parent=0 // loop_header_branch
    %12 = sbr.rel (%p10) target = $region8
  $region5: #{_generator_forward_impl.12} parent=0 // loop_body
    %s14 = ssub.s32 %s9, 1
    %s15 = ssub.s32 %s9, 2
    %s22 = sadd.s32 1, %s17
    %p23 = scmp.ge.s32.totalorder %s22, 1
    %s24 = scalar_select %p23, 0, %s22
    %s25 = sadd.s32 1, %s16
    %s26 = scalar_select %p23, %s25, %s16
    %p27 = scmp.ge.s32.totalorder %s26, 4
    %s28 = scalar_select %p27, 0, %s26
    %s29 = ssub.s32 %s16, %s28
    %s30 = ssub.s32 %s17, %s24
    %s31 = sor.u32 %s29, %s30
    %p32 = scmp.eq.s32.totalorder %s31, 0
    %s34 = sadd.s32 %s33, 1
    %s35 = scalar_select %p32, %s33, %s34
    %p38 = pneg %p32
    %p39 = scmp.eq.s32.totalorder %s9, 3
    %p40 = por %p38, %p39
    %p41 = scmp.ne.s32.totalorder %s33, %s36
    %p42 = scmp.eq.s32.totalorder %s9, 0
    %p43 = por %p41, %p42
    %p44 = scmp.ne.s32.totalorder %s33, %s36
    %p45 = scmp.eq.s32.totalorder %s14, 3
    %p46 = por %p44, %p45
    %p47 = scmp.ne.s32.totalorder %s36, %s37
    %p48 = scmp.eq.s32.totalorder %s14, 0
    %p49 = por %p47, %p48
    %p50 = scmp.ne.s32.totalorder %s36, %s37
    %p51 = scmp.eq.s32.totalorder %s15, 3
    %p52 = por %p50, %p51
    %p54 = scmp.ne.s32.totalorder %s37, %s53
    %p55 = scmp.eq.s32.totalorder %s15, 0
    %p56 = por %p54, %p55
    %s58 = sadd.s32 %s57, 1
    %p61 = scmp.eq.s32.totalorder %s9, 3
    %p62 = scmp.ne.s32.totalorder %s57, %s59
    %p63 = scmp.eq.s32.totalorder %s9, 0
    %p64 = por %p62, %p63
    %p65 = scmp.ne.s32.totalorder %s57, %s59
    %p66 = scmp.eq.s32.totalorder %s14, 3
    %p67 = por %p65, %p66
    %p68 = scmp.ne.s32.totalorder %s59, %s60
    %p69 = scmp.eq.s32.totalorder %s14, 0
    %p70 = por %p68, %p69
    %p71 = scmp.ne.s32.totalorder %s59, %s60
    %p72 = scmp.eq.s32.totalorder %s15, 3
    %p73 = por %p71, %p72
    %p75 = scmp.ne.s32.totalorder %s60, %s74
    %p76 = scmp.eq.s32.totalorder %s15, 0
    %p77 = por %p75, %p76
    %s79 = sadd.s32 %s78, 1
    %p82 = scmp.eq.s32.totalorder %s9, 3
    %p83 = scmp.ne.s32.totalorder %s78, %s80
    %p84 = scmp.eq.s32.totalorder %s9, 0
    %p85 = por %p83, %p84
    %p86 = scmp.ne.s32.totalorder %s78, %s80
    %p87 = scmp.eq.s32.totalorder %s14, 3
    %p88 = por %p86, %p87
    %p89 = scmp.ne.s32.totalorder %s80, %s81
    %p90 = scmp.eq.s32.totalorder %s14, 0
    %p91 = por %p89, %p90
    %p92 = scmp.ne.s32.totalorder %s80, %s81
    %p93 = scmp.eq.s32.totalorder %s15, 3
    %p94 = por %p92, %p93
    %p96 = scmp.ne.s32.totalorder %s81, %s95
    %p97 = scmp.eq.s32.totalorder %s15, 0
    %p98 = por %p96, %p97
    %s99 = ssub.s32 %s16, %s28
    %s100 = ssub.s32 %s17, %s24
    %s101 = sor.u32 %s99, %s100
    %p102 = scmp.eq.s32.totalorder %s101, 0
    %s104 = sadd.s32 %s103, 1
    %s105 = scalar_select %p102, %s103, %s104
    %p108 = pneg %p102
    %p109 = scmp.eq.s32.totalorder %s9, 3
    %p110 = por %p108, %p109
    %p111 = scmp.ne.s32.totalorder %s103, %s106
    %p112 = scmp.eq.s32.totalorder %s9, 0
    %p113 = por %p111, %p112
    %p114 = scmp.ne.s32.totalorder %s103, %s106
    %p115 = scmp.eq.s32.totalorder %s14, 3
    %p116 = por %p114, %p115
    %p117 = scmp.ne.s32.totalorder %s106, %s107
    %p118 = scmp.eq.s32.totalorder %s14, 0
    %p119 = por %p117, %p118
    %p120 = scmp.ne.s32.totalorder %s106, %s107
    %p121 = scmp.eq.s32.totalorder %s15, 3
    %p122 = por %p120, %p121
    %p124 = scmp.ne.s32.totalorder %s107, %s123
    %p125 = scmp.eq.s32.totalorder %s15, 0
    %p126 = por %p124, %p125
    %p127 = scmp.le.s32.totalorder 1, %s9
    %p128 = scmp.lt.s32.totalorder %s9, 5
    %p129 = pnand %p127, %p128
    %p130 = pneg %p129
    // Predicated region
    $region9: #{_generator_forward_impl.12} parent=5 // pred_check
      _
    $region10: #{_generator_forward_impl.12} parent=5 // pred_check_branch
      %132 = sbr.rel (%p129) target = $region12
    $region11: #{_generator_forward_impl.12} parent=5 // pred_region
      %s133 = ssub.s32 %s9, 1
      // Predicated region
      $region13: #{_generator_forward_impl.12} parent=11 // pred_check
        %p134 = pneg %p70
      $region14: #{_generator_forward_impl.12} parent=11 // pred_check_branch
        %136 = sbr.rel (%p134) target = $region16
      $region15: #{_generator_forward_impl.12} parent=11 // pred_region
        _
      $region16: #{_generator_forward_impl.12} parent=11 // pred_fallthru
        _
      // Predicated region
      $region17: #{_generator_forward_impl.12} parent=11 // pred_check
        %p137 = pneg %p91
      $region18: #{_generator_forward_impl.12} parent=11 // pred_check_branch
        %139 = sbr.rel (%p137) target = $region20
      $region19: #{_generator_forward_impl.12} parent=11 // pred_region
        _
      $region20: #{_generator_forward_impl.12} parent=11 // pred_fallthru
        _
    $region12: #{_generator_forward_impl.12} parent=5 // pred_fallthru
      _
    %p140 = scmp.lt.s32.totalorder %s9, 4
    // Predicated region
    $region21: #{_generator_forward_impl.12} parent=5 // pred_check
      %p141 = pneg %p140
    $region22: #{_generator_forward_impl.12} parent=5 // pred_check_branch
      %143 = sbr.rel (%p141) target = $region24
    $region23: #{_generator_forward_impl.12} parent=5 // pred_region
      // Predicated region
      $region25: #{_generator_forward_impl.12} parent=23 // pred_check
        %p144 = pneg %p43
      $region26: #{_generator_forward_impl.12} parent=23 // pred_check_branch
        %146 = sbr.rel (%p144) target = $region28
      $region27: #{_generator_forward_impl.12} parent=23 // pred_region
        %s147 = smul.u32 4, %s17
        %p148 = scmp.lt.s32.totalorder %s16, 3
        %s149 = scalar_select %p148, %s16, 3
        %p150 = scmp.lt.s32.totalorder %s147, 3
        %s151 = scalar_select %p150, %s147, 3
        %s152 = smul.addr %s149, 4
        %s153 = sadd.s32 %s151, %s152
        %s154 = smul.addr %s153, 4
        %s155 = scalar_lea.vmem %s0, %s154
        %s156 = smul.u32 4, %s17
      $region28: #{_generator_forward_impl.12} parent=23 // pred_fallthru
        _
    $region24: #{_generator_forward_impl.12} parent=5 // pred_fallthru
      _
    %p157 = scmp.le.s32.totalorder 1, %s9
    %p158 = scmp.lt.s32.totalorder %s9, 5
    %p159 = pnand %p157, %p158
    %p160 = pneg %p159
    // Predicated region
    $region29: #{_generator_forward_impl.12} parent=5 // pred_check
      _
    $region30: #{_generator_forward_impl.12} parent=5 // pred_check_branch
      %162 = sbr.rel (%p159) target = $region32
    $region31: #{_generator_forward_impl.12} parent=5 // pred_region
      %s163 = ssub.s32 %s9, 1
      %s164 = smul.u32 4, %s19
      %p165 = scmp.lt.s32.totalorder %s18, 3
      %s166 = scalar_select %p165, %s18, 3
      %p167 = scmp.lt.s32.totalorder %s164, 3
      %s168 = scalar_select %p167, %s164, 3
      %s169 = smul.addr %s166, 4
      %s170 = sadd.s32 %s168, %s169
      %s171 = smul.addr %s170, 4
      %s172 = scalar_lea.vmem %s0, %s171
      %p173 = pneg %p49
      %p174 = pneg %p46
      %p175 = pneg %p70
      %p176 = pneg %p67
      %p177 = pneg %p91
      %p178 = pneg %p88
      %p179 = pneg %p119
      %p180 = pneg %p116
      %s181 = smul.u32 4, %s19
      %p182 = scmp.lt.s32.totalorder %s18, 3
      %s183 = scalar_select %p182, %s18, 3
      %p184 = scmp.lt.s32.totalorder %s181, 3
      %s185 = scalar_select %p184, %s181, 3
      %s186 = smul.addr %s183, 4
      %s187 = sadd.s32 %s185, %s186
      %s188 = smul.addr %s187, 4
      %s189 = scalar_lea.vmem %s3, %s188
      %s190 = smul.u32 4, %s19
      %p191 = scmp.lt.s32.totalorder %s18, 3
      %s192 = scalar_select %p191, %s18, 3
      %p193 = scmp.lt.s32.totalorder %s190, 3
      %s194 = scalar_select %p193, %s190, 3
      %s195 = smul.addr %s192, 4
      %s196 = sadd.s32 %s194, %s195
      %s197 = smul.addr %s196, 4
      %s198 = scalar_lea.vmem %s0, %s197
      %s199 = smul.u32 4, %s19
      %s200 = smul.u32 4, %s19
      %p201 = scmp.lt.s32.totalorder %s18, 3
      %s202 = scalar_select %p201, %s18, 3
      %p203 = scmp.lt.s32.totalorder %s200, 3
      %s204 = scalar_select %p203, %s200, 3
      %s205 = smul.addr %s202, 4
      %s206 = sadd.s32 %s204, %s205
      %s207 = smul.addr %s206, 4
      %s208 = scalar_lea.vmem %s3, %s207
      %s209 = smul.u32 4, %s19
      %v210 = vld [vmem:[%s198] sm:$0xf]
      %v211 = vld [vmem:[%s198 + $0x4] sm:$0xf]
      %v212 = vld [vmem:[%s198 + $0x8] sm:$0xf]
      %v213 = vld [vmem:[%s198 + $0xc] sm:$0xf]
      %v214 = vunpack.c.l.bf16 %v210
      %v215 = vunpack.c.l.bf16 %v211
      %v216 = vunpack.c.l.bf16 %v212
      %v217 = vunpack.c.l.bf16 %v213
      %v218 = vld [vmem:[%s1] sm:$0x1]
      %v220 = vlaneseq
      %v221 = vshrl.u32 %v220, 7
      %v222 = vsub.s32 0, %v221
      %v223 = vrot.slane %v218, %v222
      %v225 = vmul.f32 %v214, %v223
      %v226 = vmul.f32 %v215, %v223
      %v227 = vmul.f32 %v216, %v223
      %v228 = vmul.f32 %v217, %v223
      %v229 = vld [vmem:[%s2] sm:$0x1]
      %v231 = vlaneseq
      %v232 = vshrl.u32 %v231, 7
      %v233 = vsub.s32 0, %v232
      %v234 = vrot.slane %v229, %v233
      %v236 = vadd.f32 %v225, %v234
      %v237 = vadd.f32 %v226, %v234
      %v238 = vadd.f32 %v227, %v234
      %v239 = vadd.f32 %v228, %v234
      %v240 = vmax.f32 %v236, 0.0
      %v241 = vmax.f32 %v237, 0.0
      %v242 = vmax.f32 %v238, 0.0
      %v243 = vmax.f32 %v239, 0.0
      %v244 = vpack.c.bf16 %v241, %v240
      %v245 = vpack.c.bf16 %v243, %v242
      %v248 = vunpack.c.l.b16 %v244
      %v249 = vunpack.c.h.b16 %v244
      %v250 = vunpack.c.l.b16 %v245
      %v251 = vunpack.c.h.b16 %v245
      %v252 = vpack.c.b16 %v248, %v248
      %v253 = vpack.c.b16 %v249, %v249
      %v254 = vpack.c.b16 %v250, %v250
      %v255 = vpack.c.b16 %v251, %v251
      %260 = vst [vmem:[%s208] sm:$0xf] %v252
      %261 = vst [vmem:[%s208 + $0x4] sm:$0xf] %v253
      %262 = vst [vmem:[%s208 + $0x8] sm:$0xf] %v254
      %263 = vst [vmem:[%s208 + $0xc] sm:$0xf] %v255
      %s264 = smul.u32 4, %s19
      %p265 = scmp.lt.s32.totalorder %s18, 3
      %s266 = scalar_select %p265, %s18, 3
      %p267 = scmp.lt.s32.totalorder %s264, 3
      %s268 = scalar_select %p267, %s264, 3
      %s269 = smul.addr %s266, 4
      %s270 = sadd.s32 %s268, %s269
      %s271 = smul.addr %s270, 4
      %s272 = scalar_lea.vmem %s3, %s271
      // Predicated region
      $region33: #{_generator_forward_impl.12} parent=31 // pred_check
        %p273 = pneg %p116
      $region34: #{_generator_forward_impl.12} parent=31 // pred_check_branch
        %275 = sbr.rel (%p273) target = $region36
      $region35: #{_generator_forward_impl.12} parent=31 // pred_region
        %s276 = smul.u32 4, %s19
      $region36: #{_generator_forward_impl.12} parent=31 // pred_fallthru
        _
    $region32: #{_generator_forward_impl.12} parent=5 // pred_fallthru
      _
    %p277 = scmp.le.s32.totalorder 2, %s9
    // Predicated region
    $region37: #{_generator_forward_impl.12} parent=5 // pred_check
      %p278 = pneg %p277
    $region38: #{_generator_forward_impl.12} parent=5 // pred_check_branch
      %280 = sbr.rel (%p278) target = $region40
    $region39: #{_generator_forward_impl.12} parent=5 // pred_region
      %s281 = ssub.s32 %s9, 2
      // Predicated region
      $region41: #{_generator_forward_impl.12} parent=39 // pred_check
        %p282 = pneg %p122
      $region42: #{_generator_forward_impl.12} parent=39 // pred_check_branch
        %284 = sbr.rel (%p282) target = $region44
      $region43: #{_generator_forward_impl.12} parent=39 // pred_region
        %s285 = smul.u32 4, %s21
        %p286 = scmp.lt.s32.totalorder %s20, 3
        %s287 = scalar_select %p286, %s20, 3
        %p288 = scmp.lt.s32.totalorder %s285, 3
        %s289 = scalar_select %p288, %s285, 3
        %s290 = smul.addr %s287, 4
        %s291 = sadd.s32 %s289, %s290
        %s292 = smul.addr %s291, 4
        %s293 = scalar_lea.vmem %s3, %s292
      $region44: #{_generator_forward_impl.12} parent=39 // pred_fallthru
        _
    $region40: #{_generator_forward_impl.12} parent=5 // pred_fallthru
      _
  $region6: #{_generator_forward_impl.12} parent=0 // loop_footer
    %s13 = sadd.s32 1, %s9
  $region7: #{_generator_forward_impl.12} parent=0 // loop_footer_branch
    %8 = sbr.rel target = $region3
  $region8: #{_generator_forward_impl.12} parent=0 // loop_exit
    _

// kernel: _generator_forward_impl.13
$region0: #{_generator_forward_impl.13}
  #allocation0 [shape = 'u32[]', space=smem, size = 0x4, offset = 0x4, fixed_abs, tag = 'smem constant byte address 0x4 - core index']
  #allocation1 [shape = 'u32[144,128]{1,0:T(1,128)}', space=vmem, size = 0x12000, scoped, tag = 'internal scratch']
  %s0 = inlined_call_operand.vmem [shape: bf16[4,128,128], index: 0, kind: input, shape index: {}]
  %s1 = inlined_call_operand.vmem [shape: bf16[4,128,128], index: 1, kind: input, shape index: {}]
  %s2 = inlined_call_operand.vmem [shape: bf16[4,128,128], index: 2, kind: output, shape index: {0}]
  %s3 = inlined_call_operand.vmem [shape: f32[4,1,2,128], index: 3, kind: output, shape index: {1}]
  %4 = xla_tuple %s2, %s3
  %s5 = sld [smem:[#allocation0]]
  $region49: #{_generator_forward_impl.13} parent=0
    _
  %s7 = ssub.s32 1, %s5
  %s8 = scalar_select 0, %s7, %s5
  loop: start=0, step=1, limit=6
  $region2: #{_generator_forward_impl.13} parent=0 // loop_pre_header
    _
  $region3: #{_generator_forward_impl.13} parent=0 // loop_header
    %s10 = sphi 0, %s14
    %p11 = scmp.ge.s32.totalorder %s10, 6
    %s17 = sphi 0, %s29
    %s18 = sphi 0, %s25
    %s19 = sphi 0, %s17
    %s20 = sphi 0, %s18
    %s21 = sphi 0, %s19
    %s22 = sphi 0, %s20
    %s34 = sphi 0, %s36
    %s37 = sphi 0, %s34
    %s38 = sphi 0, %s37
    %s54 = sphi 0, %s38
    %s60 = sphi 0, %s62
    %s63 = sphi 0, %s60
    %s64 = sphi 0, %s63
    %s80 = sphi 0, %s64
    %s88 = sphi 0, %s90
    %s91 = sphi 0, %s88
    %s92 = sphi 0, %s91
    %s108 = sphi 0, %s92
    %s116 = sphi 0, %s118
    %s119 = sphi 0, %s116
    %s120 = sphi 0, %s119
    %s136 = sphi 0, %s120
  $region4: #{_generator_forward_impl.13} parent=0 // loop_header_branch
    %13 = sbr.rel (%p11) target = $region8
  $region5: #{_generator_forward_impl.13} parent=0 // loop_body
    %s15 = ssub.s32 %s10, 1
    %s16 = ssub.s32 %s10, 2
    %s23 = sadd.s32 1, %s18
    %p24 = scmp.ge.s32.totalorder %s23, 1
    %s25 = scalar_select %p24, 0, %s23
    %s26 = sadd.s32 1, %s17
    %s27 = scalar_select %p24, %s26, %s17
    %p28 = scmp.ge.s32.totalorder %s27, 4
    %s29 = scalar_select %p28, 0, %s27
    %s30 = ssub.s32 %s17, %s29
    %s31 = ssub.s32 %s18, %s25
    %s32 = sor.u32 %s30, %s31
    %p33 = scmp.eq.s32.totalorder %s32, 0
    %s35 = sadd.s32 %s34, 1
    %s36 = scalar_select %p33, %s34, %s35
    %p39 = pneg %p33
    %p40 = scmp.eq.s32.totalorder %s10, 3
    %p41 = por %p39, %p40
    %p42 = scmp.ne.s32.totalorder %s34, %s37
    %p43 = scmp.eq.s32.totalorder %s10, 0
    %p44 = por %p42, %p43
    %p45 = scmp.ne.s32.totalorder %s34, %s37
    %p46 = scmp.eq.s32.totalorder %s15, 3
    %p47 = por %p45, %p46
    %p48 = scmp.ne.s32.totalorder %s37, %s38
    %p49 = scmp.eq.s32.totalorder %s15, 0
    %p50 = por %p48, %p49
    %p51 = scmp.ne.s32.totalorder %s37, %s38
    %p52 = scmp.eq.s32.totalorder %s16, 3
    %p53 = por %p51, %p52
    %p55 = scmp.ne.s32.totalorder %s38, %s54
    %p56 = scmp.eq.s32.totalorder %s16, 0
    %p57 = por %p55, %p56
    %s58 = ssub.s32 %s17, %s29
    %p59 = scmp.eq.s32.totalorder %s58, 0
    %s61 = sadd.s32 %s60, 1
    %s62 = scalar_select %p59, %s60, %s61
    %p65 = pneg %p59
    %p66 = scmp.eq.s32.totalorder %s10, 3
    %p67 = por %p65, %p66
    %p68 = scmp.ne.s32.totalorder %s60, %s63
    %p69 = scmp.eq.s32.totalorder %s10, 0
    %p70 = por %p68, %p69
    %p71 = scmp.ne.s32.totalorder %s60, %s63
    %p72 = scmp.eq.s32.totalorder %s15, 3
    %p73 = por %p71, %p72
    %p74 = scmp.ne.s32.totalorder %s63, %s64
    %p75 = scmp.eq.s32.totalorder %s15, 0
    %p76 = por %p74, %p75
    %p77 = scmp.ne.s32.totalorder %s63, %s64
    %p78 = scmp.eq.s32.totalorder %s16, 3
    %p79 = por %p77, %p78
    %p81 = scmp.ne.s32.totalorder %s64, %s80
    %p82 = scmp.eq.s32.totalorder %s16, 0
    %p83 = por %p81, %p82
    %s84 = ssub.s32 %s17, %s29
    %s85 = ssub.s32 %s18, %s25
    %s86 = sor.u32 %s84, %s85
    %p87 = scmp.eq.s32.totalorder %s86, 0
    %s89 = sadd.s32 %s88, 1
    %s90 = scalar_select %p87, %s88, %s89
    %p93 = pneg %p87
    %p94 = scmp.eq.s32.totalorder %s10, 3
    %p95 = por %p93, %p94
    %p96 = scmp.ne.s32.totalorder %s88, %s91
    %p97 = scmp.eq.s32.totalorder %s10, 0
    %p98 = por %p96, %p97
    %p99 = scmp.ne.s32.totalorder %s88, %s91
    %p100 = scmp.eq.s32.totalorder %s15, 3
    %p101 = por %p99, %p100
    %p102 = scmp.ne.s32.totalorder %s91, %s92
    %p103 = scmp.eq.s32.totalorder %s15, 0
    %p104 = por %p102, %p103
    %p105 = scmp.ne.s32.totalorder %s91, %s92
    %p106 = scmp.eq.s32.totalorder %s16, 3
    %p107 = por %p105, %p106
    %p109 = scmp.ne.s32.totalorder %s92, %s108
    %p110 = scmp.eq.s32.totalorder %s16, 0
    %p111 = por %p109, %p110
    %s112 = ssub.s32 %s17, %s29
    %s113 = ssub.s32 %s18, %s25
    %s114 = sor.u32 %s112, %s113
    %p115 = scmp.eq.s32.totalorder %s114, 0
    %s117 = sadd.s32 %s116, 1
    %s118 = scalar_select %p115, %s116, %s117
    %p121 = pneg %p115
    %p122 = scmp.eq.s32.totalorder %s10, 3
    %p123 = por %p121, %p122
    %p124 = scmp.ne.s32.totalorder %s116, %s119
    %p125 = scmp.eq.s32.totalorder %s10, 0
    %p126 = por %p124, %p125
    %p127 = scmp.ne.s32.totalorder %s116, %s119
    %p128 = scmp.eq.s32.totalorder %s15, 3
    %p129 = por %p127, %p128
    %p130 = scmp.ne.s32.totalorder %s119, %s120
    %p131 = scmp.eq.s32.totalorder %s15, 0
    %p132 = por %p130, %p131
    %p133 = scmp.ne.s32.totalorder %s119, %s120
    %p134 = scmp.eq.s32.totalorder %s16, 3
    %p135 = por %p133, %p134
    %p137 = scmp.ne.s32.totalorder %s120, %s136
    %p138 = scmp.eq.s32.totalorder %s16, 0
    %p139 = por %p137, %p138
    %p140 = scmp.le.s32.totalorder 1, %s10
    %p141 = scmp.lt.s32.totalorder %s10, 5
    %p142 = pnand %p140, %p141
    %p143 = pneg %p142
    // Predicated region
    $region9: #{_generator_forward_impl.13} parent=5 // pred_check
      _
    $region10: #{_generator_forward_impl.13} parent=5 // pred_check_branch
      %145 = sbr.rel (%p142) target = $region12
    $region11: #{_generator_forward_impl.13} parent=5 // pred_region
      %s146 = ssub.s32 %s10, 1
    $region12: #{_generator_forward_impl.13} parent=5 // pred_fallthru
      _
    %p147 = scmp.lt.s32.totalorder %s10, 4
    // Predicated region
    $region13: #{_generator_forward_impl.13} parent=5 // pred_check
      %p148 = pneg %p147
    $region14: #{_generator_forward_impl.13} parent=5 // pred_check_branch
      %150 = sbr.rel (%p148) target = $region16
    $region15: #{_generator_forward_impl.13} parent=5 // pred_region
      // Predicated region
      $region17: #{_generator_forward_impl.13} parent=15 // pred_check
        %p151 = pneg %p44
      $region18: #{_generator_forward_impl.13} parent=15 // pred_check_branch
        %153 = sbr.rel (%p151) target = $region20
      $region19: #{_generator_forward_impl.13} parent=15 // pred_region
        %s154 = smul.u32 16, %s18
        %p155 = scmp.lt.s32.totalorder %s17, 3
        %s156 = scalar_select %p155, %s17, 3
        %p157 = scmp.lt.s32.totalorder %s154, 15
        %s158 = scalar_select %p157, %s154, 15
        %s159 = smul.addr %s156, 16
        %s160 = sadd.s32 %s158, %s159
        %s161 = smul.addr %s160, 4
        %s162 = scalar_lea.vmem %s0, %s161
        %s163 = smul.u32 16, %s18
      $region20: #{_generator_forward_impl.13} parent=15 // pred_fallthru
        _
      // Predicated region
      $region21: #{_generator_forward_impl.13} parent=15 // pred_check
        %p164 = pneg %p70
      $region22: #{_generator_forward_impl.13} parent=15 // pred_check_branch
        %166 = sbr.rel (%p164) target = $region24
      $region23: #{_generator_forward_impl.13} parent=15 // pred_region
        %p167 = scmp.lt.s32.totalorder %s17, 3
        %s168 = scalar_select %p167, %s17, 3
        %s169 = smul.addr %s168, 16
        %s170 = smul.addr %s169, 4
        %s171 = scalar_lea.vmem %s1, %s170
      $region24: #{_generator_forward_impl.13} parent=15 // pred_fallthru
        _
    $region16: #{_generator_forward_impl.13} parent=5 // pred_fallthru
      _
    %p172 = scmp.le.s32.totalorder 1, %s10
    %p173 = scmp.lt.s32.totalorder %s10, 5
    %p174 = pnand %p172, %p173
    %p175 = pneg %p174
    // Predicated region
    $region25: #{_generator_forward_impl.13} parent=5 // pred_check
      _
    $region26: #{_generator_forward_impl.13} parent=5 // pred_check_branch
      %177 = sbr.rel (%p174) target = $region28
    $region27: #{_generator_forward_impl.13} parent=5 // pred_region
      %s178 = ssub.s32 %s10, 1
      %s179 = smul.u32 16, %s20
      %p180 = scmp.lt.s32.totalorder %s19, 3
      %s181 = scalar_select %p180, %s19, 3
      %p182 = scmp.lt.s32.totalorder %s179, 15
      %s183 = scalar_select %p182, %s179, 15
      %s184 = smul.addr %s181, 16
      %s185 = sadd.s32 %s183, %s184
      %s186 = smul.addr %s185, 4
      %s187 = scalar_lea.vmem %s0, %s186
      %p188 = pneg %p50
      %p189 = pneg %p47
      %p190 = scmp.lt.s32.totalorder %s19, 3
      %s191 = scalar_select %p190, %s19, 3
      %s192 = smul.addr %s191, 16
      %s193 = smul.addr %s192, 4
      %s194 = scalar_lea.vmem %s1, %s193
      %p195 = pneg %p76
      %p196 = pneg %p73
      %p197 = pneg %p104
      %p198 = pneg %p101
      %s199 = smul.u32 16, %s20
      %p200 = scmp.lt.s32.totalorder %s19, 3
      %s201 = scalar_select %p200, %s19, 3
      %p202 = scmp.lt.s32.totalorder %s199, 15
      %s203 = scalar_select %p202, %s199, 15
      %s204 = smul.addr %s201, 16
      %s205 = sadd.s32 %s203, %s204
      %s206 = smul.addr %s205, 4
      %s207 = scalar_lea.vmem %s2, %s206
      %p208 = pneg %p132
      %p209 = pneg %p129
      %p210 = scmp.lt.s32.totalorder %s19, 3
      %s211 = scalar_select %p210, %s19, 3
      %p212 = scmp.lt.s32.totalorder %s20, 0
      %s213 = scalar_select %p212, %s20, 0
      %s214 = sadd.s32 %s213, %s211
      %s215 = smul.addr %s214, 2
      %s216 = scalar_lea.vmem %s3, %s215
      %s217 = smul.u32 16, %s20
      %p218 = scmp.lt.s32.totalorder %s19, 3
      %s219 = scalar_select %p218, %s19, 3
      %p220 = scmp.lt.s32.totalorder %s217, 15
      %s221 = scalar_select %p220, %s217, 15
      %s222 = smul.addr %s219, 16
      %s223 = sadd.s32 %s221, %s222
      %s224 = smul.addr %s223, 4
      %s225 = scalar_lea.vmem %s0, %s224
      %s226 = smul.u32 16, %s20
      %p227 = scmp.lt.s32.totalorder %s19, 3
      %s228 = scalar_select %p227, %s19, 3
      %s229 = smul.addr %s228, 16
      %s230 = smul.addr %s229, 4
      %s231 = scalar_lea.vmem %s1, %s230
      %s232 = smul.u32 16, %s20
      %p233 = scmp.lt.s32.totalorder %s19, 3
      %s234 = scalar_select %p233, %s19, 3
      %p235 = scmp.lt.s32.totalorder %s232, 15
      %s236 = scalar_select %p235, %s232, 15
      %s237 = smul.addr %s234, 16
      %s238 = sadd.s32 %s236, %s237
      %s239 = smul.addr %s238, 4
      %s240 = scalar_lea.vmem %s2, %s239
      %s241 = smul.u32 16, %s20
      %p242 = scmp.lt.s32.totalorder %s19, 3
      %s243 = scalar_select %p242, %s19, 3
      %p244 = scmp.lt.s32.totalorder %s20, 0
      %s245 = scalar_select %p244, %s20, 0
      %s246 = sadd.s32 %s245, %s243
      %s247 = smul.addr %s246, 2
      %s248 = scalar_lea.vmem %s3, %s247
      %v250 = vld [vmem:[%s225] sm:$0xf]
      %v251 = vld [vmem:[%s225 + $0x4] sm:$0xf]
      %v252 = vld [vmem:[%s225 + $0x8] sm:$0xf]
      %v253 = vld [vmem:[%s225 + $0xc] sm:$0xf]
      %v254 = vld [vmem:[%s225 + $0x10] sm:$0xf]
      %v255 = vld [vmem:[%s225 + $0x14] sm:$0xf]
      %v256 = vld [vmem:[%s225 + $0x18] sm:$0xf]
      %v257 = vld [vmem:[%s225 + $0x1c] sm:$0xf]
      %v258 = vld [vmem:[%s225 + $0x20] sm:$0xf]
      %v259 = vld [vmem:[%s225 + $0x24] sm:$0xf]
      %v260 = vld [vmem:[%s225 + $0x28] sm:$0xf]
      %v261 = vld [vmem:[%s225 + $0x2c] sm:$0xf]
      %v262 = vld [vmem:[%s225 + $0x30] sm:$0xf]
      %v263 = vld [vmem:[%s225 + $0x34] sm:$0xf]
      %v264 = vld [vmem:[%s225 + $0x38] sm:$0xf]
      %v265 = vld [vmem:[%s225 + $0x3c] sm:$0xf]
      %v266 = vld [vmem:[%s231] sm:$0xf]
      %v267 = vld [vmem:[%s231 + $0x4] sm:$0xf]
      %v268 = vld [vmem:[%s231 + $0x8] sm:$0xf]
      %v269 = vld [vmem:[%s231 + $0xc] sm:$0xf]
      %v270 = vld [vmem:[%s231 + $0x10] sm:$0xf]
      %v271 = vld [vmem:[%s231 + $0x14] sm:$0xf]
      %v272 = vld [vmem:[%s231 + $0x18] sm:$0xf]
      %v273 = vld [vmem:[%s231 + $0x1c] sm:$0xf]
      %v274 = vld [vmem:[%s231 + $0x20] sm:$0xf]
      %v275 = vld [vmem:[%s231 + $0x24] sm:$0xf]
      %v276 = vld [vmem:[%s231 + $0x28] sm:$0xf]
      %v277 = vld [vmem:[%s231 + $0x2c] sm:$0xf]
      %v278 = vld [vmem:[%s231 + $0x30] sm:$0xf]
      %v279 = vld [vmem:[%s231 + $0x34] sm:$0xf]
      %v280 = vld [vmem:[%s231 + $0x38] sm:$0xf]
      %v281 = vld [vmem:[%s231 + $0x3c] sm:$0xf]
      %v298 = vunpack.c.l.b16 %v250
      %v299 = vunpack.c.l.b16 %v251
      %v300 = vunpack.c.l.b16 %v252
      %v301 = vunpack.c.l.b16 %v253
      %v302 = vunpack.c.l.b16 %v254
      %v303 = vunpack.c.l.b16 %v255
      %v304 = vunpack.c.l.b16 %v256
      %v305 = vunpack.c.l.b16 %v257
      %v306 = vunpack.c.l.b16 %v258
      %v307 = vunpack.c.l.b16 %v259
      %v308 = vunpack.c.l.b16 %v260
      %v309 = vunpack.c.l.b16 %v261
      %v310 = vunpack.c.l.b16 %v262
      %v311 = vunpack.c.l.b16 %v263
      %v312 = vunpack.c.l.b16 %v264
      %v313 = vunpack.c.l.b16 %v265
      %v314 = vpack.c.b16 %v299, %v298
      %v315 = vpack.c.b16 %v301, %v300
      %v316 = vpack.c.b16 %v303, %v302
      %v317 = vpack.c.b16 %v305, %v304
      %v318 = vpack.c.b16 %v307, %v306
      %v319 = vpack.c.b16 %v309, %v308
      %v320 = vpack.c.b16 %v311, %v310
      %v321 = vpack.c.b16 %v313, %v312
      %v346 = vunpack.c.l.b16 %v266
      %v347 = vunpack.c.l.b16 %v267
      %v348 = vunpack.c.l.b16 %v268
      %v349 = vunpack.c.l.b16 %v269
      %v350 = vunpack.c.l.b16 %v270
      %v351 = vunpack.c.l.b16 %v271
      %v352 = vunpack.c.l.b16 %v272
      %v353 = vunpack.c.l.b16 %v273
      %v354 = vunpack.c.l.b16 %v274
      %v355 = vunpack.c.l.b16 %v275
      %v356 = vunpack.c.l.b16 %v276
      %v357 = vunpack.c.l.b16 %v277
      %v358 = vunpack.c.l.b16 %v278
      %v359 = vunpack.c.l.b16 %v279
      %v360 = vunpack.c.l.b16 %v280
      %v361 = vunpack.c.l.b16 %v281
      %v362 = vpack.c.b16 %v347, %v346
      %v363 = vpack.c.b16 %v349, %v348
      %v364 = vpack.c.b16 %v351, %v350
      %v365 = vpack.c.b16 %v353, %v352
      %v366 = vpack.c.b16 %v355, %v354
      %v367 = vpack.c.b16 %v357, %v356
      %v368 = vpack.c.b16 %v359, %v358
      %v369 = vpack.c.b16 %v361, %v360
      %378 = vmatprep.subr.bf16.mxu0 0
      %379 = vmatpush1.bf16.msra.mxu0 %v362
      %380 = vmatprep.subr.bf16.mxu0 0
      %381 = vmatpush1.bf16.msra.mxu0 %v363
      %382 = vmatprep.subr.bf16.mxu0 0
      %383 = vmatpush1.bf16.msra.mxu0 %v364
      %384 = vmatprep.subr.bf16.mxu0 0
      %385 = vmatpush1.bf16.msra.mxu0 %v365
      %386 = vmatprep.subr.bf16.mxu0 0
      %387 = vmatpush1.bf16.msra.mxu0 %v366
      %388 = vmatprep.subr.bf16.mxu0 0
      %389 = vmatpush1.bf16.msra.mxu0 %v367
      %390 = vmatprep.subr.bf16.mxu0 0
      %391 = vmatpush1.bf16.msra.mxu0 %v368
      %392 = vmatprep.subr.bf16.mxu0 0
      %393 = vmatpush1.bf16.msra.mxu0 %v369
      %394 = vmatprep.subr.bf16.mxu0 0
      %395 = vmatpush1.bf16.msra.mxu0 0
      %396 = vmatprep.subr.bf16.mxu0 0
      %397 = vmatpush1.bf16.msra.mxu0 0
      %398 = vmatprep.subr.bf16.mxu0 0
      %399 = vmatpush1.bf16.msra.mxu0 0
      %400 = vmatprep.subr.bf16.mxu0 0
      %401 = vmatpush1.bf16.msra.mxu0 0
      %402 = vmatprep.subr.bf16.mxu0 0
      %403 = vmatpush1.bf16.msra.mxu0 0
      %404 = vmatprep.subr.bf16.mxu0 0
      %405 = vmatpush1.bf16.msra.mxu0 0
      %406 = vmatprep.subr.bf16.mxu0 0
      %407 = vmatpush1.bf16.msra.mxu0 0
      %408 = vmatprep.subr.bf16.mxu0 0
      %409 = vmatpush1.bf16.msra.mxu0 0
      %410 = vmatprep.mubr.bf16.mxu0 0
      %411 = vmatmul.mubr.bf16.gmra.mrb[0].mxu0 %v314
      %v412 = vpop.f32.mrb[0].mxu0
      %v413 = vadd.f32 0.0, %v412
      %v414 = vpop.f32.mrb[0].mxu0
      %v415 = vpop.f32.mrb[0].mxu0
      %v416 = vadd.f32 0.0, %v415
      %v417 = vpop.f32.mrb[0].mxu0
      %418 = vmatprep.mubr.bf16.mxu0 0
      %419 = vmatmul.mubr.bf16.gmra.mrb[0].mxu0 %v315
      %v420 = vpop.f32.mrb[0].mxu0
      %v421 = vadd.f32 0.0, %v420
      %v422 = vpop.f32.mrb[0].mxu0
      %v423 = vpop.f32.mrb[0].mxu0
      %v424 = vadd.f32 0.0, %v423
      %v425 = vpop.f32.mrb[0].mxu0
      %426 = vmatprep.mubr.bf16.mxu0 0
      %427 = vmatmul.mubr.bf16.gmra.mrb[0].mxu0 %v316
      %v428 = vpop.f32.mrb[0].mxu0
      %v429 = vadd.f32 0.0, %v428
      %v430 = vpop.f32.mrb[0].mxu0
      %v431 = vpop.f32.mrb[0].mxu0
      %v432 = vadd.f32 0.0, %v431
      %v433 = vpop.f32.mrb[0].mxu0
      %434 = vmatprep.mubr.bf16.mxu0 0
      %435 = vmatmul.mubr.bf16.gmra.mrb[0].mxu0 %v317
      %v436 = vpop.f32.mrb[0].mxu0
      %v437 = vadd.f32 0.0, %v436
      %v438 = vpop.f32.mrb[0].mxu0
      %v439 = vpop.f32.mrb[0].mxu0
      %v440 = vadd.f32 0.0, %v439
      %v441 = vpop.f32.mrb[0].mxu0
      %442 = vmatprep.mubr.bf16.mxu0 0
      %443 = vmatmul.mubr.bf16.gmra.mrb[0].mxu0 %v318
      %v444 = vpop.f32.mrb[0].mxu0
      %v445 = vadd.f32 0.0, %v444
      %v446 = vpop.f32.mrb[0].mxu0
      %v447 = vpop.f32.mrb[0].mxu0
      %v448 = vadd.f32 0.0, %v447
      %v449 = vpop.f32.mrb[0].mxu0
      %450 = vmatprep.mubr.bf16.mxu0 0
      %451 = vmatmul.mubr.bf16.gmra.mrb[0].mxu0 %v319
      %v452 = vpop.f32.mrb[0].mxu0
      %v453 = vadd.f32 0.0, %v452
      %v454 = vpop.f32.mrb[0].mxu0
      %v455 = vpop.f32.mrb[0].mxu0
      %v456 = vadd.f32 0.0, %v455
      %v457 = vpop.f32.mrb[0].mxu0
      %458 = vmatprep.mubr.bf16.mxu0 0
      %459 = vmatmul.mubr.bf16.gmra.mrb[0].mxu0 %v320
      %v460 = vpop.f32.mrb[0].mxu0
      %v461 = vadd.f32 0.0, %v460
      %v462 = vpop.f32.mrb[0].mxu0
      %v463 = vpop.f32.mrb[0].mxu0
      %v464 = vadd.f32 0.0, %v463
      %v465 = vpop.f32.mrb[0].mxu0
      %466 = vmatprep.mubr.bf16.mxu0 0
      %467 = vmatmul.mubr.bf16.gmra.mrb[0].mxu0 %v321
      %v468 = vpop.f32.mrb[0].mxu0
      %v469 = vadd.f32 0.0, %v468
      %v470 = vpop.f32.mrb[0].mxu0
      %v471 = vpop.f32.mrb[0].mxu0
      %v472 = vadd.f32 0.0, %v471
      %v473 = vpop.f32.mrb[0].mxu0
      %474 = vdwg.mxu0
      %v475 = vpack.c.bf16 %v416, %v413
      %v476 = vpack.c.bf16 %v424, %v421
      %v477 = vpack.c.bf16 %v432, %v429
      %v478 = vpack.c.bf16 %v440, %v437
      %v479 = vpack.c.bf16 %v448, %v445
      %v480 = vpack.c.bf16 %v456, %v453
      %v481 = vpack.c.bf16 %v464, %v461
      %v482 = vpack.c.bf16 %v472, %v469
      %v491 = vunpack.c.l.b16 %v475
      %v492 = vunpack.c.h.b16 %v475
      %v493 = vunpack.c.l.b16 %v476
      %v494 = vunpack.c.h.b16 %v476
      %v495 = vunpack.c.l.b16 %v477
      %v496 = vunpack.c.h.b16 %v477
      %v497 = vunpack.c.l.b16 %v478
      %v498 = vunpack.c.h.b16 %v478
      %v499 = vunpack.c.l.b16 %v479
      %v500 = vunpack.c.h.b16 %v479
      %v501 = vunpack.c.l.b16 %v480
      %v502 = vunpack.c.h.b16 %v480
      %v503 = vunpack.c.l.b16 %v481
      %v504 = vunpack.c.h.b16 %v481
      %v505 = vunpack.c.l.b16 %v482
      %v506 = vunpack.c.h.b16 %v482
      %v507 = vpack.c.b16 %v491, %v491
      %v508 = vpack.c.b16 %v492, %v492
      %v509 = vpack.c.b16 %v493, %v493
      %v510 = vpack.c.b16 %v494, %v494
      %v511 = vpack.c.b16 %v495, %v495
      %v512 = vpack.c.b16 %v496, %v496
      %v513 = vpack.c.b16 %v497, %v497
      %v514 = vpack.c.b16 %v498, %v498
      %v515 = vpack.c.b16 %v499, %v499
      %v516 = vpack.c.b16 %v500, %v500
      %v517 = vpack.c.b16 %v501, %v501
      %v518 = vpack.c.b16 %v502, %v502
      %v519 = vpack.c.b16 %v503, %v503
      %v520 = vpack.c.b16 %v504, %v504
      %v521 = vpack.c.b16 %v505, %v505
      %v522 = vpack.c.b16 %v506, %v506
      %539 = vst [vmem:[%s240] sm:$0xf] %v507
      %540 = vst [vmem:[%s240 + $0x4] sm:$0xf] %v508
      %541 = vst [vmem:[%s240 + $0x8] sm:$0xf] %v509
      %542 = vst [vmem:[%s240 + $0xc] sm:$0xf] %v510
      %543 = vst [vmem:[%s240 + $0x10] sm:$0xf] %v511
      %544 = vst [vmem:[%s240 + $0x14] sm:$0xf] %v512
      %545 = vst [vmem:[%s240 + $0x18] sm:$0xf] %v513
      %546 = vst [vmem:[%s240 + $0x1c] sm:$0xf] %v514
      %547 = vst [vmem:[%s240 + $0x20] sm:$0xf] %v515
      %548 = vst [vmem:[%s240 + $0x24] sm:$0xf] %v516
      %549 = vst [vmem:[%s240 + $0x28] sm:$0xf] %v517
      %550 = vst [vmem:[%s240 + $0x2c] sm:$0xf] %v518
      %551 = vst [vmem:[%s240 + $0x30] sm:$0xf] %v519
      %552 = vst [vmem:[%s240 + $0x34] sm:$0xf] %v520
      %553 = vst [vmem:[%s240 + $0x38] sm:$0xf] %v521
      %554 = vst [vmem:[%s240 + $0x3c] sm:$0xf] %v522
      %v555 = vadd.f32 %v413, %v416
      %v556 = vadd.f32 %v555, %v421
      %v557 = vadd.f32 %v556, %v424
      %v558 = vadd.f32 %v557, %v429
      %v559 = vadd.f32 %v558, %v432
      %v560 = vadd.f32 %v559, %v437
      %v561 = vadd.f32 %v560, %v440
      %v562 = vadd.f32 %v561, %v445
      %v563 = vadd.f32 %v562, %v448
      %v564 = vadd.f32 %v563, %v453
      %v565 = vadd.f32 %v564, %v456
      %v566 = vadd.f32 %v565, %v461
      %v567 = vadd.f32 %v566, %v464
      %v568 = vadd.f32 %v567, %v469
      %v569 = vadd.f32 %v568, %v472
      %v570 = vrot.slane %v569, 4
      %v571 = vadd.f32 %v569, %v570
      %v572 = vrot.slane %v571, 2
      %v573 = vadd.f32 %v571, %v572
      %v574 = vrot.slane %v573, 1
      %v575 = vadd.f32 %v573, %v574
      %v576 = vmul.f32 %v413, %v413
      %v577 = vmul.f32 %v416, %v416
      %v578 = vmul.f32 %v421, %v421
      %v579 = vmul.f32 %v424, %v424
      %v580 = vmul.f32 %v429, %v429
      %v581 = vmul.f32 %v432, %v432
      %v582 = vmul.f32 %v437, %v437
      %v583 = vmul.f32 %v440, %v440
      %v584 = vmul.f32 %v445, %v445
      %v585 = vmul.f32 %v448, %v448
      %v586 = vmul.f32 %v453, %v453
      %v587 = vmul.f32 %v456, %v456
      %v588 = vmul.f32 %v461, %v461
      %v589 = vmul.f32 %v464, %v464
      %v590 = vmul.f32 %v469, %v469
      %v591 = vmul.f32 %v472, %v472
      %v592 = vadd.f32 %v576, %v577
      %v593 = vadd.f32 %v592, %v578
      %v594 = vadd.f32 %v593, %v579
      %v595 = vadd.f32 %v594, %v580
      %v596 = vadd.f32 %v595, %v581
      %v597 = vadd.f32 %v596, %v582
      %v598 = vadd.f32 %v597, %v583
      %v599 = vadd.f32 %v598, %v584
      %v600 = vadd.f32 %v599, %v585
      %v601 = vadd.f32 %v600, %v586
      %v602 = vadd.f32 %v601, %v587
      %v603 = vadd.f32 %v602, %v588
      %v604 = vadd.f32 %v603, %v589
      %v605 = vadd.f32 %v604, %v590
      %v606 = vadd.f32 %v605, %v591
      %v607 = vrot.slane %v606, 4
      %v608 = vadd.f32 %v606, %v607
      %v609 = vrot.slane %v608, 2
      %v610 = vadd.f32 %v608, %v609
      %v611 = vrot.slane %v610, 1
      %v612 = vadd.f32 %v610, %v611
      %vm613 = vcmask 1040384
      %v614 = vsel %vm613, %v575, %v612
      %615 = vst [vmem:[%s248] sm:$0x3] %v614
      %s616 = smul.u32 16, %s20
      %p617 = scmp.lt.s32.totalorder %s19, 3
      %s618 = scalar_select %p617, %s19, 3
      %p619 = scmp.lt.s32.totalorder %s616, 15
      %s620 = scalar_select %p619, %s616, 15
      %s621 = smul.addr %s618, 16
      %s622 = sadd.s32 %s620, %s621
      %s623 = smul.addr %s622, 4
      %s624 = scalar_lea.vmem %s2, %s623
      %p625 = scmp.lt.s32.totalorder %s19, 3
      %s626 = scalar_select %p625, %s19, 3
      %p627 = scmp.lt.s32.totalorder %s20, 0
      %s628 = scalar_select %p627, %s20, 0
      %s629 = sadd.s32 %s628, %s626
      %s630 = smul.addr %s629, 2
      %s631 = scalar_lea.vmem %s3, %s630
      // Predicated region
      $region29: #{_generator_forward_impl.13} parent=27 // pred_check
        %p632 = pneg %p101
      $region30: #{_generator_forward_impl.13} parent=27 // pred_check_branch
        %634 = sbr.rel (%p632) target = $region32
      $region31: #{_generator_forward_impl.13} parent=27 // pred_region
        %s635 = smul.u32 16, %s20
      $region32: #{_generator_forward_impl.13} parent=27 // pred_fallthru
        _
      // Predicated region
      $region33: #{_generator_forward_impl.13} parent=27 // pred_check
        %p636 = pneg %p129
      $region34: #{_generator_forward_impl.13} parent=27 // pred_check_branch
        %638 = sbr.rel (%p636) target = $region36
      $region35: #{_generator_forward_impl.13} parent=27 // pred_region
        _
      $region36: #{_generator_forward_impl.13} parent=27 // pred_fallthru
        _
    $region28: #{_generator_forward_impl.13} parent=5 // pred_fallthru
      _
    %p639 = scmp.le.s32.totalorder 2, %s10
    // Predicated region
    $region37: #{_generator_forward_impl.13} parent=5 // pred_check
      %p640 = pneg %p639
    $region38: #{_generator_forward_impl.13} parent=5 // pred_check_branch
      %642 = sbr.rel (%p640) target = $region40
    $region39: #{_generator_forward_impl.13} parent=5 // pred_region
      %s643 = ssub.s32 %s10, 2
      // Predicated region
      $region41: #{_generator_forward_impl.13} parent=39 // pred_check
        %p644 = pneg %p107
      $region42: #{_generator_forward_impl.13} parent=39 // pred_check_branch
        %646 = sbr.rel (%p644) target = $region44
      $region43: #{_generator_forward_impl.13} parent=39 // pred_region
        %s647 = smul.u32 16, %s22
        %p648 = scmp.lt.s32.totalorder %s21, 3
        %s649 = scalar_select %p648, %s21, 3
        %p650 = scmp.lt.s32.totalorder %s647, 15
        %s651 = scalar_select %p650, %s647, 15
        %s652 = smul.addr %s649, 16
        %s653 = sadd.s32 %s651, %s652
        %s654 = smul.addr %s653, 4
        %s655 = scalar_lea.vmem %s2, %s654
      $region44: #{_generator_forward_impl.13} parent=39 // pred_fallthru
        _
      // Predicated region
      $region45: #{_generator_forward_impl.13} parent=39 // pred_check
        %p656 = pneg %p135
      $region46: #{_generator_forward_impl.13} parent=39 // pred_check_branch
        %658 = sbr.rel (%p656) target = $region48
      $region47: #{_generator_forward_impl.13} parent=39 // pred_region
        %p659 = scmp.lt.s32.totalorder %s21, 3
        %s660 = scalar_select %p659, %s21, 3
        %p661 = scmp.lt.s32.totalorder %s22, 0
        %s662 = scalar_select %p661, %s22, 0
        %s663 = sadd.s32 %s662, %s660
        %s664 = smul.addr %s663, 2
        %s665 = scalar_lea.vmem %s3, %s664
      $region48: #{_generator_forward_impl.13} parent=39 // pred_fallthru
        _
    $region40: #{_generator_forward_impl.13} parent=5 // pred_fallthru
      _
  $region6: #{_generator_forward_impl.13} parent=0 // loop_footer
    %s14 = sadd.s32 1, %s10
  $region7: #{_generator_forward_impl.13} parent=0 // loop_footer_branch
    %9 = sbr.rel target = $region3
  $region8: #{_generator_forward_impl.13} parent=0 // loop_exit
    _

// kernel: _generator_forward_impl.14
$region0: #{_generator_forward_impl.14}
  #allocation0 [shape = 'u32[]', space=smem, size = 0x4, offset = 0x4, fixed_abs, tag = 'smem constant byte address 0x4 - core index']
  #allocation1 [shape = 'u32[144,128]{1,0:T(1,128)}', space=vmem, size = 0x12000, scoped, tag = 'internal scratch']
  %s0 = inlined_call_operand.vmem [shape: bf16[4,128,128], index: 0, kind: input, shape index: {}]
  %s1 = inlined_call_operand.vmem [shape: f32[1,128], index: 1, kind: input, shape index: {}]
  %s2 = inlined_call_operand.vmem [shape: f32[1,128], index: 2, kind: input, shape index: {}]
  %s3 = inlined_call_operand.vmem [shape: bf16[4,128,128], index: 3, kind: output, shape index: {}]
  %s4 = sld [smem:[#allocation0]]
  $region45: #{_generator_forward_impl.14} parent=0
    _
  %s6 = ssub.s32 1, %s4
  %s7 = scalar_select 0, %s6, %s4
  loop: start=0, step=1, limit=6
  $region2: #{_generator_forward_impl.14} parent=0 // loop_pre_header
    _
  $region3: #{_generator_forward_impl.14} parent=0 // loop_header
    %s9 = sphi 0, %s13
    %p10 = scmp.ge.s32.totalorder %s9, 6
    %s16 = sphi 0, %s28
    %s17 = sphi 0, %s24
    %s18 = sphi 0, %s16
    %s19 = sphi 0, %s17
    %s20 = sphi 0, %s18
    %s21 = sphi 0, %s19
    %s33 = sphi 0, %s35
    %s36 = sphi 0, %s33
    %s37 = sphi 0, %s36
    %s53 = sphi 0, %s37
    %s57 = sphi 0, %s57
    %s59 = sphi 0, %s57
    %s60 = sphi 0, %s59
    %s74 = sphi 0, %s60
    %s78 = sphi 0, %s78
    %s80 = sphi 0, %s78
    %s81 = sphi 0, %s80
    %s95 = sphi 0, %s81
    %s103 = sphi 0, %s105
    %s106 = sphi 0, %s103
    %s107 = sphi 0, %s106
    %s123 = sphi 0, %s107
  $region4: #{_generator_forward_impl.14} parent=0 // loop_header_branch
    %12 = sbr.rel (%p10) target = $region8
  $region5: #{_generator_forward_impl.14} parent=0 // loop_body
    %s14 = ssub.s32 %s9, 1
    %s15 = ssub.s32 %s9, 2
    %s22 = sadd.s32 1, %s17
    %p23 = scmp.ge.s32.totalorder %s22, 1
    %s24 = scalar_select %p23, 0, %s22
    %s25 = sadd.s32 1, %s16
    %s26 = scalar_select %p23, %s25, %s16
    %p27 = scmp.ge.s32.totalorder %s26, 4
    %s28 = scalar_select %p27, 0, %s26
    %s29 = ssub.s32 %s16, %s28
    %s30 = ssub.s32 %s17, %s24
    %s31 = sor.u32 %s29, %s30
    %p32 = scmp.eq.s32.totalorder %s31, 0
    %s34 = sadd.s32 %s33, 1
    %s35 = scalar_select %p32, %s33, %s34
    %p38 = pneg %p32
    %p39 = scmp.eq.s32.totalorder %s9, 3
    %p40 = por %p38, %p39
    %p41 = scmp.ne.s32.totalorder %s33, %s36
    %p42 = scmp.eq.s32.totalorder %s9, 0
    %p43 = por %p41, %p42
    %p44 = scmp.ne.s32.totalorder %s33, %s36
    %p45 = scmp.eq.s32.totalorder %s14, 3
    %p46 = por %p44, %p45
    %p47 = scmp.ne.s32.totalorder %s36, %s37
    %p48 = scmp.eq.s32.totalorder %s14, 0
    %p49 = por %p47, %p48
    %p50 = scmp.ne.s32.totalorder %s36, %s37
    %p51 = scmp.eq.s32.totalorder %s15, 3
    %p52 = por %p50, %p51
    %p54 = scmp.ne.s32.totalorder %s37, %s53
    %p55 = scmp.eq.s32.totalorder %s15, 0
    %p56 = por %p54, %p55
    %s58 = sadd.s32 %s57, 1
    %p61 = scmp.eq.s32.totalorder %s9, 3
    %p62 = scmp.ne.s32.totalorder %s57, %s59
    %p63 = scmp.eq.s32.totalorder %s9, 0
    %p64 = por %p62, %p63
    %p65 = scmp.ne.s32.totalorder %s57, %s59
    %p66 = scmp.eq.s32.totalorder %s14, 3
    %p67 = por %p65, %p66
    %p68 = scmp.ne.s32.totalorder %s59, %s60
    %p69 = scmp.eq.s32.totalorder %s14, 0
    %p70 = por %p68, %p69
    %p71 = scmp.ne.s32.totalorder %s59, %s60
    %p72 = scmp.eq.s32.totalorder %s15, 3
    %p73 = por %p71, %p72
    %p75 = scmp.ne.s32.totalorder %s60, %s74
    %p76 = scmp.eq.s32.totalorder %s15, 0
    %p77 = por %p75, %p76
    %s79 = sadd.s32 %s78, 1
    %p82 = scmp.eq.s32.totalorder %s9, 3
    %p83 = scmp.ne.s32.totalorder %s78, %s80
    %p84 = scmp.eq.s32.totalorder %s9, 0
    %p85 = por %p83, %p84
    %p86 = scmp.ne.s32.totalorder %s78, %s80
    %p87 = scmp.eq.s32.totalorder %s14, 3
    %p88 = por %p86, %p87
    %p89 = scmp.ne.s32.totalorder %s80, %s81
    %p90 = scmp.eq.s32.totalorder %s14, 0
    %p91 = por %p89, %p90
    %p92 = scmp.ne.s32.totalorder %s80, %s81
    %p93 = scmp.eq.s32.totalorder %s15, 3
    %p94 = por %p92, %p93
    %p96 = scmp.ne.s32.totalorder %s81, %s95
    %p97 = scmp.eq.s32.totalorder %s15, 0
    %p98 = por %p96, %p97
    %s99 = ssub.s32 %s16, %s28
    %s100 = ssub.s32 %s17, %s24
    %s101 = sor.u32 %s99, %s100
    %p102 = scmp.eq.s32.totalorder %s101, 0
    %s104 = sadd.s32 %s103, 1
    %s105 = scalar_select %p102, %s103, %s104
    %p108 = pneg %p102
    %p109 = scmp.eq.s32.totalorder %s9, 3
    %p110 = por %p108, %p109
    %p111 = scmp.ne.s32.totalorder %s103, %s106
    %p112 = scmp.eq.s32.totalorder %s9, 0
    %p113 = por %p111, %p112
    %p114 = scmp.ne.s32.totalorder %s103, %s106
    %p115 = scmp.eq.s32.totalorder %s14, 3
    %p116 = por %p114, %p115
    %p117 = scmp.ne.s32.totalorder %s106, %s107
    %p118 = scmp.eq.s32.totalorder %s14, 0
    %p119 = por %p117, %p118
    %p120 = scmp.ne.s32.totalorder %s106, %s107
    %p121 = scmp.eq.s32.totalorder %s15, 3
    %p122 = por %p120, %p121
    %p124 = scmp.ne.s32.totalorder %s107, %s123
    %p125 = scmp.eq.s32.totalorder %s15, 0
    %p126 = por %p124, %p125
    %p127 = scmp.le.s32.totalorder 1, %s9
    %p128 = scmp.lt.s32.totalorder %s9, 5
    %p129 = pnand %p127, %p128
    %p130 = pneg %p129
    // Predicated region
    $region9: #{_generator_forward_impl.14} parent=5 // pred_check
      _
    $region10: #{_generator_forward_impl.14} parent=5 // pred_check_branch
      %132 = sbr.rel (%p129) target = $region12
    $region11: #{_generator_forward_impl.14} parent=5 // pred_region
      %s133 = ssub.s32 %s9, 1
      // Predicated region
      $region13: #{_generator_forward_impl.14} parent=11 // pred_check
        %p134 = pneg %p70
      $region14: #{_generator_forward_impl.14} parent=11 // pred_check_branch
        %136 = sbr.rel (%p134) target = $region16
      $region15: #{_generator_forward_impl.14} parent=11 // pred_region
        _
      $region16: #{_generator_forward_impl.14} parent=11 // pred_fallthru
        _
      // Predicated region
      $region17: #{_generator_forward_impl.14} parent=11 // pred_check
        %p137 = pneg %p91
      $region18: #{_generator_forward_impl.14} parent=11 // pred_check_branch
        %139 = sbr.rel (%p137) target = $region20
      $region19: #{_generator_forward_impl.14} parent=11 // pred_region
        _
      $region20: #{_generator_forward_impl.14} parent=11 // pred_fallthru
        _
    $region12: #{_generator_forward_impl.14} parent=5 // pred_fallthru
      _
    %p140 = scmp.lt.s32.totalorder %s9, 4
    // Predicated region
    $region21: #{_generator_forward_impl.14} parent=5 // pred_check
      %p141 = pneg %p140
    $region22: #{_generator_forward_impl.14} parent=5 // pred_check_branch
      %143 = sbr.rel (%p141) target = $region24
    $region23: #{_generator_forward_impl.14} parent=5 // pred_region
      // Predicated region
      $region25: #{_generator_forward_impl.14} parent=23 // pred_check
        %p144 = pneg %p43
      $region26: #{_generator_forward_impl.14} parent=23 // pred_check_branch
        %146 = sbr.rel (%p144) target = $region28
      $region27: #{_generator_forward_impl.14} parent=23 // pred_region
        %s147 = smul.u32 16, %s17
        %p148 = scmp.lt.s32.totalorder %s16, 3
        %s149 = scalar_select %p148, %s16, 3
        %p150 = scmp.lt.s32.totalorder %s147, 15
        %s151 = scalar_select %p150, %s147, 15
        %s152 = smul.addr %s149, 16
        %s153 = sadd.s32 %s151, %s152
        %s154 = smul.addr %s153, 4
        %s155 = scalar_lea.vmem %s0, %s154
        %s156 = smul.u32 16, %s17
      $region28: #{_generator_forward_impl.14} parent=23 // pred_fallthru
        _
    $region24: #{_generator_forward_impl.14} parent=5 // pred_fallthru
      _
    %p157 = scmp.le.s32.totalorder 1, %s9
    %p158 = scmp.lt.s32.totalorder %s9, 5
    %p159 = pnand %p157, %p158
    %p160 = pneg %p159
    // Predicated region
    $region29: #{_generator_forward_impl.14} parent=5 // pred_check
      _
    $region30: #{_generator_forward_impl.14} parent=5 // pred_check_branch
      %162 = sbr.rel (%p159) target = $region32
    $region31: #{_generator_forward_impl.14} parent=5 // pred_region
      %s163 = ssub.s32 %s9, 1
      %s164 = smul.u32 16, %s19
      %p165 = scmp.lt.s32.totalorder %s18, 3
      %s166 = scalar_select %p165, %s18, 3
      %p167 = scmp.lt.s32.totalorder %s164, 15
      %s168 = scalar_select %p167, %s164, 15
      %s169 = smul.addr %s166, 16
      %s170 = sadd.s32 %s168, %s169
      %s171 = smul.addr %s170, 4
      %s172 = scalar_lea.vmem %s0, %s171
      %p173 = pneg %p49
      %p174 = pneg %p46
      %p175 = pneg %p70
      %p176 = pneg %p67
      %p177 = pneg %p91
      %p178 = pneg %p88
      %p179 = pneg %p119
      %p180 = pneg %p116
      %s181 = smul.u32 16, %s19
      %p182 = scmp.lt.s32.totalorder %s18, 3
      %s183 = scalar_select %p182, %s18, 3
      %p184 = scmp.lt.s32.totalorder %s181, 15
      %s185 = scalar_select %p184, %s181, 15
      %s186 = smul.addr %s183, 16
      %s187 = sadd.s32 %s185, %s186
      %s188 = smul.addr %s187, 4
      %s189 = scalar_lea.vmem %s3, %s188
      %s190 = smul.u32 16, %s19
      %p191 = scmp.lt.s32.totalorder %s18, 3
      %s192 = scalar_select %p191, %s18, 3
      %p193 = scmp.lt.s32.totalorder %s190, 15
      %s194 = scalar_select %p193, %s190, 15
      %s195 = smul.addr %s192, 16
      %s196 = sadd.s32 %s194, %s195
      %s197 = smul.addr %s196, 4
      %s198 = scalar_lea.vmem %s0, %s197
      %s199 = smul.u32 16, %s19
      %s200 = smul.u32 16, %s19
      %p201 = scmp.lt.s32.totalorder %s18, 3
      %s202 = scalar_select %p201, %s18, 3
      %p203 = scmp.lt.s32.totalorder %s200, 15
      %s204 = scalar_select %p203, %s200, 15
      %s205 = smul.addr %s202, 16
      %s206 = sadd.s32 %s204, %s205
      %s207 = smul.addr %s206, 4
      %s208 = scalar_lea.vmem %s3, %s207
      %s209 = smul.u32 16, %s19
      %v210 = vld [vmem:[%s198] sm:$0xf]
      %v211 = vld [vmem:[%s198 + $0x4] sm:$0xf]
      %v212 = vld [vmem:[%s198 + $0x8] sm:$0xf]
      %v213 = vld [vmem:[%s198 + $0xc] sm:$0xf]
      %v214 = vld [vmem:[%s198 + $0x10] sm:$0xf]
      %v215 = vld [vmem:[%s198 + $0x14] sm:$0xf]
      %v216 = vld [vmem:[%s198 + $0x18] sm:$0xf]
      %v217 = vld [vmem:[%s198 + $0x1c] sm:$0xf]
      %v218 = vld [vmem:[%s198 + $0x20] sm:$0xf]
      %v219 = vld [vmem:[%s198 + $0x24] sm:$0xf]
      %v220 = vld [vmem:[%s198 + $0x28] sm:$0xf]
      %v221 = vld [vmem:[%s198 + $0x2c] sm:$0xf]
      %v222 = vld [vmem:[%s198 + $0x30] sm:$0xf]
      %v223 = vld [vmem:[%s198 + $0x34] sm:$0xf]
      %v224 = vld [vmem:[%s198 + $0x38] sm:$0xf]
      %v225 = vld [vmem:[%s198 + $0x3c] sm:$0xf]
      %v226 = vunpack.c.l.bf16 %v210
      %v227 = vunpack.c.l.bf16 %v211
      %v228 = vunpack.c.l.bf16 %v212
      %v229 = vunpack.c.l.bf16 %v213
      %v230 = vunpack.c.l.bf16 %v214
      %v231 = vunpack.c.l.bf16 %v215
      %v232 = vunpack.c.l.bf16 %v216
      %v233 = vunpack.c.l.bf16 %v217
      %v234 = vunpack.c.l.bf16 %v218
      %v235 = vunpack.c.l.bf16 %v219
      %v236 = vunpack.c.l.bf16 %v220
      %v237 = vunpack.c.l.bf16 %v221
      %v238 = vunpack.c.l.bf16 %v222
      %v239 = vunpack.c.l.bf16 %v223
      %v240 = vunpack.c.l.bf16 %v224
      %v241 = vunpack.c.l.bf16 %v225
      %v242 = vld [vmem:[%s1] sm:$0x1]
      %v244 = vlaneseq
      %v245 = vshrl.u32 %v244, 7
      %v246 = vsub.s32 0, %v245
      %v247 = vrot.slane %v242, %v246
      %v249 = vmul.f32 %v226, %v247
      %v250 = vmul.f32 %v227, %v247
      %v251 = vmul.f32 %v228, %v247
      %v252 = vmul.f32 %v229, %v247
      %v253 = vmul.f32 %v230, %v247
      %v254 = vmul.f32 %v231, %v247
      %v255 = vmul.f32 %v232, %v247
      %v256 = vmul.f32 %v233, %v247
      %v257 = vmul.f32 %v234, %v247
      %v258 = vmul.f32 %v235, %v247
      %v259 = vmul.f32 %v236, %v247
      %v260 = vmul.f32 %v237, %v247
      %v261 = vmul.f32 %v238, %v247
      %v262 = vmul.f32 %v239, %v247
      %v263 = vmul.f32 %v240, %v247
      %v264 = vmul.f32 %v241, %v247
      %v265 = vld [vmem:[%s2] sm:$0x1]
      %v267 = vlaneseq
      %v268 = vshrl.u32 %v267, 7
      %v269 = vsub.s32 0, %v268
      %v270 = vrot.slane %v265, %v269
      %v272 = vadd.f32 %v249, %v270
      %v273 = vadd.f32 %v250, %v270
      %v274 = vadd.f32 %v251, %v270
      %v275 = vadd.f32 %v252, %v270
      %v276 = vadd.f32 %v253, %v270
      %v277 = vadd.f32 %v254, %v270
      %v278 = vadd.f32 %v255, %v270
      %v279 = vadd.f32 %v256, %v270
      %v280 = vadd.f32 %v257, %v270
      %v281 = vadd.f32 %v258, %v270
      %v282 = vadd.f32 %v259, %v270
      %v283 = vadd.f32 %v260, %v270
      %v284 = vadd.f32 %v261, %v270
      %v285 = vadd.f32 %v262, %v270
      %v286 = vadd.f32 %v263, %v270
      %v287 = vadd.f32 %v264, %v270
      %v288 = vmax.f32 %v272, 0.0
      %v289 = vmax.f32 %v273, 0.0
      %v290 = vmax.f32 %v274, 0.0
      %v291 = vmax.f32 %v275, 0.0
      %v292 = vmax.f32 %v276, 0.0
      %v293 = vmax.f32 %v277, 0.0
      %v294 = vmax.f32 %v278, 0.0
      %v295 = vmax.f32 %v279, 0.0
      %v296 = vmax.f32 %v280, 0.0
      %v297 = vmax.f32 %v281, 0.0
      %v298 = vmax.f32 %v282, 0.0
      %v299 = vmax.f32 %v283, 0.0
      %v300 = vmax.f32 %v284, 0.0
      %v301 = vmax.f32 %v285, 0.0
      %v302 = vmax.f32 %v286, 0.0
      %v303 = vmax.f32 %v287, 0.0
      %v304 = vpack.c.bf16 %v289, %v288
      %v305 = vpack.c.bf16 %v291, %v290
      %v306 = vpack.c.bf16 %v293, %v292
      %v307 = vpack.c.bf16 %v295, %v294
      %v308 = vpack.c.bf16 %v297, %v296
      %v309 = vpack.c.bf16 %v299, %v298
      %v310 = vpack.c.bf16 %v301, %v300
      %v311 = vpack.c.bf16 %v303, %v302
      %v320 = vunpack.c.l.b16 %v304
      %v321 = vunpack.c.h.b16 %v304
      %v322 = vunpack.c.l.b16 %v305
      %v323 = vunpack.c.h.b16 %v305
      %v324 = vunpack.c.l.b16 %v306
      %v325 = vunpack.c.h.b16 %v306
      %v326 = vunpack.c.l.b16 %v307
      %v327 = vunpack.c.h.b16 %v307
      %v328 = vunpack.c.l.b16 %v308
      %v329 = vunpack.c.h.b16 %v308
      %v330 = vunpack.c.l.b16 %v309
      %v331 = vunpack.c.h.b16 %v309
      %v332 = vunpack.c.l.b16 %v310
      %v333 = vunpack.c.h.b16 %v310
      %v334 = vunpack.c.l.b16 %v311
      %v335 = vunpack.c.h.b16 %v311
      %v336 = vpack.c.b16 %v320, %v320
      %v337 = vpack.c.b16 %v321, %v321
      %v338 = vpack.c.b16 %v322, %v322
      %v339 = vpack.c.b16 %v323, %v323
      %v340 = vpack.c.b16 %v324, %v324
      %v341 = vpack.c.b16 %v325, %v325
      %v342 = vpack.c.b16 %v326, %v326
      %v343 = vpack.c.b16 %v327, %v327
      %v344 = vpack.c.b16 %v328, %v328
      %v345 = vpack.c.b16 %v329, %v329
      %v346 = vpack.c.b16 %v330, %v330
      %v347 = vpack.c.b16 %v331, %v331
      %v348 = vpack.c.b16 %v332, %v332
      %v349 = vpack.c.b16 %v333, %v333
      %v350 = vpack.c.b16 %v334, %v334
      %v351 = vpack.c.b16 %v335, %v335
      %368 = vst [vmem:[%s208] sm:$0xf] %v336
      %369 = vst [vmem:[%s208 + $0x4] sm:$0xf] %v337
      %370 = vst [vmem:[%s208 + $0x8] sm:$0xf] %v338
      %371 = vst [vmem:[%s208 + $0xc] sm:$0xf] %v339
      %372 = vst [vmem:[%s208 + $0x10] sm:$0xf] %v340
      %373 = vst [vmem:[%s208 + $0x14] sm:$0xf] %v341
      %374 = vst [vmem:[%s208 + $0x18] sm:$0xf] %v342
      %375 = vst [vmem:[%s208 + $0x1c] sm:$0xf] %v343
      %376 = vst [vmem:[%s208 + $0x20] sm:$0xf] %v344
      %377 = vst [vmem:[%s208 + $0x24] sm:$0xf] %v345
      %378 = vst [vmem:[%s208 + $0x28] sm:$0xf] %v346
      %379 = vst [vmem:[%s208 + $0x2c] sm:$0xf] %v347
      %380 = vst [vmem:[%s208 + $0x30] sm:$0xf] %v348
      %381 = vst [vmem:[%s208 + $0x34] sm:$0xf] %v349
      %382 = vst [vmem:[%s208 + $0x38] sm:$0xf] %v350
      %383 = vst [vmem:[%s208 + $0x3c] sm:$0xf] %v351
      %s384 = smul.u32 16, %s19
      %p385 = scmp.lt.s32.totalorder %s18, 3
      %s386 = scalar_select %p385, %s18, 3
      %p387 = scmp.lt.s32.totalorder %s384, 15
      %s388 = scalar_select %p387, %s384, 15
      %s389 = smul.addr %s386, 16
      %s390 = sadd.s32 %s388, %s389
      %s391 = smul.addr %s390, 4
      %s392 = scalar_lea.vmem %s3, %s391
      // Predicated region
      $region33: #{_generator_forward_impl.14} parent=31 // pred_check
        %p393 = pneg %p116
      $region34: #{_generator_forward_impl.14} parent=31 // pred_check_branch
        %395 = sbr.rel (%p393) target = $region36
      $region35: #{_generator_forward_impl.14} parent=31 // pred_region
        %s396 = smul.u32 16, %s19
      $region36: #{_generator_forward_impl.14} parent=31 // pred_fallthru
        _
    $region32: #{_generator_forward_impl.14} parent=5 // pred_fallthru
      _
    %p397 = scmp.le.s32.totalorder 2, %s9
    // Predicated region
    $region37: #{_generator_forward_impl.14} parent=5 // pred_check
      %p398 = pneg %p397
    $region38: #{_generator_forward_impl.14} parent=5 // pred_check_branch
      %400 = sbr.rel (%p398) target = $region40
    $region39: #{_generator_forward_impl.14} parent=5 // pred_region
      %s401 = ssub.s32 %s9, 2
      // Predicated region
      $region41: #{_generator_forward_impl.14} parent=39 // pred_check
        %p402 = pneg %p122
      $region42: #{_generator_forward_impl.14} parent=39 // pred_check_branch
        %404 = sbr.rel (%p402) target = $region44
      $region43: #{_generator_forward_impl.14} parent=39 // pred_region
        %s405 = smul.u32 16, %s21
        %p406 = scmp.lt.s32.totalorder %s20, 3
        %s407 = scalar_select %p406, %s20, 3
        %p408 = scmp.lt.s32.totalorder %s405, 15
        %s409 = scalar_select %p408, %s405, 15
        %s410 = smul.addr %s407, 16
        %s411 = sadd.s32 %s409, %s410
        %s412 = smul.addr %s411, 4
        %s413 = scalar_lea.vmem %s3, %s412
      $region44: #{_generator_forward_impl.14} parent=39 // pred_fallthru
        _
    $region40: #{_generator_forward_impl.14} parent=5 // pred_fallthru
      _
  $region6: #{_generator_forward_impl.14} parent=0 // loop_footer
    %s13 = sadd.s32 1, %s9
  $region7: #{_generator_forward_impl.14} parent=0 // loop_footer_branch
    %8 = sbr.rel target = $region3
  $region8: #{_generator_forward_impl.14} parent=0 // loop_exit
    _

// kernel: _generator_forward_impl.15
$region0: #{_generator_forward_impl.15}
  #allocation0 [shape = 'u32[]', space=smem, size = 0x4, offset = 0x4, fixed_abs, tag = 'smem constant byte address 0x4 - core index']
  #allocation1 [shape = 'u32[144,128]{1,0:T(1,128)}', space=vmem, size = 0x12000, scoped, tag = 'internal scratch']
  %s0 = inlined_call_operand.vmem [shape: bf16[4,512,128], index: 0, kind: input, shape index: {}]
  %s1 = inlined_call_operand.vmem [shape: bf16[4,128,128], index: 1, kind: input, shape index: {}]
  %s2 = inlined_call_operand.vmem [shape: bf16[4,512,128], index: 2, kind: output, shape index: {0}]
  %s3 = inlined_call_operand.vmem [shape: f32[4,1,2,128], index: 3, kind: output, shape index: {1}]
  %4 = xla_tuple %s2, %s3
  %s5 = sld [smem:[#allocation0]]
  $region49: #{_generator_forward_impl.15} parent=0
    _
  %s7 = ssub.s32 1, %s5
  %s8 = scalar_select 0, %s7, %s5
  loop: start=0, step=1, limit=6
  $region2: #{_generator_forward_impl.15} parent=0 // loop_pre_header
    _
  $region3: #{_generator_forward_impl.15} parent=0 // loop_header
    %s10 = sphi 0, %s14
    %p11 = scmp.ge.s32.totalorder %s10, 6
    %s17 = sphi 0, %s29
    %s18 = sphi 0, %s25
    %s19 = sphi 0, %s17
    %s20 = sphi 0, %s18
    %s21 = sphi 0, %s19
    %s22 = sphi 0, %s20
    %s34 = sphi 0, %s36
    %s37 = sphi 0, %s34
    %s38 = sphi 0, %s37
    %s54 = sphi 0, %s38
    %s60 = sphi 0, %s62
    %s63 = sphi 0, %s60
    %s64 = sphi 0, %s63
    %s80 = sphi 0, %s64
    %s88 = sphi 0, %s90
    %s91 = sphi 0, %s88
    %s92 = sphi 0, %s91
    %s108 = sphi 0, %s92
    %s116 = sphi 0, %s118
    %s119 = sphi 0, %s116
    %s120 = sphi 0, %s119
    %s136 = sphi 0, %s120
  $region4: #{_generator_forward_impl.15} parent=0 // loop_header_branch
    %13 = sbr.rel (%p11) target = $region8
  $region5: #{_generator_forward_impl.15} parent=0 // loop_body
    %s15 = ssub.s32 %s10, 1
    %s16 = ssub.s32 %s10, 2
    %s23 = sadd.s32 1, %s18
    %p24 = scmp.ge.s32.totalorder %s23, 1
    %s25 = scalar_select %p24, 0, %s23
    %s26 = sadd.s32 1, %s17
    %s27 = scalar_select %p24, %s26, %s17
    %p28 = scmp.ge.s32.totalorder %s27, 4
    %s29 = scalar_select %p28, 0, %s27
    %s30 = ssub.s32 %s17, %s29
    %s31 = ssub.s32 %s18, %s25
    %s32 = sor.u32 %s30, %s31
    %p33 = scmp.eq.s32.totalorder %s32, 0
    %s35 = sadd.s32 %s34, 1
    %s36 = scalar_select %p33, %s34, %s35
    %p39 = pneg %p33
    %p40 = scmp.eq.s32.totalorder %s10, 3
    %p41 = por %p39, %p40
    %p42 = scmp.ne.s32.totalorder %s34, %s37
    %p43 = scmp.eq.s32.totalorder %s10, 0
    %p44 = por %p42, %p43
    %p45 = scmp.ne.s32.totalorder %s34, %s37
    %p46 = scmp.eq.s32.totalorder %s15, 3
    %p47 = por %p45, %p46
    %p48 = scmp.ne.s32.totalorder %s37, %s38
    %p49 = scmp.eq.s32.totalorder %s15, 0
    %p50 = por %p48, %p49
    %p51 = scmp.ne.s32.totalorder %s37, %s38
    %p52 = scmp.eq.s32.totalorder %s16, 3
    %p53 = por %p51, %p52
    %p55 = scmp.ne.s32.totalorder %s38, %s54
    %p56 = scmp.eq.s32.totalorder %s16, 0
    %p57 = por %p55, %p56
    %s58 = ssub.s32 %s17, %s29
    %p59 = scmp.eq.s32.totalorder %s58, 0
    %s61 = sadd.s32 %s60, 1
    %s62 = scalar_select %p59, %s60, %s61
    %p65 = pneg %p59
    %p66 = scmp.eq.s32.totalorder %s10, 3
    %p67 = por %p65, %p66
    %p68 = scmp.ne.s32.totalorder %s60, %s63
    %p69 = scmp.eq.s32.totalorder %s10, 0
    %p70 = por %p68, %p69
    %p71 = scmp.ne.s32.totalorder %s60, %s63
    %p72 = scmp.eq.s32.totalorder %s15, 3
    %p73 = por %p71, %p72
    %p74 = scmp.ne.s32.totalorder %s63, %s64
    %p75 = scmp.eq.s32.totalorder %s15, 0
    %p76 = por %p74, %p75
    %p77 = scmp.ne.s32.totalorder %s63, %s64
    %p78 = scmp.eq.s32.totalorder %s16, 3
    %p79 = por %p77, %p78
    %p81 = scmp.ne.s32.totalorder %s64, %s80
    %p82 = scmp.eq.s32.totalorder %s16, 0
    %p83 = por %p81, %p82
    %s84 = ssub.s32 %s17, %s29
    %s85 = ssub.s32 %s18, %s25
    %s86 = sor.u32 %s84, %s85
    %p87 = scmp.eq.s32.totalorder %s86, 0
    %s89 = sadd.s32 %s88, 1
    %s90 = scalar_select %p87, %s88, %s89
    %p93 = pneg %p87
    %p94 = scmp.eq.s32.totalorder %s10, 3
    %p95 = por %p93, %p94
    %p96 = scmp.ne.s32.totalorder %s88, %s91
    %p97 = scmp.eq.s32.totalorder %s10, 0
    %p98 = por %p96, %p97
    %p99 = scmp.ne.s32.totalorder %s88, %s91
    %p100 = scmp.eq.s32.totalorder %s15, 3
    %p101 = por %p99, %p100
    %p102 = scmp.ne.s32.totalorder %s91, %s92
    %p103 = scmp.eq.s32.totalorder %s15, 0
    %p104 = por %p102, %p103
    %p105 = scmp.ne.s32.totalorder %s91, %s92
    %p106 = scmp.eq.s32.totalorder %s16, 3
    %p107 = por %p105, %p106
    %p109 = scmp.ne.s32.totalorder %s92, %s108
    %p110 = scmp.eq.s32.totalorder %s16, 0
    %p111 = por %p109, %p110
    %s112 = ssub.s32 %s17, %s29
    %s113 = ssub.s32 %s18, %s25
    %s114 = sor.u32 %s112, %s113
    %p115 = scmp.eq.s32.totalorder %s114, 0
    %s117 = sadd.s32 %s116, 1
    %s118 = scalar_select %p115, %s116, %s117
    %p121 = pneg %p115
    %p122 = scmp.eq.s32.totalorder %s10, 3
    %p123 = por %p121, %p122
    %p124 = scmp.ne.s32.totalorder %s116, %s119
    %p125 = scmp.eq.s32.totalorder %s10, 0
    %p126 = por %p124, %p125
    %p127 = scmp.ne.s32.totalorder %s116, %s119
    %p128 = scmp.eq.s32.totalorder %s15, 3
    %p129 = por %p127, %p128
    %p130 = scmp.ne.s32.totalorder %s119, %s120
    %p131 = scmp.eq.s32.totalorder %s15, 0
    %p132 = por %p130, %p131
    %p133 = scmp.ne.s32.totalorder %s119, %s120
    %p134 = scmp.eq.s32.totalorder %s16, 3
    %p135 = por %p133, %p134
    %p137 = scmp.ne.s32.totalorder %s120, %s136
    %p138 = scmp.eq.s32.totalorder %s16, 0
    %p139 = por %p137, %p138
    %p140 = scmp.le.s32.totalorder 1, %s10
    %p141 = scmp.lt.s32.totalorder %s10, 5
    %p142 = pnand %p140, %p141
    %p143 = pneg %p142
    // Predicated region
    $region9: #{_generator_forward_impl.15} parent=5 // pred_check
      _
    $region10: #{_generator_forward_impl.15} parent=5 // pred_check_branch
      %145 = sbr.rel (%p142) target = $region12
    $region11: #{_generator_forward_impl.15} parent=5 // pred_region
      %s146 = ssub.s32 %s10, 1
    $region12: #{_generator_forward_impl.15} parent=5 // pred_fallthru
      _
    %p147 = scmp.lt.s32.totalorder %s10, 4
    // Predicated region
    $region13: #{_generator_forward_impl.15} parent=5 // pred_check
      %p148 = pneg %p147
    $region14: #{_generator_forward_impl.15} parent=5 // pred_check_branch
      %150 = sbr.rel (%p148) target = $region16
    $region15: #{_generator_forward_impl.15} parent=5 // pred_region
      // Predicated region
      $region17: #{_generator_forward_impl.15} parent=15 // pred_check
        %p151 = pneg %p44
      $region18: #{_generator_forward_impl.15} parent=15 // pred_check_branch
        %153 = sbr.rel (%p151) target = $region20
      $region19: #{_generator_forward_impl.15} parent=15 // pred_region
        %s154 = smul.u32 64, %s18
        %p155 = scmp.lt.s32.totalorder %s17, 3
        %s156 = scalar_select %p155, %s17, 3
        %p157 = scmp.lt.s32.totalorder %s154, 63
        %s158 = scalar_select %p157, %s154, 63
        %s159 = smul.addr %s156, 64
        %s160 = sadd.s32 %s158, %s159
        %s161 = smul.addr %s160, 4
        %s162 = scalar_lea.vmem %s0, %s161
        %s163 = smul.u32 64, %s18
      $region20: #{_generator_forward_impl.15} parent=15 // pred_fallthru
        _
      // Predicated region
      $region21: #{_generator_forward_impl.15} parent=15 // pred_check
        %p164 = pneg %p70
      $region22: #{_generator_forward_impl.15} parent=15 // pred_check_branch
        %166 = sbr.rel (%p164) target = $region24
      $region23: #{_generator_forward_impl.15} parent=15 // pred_region
        %p167 = scmp.lt.s32.totalorder %s17, 3
        %s168 = scalar_select %p167, %s17, 3
        %s169 = smul.addr %s168, 16
        %s170 = smul.addr %s169, 4
        %s171 = scalar_lea.vmem %s1, %s170
      $region24: #{_generator_forward_impl.15} parent=15 // pred_fallthru
        _
    $region16: #{_generator_forward_impl.15} parent=5 // pred_fallthru
      _
    %p172 = scmp.le.s32.totalorder 1, %s10
    %p173 = scmp.lt.s32.totalorder %s10, 5
    %p174 = pnand %p172, %p173
    %p175 = pneg %p174
    // Predicated region
    $region25: #{_generator_forward_impl.15} parent=5 // pred_check
      _
    $region26: #{_generator_forward_impl.15} parent=5 // pred_check_branch
      %177 = sbr.rel (%p174) target = $region28
    $region27: #{_generator_forward_impl.15} parent=5 // pred_region
      %s178 = ssub.s32 %s10, 1
      %s179 = smul.u32 64, %s20
      %p180 = scmp.lt.s32.totalorder %s19, 3
      %s181 = scalar_select %p180, %s19, 3
      %p182 = scmp.lt.s32.totalorder %s179, 63
      %s183 = scalar_select %p182, %s179, 63
      %s184 = smul.addr %s181, 64
      %s185 = sadd.s32 %s183, %s184
      %s186 = smul.addr %s185, 4
      %s187 = scalar_lea.vmem %s0, %s186
      %p188 = pneg %p50
      %p189 = pneg %p47
      %p190 = scmp.lt.s32.totalorder %s19, 3
      %s191 = scalar_select %p190, %s19, 3
      %s192 = smul.addr %s191, 16
      %s193 = smul.addr %s192, 4
      %s194 = scalar_lea.vmem %s1, %s193
      %p195 = pneg %p76
      %p196 = pneg %p73
      %p197 = pneg %p104
      %p198 = pneg %p101
      %s199 = smul.u32 64, %s20
      %p200 = scmp.lt.s32.totalorder %s19, 3
      %s201 = scalar_select %p200, %s19, 3
      %p202 = scmp.lt.s32.totalorder %s199, 63
      %s203 = scalar_select %p202, %s199, 63
      %s204 = smul.addr %s201, 64
      %s205 = sadd.s32 %s203, %s204
      %s206 = smul.addr %s205, 4
      %s207 = scalar_lea.vmem %s2, %s206
      %p208 = pneg %p132
      %p209 = pneg %p129
      %p210 = scmp.lt.s32.totalorder %s19, 3
      %s211 = scalar_select %p210, %s19, 3
      %p212 = scmp.lt.s32.totalorder %s20, 0
      %s213 = scalar_select %p212, %s20, 0
      %s214 = sadd.s32 %s213, %s211
      %s215 = smul.addr %s214, 2
      %s216 = scalar_lea.vmem %s3, %s215
      %s217 = smul.u32 64, %s20
      %p218 = scmp.lt.s32.totalorder %s19, 3
      %s219 = scalar_select %p218, %s19, 3
      %p220 = scmp.lt.s32.totalorder %s217, 63
      %s221 = scalar_select %p220, %s217, 63
      %s222 = smul.addr %s219, 64
      %s223 = sadd.s32 %s221, %s222
      %s224 = smul.addr %s223, 4
      %s225 = scalar_lea.vmem %s0, %s224
      %s226 = smul.u32 64, %s20
      %p227 = scmp.lt.s32.totalorder %s19, 3
      %s228 = scalar_select %p227, %s19, 3
      %s229 = smul.addr %s228, 16
      %s230 = smul.addr %s229, 4
      %s231 = scalar_lea.vmem %s1, %s230
      %s232 = smul.u32 64, %s20
      %p233 = scmp.lt.s32.totalorder %s19, 3
      %s234 = scalar_select %p233, %s19, 3
      %p235 = scmp.lt.s32.totalorder %s232, 63
      %s236 = scalar_select %p235, %s232, 63
      %s237 = smul.addr %s234, 64
      %s238 = sadd.s32 %s236, %s237
      %s239 = smul.addr %s238, 4
      %s240 = scalar_lea.vmem %s2, %s239
      %s241 = smul.u32 64, %s20
      %p242 = scmp.lt.s32.totalorder %s19, 3
      %s243 = scalar_select %p242, %s19, 3
      %p244 = scmp.lt.s32.totalorder %s20, 0
      %s245 = scalar_select %p244, %s20, 0
      %s246 = sadd.s32 %s245, %s243
      %s247 = smul.addr %s246, 2
      %s248 = scalar_lea.vmem %s3, %s247
      %v250 = vld [vmem:[%s225] sm:$0xf]
      %v251 = vld [vmem:[%s225 + $0x4] sm:$0xf]
      %v252 = vld [vmem:[%s225 + $0x8] sm:$0xf]
      %v253 = vld [vmem:[%s225 + $0xc] sm:$0xf]
      %v254 = vld [vmem:[%s225 + $0x10] sm:$0xf]
      %v255 = vld [vmem:[%s225 + $0x14] sm:$0xf]
      %v256 = vld [vmem:[%s225 + $0x18] sm:$0xf]
      %v257 = vld [vmem:[%s225 + $0x1c] sm:$0xf]
      %v258 = vld [vmem:[%s225 + $0x20] sm:$0xf]
      %v259 = vld [vmem:[%s225 + $0x24] sm:$0xf]
      %v260 = vld [vmem:[%s225 + $0x28] sm:$0xf]
      %v261 = vld [vmem:[%s225 + $0x2c] sm:$0xf]
      %v262 = vld [vmem:[%s225 + $0x30] sm:$0xf]
      %v263 = vld [vmem:[%s225 + $0x34] sm:$0xf]
      %v264 = vld [vmem:[%s225 + $0x38] sm:$0xf]
      %v265 = vld [vmem:[%s225 + $0x3c] sm:$0xf]
      %v266 = vld [vmem:[%s225 + $0x40] sm:$0xf]
      %v267 = vld [vmem:[%s225 + $0x44] sm:$0xf]
      %v268 = vld [vmem:[%s225 + $0x48] sm:$0xf]
      %v269 = vld [vmem:[%s225 + $0x4c] sm:$0xf]
      %v270 = vld [vmem:[%s225 + $0x50] sm:$0xf]
      %v271 = vld [vmem:[%s225 + $0x54] sm:$0xf]
      %v272 = vld [vmem:[%s225 + $0x58] sm:$0xf]
      %v273 = vld [vmem:[%s225 + $0x5c] sm:$0xf]
      %v274 = vld [vmem:[%s225 + $0x60] sm:$0xf]
      %v275 = vld [vmem:[%s225 + $0x64] sm:$0xf]
      %v276 = vld [vmem:[%s225 + $0x68] sm:$0xf]
      %v277 = vld [vmem:[%s225 + $0x6c] sm:$0xf]
      %v278 = vld [vmem:[%s225 + $0x70] sm:$0xf]
      %v279 = vld [vmem:[%s225 + $0x74] sm:$0xf]
      %v280 = vld [vmem:[%s225 + $0x78] sm:$0xf]
      %v281 = vld [vmem:[%s225 + $0x7c] sm:$0xf]
      %v282 = vld [vmem:[%s225 + $0x80] sm:$0xf]
      %v283 = vld [vmem:[%s225 + $0x84] sm:$0xf]
      %v284 = vld [vmem:[%s225 + $0x88] sm:$0xf]
      %v285 = vld [vmem:[%s225 + $0x8c] sm:$0xf]
      %v286 = vld [vmem:[%s225 + $0x90] sm:$0xf]
      %v287 = vld [vmem:[%s225 + $0x94] sm:$0xf]
      %v288 = vld [vmem:[%s225 + $0x98] sm:$0xf]
      %v289 = vld [vmem:[%s225 + $0x9c] sm:$0xf]
      %v290 = vld [vmem:[%s225 + $0xa0] sm:$0xf]
      %v291 = vld [vmem:[%s225 + $0xa4] sm:$0xf]
      %v292 = vld [vmem:[%s225 + $0xa8] sm:$0xf]
      %v293 = vld [vmem:[%s225 + $0xac] sm:$0xf]
      %v294 = vld [vmem:[%s225 + $0xb0] sm:$0xf]
      %v295 = vld [vmem:[%s225 + $0xb4] sm:$0xf]
      %v296 = vld [vmem:[%s225 + $0xb8] sm:$0xf]
      %v297 = vld [vmem:[%s225 + $0xbc] sm:$0xf]
      %v298 = vld [vmem:[%s225 + $0xc0] sm:$0xf]
      %v299 = vld [vmem:[%s225 + $0xc4] sm:$0xf]
      %v300 = vld [vmem:[%s225 + $0xc8] sm:$0xf]
      %v301 = vld [vmem:[%s225 + $0xcc] sm:$0xf]
      %v302 = vld [vmem:[%s225 + $0xd0] sm:$0xf]
      %v303 = vld [vmem:[%s225 + $0xd4] sm:$0xf]
      %v304 = vld [vmem:[%s225 + $0xd8] sm:$0xf]
      %v305 = vld [vmem:[%s225 + $0xdc] sm:$0xf]
      %v306 = vld [vmem:[%s225 + $0xe0] sm:$0xf]
      %v307 = vld [vmem:[%s225 + $0xe4] sm:$0xf]
      %v308 = vld [vmem:[%s225 + $0xe8] sm:$0xf]
      %v309 = vld [vmem:[%s225 + $0xec] sm:$0xf]
      %v310 = vld [vmem:[%s225 + $0xf0] sm:$0xf]
      %v311 = vld [vmem:[%s225 + $0xf4] sm:$0xf]
      %v312 = vld [vmem:[%s225 + $0xf8] sm:$0xf]
      %v313 = vld [vmem:[%s225 + $0xfc] sm:$0xf]
      %v314 = vld [vmem:[%s231] sm:$0xf]
      %v315 = vld [vmem:[%s231 + $0x4] sm:$0xf]
      %v316 = vld [vmem:[%s231 + $0x8] sm:$0xf]
      %v317 = vld [vmem:[%s231 + $0xc] sm:$0xf]
      %v318 = vld [vmem:[%s231 + $0x10] sm:$0xf]
      %v319 = vld [vmem:[%s231 + $0x14] sm:$0xf]
      %v320 = vld [vmem:[%s231 + $0x18] sm:$0xf]
      %v321 = vld [vmem:[%s231 + $0x1c] sm:$0xf]
      %v322 = vld [vmem:[%s231 + $0x20] sm:$0xf]
      %v323 = vld [vmem:[%s231 + $0x24] sm:$0xf]
      %v324 = vld [vmem:[%s231 + $0x28] sm:$0xf]
      %v325 = vld [vmem:[%s231 + $0x2c] sm:$0xf]
      %v326 = vld [vmem:[%s231 + $0x30] sm:$0xf]
      %v327 = vld [vmem:[%s231 + $0x34] sm:$0xf]
      %v328 = vld [vmem:[%s231 + $0x38] sm:$0xf]
      %v329 = vld [vmem:[%s231 + $0x3c] sm:$0xf]
      %v394 = vunpack.c.l.b16 %v250
      %v395 = vunpack.c.l.b16 %v251
      %v396 = vunpack.c.l.b16 %v252
      %v397 = vunpack.c.l.b16 %v253
      %v398 = vunpack.c.l.b16 %v254
      %v399 = vunpack.c.l.b16 %v255
      %v400 = vunpack.c.l.b16 %v256
      %v401 = vunpack.c.l.b16 %v257
      %v402 = vunpack.c.l.b16 %v258
      %v403 = vunpack.c.l.b16 %v259
      %v404 = vunpack.c.l.b16 %v260
      %v405 = vunpack.c.l.b16 %v261
      %v406 = vunpack.c.l.b16 %v262
      %v407 = vunpack.c.l.b16 %v263
      %v408 = vunpack.c.l.b16 %v264
      %v409 = vunpack.c.l.b16 %v265
      %v410 = vunpack.c.l.b16 %v266
      %v411 = vunpack.c.l.b16 %v267
      %v412 = vunpack.c.l.b16 %v268
      %v413 = vunpack.c.l.b16 %v269
      %v414 = vunpack.c.l.b16 %v270
      %v415 = vunpack.c.l.b16 %v271
      %v416 = vunpack.c.l.b16 %v272
      %v417 = vunpack.c.l.b16 %v273
      %v418 = vunpack.c.l.b16 %v274
      %v419 = vunpack.c.l.b16 %v275
      %v420 = vunpack.c.l.b16 %v276
      %v421 = vunpack.c.l.b16 %v277
      %v422 = vunpack.c.l.b16 %v278
      %v423 = vunpack.c.l.b16 %v279
      %v424 = vunpack.c.l.b16 %v280
      %v425 = vunpack.c.l.b16 %v281
      %v426 = vunpack.c.l.b16 %v282
      %v427 = vunpack.c.l.b16 %v283
      %v428 = vunpack.c.l.b16 %v284
      %v429 = vunpack.c.l.b16 %v285
      %v430 = vunpack.c.l.b16 %v286
      %v431 = vunpack.c.l.b16 %v287
      %v432 = vunpack.c.l.b16 %v288
      %v433 = vunpack.c.l.b16 %v289
      %v434 = vunpack.c.l.b16 %v290
      %v435 = vunpack.c.l.b16 %v291
      %v436 = vunpack.c.l.b16 %v292
      %v437 = vunpack.c.l.b16 %v293
      %v438 = vunpack.c.l.b16 %v294
      %v439 = vunpack.c.l.b16 %v295
      %v440 = vunpack.c.l.b16 %v296
      %v441 = vunpack.c.l.b16 %v297
      %v442 = vunpack.c.l.b16 %v298
      %v443 = vunpack.c.l.b16 %v299
      %v444 = vunpack.c.l.b16 %v300
      %v445 = vunpack.c.l.b16 %v301
      %v446 = vunpack.c.l.b16 %v302
      %v447 = vunpack.c.l.b16 %v303
      %v448 = vunpack.c.l.b16 %v304
      %v449 = vunpack.c.l.b16 %v305
      %v450 = vunpack.c.l.b16 %v306
      %v451 = vunpack.c.l.b16 %v307
      %v452 = vunpack.c.l.b16 %v308
      %v453 = vunpack.c.l.b16 %v309
      %v454 = vunpack.c.l.b16 %v310
      %v455 = vunpack.c.l.b16 %v311
      %v456 = vunpack.c.l.b16 %v312
      %v457 = vunpack.c.l.b16 %v313
      %v458 = vpack.c.b16 %v395, %v394
      %v459 = vpack.c.b16 %v397, %v396
      %v460 = vpack.c.b16 %v399, %v398
      %v461 = vpack.c.b16 %v401, %v400
      %v462 = vpack.c.b16 %v403, %v402
      %v463 = vpack.c.b16 %v405, %v404
      %v464 = vpack.c.b16 %v407, %v406
      %v465 = vpack.c.b16 %v409, %v408
      %v466 = vpack.c.b16 %v411, %v410
      %v467 = vpack.c.b16 %v413, %v412
      %v468 = vpack.c.b16 %v415, %v414
      %v469 = vpack.c.b16 %v417, %v416
      %v470 = vpack.c.b16 %v419, %v418
      %v471 = vpack.c.b16 %v421, %v420
      %v472 = vpack.c.b16 %v423, %v422
      %v473 = vpack.c.b16 %v425, %v424
      %v474 = vpack.c.b16 %v427, %v426
      %v475 = vpack.c.b16 %v429, %v428
      %v476 = vpack.c.b16 %v431, %v430
      %v477 = vpack.c.b16 %v433, %v432
      %v478 = vpack.c.b16 %v435, %v434
      %v479 = vpack.c.b16 %v437, %v436
      %v480 = vpack.c.b16 %v439, %v438
      %v481 = vpack.c.b16 %v441, %v440
      %v482 = vpack.c.b16 %v443, %v442
      %v483 = vpack.c.b16 %v445, %v444
      %v484 = vpack.c.b16 %v447, %v446
      %v485 = vpack.c.b16 %v449, %v448
      %v486 = vpack.c.b16 %v451, %v450
      %v487 = vpack.c.b16 %v453, %v452
      %v488 = vpack.c.b16 %v455, %v454
      %v489 = vpack.c.b16 %v457, %v456
      %v538 = vunpack.c.l.b16 %v314
      %v539 = vunpack.c.l.b16 %v315
      %v540 = vunpack.c.l.b16 %v316
      %v541 = vunpack.c.l.b16 %v317
      %v542 = vunpack.c.l.b16 %v318
      %v543 = vunpack.c.l.b16 %v319
      %v544 = vunpack.c.l.b16 %v320
      %v545 = vunpack.c.l.b16 %v321
      %v546 = vunpack.c.l.b16 %v322
      %v547 = vunpack.c.l.b16 %v323
      %v548 = vunpack.c.l.b16 %v324
      %v549 = vunpack.c.l.b16 %v325
      %v550 = vunpack.c.l.b16 %v326
      %v551 = vunpack.c.l.b16 %v327
      %v552 = vunpack.c.l.b16 %v328
      %v553 = vunpack.c.l.b16 %v329
      %v554 = vpack.c.b16 %v539, %v538
      %v555 = vpack.c.b16 %v541, %v540
      %v556 = vpack.c.b16 %v543, %v542
      %v557 = vpack.c.b16 %v545, %v544
      %v558 = vpack.c.b16 %v547, %v546
      %v559 = vpack.c.b16 %v549, %v548
      %v560 = vpack.c.b16 %v551, %v550
      %v561 = vpack.c.b16 %v553, %v552
      %570 = vmatprep.subr.bf16.mxu0 0
      %571 = vmatpush1.bf16.msra.mxu0 %v554
      %572 = vmatprep.subr.bf16.mxu0 0
      %573 = vmatpush1.bf16.msra.mxu0 %v555
      %574 = vmatprep.subr.bf16.mxu0 0
      %575 = vmatpush1.bf16.msra.mxu0 %v556
      %576 = vmatprep.subr.bf16.mxu0 0
      %577 = vmatpush1.bf16.msra.mxu0 %v557
      %578 = vmatprep.subr.bf16.mxu0 0
      %579 = vmatpush1.bf16.msra.mxu0 %v558
      %580 = vmatprep.subr.bf16.mxu0 0
      %581 = vmatpush1.bf16.msra.mxu0 %v559
      %582 = vmatprep.subr.bf16.mxu0 0
      %583 = vmatpush1.bf16.msra.mxu0 %v560
      %584 = vmatprep.subr.bf16.mxu0 0
      %585 = vmatpush1.bf16.msra.mxu0 %v561
      %586 = vmatprep.subr.bf16.mxu0 0
      %587 = vmatpush1.bf16.msra.mxu0 0
      %588 = vmatprep.subr.bf16.mxu0 0
      %589 = vmatpush1.bf16.msra.mxu0 0
      %590 = vmatprep.subr.bf16.mxu0 0
      %591 = vmatpush1.bf16.msra.mxu0 0
      %592 = vmatprep.subr.bf16.mxu0 0
      %593 = vmatpush1.bf16.msra.mxu0 0
      %594 = vmatprep.subr.bf16.mxu0 0
      %595 = vmatpush1.bf16.msra.mxu0 0
      %596 = vmatprep.subr.bf16.mxu0 0
      %597 = vmatpush1.bf16.msra.mxu0 0
      %598 = vmatprep.subr.bf16.mxu0 0
      %599 = vmatpush1.bf16.msra.mxu0 0
      %600 = vmatprep.subr.bf16.mxu0 0
      %601 = vmatpush1.bf16.msra.mxu0 0
      %602 = vmatprep.mubr.bf16.mxu0 0
      %603 = vmatmul.mubr.bf16.gmra.mrb[0].mxu0 %v458
      %v604 = vpop.f32.mrb[0].mxu0
      %v605 = vadd.f32 0.0, %v604
      %v606 = vpop.f32.mrb[0].mxu0
      %v607 = vpop.f32.mrb[0].mxu0
      %v608 = vadd.f32 0.0, %v607
      %v609 = vpop.f32.mrb[0].mxu0
      %610 = vmatprep.mubr.bf16.mxu0 0
      %611 = vmatmul.mubr.bf16.gmra.mrb[0].mxu0 %v459
      %v612 = vpop.f32.mrb[0].mxu0
      %v613 = vadd.f32 0.0, %v612
      %v614 = vpop.f32.mrb[0].mxu0
      %v615 = vpop.f32.mrb[0].mxu0
      %v616 = vadd.f32 0.0, %v615
      %v617 = vpop.f32.mrb[0].mxu0
      %618 = vmatprep.mubr.bf16.mxu0 0
      %619 = vmatmul.mubr.bf16.gmra.mrb[0].mxu0 %v460
      %v620 = vpop.f32.mrb[0].mxu0
      %v621 = vadd.f32 0.0, %v620
      %v622 = vpop.f32.mrb[0].mxu0
      %v623 = vpop.f32.mrb[0].mxu0
      %v624 = vadd.f32 0.0, %v623
      %v625 = vpop.f32.mrb[0].mxu0
      %626 = vmatprep.mubr.bf16.mxu0 0
      %627 = vmatmul.mubr.bf16.gmra.mrb[0].mxu0 %v461
      %v628 = vpop.f32.mrb[0].mxu0
      %v629 = vadd.f32 0.0, %v628
      %v630 = vpop.f32.mrb[0].mxu0
      %v631 = vpop.f32.mrb[0].mxu0
      %v632 = vadd.f32 0.0, %v631
      %v633 = vpop.f32.mrb[0].mxu0
      %634 = vmatprep.mubr.bf16.mxu0 0
      %635 = vmatmul.mubr.bf16.gmra.mrb[0].mxu0 %v462
      %v636 = vpop.f32.mrb[0].mxu0
      %v637 = vadd.f32 0.0, %v636
      %v638 = vpop.f32.mrb[0].mxu0
      %v639 = vpop.f32.mrb[0].mxu0
      %v640 = vadd.f32 0.0, %v639
      %v641 = vpop.f32.mrb[0].mxu0
      %642 = vmatprep.mubr.bf16.mxu0 0
      %643 = vmatmul.mubr.bf16.gmra.mrb[0].mxu0 %v463
      %v644 = vpop.f32.mrb[0].mxu0
      %v645 = vadd.f32 0.0, %v644
      %v646 = vpop.f32.mrb[0].mxu0
      %v647 = vpop.f32.mrb[0].mxu0
      %v648 = vadd.f32 0.0, %v647
      %v649 = vpop.f32.mrb[0].mxu0
      %650 = vmatprep.mubr.bf16.mxu0 0
      %651 = vmatmul.mubr.bf16.gmra.mrb[0].mxu0 %v464
      %v652 = vpop.f32.mrb[0].mxu0
      %v653 = vadd.f32 0.0, %v652
      %v654 = vpop.f32.mrb[0].mxu0
      %v655 = vpop.f32.mrb[0].mxu0
      %v656 = vadd.f32 0.0, %v655
      %v657 = vpop.f32.mrb[0].mxu0
      %658 = vmatprep.mubr.bf16.mxu0 0
      %659 = vmatmul.mubr.bf16.gmra.mrb[0].mxu0 %v465
      %v660 = vpop.f32.mrb[0].mxu0
      %v661 = vadd.f32 0.0, %v660
      %v662 = vpop.f32.mrb[0].mxu0
      %v663 = vpop.f32.mrb[0].mxu0
      %v664 = vadd.f32 0.0, %v663
      %v665 = vpop.f32.mrb[0].mxu0
      %666 = vmatprep.mubr.bf16.mxu0 0
      %667 = vmatmul.mubr.bf16.gmra.mrb[0].mxu0 %v466
      %v668 = vpop.f32.mrb[0].mxu0
      %v669 = vadd.f32 0.0, %v668
      %v670 = vpop.f32.mrb[0].mxu0
      %v671 = vpop.f32.mrb[0].mxu0
      %v672 = vadd.f32 0.0, %v671
      %v673 = vpop.f32.mrb[0].mxu0
      %674 = vmatprep.mubr.bf16.mxu0 0
      %675 = vmatmul.mubr.bf16.gmra.mrb[0].mxu0 %v467
      %v676 = vpop.f32.mrb[0].mxu0
      %v677 = vadd.f32 0.0, %v676
      %v678 = vpop.f32.mrb[0].mxu0
      %v679 = vpop.f32.mrb[0].mxu0
      %v680 = vadd.f32 0.0, %v679
      %v681 = vpop.f32.mrb[0].mxu0
      %682 = vmatprep.mubr.bf16.mxu0 0
      %683 = vmatmul.mubr.bf16.gmra.mrb[0].mxu0 %v468
      %v684 = vpop.f32.mrb[0].mxu0
      %v685 = vadd.f32 0.0, %v684
      %v686 = vpop.f32.mrb[0].mxu0
      %v687 = vpop.f32.mrb[0].mxu0
      %v688 = vadd.f32 0.0, %v687
      %v689 = vpop.f32.mrb[0].mxu0
      %690 = vmatprep.mubr.bf16.mxu0 0
      %691 = vmatmul.mubr.bf16.gmra.mrb[0].mxu0 %v469
      %v692 = vpop.f32.mrb[0].mxu0
      %v693 = vadd.f32 0.0, %v692
      %v694 = vpop.f32.mrb[0].mxu0
      %v695 = vpop.f32.mrb[0].mxu0
      %v696 = vadd.f32 0.0, %v695
      %v697 = vpop.f32.mrb[0].mxu0
      %698 = vmatprep.mubr.bf16.mxu0 0
      %699 = vmatmul.mubr.bf16.gmra.mrb[0].mxu0 %v470
      %v700 = vpop.f32.mrb[0].mxu0
      %v701 = vadd.f32 0.0, %v700
      %v702 = vpop.f32.mrb[0].mxu0
      %v703 = vpop.f32.mrb[0].mxu0
      %v704 = vadd.f32 0.0, %v703
      %v705 = vpop.f32.mrb[0].mxu0
      %706 = vmatprep.mubr.bf16.mxu0 0
      %707 = vmatmul.mubr.bf16.gmra.mrb[0].mxu0 %v471
      %v708 = vpop.f32.mrb[0].mxu0
      %v709 = vadd.f32 0.0, %v708
      %v710 = vpop.f32.mrb[0].mxu0
      %v711 = vpop.f32.mrb[0].mxu0
      %v712 = vadd.f32 0.0, %v711
      %v713 = vpop.f32.mrb[0].mxu0
      %714 = vmatprep.mubr.bf16.mxu0 0
      %715 = vmatmul.mubr.bf16.gmra.mrb[0].mxu0 %v472
      %v716 = vpop.f32.mrb[0].mxu0
      %v717 = vadd.f32 0.0, %v716
      %v718 = vpop.f32.mrb[0].mxu0
      %v719 = vpop.f32.mrb[0].mxu0
      %v720 = vadd.f32 0.0, %v719
      %v721 = vpop.f32.mrb[0].mxu0
      %722 = vmatprep.mubr.bf16.mxu0 0
      %723 = vmatmul.mubr.bf16.gmra.mrb[0].mxu0 %v473
      %v724 = vpop.f32.mrb[0].mxu0
      %v725 = vadd.f32 0.0, %v724
      %v726 = vpop.f32.mrb[0].mxu0
      %v727 = vpop.f32.mrb[0].mxu0
      %v728 = vadd.f32 0.0, %v727
      %v729 = vpop.f32.mrb[0].mxu0
      %730 = vmatprep.mubr.bf16.mxu0 0
      %731 = vmatmul.mubr.bf16.gmra.mrb[0].mxu0 %v474
      %v732 = vpop.f32.mrb[0].mxu0
      %v733 = vadd.f32 0.0, %v732
      %v734 = vpop.f32.mrb[0].mxu0
      %v735 = vpop.f32.mrb[0].mxu0
      %v736 = vadd.f32 0.0, %v735
      %v737 = vpop.f32.mrb[0].mxu0
      %738 = vmatprep.mubr.bf16.mxu0 0
      %739 = vmatmul.mubr.bf16.gmra.mrb[0].mxu0 %v475
      %v740 = vpop.f32.mrb[0].mxu0
      %v741 = vadd.f32 0.0, %v740
      %v742 = vpop.f32.mrb[0].mxu0
      %v743 = vpop.f32.mrb[0].mxu0
      %v744 = vadd.f32 0.0, %v743
      %v745 = vpop.f32.mrb[0].mxu0
      %746 = vmatprep.mubr.bf16.mxu0 0
      %747 = vmatmul.mubr.bf16.gmra.mrb[0].mxu0 %v476
      %v748 = vpop.f32.mrb[0].mxu0
      %v749 = vadd.f32 0.0, %v748
      %v750 = vpop.f32.mrb[0].mxu0
      %v751 = vpop.f32.mrb[0].mxu0
      %v752 = vadd.f32 0.0, %v751
      %v753 = vpop.f32.mrb[0].mxu0
      %754 = vmatprep.mubr.bf16.mxu0 0
      %755 = vmatmul.mubr.bf16.gmra.mrb[0].mxu0 %v477
      %v756 = vpop.f32.mrb[0].mxu0
      %v757 = vadd.f32 0.0, %v756
      %v758 = vpop.f32.mrb[0].mxu0
      %v759 = vpop.f32.mrb[0].mxu0
      %v760 = vadd.f32 0.0, %v759
      %v761 = vpop.f32.mrb[0].mxu0
      %762 = vmatprep.mubr.bf16.mxu0 0
      %763 = vmatmul.mubr.bf16.gmra.mrb[0].mxu0 %v478
      %v764 = vpop.f32.mrb[0].mxu0
      %v765 = vadd.f32 0.0, %v764
      %v766 = vpop.f32.mrb[0].mxu0
      %v767 = vpop.f32.mrb[0].mxu0
      %v768 = vadd.f32 0.0, %v767
      %v769 = vpop.f32.mrb[0].mxu0
      %770 = vmatprep.mubr.bf16.mxu0 0
      %771 = vmatmul.mubr.bf16.gmra.mrb[0].mxu0 %v479
      %v772 = vpop.f32.mrb[0].mxu0
      %v773 = vadd.f32 0.0, %v772
      %v774 = vpop.f32.mrb[0].mxu0
      %v775 = vpop.f32.mrb[0].mxu0
      %v776 = vadd.f32 0.0, %v775
      %v777 = vpop.f32.mrb[0].mxu0
      %778 = vmatprep.mubr.bf16.mxu0 0
      %779 = vmatmul.mubr.bf16.gmra.mrb[0].mxu0 %v480
      %v780 = vpop.f32.mrb[0].mxu0
      %v781 = vadd.f32 0.0, %v780
      %v782 = vpop.f32.mrb[0].mxu0
      %v783 = vpop.f32.mrb[0].mxu0
      %v784 = vadd.f32 0.0, %v783
      %v785 = vpop.f32.mrb[0].mxu0
      %786 = vmatprep.mubr.bf16.mxu0 0
      %787 = vmatmul.mubr.bf16.gmra.mrb[0].mxu0 %v481
      %v788 = vpop.f32.mrb[0].mxu0
      %v789 = vadd.f32 0.0, %v788
      %v790 = vpop.f32.mrb[0].mxu0
      %v791 = vpop.f32.mrb[0].mxu0
      %v792 = vadd.f32 0.0, %v791
      %v793 = vpop.f32.mrb[0].mxu0
      %794 = vmatprep.mubr.bf16.mxu0 0
      %795 = vmatmul.mubr.bf16.gmra.mrb[0].mxu0 %v482
      %v796 = vpop.f32.mrb[0].mxu0
      %v797 = vadd.f32 0.0, %v796
      %v798 = vpop.f32.mrb[0].mxu0
      %v799 = vpop.f32.mrb[0].mxu0
      %v800 = vadd.f32 0.0, %v799
      %v801 = vpop.f32.mrb[0].mxu0
      %802 = vmatprep.mubr.bf16.mxu0 0
      %803 = vmatmul.mubr.bf16.gmra.mrb[0].mxu0 %v483
      %v804 = vpop.f32.mrb[0].mxu0
      %v805 = vadd.f32 0.0, %v804
      %v806 = vpop.f32.mrb[0].mxu0
      %v807 = vpop.f32.mrb[0].mxu0
      %v808 = vadd.f32 0.0, %v807
      %v809 = vpop.f32.mrb[0].mxu0
      %810 = vmatprep.mubr.bf16.mxu0 0
      %811 = vmatmul.mubr.bf16.gmra.mrb[0].mxu0 %v484
      %v812 = vpop.f32.mrb[0].mxu0
      %v813 = vadd.f32 0.0, %v812
      %v814 = vpop.f32.mrb[0].mxu0
      %v815 = vpop.f32.mrb[0].mxu0
      %v816 = vadd.f32 0.0, %v815
      %v817 = vpop.f32.mrb[0].mxu0
      %818 = vmatprep.mubr.bf16.mxu0 0
      %819 = vmatmul.mubr.bf16.gmra.mrb[0].mxu0 %v485
      %v820 = vpop.f32.mrb[0].mxu0
      %v821 = vadd.f32 0.0, %v820
      %v822 = vpop.f32.mrb[0].mxu0
      %v823 = vpop.f32.mrb[0].mxu0
      %v824 = vadd.f32 0.0, %v823
      %v825 = vpop.f32.mrb[0].mxu0
      %826 = vmatprep.mubr.bf16.mxu0 0
      %827 = vmatmul.mubr.bf16.gmra.mrb[0].mxu0 %v486
      %v828 = vpop.f32.mrb[0].mxu0
      %v829 = vadd.f32 0.0, %v828
      %v830 = vpop.f32.mrb[0].mxu0
      %v831 = vpop.f32.mrb[0].mxu0
      %v832 = vadd.f32 0.0, %v831
      %v833 = vpop.f32.mrb[0].mxu0
      %834 = vmatprep.mubr.bf16.mxu0 0
      %835 = vmatmul.mubr.bf16.gmra.mrb[0].mxu0 %v487
      %v836 = vpop.f32.mrb[0].mxu0
      %v837 = vadd.f32 0.0, %v836
      %v838 = vpop.f32.mrb[0].mxu0
      %v839 = vpop.f32.mrb[0].mxu0
      %v840 = vadd.f32 0.0, %v839
      %v841 = vpop.f32.mrb[0].mxu0
      %842 = vmatprep.mubr.bf16.mxu0 0
      %843 = vmatmul.mubr.bf16.gmra.mrb[0].mxu0 %v488
      %v844 = vpop.f32.mrb[0].mxu0
      %v845 = vadd.f32 0.0, %v844
      %v846 = vpop.f32.mrb[0].mxu0
      %v847 = vpop.f32.mrb[0].mxu0
      %v848 = vadd.f32 0.0, %v847
      %v849 = vpop.f32.mrb[0].mxu0
      %850 = vmatprep.mubr.bf16.mxu0 0
      %851 = vmatmul.mubr.bf16.gmra.mrb[0].mxu0 %v489
      %v852 = vpop.f32.mrb[0].mxu0
      %v853 = vadd.f32 0.0, %v852
      %v854 = vpop.f32.mrb[0].mxu0
      %v855 = vpop.f32.mrb[0].mxu0
      %v856 = vadd.f32 0.0, %v855
      %v857 = vpop.f32.mrb[0].mxu0
      %858 = vdwg.mxu0
      %v859 = vpack.c.bf16 %v608, %v605
      %v860 = vpack.c.bf16 %v616, %v613
      %v861 = vpack.c.bf16 %v624, %v621
      %v862 = vpack.c.bf16 %v632, %v629
      %v863 = vpack.c.bf16 %v640, %v637
      %v864 = vpack.c.bf16 %v648, %v645
      %v865 = vpack.c.bf16 %v656, %v653
      %v866 = vpack.c.bf16 %v664, %v661
      %v867 = vpack.c.bf16 %v672, %v669
      %v868 = vpack.c.bf16 %v680, %v677
      %v869 = vpack.c.bf16 %v688, %v685
      %v870 = vpack.c.bf16 %v696, %v693
      %v871 = vpack.c.bf16 %v704, %v701
      %v872 = vpack.c.bf16 %v712, %v709
      %v873 = vpack.c.bf16 %v720, %v717
      %v874 = vpack.c.bf16 %v728, %v725
      %v875 = vpack.c.bf16 %v736, %v733
      %v876 = vpack.c.bf16 %v744, %v741
      %v877 = vpack.c.bf16 %v752, %v749
      %v878 = vpack.c.bf16 %v760, %v757
      %v879 = vpack.c.bf16 %v768, %v765
      %v880 = vpack.c.bf16 %v776, %v773
      %v881 = vpack.c.bf16 %v784, %v781
      %v882 = vpack.c.bf16 %v792, %v789
      %v883 = vpack.c.bf16 %v800, %v797
      %v884 = vpack.c.bf16 %v808, %v805
      %v885 = vpack.c.bf16 %v816, %v813
      %v886 = vpack.c.bf16 %v824, %v821
      %v887 = vpack.c.bf16 %v832, %v829
      %v888 = vpack.c.bf16 %v840, %v837
      %v889 = vpack.c.bf16 %v848, %v845
      %v890 = vpack.c.bf16 %v856, %v853
      %v923 = vunpack.c.l.b16 %v859
      %v924 = vunpack.c.h.b16 %v859
      %v925 = vunpack.c.l.b16 %v860
      %v926 = vunpack.c.h.b16 %v860
      %v927 = vunpack.c.l.b16 %v861
      %v928 = vunpack.c.h.b16 %v861
      %v929 = vunpack.c.l.b16 %v862
      %v930 = vunpack.c.h.b16 %v862
      %v931 = vunpack.c.l.b16 %v863
      %v932 = vunpack.c.h.b16 %v863
      %v933 = vunpack.c.l.b16 %v864
      %v934 = vunpack.c.h.b16 %v864
      %v935 = vunpack.c.l.b16 %v865
      %v936 = vunpack.c.h.b16 %v865
      %v937 = vunpack.c.l.b16 %v866
      %v938 = vunpack.c.h.b16 %v866
      %v939 = vunpack.c.l.b16 %v867
      %v940 = vunpack.c.h.b16 %v867
      %v941 = vunpack.c.l.b16 %v868
      %v942 = vunpack.c.h.b16 %v868
      %v943 = vunpack.c.l.b16 %v869
      %v944 = vunpack.c.h.b16 %v869
      %v945 = vunpack.c.l.b16 %v870
      %v946 = vunpack.c.h.b16 %v870
      %v947 = vunpack.c.l.b16 %v871
      %v948 = vunpack.c.h.b16 %v871
      %v949 = vunpack.c.l.b16 %v872
      %v950 = vunpack.c.h.b16 %v872
      %v951 = vunpack.c.l.b16 %v873
      %v952 = vunpack.c.h.b16 %v873
      %v953 = vunpack.c.l.b16 %v874
      %v954 = vunpack.c.h.b16 %v874
      %v955 = vunpack.c.l.b16 %v875
      %v956 = vunpack.c.h.b16 %v875
      %v957 = vunpack.c.l.b16 %v876
      %v958 = vunpack.c.h.b16 %v876
      %v959 = vunpack.c.l.b16 %v877
      %v960 = vunpack.c.h.b16 %v877
      %v961 = vunpack.c.l.b16 %v878
      %v962 = vunpack.c.h.b16 %v878
      %v963 = vunpack.c.l.b16 %v879
      %v964 = vunpack.c.h.b16 %v879
      %v965 = vunpack.c.l.b16 %v880
      %v966 = vunpack.c.h.b16 %v880
      %v967 = vunpack.c.l.b16 %v881
      %v968 = vunpack.c.h.b16 %v881
      %v969 = vunpack.c.l.b16 %v882
      %v970 = vunpack.c.h.b16 %v882
      %v971 = vunpack.c.l.b16 %v883
      %v972 = vunpack.c.h.b16 %v883
      %v973 = vunpack.c.l.b16 %v884
      %v974 = vunpack.c.h.b16 %v884
      %v975 = vunpack.c.l.b16 %v885
      %v976 = vunpack.c.h.b16 %v885
      %v977 = vunpack.c.l.b16 %v886
      %v978 = vunpack.c.h.b16 %v886
      %v979 = vunpack.c.l.b16 %v887
      %v980 = vunpack.c.h.b16 %v887
      %v981 = vunpack.c.l.b16 %v888
      %v982 = vunpack.c.h.b16 %v888
      %v983 = vunpack.c.l.b16 %v889
      %v984 = vunpack.c.h.b16 %v889
      %v985 = vunpack.c.l.b16 %v890
      %v986 = vunpack.c.h.b16 %v890
      %v987 = vpack.c.b16 %v923, %v923
      %v988 = vpack.c.b16 %v924, %v924
      %v989 = vpack.c.b16 %v925, %v925
      %v990 = vpack.c.b16 %v926, %v926
      %v991 = vpack.c.b16 %v927, %v927
      %v992 = vpack.c.b16 %v928, %v928
      %v993 = vpack.c.b16 %v929, %v929
      %v994 = vpack.c.b16 %v930, %v930
      %v995 = vpack.c.b16 %v931, %v931
      %v996 = vpack.c.b16 %v932, %v932
      %v997 = vpack.c.b16 %v933, %v933
      %v998 = vpack.c.b16 %v934, %v934
      %v999 = vpack.c.b16 %v935, %v935
      %v1000 = vpack.c.b16 %v936, %v936
      %v1001 = vpack.c.b16 %v937, %v937
      %v1002 = vpack.c.b16 %v938, %v938
      %v1003 = vpack.c.b16 %v939, %v939
      %v1004 = vpack.c.b16 %v940, %v940
      %v1005 = vpack.c.b16 %v941, %v941
      %v1006 = vpack.c.b16 %v942, %v942
      %v1007 = vpack.c.b16 %v943, %v943
      %v1008 = vpack.c.b16 %v944, %v944
      %v1009 = vpack.c.b16 %v945, %v945
      %v1010 = vpack.c.b16 %v946, %v946
      %v1011 = vpack.c.b16 %v947, %v947
      %v1012 = vpack.c.b16 %v948, %v948
      %v1013 = vpack.c.b16 %v949, %v949
      %v1014 = vpack.c.b16 %v950, %v950
      %v1015 = vpack.c.b16 %v951, %v951
      %v1016 = vpack.c.b16 %v952, %v952
      %v1017 = vpack.c.b16 %v953, %v953
      %v1018 = vpack.c.b16 %v954, %v954
      %v1019 = vpack.c.b16 %v955, %v955
      %v1020 = vpack.c.b16 %v956, %v956
      %v1021 = vpack.c.b16 %v957, %v957
      %v1022 = vpack.c.b16 %v958, %v958
      %v1023 = vpack.c.b16 %v959, %v959
      %v1024 = vpack.c.b16 %v960, %v960
      %v1025 = vpack.c.b16 %v961, %v961
      %v1026 = vpack.c.b16 %v962, %v962
      %v1027 = vpack.c.b16 %v963, %v963
      %v1028 = vpack.c.b16 %v964, %v964
      %v1029 = vpack.c.b16 %v965, %v965
      %v1030 = vpack.c.b16 %v966, %v966
      %v1031 = vpack.c.b16 %v967, %v967
      %v1032 = vpack.c.b16 %v968, %v968
      %v1033 = vpack.c.b16 %v969, %v969
      %v1034 = vpack.c.b16 %v970, %v970
      %v1035 = vpack.c.b16 %v971, %v971
      %v1036 = vpack.c.b16 %v972, %v972
      %v1037 = vpack.c.b16 %v973, %v973
      %v1038 = vpack.c.b16 %v974, %v974
      %v1039 = vpack.c.b16 %v975, %v975
      %v1040 = vpack.c.b16 %v976, %v976
      %v1041 = vpack.c.b16 %v977, %v977
      %v1042 = vpack.c.b16 %v978, %v978
      %v1043 = vpack.c.b16 %v979, %v979
      %v1044 = vpack.c.b16 %v980, %v980
      %v1045 = vpack.c.b16 %v981, %v981
      %v1046 = vpack.c.b16 %v982, %v982
      %v1047 = vpack.c.b16 %v983, %v983
      %v1048 = vpack.c.b16 %v984, %v984
      %v1049 = vpack.c.b16 %v985, %v985
      %v1050 = vpack.c.b16 %v986, %v986
      %1115 = vst [vmem:[%s240] sm:$0xf] %v987
      %1116 = vst [vmem:[%s240 + $0x4] sm:$0xf] %v988
      %1117 = vst [vmem:[%s240 + $0x8] sm:$0xf] %v989
      %1118 = vst [vmem:[%s240 + $0xc] sm:$0xf] %v990
      %1119 = vst [vmem:[%s240 + $0x10] sm:$0xf] %v991
      %1120 = vst [vmem:[%s240 + $0x14] sm:$0xf] %v992
      %1121 = vst [vmem:[%s240 + $0x18] sm:$0xf] %v993
      %1122 = vst [vmem:[%s240 + $0x1c] sm:$0xf] %v994
      %1123 = vst [vmem:[%s240 + $0x20] sm:$0xf] %v995
      %1124 = vst [vmem:[%s240 + $0x24] sm:$0xf] %v996
      %1125 = vst [vmem:[%s240 + $0x28] sm:$0xf] %v997
      %1126 = vst [vmem:[%s240 + $0x2c] sm:$0xf] %v998
      %1127 = vst [vmem:[%s240 + $0x30] sm:$0xf] %v999
      %1128 = vst [vmem:[%s240 + $0x34] sm:$0xf] %v1000
      %1129 = vst [vmem:[%s240 + $0x38] sm:$0xf] %v1001
      %1130 = vst [vmem:[%s240 + $0x3c] sm:$0xf] %v1002
      %1131 = vst [vmem:[%s240 + $0x40] sm:$0xf] %v1003
      %1132 = vst [vmem:[%s240 + $0x44] sm:$0xf] %v1004
      %1133 = vst [vmem:[%s240 + $0x48] sm:$0xf] %v1005
      %1134 = vst [vmem:[%s240 + $0x4c] sm:$0xf] %v1006
      %1135 = vst [vmem:[%s240 + $0x50] sm:$0xf] %v1007
      %1136 = vst [vmem:[%s240 + $0x54] sm:$0xf] %v1008
      %1137 = vst [vmem:[%s240 + $0x58] sm:$0xf] %v1009
      %1138 = vst [vmem:[%s240 + $0x5c] sm:$0xf] %v1010
      %1139 = vst [vmem:[%s240 + $0x60] sm:$0xf] %v1011
      %1140 = vst [vmem:[%s240 + $0x64] sm:$0xf] %v1012
      %1141 = vst [vmem:[%s240 + $0x68] sm:$0xf] %v1013
      %1142 = vst [vmem:[%s240 + $0x6c] sm:$0xf] %v1014
      %1143 = vst [vmem:[%s240 + $0x70] sm:$0xf] %v1015
      %1144 = vst [vmem:[%s240 + $0x74] sm:$0xf] %v1016
      %1145 = vst [vmem:[%s240 + $0x78] sm:$0xf] %v1017
      %1146 = vst [vmem:[%s240 + $0x7c] sm:$0xf] %v1018
      %1147 = vst [vmem:[%s240 + $0x80] sm:$0xf] %v1019
      %1148 = vst [vmem:[%s240 + $0x84] sm:$0xf] %v1020
      %1149 = vst [vmem:[%s240 + $0x88] sm:$0xf] %v1021
      %1150 = vst [vmem:[%s240 + $0x8c] sm:$0xf] %v1022
      %1151 = vst [vmem:[%s240 + $0x90] sm:$0xf] %v1023
      %1152 = vst [vmem:[%s240 + $0x94] sm:$0xf] %v1024
      %1153 = vst [vmem:[%s240 + $0x98] sm:$0xf] %v1025
      %1154 = vst [vmem:[%s240 + $0x9c] sm:$0xf] %v1026
      %1155 = vst [vmem:[%s240 + $0xa0] sm:$0xf] %v1027
      %1156 = vst [vmem:[%s240 + $0xa4] sm:$0xf] %v1028
      %1157 = vst [vmem:[%s240 + $0xa8] sm:$0xf] %v1029
      %1158 = vst [vmem:[%s240 + $0xac] sm:$0xf] %v1030
      %1159 = vst [vmem:[%s240 + $0xb0] sm:$0xf] %v1031
      %1160 = vst [vmem:[%s240 + $0xb4] sm:$0xf] %v1032
      %1161 = vst [vmem:[%s240 + $0xb8] sm:$0xf] %v1033
      %1162 = vst [vmem:[%s240 + $0xbc] sm:$0xf] %v1034
      %1163 = vst [vmem:[%s240 + $0xc0] sm:$0xf] %v1035
      %1164 = vst [vmem:[%s240 + $0xc4] sm:$0xf] %v1036
      %1165 = vst [vmem:[%s240 + $0xc8] sm:$0xf] %v1037
      %1166 = vst [vmem:[%s240 + $0xcc] sm:$0xf] %v1038
      %1167 = vst [vmem:[%s240 + $0xd0] sm:$0xf] %v1039
      %1168 = vst [vmem:[%s240 + $0xd4] sm:$0xf] %v1040
      %1169 = vst [vmem:[%s240 + $0xd8] sm:$0xf] %v1041
      %1170 = vst [vmem:[%s240 + $0xdc] sm:$0xf] %v1042
      %1171 = vst [vmem:[%s240 + $0xe0] sm:$0xf] %v1043
      %1172 = vst [vmem:[%s240 + $0xe4] sm:$0xf] %v1044
      %1173 = vst [vmem:[%s240 + $0xe8] sm:$0xf] %v1045
      %1174 = vst [vmem:[%s240 + $0xec] sm:$0xf] %v1046
      %1175 = vst [vmem:[%s240 + $0xf0] sm:$0xf] %v1047
      %1176 = vst [vmem:[%s240 + $0xf4] sm:$0xf] %v1048
      %1177 = vst [vmem:[%s240 + $0xf8] sm:$0xf] %v1049
      %1178 = vst [vmem:[%s240 + $0xfc] sm:$0xf] %v1050
      %v1179 = vadd.f32 %v605, %v608
      %v1180 = vadd.f32 %v1179, %v613
      %v1181 = vadd.f32 %v1180, %v616
      %v1182 = vadd.f32 %v1181, %v621
      %v1183 = vadd.f32 %v1182, %v624
      %v1184 = vadd.f32 %v1183, %v629
      %v1185 = vadd.f32 %v1184, %v632
      %v1186 = vadd.f32 %v1185, %v637
      %v1187 = vadd.f32 %v1186, %v640
      %v1188 = vadd.f32 %v1187, %v645
      %v1189 = vadd.f32 %v1188, %v648
      %v1190 = vadd.f32 %v1189, %v653
      %v1191 = vadd.f32 %v1190, %v656
      %v1192 = vadd.f32 %v1191, %v661
      %v1193 = vadd.f32 %v1192, %v664
      %v1194 = vadd.f32 %v1193, %v669
      %v1195 = vadd.f32 %v1194, %v672
      %v1196 = vadd.f32 %v1195, %v677
      %v1197 = vadd.f32 %v1196, %v680
      %v1198 = vadd.f32 %v1197, %v685
      %v1199 = vadd.f32 %v1198, %v688
      %v1200 = vadd.f32 %v1199, %v693
      %v1201 = vadd.f32 %v1200, %v696
      %v1202 = vadd.f32 %v1201, %v701
      %v1203 = vadd.f32 %v1202, %v704
      %v1204 = vadd.f32 %v1203, %v709
      %v1205 = vadd.f32 %v1204, %v712
      %v1206 = vadd.f32 %v1205, %v717
      %v1207 = vadd.f32 %v1206, %v720
      %v1208 = vadd.f32 %v1207, %v725
      %v1209 = vadd.f32 %v1208, %v728
      %v1210 = vadd.f32 %v1209, %v733
      %v1211 = vadd.f32 %v1210, %v736
      %v1212 = vadd.f32 %v1211, %v741
      %v1213 = vadd.f32 %v1212, %v744
      %v1214 = vadd.f32 %v1213, %v749
      %v1215 = vadd.f32 %v1214, %v752
      %v1216 = vadd.f32 %v1215, %v757
      %v1217 = vadd.f32 %v1216, %v760
      %v1218 = vadd.f32 %v1217, %v765
      %v1219 = vadd.f32 %v1218, %v768
      %v1220 = vadd.f32 %v1219, %v773
      %v1221 = vadd.f32 %v1220, %v776
      %v1222 = vadd.f32 %v1221, %v781
      %v1223 = vadd.f32 %v1222, %v784
      %v1224 = vadd.f32 %v1223, %v789
      %v1225 = vadd.f32 %v1224, %v792
      %v1226 = vadd.f32 %v1225, %v797
      %v1227 = vadd.f32 %v1226, %v800
      %v1228 = vadd.f32 %v1227, %v805
      %v1229 = vadd.f32 %v1228, %v808
      %v1230 = vadd.f32 %v1229, %v813
      %v1231 = vadd.f32 %v1230, %v816
      %v1232 = vadd.f32 %v1231, %v821
      %v1233 = vadd.f32 %v1232, %v824
      %v1234 = vadd.f32 %v1233, %v829
      %v1235 = vadd.f32 %v1234, %v832
      %v1236 = vadd.f32 %v1235, %v837
      %v1237 = vadd.f32 %v1236, %v840
      %v1238 = vadd.f32 %v1237, %v845
      %v1239 = vadd.f32 %v1238, %v848
      %v1240 = vadd.f32 %v1239, %v853
      %v1241 = vadd.f32 %v1240, %v856
      %v1242 = vrot.slane %v1241, 4
      %v1243 = vadd.f32 %v1241, %v1242
      %v1244 = vrot.slane %v1243, 2
      %v1245 = vadd.f32 %v1243, %v1244
      %v1246 = vrot.slane %v1245, 1
      %v1247 = vadd.f32 %v1245, %v1246
      %v1248 = vmul.f32 %v605, %v605
      %v1249 = vmul.f32 %v608, %v608
      %v1250 = vmul.f32 %v613, %v613
      %v1251 = vmul.f32 %v616, %v616
      %v1252 = vmul.f32 %v621, %v621
      %v1253 = vmul.f32 %v624, %v624
      %v1254 = vmul.f32 %v629, %v629
      %v1255 = vmul.f32 %v632, %v632
      %v1256 = vmul.f32 %v637, %v637
      %v1257 = vmul.f32 %v640, %v640
      %v1258 = vmul.f32 %v645, %v645
      %v1259 = vmul.f32 %v648, %v648
      %v1260 = vmul.f32 %v653, %v653
      %v1261 = vmul.f32 %v656, %v656
      %v1262 = vmul.f32 %v661, %v661
      %v1263 = vmul.f32 %v664, %v664
      %v1264 = vmul.f32 %v669, %v669
      %v1265 = vmul.f32 %v672, %v672
      %v1266 = vmul.f32 %v677, %v677
      %v1267 = vmul.f32 %v680, %v680
      %v1268 = vmul.f32 %v685, %v685
      %v1269 = vmul.f32 %v688, %v688
      %v1270 = vmul.f32 %v693, %v693
      %v1271 = vmul.f32 %v696, %v696
      %v1272 = vmul.f32 %v701, %v701
      %v1273 = vmul.f32 %v704, %v704
      %v1274 = vmul.f32 %v709, %v709
      %v1275 = vmul.f32 %v712, %v712
      %v1276 = vmul.f32 %v717, %v717
      %v1277 = vmul.f32 %v720, %v720
      %v1278 = vmul.f32 %v725, %v725
      %v1279 = vmul.f32 %v728, %v728
      %v1280 = vmul.f32 %v733, %v733
      %v1281 = vmul.f32 %v736, %v736
      %v1282 = vmul.f32 %v741, %v741
      %v1283 = vmul.f32 %v744, %v744
      %v1284 = vmul.f32 %v749, %v749
      %v1285 = vmul.f32 %v752, %v752
      %v1286 = vmul.f32 %v757, %v757
      %v1287 = vmul.f32 %v760, %v760
      %v1288 = vmul.f32 %v765, %v765
      %v1289 = vmul.f32 %v768, %v768
      %v1290 = vmul.f32 %v773, %v773
      %v1291 = vmul.f32 %v776, %v776
      %v1292 = vmul.f32 %v781, %v781
      %v1293 = vmul.f32 %v784, %v784
      %v1294 = vmul.f32 %v789, %v789
      %v1295 = vmul.f32 %v792, %v792
      %v1296 = vmul.f32 %v797, %v797
      %v1297 = vmul.f32 %v800, %v800
      %v1298 = vmul.f32 %v805, %v805
      %v1299 = vmul.f32 %v808, %v808
      %v1300 = vmul.f32 %v813, %v813
      %v1301 = vmul.f32 %v816, %v816
      %v1302 = vmul.f32 %v821, %v821
      %v1303 = vmul.f32 %v824, %v824
      %v1304 = vmul.f32 %v829, %v829
      %v1305 = vmul.f32 %v832, %v832
      %v1306 = vmul.f32 %v837, %v837
      %v1307 = vmul.f32 %v840, %v840
      %v1308 = vmul.f32 %v845, %v845
      %v1309 = vmul.f32 %v848, %v848
      %v1310 = vmul.f32 %v853, %v853
      %v1311 = vmul.f32 %v856, %v856
      %v1312 = vadd.f32 %v1248, %v1249
      %v1313 = vadd.f32 %v1312, %v1250
      %v1314 = vadd.f32 %v1313, %v1251
      %v1315 = vadd.f32 %v1314, %v1252
      %v1316 = vadd.f32 %v1315, %v1253
      %v1317 = vadd.f32 %v1316, %v1254
      %v1318 = vadd.f32 %v1317, %v1255
      %v1319 = vadd.f32 %v1318, %v1256
      %v1320 = vadd.f32 %v1319, %v1257
      %v1321 = vadd.f32 %v1320, %v1258
      %v1322 = vadd.f32 %v1321, %v1259
      %v1323 = vadd.f32 %v1322, %v1260
      %v1324 = vadd.f32 %v1323, %v1261
      %v1325 = vadd.f32 %v1324, %v1262
      %v1326 = vadd.f32 %v1325, %v1263
      %v1327 = vadd.f32 %v1326, %v1264
      %v1328 = vadd.f32 %v1327, %v1265
      %v1329 = vadd.f32 %v1328, %v1266
      %v1330 = vadd.f32 %v1329, %v1267
      %v1331 = vadd.f32 %v1330, %v1268
      %v1332 = vadd.f32 %v1331, %v1269
      %v1333 = vadd.f32 %v1332, %v1270
      %v1334 = vadd.f32 %v1333, %v1271
      %v1335 = vadd.f32 %v1334, %v1272
      %v1336 = vadd.f32 %v1335, %v1273
      %v1337 = vadd.f32 %v1336, %v1274
      %v1338 = vadd.f32 %v1337, %v1275
      %v1339 = vadd.f32 %v1338, %v1276
      %v1340 = vadd.f32 %v1339, %v1277
      %v1341 = vadd.f32 %v1340, %v1278
      %v1342 = vadd.f32 %v1341, %v1279
      %v1343 = vadd.f32 %v1342, %v1280
      %v1344 = vadd.f32 %v1343, %v1281
      %v1345 = vadd.f32 %v1344, %v1282
      %v1346 = vadd.f32 %v1345, %v1283
      %v1347 = vadd.f32 %v1346, %v1284
      %v1348 = vadd.f32 %v1347, %v1285
      %v1349 = vadd.f32 %v1348, %v1286
      %v1350 = vadd.f32 %v1349, %v1287
      %v1351 = vadd.f32 %v1350, %v1288
      %v1352 = vadd.f32 %v1351, %v1289
      %v1353 = vadd.f32 %v1352, %v1290
      %v1354 = vadd.f32 %v1353, %v1291
      %v1355 = vadd.f32 %v1354, %v1292
      %v1356 = vadd.f32 %v1355, %v1293
      %v1357 = vadd.f32 %v1356, %v1294
      %v1358 = vadd.f32 %v1357, %v1295
      %v1359 = vadd.f32 %v1358, %v1296
      %v1360 = vadd.f32 %v1359, %v1297
      %v1361 = vadd.f32 %v1360, %v1298
      %v1362 = vadd.f32 %v1361, %v1299
      %v1363 = vadd.f32 %v1362, %v1300
      %v1364 = vadd.f32 %v1363, %v1301
      %v1365 = vadd.f32 %v1364, %v1302
      %v1366 = vadd.f32 %v1365, %v1303
      %v1367 = vadd.f32 %v1366, %v1304
      %v1368 = vadd.f32 %v1367, %v1305
      %v1369 = vadd.f32 %v1368, %v1306
      %v1370 = vadd.f32 %v1369, %v1307
      %v1371 = vadd.f32 %v1370, %v1308
      %v1372 = vadd.f32 %v1371, %v1309
      %v1373 = vadd.f32 %v1372, %v1310
      %v1374 = vadd.f32 %v1373, %v1311
      %v1375 = vrot.slane %v1374, 4
      %v1376 = vadd.f32 %v1374, %v1375
      %v1377 = vrot.slane %v1376, 2
      %v1378 = vadd.f32 %v1376, %v1377
      %v1379 = vrot.slane %v1378, 1
      %v1380 = vadd.f32 %v1378, %v1379
      %vm1381 = vcmask 1040384
      %v1382 = vsel %vm1381, %v1247, %v1380
      %1383 = vst [vmem:[%s248] sm:$0x3] %v1382
      %s1384 = smul.u32 64, %s20
      %p1385 = scmp.lt.s32.totalorder %s19, 3
      %s1386 = scalar_select %p1385, %s19, 3
      %p1387 = scmp.lt.s32.totalorder %s1384, 63
      %s1388 = scalar_select %p1387, %s1384, 63
      %s1389 = smul.addr %s1386, 64
      %s1390 = sadd.s32 %s1388, %s1389
      %s1391 = smul.addr %s1390, 4
      %s1392 = scalar_lea.vmem %s2, %s1391
      %p1393 = scmp.lt.s32.totalorder %s19, 3
      %s1394 = scalar_select %p1393, %s19, 3
      %p1395 = scmp.lt.s32.totalorder %s20, 0
      %s1396 = scalar_select %p1395, %s20, 0
      %s1397 = sadd.s32 %s1396, %s1394
      %s1398 = smul.addr %s1397, 2
      %s1399 = scalar_lea.vmem %s3, %s1398
      // Predicated region
      $region29: #{_generator_forward_impl.15} parent=27 // pred_check
        %p1400 = pneg %p101
      $region30: #{_generator_forward_impl.15} parent=27 // pred_check_branch
        %1402 = sbr.rel (%p1400) target = $region32
      $region31: #{_generator_forward_impl.15} parent=27 // pred_region
        %s1403 = smul.u32 64, %s20
      $region32: #{_generator_forward_impl.15} parent=27 // pred_fallthru
        _
      // Predicated region
      $region33: #{_generator_forward_impl.15} parent=27 // pred_check
        %p1404 = pneg %p129
      $region34: #{_generator_forward_impl.15} parent=27 // pred_check_branch
        %1406 = sbr.rel (%p1404) target = $region36
      $region35: #{_generator_forward_impl.15} parent=27 // pred_region
        _
      $region36: #{_generator_forward_impl.15} parent=27 // pred_fallthru
        _
    $region28: #{_generator_forward_impl.15} parent=5 // pred_fallthru
      _
    %p1407 = scmp.le.s32.totalorder 2, %s10
    // Predicated region
    $region37: #{_generator_forward_impl.15} parent=5 // pred_check
      %p1408 = pneg %p1407
    $region38: #{_generator_forward_impl.15} parent=5 // pred_check_branch
      %1410 = sbr.rel (%p1408) target = $region40
    $region39: #{_generator_forward_impl.15} parent=5 // pred_region
      %s1411 = ssub.s32 %s10, 2
      // Predicated region
      $region41: #{_generator_forward_impl.15} parent=39 // pred_check
        %p1412 = pneg %p107
      $region42: #{_generator_forward_impl.15} parent=39 // pred_check_branch
        %1414 = sbr.rel (%p1412) target = $region44
      $region43: #{_generator_forward_impl.15} parent=39 // pred_region
        %s1415 = smul.u32 64, %s22
        %p1416 = scmp.lt.s32.totalorder %s21, 3
        %s1417 = scalar_select %p1416, %s21, 3
        %p1418 = scmp.lt.s32.totalorder %s1415, 63
        %s1419 = scalar_select %p1418, %s1415, 63
        %s1420 = smul.addr %s1417, 64
        %s1421 = sadd.s32 %s1419, %s1420
        %s1422 = smul.addr %s1421, 4
        %s1423 = scalar_lea.vmem %s2, %s1422
      $region44: #{_generator_forward_impl.15} parent=39 // pred_fallthru
        _
      // Predicated region
      $region45: #{_generator_forward_impl.15} parent=39 // pred_check
        %p1424 = pneg %p135
      $region46: #{_generator_forward_impl.15} parent=39 // pred_check_branch
        %1426 = sbr.rel (%p1424) target = $region48
      $region47: #{_generator_forward_impl.15} parent=39 // pred_region
        %p1427 = scmp.lt.s32.totalorder %s21, 3
        %s1428 = scalar_select %p1427, %s21, 3
        %p1429 = scmp.lt.s32.totalorder %s22, 0
        %s1430 = scalar_select %p1429, %s22, 0
        %s1431 = sadd.s32 %s1430, %s1428
        %s1432 = smul.addr %s1431, 2
        %s1433 = scalar_lea.vmem %s3, %s1432
      $region48: #{_generator_forward_impl.15} parent=39 // pred_fallthru
        _
    $region40: #{_generator_forward_impl.15} parent=5 // pred_fallthru
      _
  $region6: #{_generator_forward_impl.15} parent=0 // loop_footer
    %s14 = sadd.s32 1, %s10
  $region7: #{_generator_forward_impl.15} parent=0 // loop_footer_branch
    %9 = sbr.rel target = $region3
  $region8: #{_generator_forward_impl.15} parent=0 // loop_exit
    _

// kernel: _generator_forward_impl.16
$region0: #{_generator_forward_impl.16}
  #allocation0 [shape = 'u32[]', space=smem, size = 0x4, offset = 0x4, fixed_abs, tag = 'smem constant byte address 0x4 - core index']
  #allocation1 [shape = 'u32[144,128]{1,0:T(1,128)}', space=vmem, size = 0x12000, scoped, tag = 'internal scratch']
  %s0 = inlined_call_operand.vmem [shape: bf16[4,512,128], index: 0, kind: input, shape index: {}]
  %s1 = inlined_call_operand.vmem [shape: f32[1,128], index: 1, kind: input, shape index: {}]
  %s2 = inlined_call_operand.vmem [shape: f32[1,128], index: 2, kind: input, shape index: {}]
  %s3 = inlined_call_operand.vmem [shape: bf16[4,512,128], index: 3, kind: output, shape index: {}]
  %s4 = sld [smem:[#allocation0]]
  $region45: #{_generator_forward_impl.16} parent=0
    _
  %s6 = ssub.s32 1, %s4
  %s7 = scalar_select 0, %s6, %s4
  loop: start=0, step=1, limit=6
  $region2: #{_generator_forward_impl.16} parent=0 // loop_pre_header
    _
  $region3: #{_generator_forward_impl.16} parent=0 // loop_header
    %s9 = sphi 0, %s13
    %p10 = scmp.ge.s32.totalorder %s9, 6
    %s16 = sphi 0, %s28
    %s17 = sphi 0, %s24
    %s18 = sphi 0, %s16
    %s19 = sphi 0, %s17
    %s20 = sphi 0, %s18
    %s21 = sphi 0, %s19
    %s33 = sphi 0, %s35
    %s36 = sphi 0, %s33
    %s37 = sphi 0, %s36
    %s53 = sphi 0, %s37
    %s57 = sphi 0, %s57
    %s59 = sphi 0, %s57
    %s60 = sphi 0, %s59
    %s74 = sphi 0, %s60
    %s78 = sphi 0, %s78
    %s80 = sphi 0, %s78
    %s81 = sphi 0, %s80
    %s95 = sphi 0, %s81
    %s103 = sphi 0, %s105
    %s106 = sphi 0, %s103
    %s107 = sphi 0, %s106
    %s123 = sphi 0, %s107
  $region4: #{_generator_forward_impl.16} parent=0 // loop_header_branch
    %12 = sbr.rel (%p10) target = $region8
  $region5: #{_generator_forward_impl.16} parent=0 // loop_body
    %s14 = ssub.s32 %s9, 1
    %s15 = ssub.s32 %s9, 2
    %s22 = sadd.s32 1, %s17
    %p23 = scmp.ge.s32.totalorder %s22, 1
    %s24 = scalar_select %p23, 0, %s22
    %s25 = sadd.s32 1, %s16
    %s26 = scalar_select %p23, %s25, %s16
    %p27 = scmp.ge.s32.totalorder %s26, 4
    %s28 = scalar_select %p27, 0, %s26
    %s29 = ssub.s32 %s16, %s28
    %s30 = ssub.s32 %s17, %s24
    %s31 = sor.u32 %s29, %s30
    %p32 = scmp.eq.s32.totalorder %s31, 0
    %s34 = sadd.s32 %s33, 1
    %s35 = scalar_select %p32, %s33, %s34
    %p38 = pneg %p32
    %p39 = scmp.eq.s32.totalorder %s9, 3
    %p40 = por %p38, %p39
    %p41 = scmp.ne.s32.totalorder %s33, %s36
    %p42 = scmp.eq.s32.totalorder %s9, 0
    %p43 = por %p41, %p42
    %p44 = scmp.ne.s32.totalorder %s33, %s36
    %p45 = scmp.eq.s32.totalorder %s14, 3
    %p46 = por %p44, %p45
    %p47 = scmp.ne.s32.totalorder %s36, %s37
    %p48 = scmp.eq.s32.totalorder %s14, 0
    %p49 = por %p47, %p48
    %p50 = scmp.ne.s32.totalorder %s36, %s37
    %p51 = scmp.eq.s32.totalorder %s15, 3
    %p52 = por %p50, %p51
    %p54 = scmp.ne.s32.totalorder %s37, %s53
    %p55 = scmp.eq.s32.totalorder %s15, 0
    %p56 = por %p54, %p55
    %s58 = sadd.s32 %s57, 1
    %p61 = scmp.eq.s32.totalorder %s9, 3
    %p62 = scmp.ne.s32.totalorder %s57, %s59
    %p63 = scmp.eq.s32.totalorder %s9, 0
    %p64 = por %p62, %p63
    %p65 = scmp.ne.s32.totalorder %s57, %s59
    %p66 = scmp.eq.s32.totalorder %s14, 3
    %p67 = por %p65, %p66
    %p68 = scmp.ne.s32.totalorder %s59, %s60
    %p69 = scmp.eq.s32.totalorder %s14, 0
    %p70 = por %p68, %p69
    %p71 = scmp.ne.s32.totalorder %s59, %s60
    %p72 = scmp.eq.s32.totalorder %s15, 3
    %p73 = por %p71, %p72
    %p75 = scmp.ne.s32.totalorder %s60, %s74
    %p76 = scmp.eq.s32.totalorder %s15, 0
    %p77 = por %p75, %p76
    %s79 = sadd.s32 %s78, 1
    %p82 = scmp.eq.s32.totalorder %s9, 3
    %p83 = scmp.ne.s32.totalorder %s78, %s80
    %p84 = scmp.eq.s32.totalorder %s9, 0
    %p85 = por %p83, %p84
    %p86 = scmp.ne.s32.totalorder %s78, %s80
    %p87 = scmp.eq.s32.totalorder %s14, 3
    %p88 = por %p86, %p87
    %p89 = scmp.ne.s32.totalorder %s80, %s81
    %p90 = scmp.eq.s32.totalorder %s14, 0
    %p91 = por %p89, %p90
    %p92 = scmp.ne.s32.totalorder %s80, %s81
    %p93 = scmp.eq.s32.totalorder %s15, 3
    %p94 = por %p92, %p93
    %p96 = scmp.ne.s32.totalorder %s81, %s95
    %p97 = scmp.eq.s32.totalorder %s15, 0
    %p98 = por %p96, %p97
    %s99 = ssub.s32 %s16, %s28
    %s100 = ssub.s32 %s17, %s24
    %s101 = sor.u32 %s99, %s100
    %p102 = scmp.eq.s32.totalorder %s101, 0
    %s104 = sadd.s32 %s103, 1
    %s105 = scalar_select %p102, %s103, %s104
    %p108 = pneg %p102
    %p109 = scmp.eq.s32.totalorder %s9, 3
    %p110 = por %p108, %p109
    %p111 = scmp.ne.s32.totalorder %s103, %s106
    %p112 = scmp.eq.s32.totalorder %s9, 0
    %p113 = por %p111, %p112
    %p114 = scmp.ne.s32.totalorder %s103, %s106
    %p115 = scmp.eq.s32.totalorder %s14, 3
    %p116 = por %p114, %p115
    %p117 = scmp.ne.s32.totalorder %s106, %s107
    %p118 = scmp.eq.s32.totalorder %s14, 0
    %p119 = por %p117, %p118
    %p120 = scmp.ne.s32.totalorder %s106, %s107
    %p121 = scmp.eq.s32.totalorder %s15, 3
    %p122 = por %p120, %p121
    %p124 = scmp.ne.s32.totalorder %s107, %s123
    %p125 = scmp.eq.s32.totalorder %s15, 0
    %p126 = por %p124, %p125
    %p127 = scmp.le.s32.totalorder 1, %s9
    %p128 = scmp.lt.s32.totalorder %s9, 5
    %p129 = pnand %p127, %p128
    %p130 = pneg %p129
    // Predicated region
    $region9: #{_generator_forward_impl.16} parent=5 // pred_check
      _
    $region10: #{_generator_forward_impl.16} parent=5 // pred_check_branch
      %132 = sbr.rel (%p129) target = $region12
    $region11: #{_generator_forward_impl.16} parent=5 // pred_region
      %s133 = ssub.s32 %s9, 1
      // Predicated region
      $region13: #{_generator_forward_impl.16} parent=11 // pred_check
        %p134 = pneg %p70
      $region14: #{_generator_forward_impl.16} parent=11 // pred_check_branch
        %136 = sbr.rel (%p134) target = $region16
      $region15: #{_generator_forward_impl.16} parent=11 // pred_region
        _
      $region16: #{_generator_forward_impl.16} parent=11 // pred_fallthru
        _
      // Predicated region
      $region17: #{_generator_forward_impl.16} parent=11 // pred_check
        %p137 = pneg %p91
      $region18: #{_generator_forward_impl.16} parent=11 // pred_check_branch
        %139 = sbr.rel (%p137) target = $region20
      $region19: #{_generator_forward_impl.16} parent=11 // pred_region
        _
      $region20: #{_generator_forward_impl.16} parent=11 // pred_fallthru
        _
    $region12: #{_generator_forward_impl.16} parent=5 // pred_fallthru
      _
    %p140 = scmp.lt.s32.totalorder %s9, 4
    // Predicated region
    $region21: #{_generator_forward_impl.16} parent=5 // pred_check
      %p141 = pneg %p140
    $region22: #{_generator_forward_impl.16} parent=5 // pred_check_branch
      %143 = sbr.rel (%p141) target = $region24
    $region23: #{_generator_forward_impl.16} parent=5 // pred_region
      // Predicated region
      $region25: #{_generator_forward_impl.16} parent=23 // pred_check
        %p144 = pneg %p43
      $region26: #{_generator_forward_impl.16} parent=23 // pred_check_branch
        %146 = sbr.rel (%p144) target = $region28
      $region27: #{_generator_forward_impl.16} parent=23 // pred_region
        %s147 = smul.u32 64, %s17
        %p148 = scmp.lt.s32.totalorder %s16, 3
        %s149 = scalar_select %p148, %s16, 3
        %p150 = scmp.lt.s32.totalorder %s147, 63
        %s151 = scalar_select %p150, %s147, 63
        %s152 = smul.addr %s149, 64
        %s153 = sadd.s32 %s151, %s152
        %s154 = smul.addr %s153, 4
        %s155 = scalar_lea.vmem %s0, %s154
        %s156 = smul.u32 64, %s17
      $region28: #{_generator_forward_impl.16} parent=23 // pred_fallthru
        _
    $region24: #{_generator_forward_impl.16} parent=5 // pred_fallthru
      _
    %p157 = scmp.le.s32.totalorder 1, %s9
    %p158 = scmp.lt.s32.totalorder %s9, 5
    %p159 = pnand %p157, %p158
    %p160 = pneg %p159
    // Predicated region
    $region29: #{_generator_forward_impl.16} parent=5 // pred_check
      _
    $region30: #{_generator_forward_impl.16} parent=5 // pred_check_branch
      %162 = sbr.rel (%p159) target = $region32
    $region31: #{_generator_forward_impl.16} parent=5 // pred_region
      %s163 = ssub.s32 %s9, 1
      %s164 = smul.u32 64, %s19
      %p165 = scmp.lt.s32.totalorder %s18, 3
      %s166 = scalar_select %p165, %s18, 3
      %p167 = scmp.lt.s32.totalorder %s164, 63
      %s168 = scalar_select %p167, %s164, 63
      %s169 = smul.addr %s166, 64
      %s170 = sadd.s32 %s168, %s169
      %s171 = smul.addr %s170, 4
      %s172 = scalar_lea.vmem %s0, %s171
      %p173 = pneg %p49
      %p174 = pneg %p46
      %p175 = pneg %p70
      %p176 = pneg %p67
      %p177 = pneg %p91
      %p178 = pneg %p88
      %p179 = pneg %p119
      %p180 = pneg %p116
      %s181 = smul.u32 64, %s19
      %p182 = scmp.lt.s32.totalorder %s18, 3
      %s183 = scalar_select %p182, %s18, 3
      %p184 = scmp.lt.s32.totalorder %s181, 63
      %s185 = scalar_select %p184, %s181, 63
      %s186 = smul.addr %s183, 64
      %s187 = sadd.s32 %s185, %s186
      %s188 = smul.addr %s187, 4
      %s189 = scalar_lea.vmem %s3, %s188
      %s190 = smul.u32 64, %s19
      %p191 = scmp.lt.s32.totalorder %s18, 3
      %s192 = scalar_select %p191, %s18, 3
      %p193 = scmp.lt.s32.totalorder %s190, 63
      %s194 = scalar_select %p193, %s190, 63
      %s195 = smul.addr %s192, 64
      %s196 = sadd.s32 %s194, %s195
      %s197 = smul.addr %s196, 4
      %s198 = scalar_lea.vmem %s0, %s197
      %s199 = smul.u32 64, %s19
      %s200 = smul.u32 64, %s19
      %p201 = scmp.lt.s32.totalorder %s18, 3
      %s202 = scalar_select %p201, %s18, 3
      %p203 = scmp.lt.s32.totalorder %s200, 63
      %s204 = scalar_select %p203, %s200, 63
      %s205 = smul.addr %s202, 64
      %s206 = sadd.s32 %s204, %s205
      %s207 = smul.addr %s206, 4
      %s208 = scalar_lea.vmem %s3, %s207
      %s209 = smul.u32 64, %s19
      %v210 = vld [vmem:[%s198] sm:$0xf]
      %v211 = vld [vmem:[%s198 + $0x4] sm:$0xf]
      %v212 = vld [vmem:[%s198 + $0x8] sm:$0xf]
      %v213 = vld [vmem:[%s198 + $0xc] sm:$0xf]
      %v214 = vld [vmem:[%s198 + $0x10] sm:$0xf]
      %v215 = vld [vmem:[%s198 + $0x14] sm:$0xf]
      %v216 = vld [vmem:[%s198 + $0x18] sm:$0xf]
      %v217 = vld [vmem:[%s198 + $0x1c] sm:$0xf]
      %v218 = vld [vmem:[%s198 + $0x20] sm:$0xf]
      %v219 = vld [vmem:[%s198 + $0x24] sm:$0xf]
      %v220 = vld [vmem:[%s198 + $0x28] sm:$0xf]
      %v221 = vld [vmem:[%s198 + $0x2c] sm:$0xf]
      %v222 = vld [vmem:[%s198 + $0x30] sm:$0xf]
      %v223 = vld [vmem:[%s198 + $0x34] sm:$0xf]
      %v224 = vld [vmem:[%s198 + $0x38] sm:$0xf]
      %v225 = vld [vmem:[%s198 + $0x3c] sm:$0xf]
      %v226 = vld [vmem:[%s198 + $0x40] sm:$0xf]
      %v227 = vld [vmem:[%s198 + $0x44] sm:$0xf]
      %v228 = vld [vmem:[%s198 + $0x48] sm:$0xf]
      %v229 = vld [vmem:[%s198 + $0x4c] sm:$0xf]
      %v230 = vld [vmem:[%s198 + $0x50] sm:$0xf]
      %v231 = vld [vmem:[%s198 + $0x54] sm:$0xf]
      %v232 = vld [vmem:[%s198 + $0x58] sm:$0xf]
      %v233 = vld [vmem:[%s198 + $0x5c] sm:$0xf]
      %v234 = vld [vmem:[%s198 + $0x60] sm:$0xf]
      %v235 = vld [vmem:[%s198 + $0x64] sm:$0xf]
      %v236 = vld [vmem:[%s198 + $0x68] sm:$0xf]
      %v237 = vld [vmem:[%s198 + $0x6c] sm:$0xf]
      %v238 = vld [vmem:[%s198 + $0x70] sm:$0xf]
      %v239 = vld [vmem:[%s198 + $0x74] sm:$0xf]
      %v240 = vld [vmem:[%s198 + $0x78] sm:$0xf]
      %v241 = vld [vmem:[%s198 + $0x7c] sm:$0xf]
      %v242 = vld [vmem:[%s198 + $0x80] sm:$0xf]
      %v243 = vld [vmem:[%s198 + $0x84] sm:$0xf]
      %v244 = vld [vmem:[%s198 + $0x88] sm:$0xf]
      %v245 = vld [vmem:[%s198 + $0x8c] sm:$0xf]
      %v246 = vld [vmem:[%s198 + $0x90] sm:$0xf]
      %v247 = vld [vmem:[%s198 + $0x94] sm:$0xf]
      %v248 = vld [vmem:[%s198 + $0x98] sm:$0xf]
      %v249 = vld [vmem:[%s198 + $0x9c] sm:$0xf]
      %v250 = vld [vmem:[%s198 + $0xa0] sm:$0xf]
      %v251 = vld [vmem:[%s198 + $0xa4] sm:$0xf]
      %v252 = vld [vmem:[%s198 + $0xa8] sm:$0xf]
      %v253 = vld [vmem:[%s198 + $0xac] sm:$0xf]
      %v254 = vld [vmem:[%s198 + $0xb0] sm:$0xf]
      %v255 = vld [vmem:[%s198 + $0xb4] sm:$0xf]
      %v256 = vld [vmem:[%s198 + $0xb8] sm:$0xf]
      %v257 = vld [vmem:[%s198 + $0xbc] sm:$0xf]
      %v258 = vld [vmem:[%s198 + $0xc0] sm:$0xf]
      %v259 = vld [vmem:[%s198 + $0xc4] sm:$0xf]
      %v260 = vld [vmem:[%s198 + $0xc8] sm:$0xf]
      %v261 = vld [vmem:[%s198 + $0xcc] sm:$0xf]
      %v262 = vld [vmem:[%s198 + $0xd0] sm:$0xf]
      %v263 = vld [vmem:[%s198 + $0xd4] sm:$0xf]
      %v264 = vld [vmem:[%s198 + $0xd8] sm:$0xf]
      %v265 = vld [vmem:[%s198 + $0xdc] sm:$0xf]
      %v266 = vld [vmem:[%s198 + $0xe0] sm:$0xf]
      %v267 = vld [vmem:[%s198 + $0xe4] sm:$0xf]
      %v268 = vld [vmem:[%s198 + $0xe8] sm:$0xf]
      %v269 = vld [vmem:[%s198 + $0xec] sm:$0xf]
      %v270 = vld [vmem:[%s198 + $0xf0] sm:$0xf]
      %v271 = vld [vmem:[%s198 + $0xf4] sm:$0xf]
      %v272 = vld [vmem:[%s198 + $0xf8] sm:$0xf]
      %v273 = vld [vmem:[%s198 + $0xfc] sm:$0xf]
      %v274 = vunpack.c.l.bf16 %v210
      %v275 = vunpack.c.l.bf16 %v211
      %v276 = vunpack.c.l.bf16 %v212
      %v277 = vunpack.c.l.bf16 %v213
      %v278 = vunpack.c.l.bf16 %v214
      %v279 = vunpack.c.l.bf16 %v215
      %v280 = vunpack.c.l.bf16 %v216
      %v281 = vunpack.c.l.bf16 %v217
      %v282 = vunpack.c.l.bf16 %v218
      %v283 = vunpack.c.l.bf16 %v219
      %v284 = vunpack.c.l.bf16 %v220
      %v285 = vunpack.c.l.bf16 %v221
      %v286 = vunpack.c.l.bf16 %v222
      %v287 = vunpack.c.l.bf16 %v223
      %v288 = vunpack.c.l.bf16 %v224
      %v289 = vunpack.c.l.bf16 %v225
      %v290 = vunpack.c.l.bf16 %v226
      %v291 = vunpack.c.l.bf16 %v227
      %v292 = vunpack.c.l.bf16 %v228
      %v293 = vunpack.c.l.bf16 %v229
      %v294 = vunpack.c.l.bf16 %v230
      %v295 = vunpack.c.l.bf16 %v231
      %v296 = vunpack.c.l.bf16 %v232
      %v297 = vunpack.c.l.bf16 %v233
      %v298 = vunpack.c.l.bf16 %v234
      %v299 = vunpack.c.l.bf16 %v235
      %v300 = vunpack.c.l.bf16 %v236
      %v301 = vunpack.c.l.bf16 %v237
      %v302 = vunpack.c.l.bf16 %v238
      %v303 = vunpack.c.l.bf16 %v239
      %v304 = vunpack.c.l.bf16 %v240
      %v305 = vunpack.c.l.bf16 %v241
      %v306 = vunpack.c.l.bf16 %v242
      %v307 = vunpack.c.l.bf16 %v243
      %v308 = vunpack.c.l.bf16 %v244
      %v309 = vunpack.c.l.bf16 %v245
      %v310 = vunpack.c.l.bf16 %v246
      %v311 = vunpack.c.l.bf16 %v247
      %v312 = vunpack.c.l.bf16 %v248
      %v313 = vunpack.c.l.bf16 %v249
      %v314 = vunpack.c.l.bf16 %v250
      %v315 = vunpack.c.l.bf16 %v251
      %v316 = vunpack.c.l.bf16 %v252
      %v317 = vunpack.c.l.bf16 %v253
      %v318 = vunpack.c.l.bf16 %v254
      %v319 = vunpack.c.l.bf16 %v255
      %v320 = vunpack.c.l.bf16 %v256
      %v321 = vunpack.c.l.bf16 %v257
      %v322 = vunpack.c.l.bf16 %v258
      %v323 = vunpack.c.l.bf16 %v259
      %v324 = vunpack.c.l.bf16 %v260
      %v325 = vunpack.c.l.bf16 %v261
      %v326 = vunpack.c.l.bf16 %v262
      %v327 = vunpack.c.l.bf16 %v263
      %v328 = vunpack.c.l.bf16 %v264
      %v329 = vunpack.c.l.bf16 %v265
      %v330 = vunpack.c.l.bf16 %v266
      %v331 = vunpack.c.l.bf16 %v267
      %v332 = vunpack.c.l.bf16 %v268
      %v333 = vunpack.c.l.bf16 %v269
      %v334 = vunpack.c.l.bf16 %v270
      %v335 = vunpack.c.l.bf16 %v271
      %v336 = vunpack.c.l.bf16 %v272
      %v337 = vunpack.c.l.bf16 %v273
      %v338 = vld [vmem:[%s1] sm:$0x1]
      %v340 = vlaneseq
      %v341 = vshrl.u32 %v340, 7
      %v342 = vsub.s32 0, %v341
      %v343 = vrot.slane %v338, %v342
      %v345 = vmul.f32 %v274, %v343
      %v346 = vmul.f32 %v275, %v343
      %v347 = vmul.f32 %v276, %v343
      %v348 = vmul.f32 %v277, %v343
      %v349 = vmul.f32 %v278, %v343
      %v350 = vmul.f32 %v279, %v343
      %v351 = vmul.f32 %v280, %v343
      %v352 = vmul.f32 %v281, %v343
      %v353 = vmul.f32 %v282, %v343
      %v354 = vmul.f32 %v283, %v343
      %v355 = vmul.f32 %v284, %v343
      %v356 = vmul.f32 %v285, %v343
      %v357 = vmul.f32 %v286, %v343
      %v358 = vmul.f32 %v287, %v343
      %v359 = vmul.f32 %v288, %v343
      %v360 = vmul.f32 %v289, %v343
      %v361 = vmul.f32 %v290, %v343
      %v362 = vmul.f32 %v291, %v343
      %v363 = vmul.f32 %v292, %v343
      %v364 = vmul.f32 %v293, %v343
      %v365 = vmul.f32 %v294, %v343
      %v366 = vmul.f32 %v295, %v343
      %v367 = vmul.f32 %v296, %v343
      %v368 = vmul.f32 %v297, %v343
      %v369 = vmul.f32 %v298, %v343
      %v370 = vmul.f32 %v299, %v343
      %v371 = vmul.f32 %v300, %v343
      %v372 = vmul.f32 %v301, %v343
      %v373 = vmul.f32 %v302, %v343
      %v374 = vmul.f32 %v303, %v343
      %v375 = vmul.f32 %v304, %v343
      %v376 = vmul.f32 %v305, %v343
      %v377 = vmul.f32 %v306, %v343
      %v378 = vmul.f32 %v307, %v343
      %v379 = vmul.f32 %v308, %v343
      %v380 = vmul.f32 %v309, %v343
      %v381 = vmul.f32 %v310, %v343
      %v382 = vmul.f32 %v311, %v343
      %v383 = vmul.f32 %v312, %v343
      %v384 = vmul.f32 %v313, %v343
      %v385 = vmul.f32 %v314, %v343
      %v386 = vmul.f32 %v315, %v343
      %v387 = vmul.f32 %v316, %v343
      %v388 = vmul.f32 %v317, %v343
      %v389 = vmul.f32 %v318, %v343
      %v390 = vmul.f32 %v319, %v343
      %v391 = vmul.f32 %v320, %v343
      %v392 = vmul.f32 %v321, %v343
      %v393 = vmul.f32 %v322, %v343
      %v394 = vmul.f32 %v323, %v343
      %v395 = vmul.f32 %v324, %v343
      %v396 = vmul.f32 %v325, %v343
      %v397 = vmul.f32 %v326, %v343
      %v398 = vmul.f32 %v327, %v343
      %v399 = vmul.f32 %v328, %v343
      %v400 = vmul.f32 %v329, %v343
      %v401 = vmul.f32 %v330, %v343
      %v402 = vmul.f32 %v331, %v343
      %v403 = vmul.f32 %v332, %v343
      %v404 = vmul.f32 %v333, %v343
      %v405 = vmul.f32 %v334, %v343
      %v406 = vmul.f32 %v335, %v343
      %v407 = vmul.f32 %v336, %v343
      %v408 = vmul.f32 %v337, %v343
      %v409 = vld [vmem:[%s2] sm:$0x1]
      %v411 = vlaneseq
      %v412 = vshrl.u32 %v411, 7
      %v413 = vsub.s32 0, %v412
      %v414 = vrot.slane %v409, %v413
      %v416 = vadd.f32 %v345, %v414
      %v417 = vadd.f32 %v346, %v414
      %v418 = vadd.f32 %v347, %v414
      %v419 = vadd.f32 %v348, %v414
      %v420 = vadd.f32 %v349, %v414
      %v421 = vadd.f32 %v350, %v414
      %v422 = vadd.f32 %v351, %v414
      %v423 = vadd.f32 %v352, %v414
      %v424 = vadd.f32 %v353, %v414
      %v425 = vadd.f32 %v354, %v414
      %v426 = vadd.f32 %v355, %v414
      %v427 = vadd.f32 %v356, %v414
      %v428 = vadd.f32 %v357, %v414
      %v429 = vadd.f32 %v358, %v414
      %v430 = vadd.f32 %v359, %v414
      %v431 = vadd.f32 %v360, %v414
      %v432 = vadd.f32 %v361, %v414
      %v433 = vadd.f32 %v362, %v414
      %v434 = vadd.f32 %v363, %v414
      %v435 = vadd.f32 %v364, %v414
      %v436 = vadd.f32 %v365, %v414
      %v437 = vadd.f32 %v366, %v414
      %v438 = vadd.f32 %v367, %v414
      %v439 = vadd.f32 %v368, %v414
      %v440 = vadd.f32 %v369, %v414
      %v441 = vadd.f32 %v370, %v414
      %v442 = vadd.f32 %v371, %v414
      %v443 = vadd.f32 %v372, %v414
      %v444 = vadd.f32 %v373, %v414
      %v445 = vadd.f32 %v374, %v414
      %v446 = vadd.f32 %v375, %v414
      %v447 = vadd.f32 %v376, %v414
      %v448 = vadd.f32 %v377, %v414
      %v449 = vadd.f32 %v378, %v414
      %v450 = vadd.f32 %v379, %v414
      %v451 = vadd.f32 %v380, %v414
      %v452 = vadd.f32 %v381, %v414
      %v453 = vadd.f32 %v382, %v414
      %v454 = vadd.f32 %v383, %v414
      %v455 = vadd.f32 %v384, %v414
      %v456 = vadd.f32 %v385, %v414
      %v457 = vadd.f32 %v386, %v414
      %v458 = vadd.f32 %v387, %v414
      %v459 = vadd.f32 %v388, %v414
      %v460 = vadd.f32 %v389, %v414
      %v461 = vadd.f32 %v390, %v414
      %v462 = vadd.f32 %v391, %v414
      %v463 = vadd.f32 %v392, %v414
      %v464 = vadd.f32 %v393, %v414
      %v465 = vadd.f32 %v394, %v414
      %v466 = vadd.f32 %v395, %v414
      %v467 = vadd.f32 %v396, %v414
      %v468 = vadd.f32 %v397, %v414
      %v469 = vadd.f32 %v398, %v414
      %v470 = vadd.f32 %v399, %v414
      %v471 = vadd.f32 %v400, %v414
      %v472 = vadd.f32 %v401, %v414
      %v473 = vadd.f32 %v402, %v414
      %v474 = vadd.f32 %v403, %v414
      %v475 = vadd.f32 %v404, %v414
      %v476 = vadd.f32 %v405, %v414
      %v477 = vadd.f32 %v406, %v414
      %v478 = vadd.f32 %v407, %v414
      %v479 = vadd.f32 %v408, %v414
      %v480 = vmax.f32 %v416, 0.0
      %v481 = vmax.f32 %v417, 0.0
      %v482 = vmax.f32 %v418, 0.0
      %v483 = vmax.f32 %v419, 0.0
      %v484 = vmax.f32 %v420, 0.0
      %v485 = vmax.f32 %v421, 0.0
      %v486 = vmax.f32 %v422, 0.0
      %v487 = vmax.f32 %v423, 0.0
      %v488 = vmax.f32 %v424, 0.0
      %v489 = vmax.f32 %v425, 0.0
      %v490 = vmax.f32 %v426, 0.0
      %v491 = vmax.f32 %v427, 0.0
      %v492 = vmax.f32 %v428, 0.0
      %v493 = vmax.f32 %v429, 0.0
      %v494 = vmax.f32 %v430, 0.0
      %v495 = vmax.f32 %v431, 0.0
      %v496 = vmax.f32 %v432, 0.0
      %v497 = vmax.f32 %v433, 0.0
      %v498 = vmax.f32 %v434, 0.0
      %v499 = vmax.f32 %v435, 0.0
      %v500 = vmax.f32 %v436, 0.0
      %v501 = vmax.f32 %v437, 0.0
      %v502 = vmax.f32 %v438, 0.0
      %v503 = vmax.f32 %v439, 0.0
      %v504 = vmax.f32 %v440, 0.0
      %v505 = vmax.f32 %v441, 0.0
      %v506 = vmax.f32 %v442, 0.0
      %v507 = vmax.f32 %v443, 0.0
      %v508 = vmax.f32 %v444, 0.0
      %v509 = vmax.f32 %v445, 0.0
      %v510 = vmax.f32 %v446, 0.0
      %v511 = vmax.f32 %v447, 0.0
      %v512 = vmax.f32 %v448, 0.0
      %v513 = vmax.f32 %v449, 0.0
      %v514 = vmax.f32 %v450, 0.0
      %v515 = vmax.f32 %v451, 0.0
      %v516 = vmax.f32 %v452, 0.0
      %v517 = vmax.f32 %v453, 0.0
      %v518 = vmax.f32 %v454, 0.0
      %v519 = vmax.f32 %v455, 0.0
      %v520 = vmax.f32 %v456, 0.0
      %v521 = vmax.f32 %v457, 0.0
      %v522 = vmax.f32 %v458, 0.0
      %v523 = vmax.f32 %v459, 0.0
      %v524 = vmax.f32 %v460, 0.0
      %v525 = vmax.f32 %v461, 0.0
      %v526 = vmax.f32 %v462, 0.0
      %v527 = vmax.f32 %v463, 0.0
      %v528 = vmax.f32 %v464, 0.0
      %v529 = vmax.f32 %v465, 0.0
      %v530 = vmax.f32 %v466, 0.0
      %v531 = vmax.f32 %v467, 0.0
      %v532 = vmax.f32 %v468, 0.0
      %v533 = vmax.f32 %v469, 0.0
      %v534 = vmax.f32 %v470, 0.0
      %v535 = vmax.f32 %v471, 0.0
      %v536 = vmax.f32 %v472, 0.0
      %v537 = vmax.f32 %v473, 0.0
      %v538 = vmax.f32 %v474, 0.0
      %v539 = vmax.f32 %v475, 0.0
      %v540 = vmax.f32 %v476, 0.0
      %v541 = vmax.f32 %v477, 0.0
      %v542 = vmax.f32 %v478, 0.0
      %v543 = vmax.f32 %v479, 0.0
      %v544 = vpack.c.bf16 %v481, %v480
      %v545 = vpack.c.bf16 %v483, %v482
      %v546 = vpack.c.bf16 %v485, %v484
      %v547 = vpack.c.bf16 %v487, %v486
      %v548 = vpack.c.bf16 %v489, %v488
      %v549 = vpack.c.bf16 %v491, %v490
      %v550 = vpack.c.bf16 %v493, %v492
      %v551 = vpack.c.bf16 %v495, %v494
      %v552 = vpack.c.bf16 %v497, %v496
      %v553 = vpack.c.bf16 %v499, %v498
      %v554 = vpack.c.bf16 %v501, %v500
      %v555 = vpack.c.bf16 %v503, %v502
      %v556 = vpack.c.bf16 %v505, %v504
      %v557 = vpack.c.bf16 %v507, %v506
      %v558 = vpack.c.bf16 %v509, %v508
      %v559 = vpack.c.bf16 %v511, %v510
      %v560 = vpack.c.bf16 %v513, %v512
      %v561 = vpack.c.bf16 %v515, %v514
      %v562 = vpack.c.bf16 %v517, %v516
      %v563 = vpack.c.bf16 %v519, %v518
      %v564 = vpack.c.bf16 %v521, %v520
      %v565 = vpack.c.bf16 %v523, %v522
      %v566 = vpack.c.bf16 %v525, %v524
      %v567 = vpack.c.bf16 %v527, %v526
      %v568 = vpack.c.bf16 %v529, %v528
      %v569 = vpack.c.bf16 %v531, %v530
      %v570 = vpack.c.bf16 %v533, %v532
      %v571 = vpack.c.bf16 %v535, %v534
      %v572 = vpack.c.bf16 %v537, %v536
      %v573 = vpack.c.bf16 %v539, %v538
      %v574 = vpack.c.bf16 %v541, %v540
      %v575 = vpack.c.bf16 %v543, %v542
      %v608 = vunpack.c.l.b16 %v544
      %v609 = vunpack.c.h.b16 %v544
      %v610 = vunpack.c.l.b16 %v545
      %v611 = vunpack.c.h.b16 %v545
      %v612 = vunpack.c.l.b16 %v546
      %v613 = vunpack.c.h.b16 %v546
      %v614 = vunpack.c.l.b16 %v547
      %v615 = vunpack.c.h.b16 %v547
      %v616 = vunpack.c.l.b16 %v548
      %v617 = vunpack.c.h.b16 %v548
      %v618 = vunpack.c.l.b16 %v549
      %v619 = vunpack.c.h.b16 %v549
      %v620 = vunpack.c.l.b16 %v550
      %v621 = vunpack.c.h.b16 %v550
      %v622 = vunpack.c.l.b16 %v551
      %v623 = vunpack.c.h.b16 %v551
      %v624 = vunpack.c.l.b16 %v552
      %v625 = vunpack.c.h.b16 %v552
      %v626 = vunpack.c.l.b16 %v553
      %v627 = vunpack.c.h.b16 %v553
      %v628 = vunpack.c.l.b16 %v554
      %v629 = vunpack.c.h.b16 %v554
      %v630 = vunpack.c.l.b16 %v555
      %v631 = vunpack.c.h.b16 %v555
      %v632 = vunpack.c.l.b16 %v556
      %v633 = vunpack.c.h.b16 %v556
      %v634 = vunpack.c.l.b16 %v557
      %v635 = vunpack.c.h.b16 %v557
      %v636 = vunpack.c.l.b16 %v558
      %v637 = vunpack.c.h.b16 %v558
      %v638 = vunpack.c.l.b16 %v559
      %v639 = vunpack.c.h.b16 %v559
      %v640 = vunpack.c.l.b16 %v560
      %v641 = vunpack.c.h.b16 %v560
      %v642 = vunpack.c.l.b16 %v561
      %v643 = vunpack.c.h.b16 %v561
      %v644 = vunpack.c.l.b16 %v562
      %v645 = vunpack.c.h.b16 %v562
      %v646 = vunpack.c.l.b16 %v563
      %v647 = vunpack.c.h.b16 %v563
      %v648 = vunpack.c.l.b16 %v564
      %v649 = vunpack.c.h.b16 %v564
      %v650 = vunpack.c.l.b16 %v565
      %v651 = vunpack.c.h.b16 %v565
      %v652 = vunpack.c.l.b16 %v566
      %v653 = vunpack.c.h.b16 %v566
      %v654 = vunpack.c.l.b16 %v567
      %v655 = vunpack.c.h.b16 %v567
      %v656 = vunpack.c.l.b16 %v568
      %v657 = vunpack.c.h.b16 %v568
      %v658 = vunpack.c.l.b16 %v569
      %v659 = vunpack.c.h.b16 %v569
      %v660 = vunpack.c.l.b16 %v570
      %v661 = vunpack.c.h.b16 %v570
      %v662 = vunpack.c.l.b16 %v571
      %v663 = vunpack.c.h.b16 %v571
      %v664 = vunpack.c.l.b16 %v572
      %v665 = vunpack.c.h.b16 %v572
      %v666 = vunpack.c.l.b16 %v573
      %v667 = vunpack.c.h.b16 %v573
      %v668 = vunpack.c.l.b16 %v574
      %v669 = vunpack.c.h.b16 %v574
      %v670 = vunpack.c.l.b16 %v575
      %v671 = vunpack.c.h.b16 %v575
      %v672 = vpack.c.b16 %v608, %v608
      %v673 = vpack.c.b16 %v609, %v609
      %v674 = vpack.c.b16 %v610, %v610
      %v675 = vpack.c.b16 %v611, %v611
      %v676 = vpack.c.b16 %v612, %v612
      %v677 = vpack.c.b16 %v613, %v613
      %v678 = vpack.c.b16 %v614, %v614
      %v679 = vpack.c.b16 %v615, %v615
      %v680 = vpack.c.b16 %v616, %v616
      %v681 = vpack.c.b16 %v617, %v617
      %v682 = vpack.c.b16 %v618, %v618
      %v683 = vpack.c.b16 %v619, %v619
      %v684 = vpack.c.b16 %v620, %v620
      %v685 = vpack.c.b16 %v621, %v621
      %v686 = vpack.c.b16 %v622, %v622
      %v687 = vpack.c.b16 %v623, %v623
      %v688 = vpack.c.b16 %v624, %v624
      %v689 = vpack.c.b16 %v625, %v625
      %v690 = vpack.c.b16 %v626, %v626
      %v691 = vpack.c.b16 %v627, %v627
      %v692 = vpack.c.b16 %v628, %v628
      %v693 = vpack.c.b16 %v629, %v629
      %v694 = vpack.c.b16 %v630, %v630
      %v695 = vpack.c.b16 %v631, %v631
      %v696 = vpack.c.b16 %v632, %v632
      %v697 = vpack.c.b16 %v633, %v633
      %v698 = vpack.c.b16 %v634, %v634
      %v699 = vpack.c.b16 %v635, %v635
      %v700 = vpack.c.b16 %v636, %v636
      %v701 = vpack.c.b16 %v637, %v637
      %v702 = vpack.c.b16 %v638, %v638
      %v703 = vpack.c.b16 %v639, %v639
      %v704 = vpack.c.b16 %v640, %v640
      %v705 = vpack.c.b16 %v641, %v641
      %v706 = vpack.c.b16 %v642, %v642
      %v707 = vpack.c.b16 %v643, %v643
      %v708 = vpack.c.b16 %v644, %v644
      %v709 = vpack.c.b16 %v645, %v645
      %v710 = vpack.c.b16 %v646, %v646
      %v711 = vpack.c.b16 %v647, %v647
      %v712 = vpack.c.b16 %v648, %v648
      %v713 = vpack.c.b16 %v649, %v649
      %v714 = vpack.c.b16 %v650, %v650
      %v715 = vpack.c.b16 %v651, %v651
      %v716 = vpack.c.b16 %v652, %v652
      %v717 = vpack.c.b16 %v653, %v653
      %v718 = vpack.c.b16 %v654, %v654
      %v719 = vpack.c.b16 %v655, %v655
      %v720 = vpack.c.b16 %v656, %v656
      %v721 = vpack.c.b16 %v657, %v657
      %v722 = vpack.c.b16 %v658, %v658
      %v723 = vpack.c.b16 %v659, %v659
      %v724 = vpack.c.b16 %v660, %v660
      %v725 = vpack.c.b16 %v661, %v661
      %v726 = vpack.c.b16 %v662, %v662
      %v727 = vpack.c.b16 %v663, %v663
      %v728 = vpack.c.b16 %v664, %v664
      %v729 = vpack.c.b16 %v665, %v665
      %v730 = vpack.c.b16 %v666, %v666
      %v731 = vpack.c.b16 %v667, %v667
      %v732 = vpack.c.b16 %v668, %v668
      %v733 = vpack.c.b16 %v669, %v669
      %v734 = vpack.c.b16 %v670, %v670
      %v735 = vpack.c.b16 %v671, %v671
      %800 = vst [vmem:[%s208] sm:$0xf] %v672
      %801 = vst [vmem:[%s208 + $0x4] sm:$0xf] %v673
      %802 = vst [vmem:[%s208 + $0x8] sm:$0xf] %v674
      %803 = vst [vmem:[%s208 + $0xc] sm:$0xf] %v675
      %804 = vst [vmem:[%s208 + $0x10] sm:$0xf] %v676
      %805 = vst [vmem:[%s208 + $0x14] sm:$0xf] %v677
      %806 = vst [vmem:[%s208 + $0x18] sm:$0xf] %v678
      %807 = vst [vmem:[%s208 + $0x1c] sm:$0xf] %v679
      %808 = vst [vmem:[%s208 + $0x20] sm:$0xf] %v680
      %809 = vst [vmem:[%s208 + $0x24] sm:$0xf] %v681
      %810 = vst [vmem:[%s208 + $0x28] sm:$0xf] %v682
      %811 = vst [vmem:[%s208 + $0x2c] sm:$0xf] %v683
      %812 = vst [vmem:[%s208 + $0x30] sm:$0xf] %v684
      %813 = vst [vmem:[%s208 + $0x34] sm:$0xf] %v685
      %814 = vst [vmem:[%s208 + $0x38] sm:$0xf] %v686
      %815 = vst [vmem:[%s208 + $0x3c] sm:$0xf] %v687
      %816 = vst [vmem:[%s208 + $0x40] sm:$0xf] %v688
      %817 = vst [vmem:[%s208 + $0x44] sm:$0xf] %v689
      %818 = vst [vmem:[%s208 + $0x48] sm:$0xf] %v690
      %819 = vst [vmem:[%s208 + $0x4c] sm:$0xf] %v691
      %820 = vst [vmem:[%s208 + $0x50] sm:$0xf] %v692
      %821 = vst [vmem:[%s208 + $0x54] sm:$0xf] %v693
      %822 = vst [vmem:[%s208 + $0x58] sm:$0xf] %v694
      %823 = vst [vmem:[%s208 + $0x5c] sm:$0xf] %v695
      %824 = vst [vmem:[%s208 + $0x60] sm:$0xf] %v696
      %825 = vst [vmem:[%s208 + $0x64] sm:$0xf] %v697
      %826 = vst [vmem:[%s208 + $0x68] sm:$0xf] %v698
      %827 = vst [vmem:[%s208 + $0x6c] sm:$0xf] %v699
      %828 = vst [vmem:[%s208 + $0x70] sm:$0xf] %v700
      %829 = vst [vmem:[%s208 + $0x74] sm:$0xf] %v701
      %830 = vst [vmem:[%s208 + $0x78] sm:$0xf] %v702
      %831 = vst [vmem:[%s208 + $0x7c] sm:$0xf] %v703
      %832 = vst [vmem:[%s208 + $0x80] sm:$0xf] %v704
      %833 = vst [vmem:[%s208 + $0x84] sm:$0xf] %v705
      %834 = vst [vmem:[%s208 + $0x88] sm:$0xf] %v706
      %835 = vst [vmem:[%s208 + $0x8c] sm:$0xf] %v707
      %836 = vst [vmem:[%s208 + $0x90] sm:$0xf] %v708
      %837 = vst [vmem:[%s208 + $0x94] sm:$0xf] %v709
      %838 = vst [vmem:[%s208 + $0x98] sm:$0xf] %v710
      %839 = vst [vmem:[%s208 + $0x9c] sm:$0xf] %v711
      %840 = vst [vmem:[%s208 + $0xa0] sm:$0xf] %v712
      %841 = vst [vmem:[%s208 + $0xa4] sm:$0xf] %v713
      %842 = vst [vmem:[%s208 + $0xa8] sm:$0xf] %v714
      %843 = vst [vmem:[%s208 + $0xac] sm:$0xf] %v715
      %844 = vst [vmem:[%s208 + $0xb0] sm:$0xf] %v716
      %845 = vst [vmem:[%s208 + $0xb4] sm:$0xf] %v717
      %846 = vst [vmem:[%s208 + $0xb8] sm:$0xf] %v718
      %847 = vst [vmem:[%s208 + $0xbc] sm:$0xf] %v719
      %848 = vst [vmem:[%s208 + $0xc0] sm:$0xf] %v720
      %849 = vst [vmem:[%s208 + $0xc4] sm:$0xf] %v721
      %850 = vst [vmem:[%s208 + $0xc8] sm:$0xf] %v722
      %851 = vst [vmem:[%s208 + $0xcc] sm:$0xf] %v723
      %852 = vst [vmem:[%s208 + $0xd0] sm:$0xf] %v724
      %853 = vst [vmem:[%s208 + $0xd4] sm:$0xf] %v725
      %854 = vst [vmem:[%s208 + $0xd8] sm:$0xf] %v726
      %855 = vst [vmem:[%s208 + $0xdc] sm:$0xf] %v727
      %856 = vst [vmem:[%s208 + $0xe0] sm:$0xf] %v728
      %857 = vst [vmem:[%s208 + $0xe4] sm:$0xf] %v729
      %858 = vst [vmem:[%s208 + $0xe8] sm:$0xf] %v730
      %859 = vst [vmem:[%s208 + $0xec] sm:$0xf] %v731
      %860 = vst [vmem:[%s208 + $0xf0] sm:$0xf] %v732
      %861 = vst [vmem:[%s208 + $0xf4] sm:$0xf] %v733
      %862 = vst [vmem:[%s208 + $0xf8] sm:$0xf] %v734
      %863 = vst [vmem:[%s208 + $0xfc] sm:$0xf] %v735
      %s864 = smul.u32 64, %s19
      %p865 = scmp.lt.s32.totalorder %s18, 3
      %s866 = scalar_select %p865, %s18, 3
      %p867 = scmp.lt.s32.totalorder %s864, 63
      %s868 = scalar_select %p867, %s864, 63
      %s869 = smul.addr %s866, 64
      %s870 = sadd.s32 %s868, %s869
      %s871 = smul.addr %s870, 4
      %s872 = scalar_lea.vmem %s3, %s871
      // Predicated region
      $region33: #{_generator_forward_impl.16} parent=31 // pred_check
        %p873 = pneg %p116
      $region34: #{_generator_forward_impl.16} parent=31 // pred_check_branch
        %875 = sbr.rel (%p873) target = $region36
      $region35: #{_generator_forward_impl.16} parent=31 // pred_region
        %s876 = smul.u32 64, %s19
      $region36: #{_generator_forward_impl.16} parent=31 // pred_fallthru
        _
    $region32: #{_generator_forward_impl.16} parent=5 // pred_fallthru
      _
    %p877 = scmp.le.s32.totalorder 2, %s9
    // Predicated region
    $region37: #{_generator_forward_impl.16} parent=5 // pred_check
      %p878 = pneg %p877
    $region38: #{_generator_forward_impl.16} parent=5 // pred_check_branch
      %880 = sbr.rel (%p878) target = $region40
    $region39: #{_generator_forward_impl.16} parent=5 // pred_region
      %s881 = ssub.s32 %s9, 2
      // Predicated region
      $region41: #{_generator_forward_impl.16} parent=39 // pred_check
        %p882 = pneg %p122
      $region42: #{_generator_forward_impl.16} parent=39 // pred_check_branch
        %884 = sbr.rel (%p882) target = $region44
      $region43: #{_generator_forward_impl.16} parent=39 // pred_region
        %s885 = smul.u32 64, %s21
        %p886 = scmp.lt.s32.totalorder %s20, 3
        %s887 = scalar_select %p886, %s20, 3
        %p888 = scmp.lt.s32.totalorder %s885, 63
        %s889 = scalar_select %p888, %s885, 63
        %s890 = smul.addr %s887, 64
        %s891 = sadd.s32 %s889, %s890
        %s892 = smul.addr %s891, 4
        %s893 = scalar_lea.vmem %s3, %s892
      $region44: #{_generator_forward_impl.16} parent=39 // pred_fallthru
        _
    $region40: #{_generator_forward_impl.16} parent=5 // pred_fallthru
      _
  $region6: #{_generator_forward_impl.16} parent=0 // loop_footer
    %s13 = sadd.s32 1, %s9
  $region7: #{_generator_forward_impl.16} parent=0 // loop_footer_branch
    %8 = sbr.rel target = $region3
  $region8: #{_generator_forward_impl.16} parent=0 // loop_exit
    _

// kernel: _generator_forward_impl.17
$region0: #{_generator_forward_impl.17}
  #allocation0 [shape = 'u32[]', space=smem, size = 0x4, offset = 0x4, fixed_abs, tag = 'smem constant byte address 0x4 - core index']
  #allocation1 [shape = 'u32[144,128]{1,0:T(1,128)}', space=vmem, size = 0x12000, scoped, tag = 'internal scratch']
  %s0 = inlined_call_operand.vmem [shape: bf16[4,2048,128], index: 0, kind: input, shape index: {}]
  %s1 = inlined_call_operand.vmem [shape: bf16[4,128,128], index: 1, kind: input, shape index: {}]
  %s2 = inlined_call_operand.vmem [shape: bf16[4,2048,128], index: 2, kind: output, shape index: {}]
  %s3 = sld [smem:[#allocation0]]
  $region41: #{_generator_forward_impl.17} parent=0
    _
  %s5 = ssub.s32 1, %s3
  %s6 = scalar_select 0, %s5, %s3
  loop: start=0, step=1, limit=6
  $region2: #{_generator_forward_impl.17} parent=0 // loop_pre_header
    _
  $region3: #{_generator_forward_impl.17} parent=0 // loop_header
    %s8 = sphi 0, %s12
    %p9 = scmp.ge.s32.totalorder %s8, 6
    %s15 = sphi 0, %s27
    %s16 = sphi 0, %s23
    %s17 = sphi 0, %s15
    %s18 = sphi 0, %s16
    %s19 = sphi 0, %s17
    %s20 = sphi 0, %s18
    %s32 = sphi 0, %s34
    %s35 = sphi 0, %s32
    %s36 = sphi 0, %s35
    %s52 = sphi 0, %s36
    %s58 = sphi 0, %s60
    %s61 = sphi 0, %s58
    %s62 = sphi 0, %s61
    %s78 = sphi 0, %s62
    %s86 = sphi 0, %s88
    %s89 = sphi 0, %s86
    %s90 = sphi 0, %s89
    %s106 = sphi 0, %s90
  $region4: #{_generator_forward_impl.17} parent=0 // loop_header_branch
    %11 = sbr.rel (%p9) target = $region8
  $region5: #{_generator_forward_impl.17} parent=0 // loop_body
    %s13 = ssub.s32 %s8, 1
    %s14 = ssub.s32 %s8, 2
    %s21 = sadd.s32 1, %s16
    %p22 = scmp.ge.s32.totalorder %s21, 1
    %s23 = scalar_select %p22, 0, %s21
    %s24 = sadd.s32 1, %s15
    %s25 = scalar_select %p22, %s24, %s15
    %p26 = scmp.ge.s32.totalorder %s25, 4
    %s27 = scalar_select %p26, 0, %s25
    %s28 = ssub.s32 %s15, %s27
    %s29 = ssub.s32 %s16, %s23
    %s30 = sor.u32 %s28, %s29
    %p31 = scmp.eq.s32.totalorder %s30, 0
    %s33 = sadd.s32 %s32, 1
    %s34 = scalar_select %p31, %s32, %s33
    %p37 = pneg %p31
    %p38 = scmp.eq.s32.totalorder %s8, 3
    %p39 = por %p37, %p38
    %p40 = scmp.ne.s32.totalorder %s32, %s35
    %p41 = scmp.eq.s32.totalorder %s8, 0
    %p42 = por %p40, %p41
    %p43 = scmp.ne.s32.totalorder %s32, %s35
    %p44 = scmp.eq.s32.totalorder %s13, 3
    %p45 = por %p43, %p44
    %p46 = scmp.ne.s32.totalorder %s35, %s36
    %p47 = scmp.eq.s32.totalorder %s13, 0
    %p48 = por %p46, %p47
    %p49 = scmp.ne.s32.totalorder %s35, %s36
    %p50 = scmp.eq.s32.totalorder %s14, 3
    %p51 = por %p49, %p50
    %p53 = scmp.ne.s32.totalorder %s36, %s52
    %p54 = scmp.eq.s32.totalorder %s14, 0
    %p55 = por %p53, %p54
    %s56 = ssub.s32 %s15, %s27
    %p57 = scmp.eq.s32.totalorder %s56, 0
    %s59 = sadd.s32 %s58, 1
    %s60 = scalar_select %p57, %s58, %s59
    %p63 = pneg %p57
    %p64 = scmp.eq.s32.totalorder %s8, 3
    %p65 = por %p63, %p64
    %p66 = scmp.ne.s32.totalorder %s58, %s61
    %p67 = scmp.eq.s32.totalorder %s8, 0
    %p68 = por %p66, %p67
    %p69 = scmp.ne.s32.totalorder %s58, %s61
    %p70 = scmp.eq.s32.totalorder %s13, 3
    %p71 = por %p69, %p70
    %p72 = scmp.ne.s32.totalorder %s61, %s62
    %p73 = scmp.eq.s32.totalorder %s13, 0
    %p74 = por %p72, %p73
    %p75 = scmp.ne.s32.totalorder %s61, %s62
    %p76 = scmp.eq.s32.totalorder %s14, 3
    %p77 = por %p75, %p76
    %p79 = scmp.ne.s32.totalorder %s62, %s78
    %p80 = scmp.eq.s32.totalorder %s14, 0
    %p81 = por %p79, %p80
    %s82 = ssub.s32 %s15, %s27
    %s83 = ssub.s32 %s16, %s23
    %s84 = sor.u32 %s82, %s83
    %p85 = scmp.eq.s32.totalorder %s84, 0
    %s87 = sadd.s32 %s86, 1
    %s88 = scalar_select %p85, %s86, %s87
    %p91 = pneg %p85
    %p92 = scmp.eq.s32.totalorder %s8, 3
    %p93 = por %p91, %p92
    %p94 = scmp.ne.s32.totalorder %s86, %s89
    %p95 = scmp.eq.s32.totalorder %s8, 0
    %p96 = por %p94, %p95
    %p97 = scmp.ne.s32.totalorder %s86, %s89
    %p98 = scmp.eq.s32.totalorder %s13, 3
    %p99 = por %p97, %p98
    %p100 = scmp.ne.s32.totalorder %s89, %s90
    %p101 = scmp.eq.s32.totalorder %s13, 0
    %p102 = por %p100, %p101
    %p103 = scmp.ne.s32.totalorder %s89, %s90
    %p104 = scmp.eq.s32.totalorder %s14, 3
    %p105 = por %p103, %p104
    %p107 = scmp.ne.s32.totalorder %s90, %s106
    %p108 = scmp.eq.s32.totalorder %s14, 0
    %p109 = por %p107, %p108
    %p110 = scmp.le.s32.totalorder 1, %s8
    %p111 = scmp.lt.s32.totalorder %s8, 5
    %p112 = pnand %p110, %p111
    %p113 = pneg %p112
    // Predicated region
    $region9: #{_generator_forward_impl.17} parent=5 // pred_check
      _
    $region10: #{_generator_forward_impl.17} parent=5 // pred_check_branch
      %115 = sbr.rel (%p112) target = $region12
    $region11: #{_generator_forward_impl.17} parent=5 // pred_region
      %s116 = ssub.s32 %s8, 1
    $region12: #{_generator_forward_impl.17} parent=5 // pred_fallthru
      _
    %p117 = scmp.lt.s32.totalorder %s8, 4
    // Predicated region
    $region13: #{_generator_forward_impl.17} parent=5 // pred_check
      %p118 = pneg %p117
    $region14: #{_generator_forward_impl.17} parent=5 // pred_check_branch
      %120 = sbr.rel (%p118) target = $region16
    $region15: #{_generator_forward_impl.17} parent=5 // pred_region
      // Predicated region
      $region17: #{_generator_forward_impl.17} parent=15 // pred_check
        %p121 = pneg %p42
      $region18: #{_generator_forward_impl.17} parent=15 // pred_check_branch
        %123 = sbr.rel (%p121) target = $region20
      $region19: #{_generator_forward_impl.17} parent=15 // pred_region
        %s124 = smul.u32 256, %s16
        %p125 = scmp.lt.s32.totalorder %s15, 3
        %s126 = scalar_select %p125, %s15, 3
        %p127 = scmp.lt.s32.totalorder %s124, 255
        %s128 = scalar_select %p127, %s124, 255
        %s129 = smul.addr %s126, 256
        %s130 = sadd.s32 %s128, %s129
        %s131 = smul.addr %s130, 4
        %s132 = scalar_lea.vmem %s0, %s131
        %s133 = smul.u32 256, %s16
      $region20: #{_generator_forward_impl.17} parent=15 // pred_fallthru
        _
      // Predicated region
      $region21: #{_generator_forward_impl.17} parent=15 // pred_check
        %p134 = pneg %p68
      $region22: #{_generator_forward_impl.17} parent=15 // pred_check_branch
        %136 = sbr.rel (%p134) target = $region24
      $region23: #{_generator_forward_impl.17} parent=15 // pred_region
        %p137 = scmp.lt.s32.totalorder %s15, 3
        %s138 = scalar_select %p137, %s15, 3
        %s139 = smul.addr %s138, 16
        %s140 = smul.addr %s139, 4
        %s141 = scalar_lea.vmem %s1, %s140
      $region24: #{_generator_forward_impl.17} parent=15 // pred_fallthru
        _
    $region16: #{_generator_forward_impl.17} parent=5 // pred_fallthru
      _
    %p142 = scmp.le.s32.totalorder 1, %s8
    %p143 = scmp.lt.s32.totalorder %s8, 5
    %p144 = pnand %p142, %p143
    %p145 = pneg %p144
    // Predicated region
    $region25: #{_generator_forward_impl.17} parent=5 // pred_check
      _
    $region26: #{_generator_forward_impl.17} parent=5 // pred_check_branch
      %147 = sbr.rel (%p144) target = $region28
    $region27: #{_generator_forward_impl.17} parent=5 // pred_region
      %s148 = ssub.s32 %s8, 1
      %s149 = smul.u32 256, %s18
      %p150 = scmp.lt.s32.totalorder %s17, 3
      %s151 = scalar_select %p150, %s17, 3
      %p152 = scmp.lt.s32.totalorder %s149, 255
      %s153 = scalar_select %p152, %s149, 255
      %s154 = smul.addr %s151, 256
      %s155 = sadd.s32 %s153, %s154
      %s156 = smul.addr %s155, 4
      %s157 = scalar_lea.vmem %s0, %s156
      %p158 = pneg %p48
      %p159 = pneg %p45
      %p160 = scmp.lt.s32.totalorder %s17, 3
      %s161 = scalar_select %p160, %s17, 3
      %s162 = smul.addr %s161, 16
      %s163 = smul.addr %s162, 4
      %s164 = scalar_lea.vmem %s1, %s163
      %p165 = pneg %p74
      %p166 = pneg %p71
      %p167 = pneg %p102
      %p168 = pneg %p99
      %s169 = smul.u32 256, %s18
      %p170 = scmp.lt.s32.totalorder %s17, 3
      %s171 = scalar_select %p170, %s17, 3
      %p172 = scmp.lt.s32.totalorder %s169, 255
      %s173 = scalar_select %p172, %s169, 255
      %s174 = smul.addr %s171, 256
      %s175 = sadd.s32 %s173, %s174
      %s176 = smul.addr %s175, 4
      %s177 = scalar_lea.vmem %s2, %s176
      %s178 = smul.u32 256, %s18
      %p179 = scmp.lt.s32.totalorder %s17, 3
      %s180 = scalar_select %p179, %s17, 3
      %p181 = scmp.lt.s32.totalorder %s178, 255
      %s182 = scalar_select %p181, %s178, 255
      %s183 = smul.addr %s180, 256
      %s184 = sadd.s32 %s182, %s183
      %s185 = smul.addr %s184, 4
      %s186 = scalar_lea.vmem %s0, %s185
      %s187 = smul.u32 256, %s18
      %p188 = scmp.lt.s32.totalorder %s17, 3
      %s189 = scalar_select %p188, %s17, 3
      %s190 = smul.addr %s189, 16
      %s191 = smul.addr %s190, 4
      %s192 = scalar_lea.vmem %s1, %s191
      %s193 = smul.u32 256, %s18
      %p194 = scmp.lt.s32.totalorder %s17, 3
      %s195 = scalar_select %p194, %s17, 3
      %p196 = scmp.lt.s32.totalorder %s193, 255
      %s197 = scalar_select %p196, %s193, 255
      %s198 = smul.addr %s195, 256
      %s199 = sadd.s32 %s197, %s198
      %s200 = smul.addr %s199, 4
      %s201 = scalar_lea.vmem %s2, %s200
      %s202 = smul.u32 256, %s18
      %v204 = vld [vmem:[%s186] sm:$0xf]
      %v205 = vld [vmem:[%s186 + $0x4] sm:$0xf]
      %v206 = vld [vmem:[%s186 + $0x8] sm:$0xf]
      %v207 = vld [vmem:[%s186 + $0xc] sm:$0xf]
      %v208 = vld [vmem:[%s186 + $0x10] sm:$0xf]
      %v209 = vld [vmem:[%s186 + $0x14] sm:$0xf]
      %v210 = vld [vmem:[%s186 + $0x18] sm:$0xf]
      %v211 = vld [vmem:[%s186 + $0x1c] sm:$0xf]
      %v212 = vld [vmem:[%s186 + $0x20] sm:$0xf]
      %v213 = vld [vmem:[%s186 + $0x24] sm:$0xf]
      %v214 = vld [vmem:[%s186 + $0x28] sm:$0xf]
      %v215 = vld [vmem:[%s186 + $0x2c] sm:$0xf]
      %v216 = vld [vmem:[%s186 + $0x30] sm:$0xf]
      %v217 = vld [vmem:[%s186 + $0x34] sm:$0xf]
      %v218 = vld [vmem:[%s186 + $0x38] sm:$0xf]
      %v219 = vld [vmem:[%s186 + $0x3c] sm:$0xf]
      %v220 = vld [vmem:[%s186 + $0x40] sm:$0xf]
      %v221 = vld [vmem:[%s186 + $0x44] sm:$0xf]
      %v222 = vld [vmem:[%s186 + $0x48] sm:$0xf]
      %v223 = vld [vmem:[%s186 + $0x4c] sm:$0xf]
      %v224 = vld [vmem:[%s186 + $0x50] sm:$0xf]
      %v225 = vld [vmem:[%s186 + $0x54] sm:$0xf]
      %v226 = vld [vmem:[%s186 + $0x58] sm:$0xf]
      %v227 = vld [vmem:[%s186 + $0x5c] sm:$0xf]
      %v228 = vld [vmem:[%s186 + $0x60] sm:$0xf]
      %v229 = vld [vmem:[%s186 + $0x64] sm:$0xf]
      %v230 = vld [vmem:[%s186 + $0x68] sm:$0xf]
      %v231 = vld [vmem:[%s186 + $0x6c] sm:$0xf]
      %v232 = vld [vmem:[%s186 + $0x70] sm:$0xf]
      %v233 = vld [vmem:[%s186 + $0x74] sm:$0xf]
      %v234 = vld [vmem:[%s186 + $0x78] sm:$0xf]
      %v235 = vld [vmem:[%s186 + $0x7c] sm:$0xf]
      %v236 = vld [vmem:[%s186 + $0x80] sm:$0xf]
      %v237 = vld [vmem:[%s186 + $0x84] sm:$0xf]
      %v238 = vld [vmem:[%s186 + $0x88] sm:$0xf]
      %v239 = vld [vmem:[%s186 + $0x8c] sm:$0xf]
      %v240 = vld [vmem:[%s186 + $0x90] sm:$0xf]
      %v241 = vld [vmem:[%s186 + $0x94] sm:$0xf]
      %v242 = vld [vmem:[%s186 + $0x98] sm:$0xf]
      %v243 = vld [vmem:[%s186 + $0x9c] sm:$0xf]
      %v244 = vld [vmem:[%s186 + $0xa0] sm:$0xf]
      %v245 = vld [vmem:[%s186 + $0xa4] sm:$0xf]
      %v246 = vld [vmem:[%s186 + $0xa8] sm:$0xf]
      %v247 = vld [vmem:[%s186 + $0xac] sm:$0xf]
      %v248 = vld [vmem:[%s186 + $0xb0] sm:$0xf]
      %v249 = vld [vmem:[%s186 + $0xb4] sm:$0xf]
      %v250 = vld [vmem:[%s186 + $0xb8] sm:$0xf]
      %v251 = vld [vmem:[%s186 + $0xbc] sm:$0xf]
      %v252 = vld [vmem:[%s186 + $0xc0] sm:$0xf]
      %v253 = vld [vmem:[%s186 + $0xc4] sm:$0xf]
      %v254 = vld [vmem:[%s186 + $0xc8] sm:$0xf]
      %v255 = vld [vmem:[%s186 + $0xcc] sm:$0xf]
      %v256 = vld [vmem:[%s186 + $0xd0] sm:$0xf]
      %v257 = vld [vmem:[%s186 + $0xd4] sm:$0xf]
      %v258 = vld [vmem:[%s186 + $0xd8] sm:$0xf]
      %v259 = vld [vmem:[%s186 + $0xdc] sm:$0xf]
      %v260 = vld [vmem:[%s186 + $0xe0] sm:$0xf]
      %v261 = vld [vmem:[%s186 + $0xe4] sm:$0xf]
      %v262 = vld [vmem:[%s186 + $0xe8] sm:$0xf]
      %v263 = vld [vmem:[%s186 + $0xec] sm:$0xf]
      %v264 = vld [vmem:[%s186 + $0xf0] sm:$0xf]
      %v265 = vld [vmem:[%s186 + $0xf4] sm:$0xf]
      %v266 = vld [vmem:[%s186 + $0xf8] sm:$0xf]
      %v267 = vld [vmem:[%s186 + $0xfc] sm:$0xf]
      %v268 = vld [vmem:[%s186 + $0x100] sm:$0xf]
      %v269 = vld [vmem:[%s186 + $0x104] sm:$0xf]
      %v270 = vld [vmem:[%s186 + $0x108] sm:$0xf]
      %v271 = vld [vmem:[%s186 + $0x10c] sm:$0xf]
      %v272 = vld [vmem:[%s186 + $0x110] sm:$0xf]
      %v273 = vld [vmem:[%s186 + $0x114] sm:$0xf]
      %v274 = vld [vmem:[%s186 + $0x118] sm:$0xf]
      %v275 = vld [vmem:[%s186 + $0x11c] sm:$0xf]
      %v276 = vld [vmem:[%s186 + $0x120] sm:$0xf]
      %v277 = vld [vmem:[%s186 + $0x124] sm:$0xf]
      %v278 = vld [vmem:[%s186 + $0x128] sm:$0xf]
      %v279 = vld [vmem:[%s186 + $0x12c] sm:$0xf]
      %v280 = vld [vmem:[%s186 + $0x130] sm:$0xf]
      %v281 = vld [vmem:[%s186 + $0x134] sm:$0xf]
      %v282 = vld [vmem:[%s186 + $0x138] sm:$0xf]
      %v283 = vld [vmem:[%s186 + $0x13c] sm:$0xf]
      %v284 = vld [vmem:[%s186 + $0x140] sm:$0xf]
      %v285 = vld [vmem:[%s186 + $0x144] sm:$0xf]
      %v286 = vld [vmem:[%s186 + $0x148] sm:$0xf]
      %v287 = vld [vmem:[%s186 + $0x14c] sm:$0xf]
      %v288 = vld [vmem:[%s186 + $0x150] sm:$0xf]
      %v289 = vld [vmem:[%s186 + $0x154] sm:$0xf]
      %v290 = vld [vmem:[%s186 + $0x158] sm:$0xf]
      %v291 = vld [vmem:[%s186 + $0x15c] sm:$0xf]
      %v292 = vld [vmem:[%s186 + $0x160] sm:$0xf]
      %v293 = vld [vmem:[%s186 + $0x164] sm:$0xf]
      %v294 = vld [vmem:[%s186 + $0x168] sm:$0xf]
      %v295 = vld [vmem:[%s186 + $0x16c] sm:$0xf]
      %v296 = vld [vmem:[%s186 + $0x170] sm:$0xf]
      %v297 = vld [vmem:[%s186 + $0x174] sm:$0xf]
      %v298 = vld [vmem:[%s186 + $0x178] sm:$0xf]
      %v299 = vld [vmem:[%s186 + $0x17c] sm:$0xf]
      %v300 = vld [vmem:[%s186 + $0x180] sm:$0xf]
      %v301 = vld [vmem:[%s186 + $0x184] sm:$0xf]
      %v302 = vld [vmem:[%s186 + $0x188] sm:$0xf]
      %v303 = vld [vmem:[%s186 + $0x18c] sm:$0xf]
      %v304 = vld [vmem:[%s186 + $0x190] sm:$0xf]
      %v305 = vld [vmem:[%s186 + $0x194] sm:$0xf]
      %v306 = vld [vmem:[%s186 + $0x198] sm:$0xf]
      %v307 = vld [vmem:[%s186 + $0x19c] sm:$0xf]
      %v308 = vld [vmem:[%s186 + $0x1a0] sm:$0xf]
      %v309 = vld [vmem:[%s186 + $0x1a4] sm:$0xf]
      %v310 = vld [vmem:[%s186 + $0x1a8] sm:$0xf]
      %v311 = vld [vmem:[%s186 + $0x1ac] sm:$0xf]
      %v312 = vld [vmem:[%s186 + $0x1b0] sm:$0xf]
      %v313 = vld [vmem:[%s186 + $0x1b4] sm:$0xf]
      %v314 = vld [vmem:[%s186 + $0x1b8] sm:$0xf]
      %v315 = vld [vmem:[%s186 + $0x1bc] sm:$0xf]
      %v316 = vld [vmem:[%s186 + $0x1c0] sm:$0xf]
      %v317 = vld [vmem:[%s186 + $0x1c4] sm:$0xf]
      %v318 = vld [vmem:[%s186 + $0x1c8] sm:$0xf]
      %v319 = vld [vmem:[%s186 + $0x1cc] sm:$0xf]
      %v320 = vld [vmem:[%s186 + $0x1d0] sm:$0xf]
      %v321 = vld [vmem:[%s186 + $0x1d4] sm:$0xf]
      %v322 = vld [vmem:[%s186 + $0x1d8] sm:$0xf]
      %v323 = vld [vmem:[%s186 + $0x1dc] sm:$0xf]
      %v324 = vld [vmem:[%s186 + $0x1e0] sm:$0xf]
      %v325 = vld [vmem:[%s186 + $0x1e4] sm:$0xf]
      %v326 = vld [vmem:[%s186 + $0x1e8] sm:$0xf]
      %v327 = vld [vmem:[%s186 + $0x1ec] sm:$0xf]
      %v328 = vld [vmem:[%s186 + $0x1f0] sm:$0xf]
      %v329 = vld [vmem:[%s186 + $0x1f4] sm:$0xf]
      %v330 = vld [vmem:[%s186 + $0x1f8] sm:$0xf]
      %v331 = vld [vmem:[%s186 + $0x1fc] sm:$0xf]
      %v332 = vld [vmem:[%s186 + $0x200] sm:$0xf]
      %v333 = vld [vmem:[%s186 + $0x204] sm:$0xf]
      %v334 = vld [vmem:[%s186 + $0x208] sm:$0xf]
      %v335 = vld [vmem:[%s186 + $0x20c] sm:$0xf]
      %v336 = vld [vmem:[%s186 + $0x210] sm:$0xf]
      %v337 = vld [vmem:[%s186 + $0x214] sm:$0xf]
      %v338 = vld [vmem:[%s186 + $0x218] sm:$0xf]
      %v339 = vld [vmem:[%s186 + $0x21c] sm:$0xf]
      %v340 = vld [vmem:[%s186 + $0x220] sm:$0xf]
      %v341 = vld [vmem:[%s186 + $0x224] sm:$0xf]
      %v342 = vld [vmem:[%s186 + $0x228] sm:$0xf]
      %v343 = vld [vmem:[%s186 + $0x22c] sm:$0xf]
      %v344 = vld [vmem:[%s186 + $0x230] sm:$0xf]
      %v345 = vld [vmem:[%s186 + $0x234] sm:$0xf]
      %v346 = vld [vmem:[%s186 + $0x238] sm:$0xf]
      %v347 = vld [vmem:[%s186 + $0x23c] sm:$0xf]
      %v348 = vld [vmem:[%s186 + $0x240] sm:$0xf]
      %v349 = vld [vmem:[%s186 + $0x244] sm:$0xf]
      %v350 = vld [vmem:[%s186 + $0x248] sm:$0xf]
      %v351 = vld [vmem:[%s186 + $0x24c] sm:$0xf]
      %v352 = vld [vmem:[%s186 + $0x250] sm:$0xf]
      %v353 = vld [vmem:[%s186 + $0x254] sm:$0xf]
      %v354 = vld [vmem:[%s186 + $0x258] sm:$0xf]
      %v355 = vld [vmem:[%s186 + $0x25c] sm:$0xf]
      %v356 = vld [vmem:[%s186 + $0x260] sm:$0xf]
      %v357 = vld [vmem:[%s186 + $0x264] sm:$0xf]
      %v358 = vld [vmem:[%s186 + $0x268] sm:$0xf]
      %v359 = vld [vmem:[%s186 + $0x26c] sm:$0xf]
      %v360 = vld [vmem:[%s186 + $0x270] sm:$0xf]
      %v361 = vld [vmem:[%s186 + $0x274] sm:$0xf]
      %v362 = vld [vmem:[%s186 + $0x278] sm:$0xf]
      %v363 = vld [vmem:[%s186 + $0x27c] sm:$0xf]
      %v364 = vld [vmem:[%s186 + $0x280] sm:$0xf]
      %v365 = vld [vmem:[%s186 + $0x284] sm:$0xf]
      %v366 = vld [vmem:[%s186 + $0x288] sm:$0xf]
      %v367 = vld [vmem:[%s186 + $0x28c] sm:$0xf]
      %v368 = vld [vmem:[%s186 + $0x290] sm:$0xf]
      %v369 = vld [vmem:[%s186 + $0x294] sm:$0xf]
      %v370 = vld [vmem:[%s186 + $0x298] sm:$0xf]
      %v371 = vld [vmem:[%s186 + $0x29c] sm:$0xf]
      %v372 = vld [vmem:[%s186 + $0x2a0] sm:$0xf]
      %v373 = vld [vmem:[%s186 + $0x2a4] sm:$0xf]
      %v374 = vld [vmem:[%s186 + $0x2a8] sm:$0xf]
      %v375 = vld [vmem:[%s186 + $0x2ac] sm:$0xf]
      %v376 = vld [vmem:[%s186 + $0x2b0] sm:$0xf]
      %v377 = vld [vmem:[%s186 + $0x2b4] sm:$0xf]
      %v378 = vld [vmem:[%s186 + $0x2b8] sm:$0xf]
      %v379 = vld [vmem:[%s186 + $0x2bc] sm:$0xf]
      %v380 = vld [vmem:[%s186 + $0x2c0] sm:$0xf]
      %v381 = vld [vmem:[%s186 + $0x2c4] sm:$0xf]
      %v382 = vld [vmem:[%s186 + $0x2c8] sm:$0xf]
      %v383 = vld [vmem:[%s186 + $0x2cc] sm:$0xf]
      %v384 = vld [vmem:[%s186 + $0x2d0] sm:$0xf]
      %v385 = vld [vmem:[%s186 + $0x2d4] sm:$0xf]
      %v386 = vld [vmem:[%s186 + $0x2d8] sm:$0xf]
      %v387 = vld [vmem:[%s186 + $0x2dc] sm:$0xf]
      %v388 = vld [vmem:[%s186 + $0x2e0] sm:$0xf]
      %v389 = vld [vmem:[%s186 + $0x2e4] sm:$0xf]
      %v390 = vld [vmem:[%s186 + $0x2e8] sm:$0xf]
      %v391 = vld [vmem:[%s186 + $0x2ec] sm:$0xf]
      %v392 = vld [vmem:[%s186 + $0x2f0] sm:$0xf]
      %v393 = vld [vmem:[%s186 + $0x2f4] sm:$0xf]
      %v394 = vld [vmem:[%s186 + $0x2f8] sm:$0xf]
      %v395 = vld [vmem:[%s186 + $0x2fc] sm:$0xf]
      %v396 = vld [vmem:[%s186 + $0x300] sm:$0xf]
      %v397 = vld [vmem:[%s186 + $0x304] sm:$0xf]
      %v398 = vld [vmem:[%s186 + $0x308] sm:$0xf]
      %v399 = vld [vmem:[%s186 + $0x30c] sm:$0xf]
      %v400 = vld [vmem:[%s186 + $0x310] sm:$0xf]
      %v401 = vld [vmem:[%s186 + $0x314] sm:$0xf]
      %v402 = vld [vmem:[%s186 + $0x318] sm:$0xf]
      %v403 = vld [vmem:[%s186 + $0x31c] sm:$0xf]
      %v404 = vld [vmem:[%s186 + $0x320] sm:$0xf]
      %v405 = vld [vmem:[%s186 + $0x324] sm:$0xf]
      %v406 = vld [vmem:[%s186 + $0x328] sm:$0xf]
      %v407 = vld [vmem:[%s186 + $0x32c] sm:$0xf]
      %v408 = vld [vmem:[%s186 + $0x330] sm:$0xf]
      %v409 = vld [vmem:[%s186 + $0x334] sm:$0xf]
      %v410 = vld [vmem:[%s186 + $0x338] sm:$0xf]
      %v411 = vld [vmem:[%s186 + $0x33c] sm:$0xf]
      %v412 = vld [vmem:[%s186 + $0x340] sm:$0xf]
      %v413 = vld [vmem:[%s186 + $0x344] sm:$0xf]
      %v414 = vld [vmem:[%s186 + $0x348] sm:$0xf]
      %v415 = vld [vmem:[%s186 + $0x34c] sm:$0xf]
      %v416 = vld [vmem:[%s186 + $0x350] sm:$0xf]
      %v417 = vld [vmem:[%s186 + $0x354] sm:$0xf]
      %v418 = vld [vmem:[%s186 + $0x358] sm:$0xf]
      %v419 = vld [vmem:[%s186 + $0x35c] sm:$0xf]
      %v420 = vld [vmem:[%s186 + $0x360] sm:$0xf]
      %v421 = vld [vmem:[%s186 + $0x364] sm:$0xf]
      %v422 = vld [vmem:[%s186 + $0x368] sm:$0xf]
      %v423 = vld [vmem:[%s186 + $0x36c] sm:$0xf]
      %v424 = vld [vmem:[%s186 + $0x370] sm:$0xf]
      %v425 = vld [vmem:[%s186 + $0x374] sm:$0xf]
      %v426 = vld [vmem:[%s186 + $0x378] sm:$0xf]
      %v427 = vld [vmem:[%s186 + $0x37c] sm:$0xf]
      %v428 = vld [vmem:[%s186 + $0x380] sm:$0xf]
      %v429 = vld [vmem:[%s186 + $0x384] sm:$0xf]
      %v430 = vld [vmem:[%s186 + $0x388] sm:$0xf]
      %v431 = vld [vmem:[%s186 + $0x38c] sm:$0xf]
      %v432 = vld [vmem:[%s186 + $0x390] sm:$0xf]
      %v433 = vld [vmem:[%s186 + $0x394] sm:$0xf]
      %v434 = vld [vmem:[%s186 + $0x398] sm:$0xf]
      %v435 = vld [vmem:[%s186 + $0x39c] sm:$0xf]
      %v436 = vld [vmem:[%s186 + $0x3a0] sm:$0xf]
      %v437 = vld [vmem:[%s186 + $0x3a4] sm:$0xf]
      %v438 = vld [vmem:[%s186 + $0x3a8] sm:$0xf]
      %v439 = vld [vmem:[%s186 + $0x3ac] sm:$0xf]
      %v440 = vld [vmem:[%s186 + $0x3b0] sm:$0xf]
      %v441 = vld [vmem:[%s186 + $0x3b4] sm:$0xf]
      %v442 = vld [vmem:[%s186 + $0x3b8] sm:$0xf]
      %v443 = vld [vmem:[%s186 + $0x3bc] sm:$0xf]
      %v444 = vld [vmem:[%s186 + $0x3c0] sm:$0xf]
      %v445 = vld [vmem:[%s186 + $0x3c4] sm:$0xf]
      %v446 = vld [vmem:[%s186 + $0x3c8] sm:$0xf]
      %v447 = vld [vmem:[%s186 + $0x3cc] sm:$0xf]
      %v448 = vld [vmem:[%s186 + $0x3d0] sm:$0xf]
      %v449 = vld [vmem:[%s186 + $0x3d4] sm:$0xf]
      %v450 = vld [vmem:[%s186 + $0x3d8] sm:$0xf]
      %v451 = vld [vmem:[%s186 + $0x3dc] sm:$0xf]
      %v452 = vld [vmem:[%s186 + $0x3e0] sm:$0xf]
      %v453 = vld [vmem:[%s186 + $0x3e4] sm:$0xf]
      %v454 = vld [vmem:[%s186 + $0x3e8] sm:$0xf]
      %v455 = vld [vmem:[%s186 + $0x3ec] sm:$0xf]
      %v456 = vld [vmem:[%s186 + $0x3f0] sm:$0xf]
      %v457 = vld [vmem:[%s186 + $0x3f4] sm:$0xf]
      %v458 = vld [vmem:[%s186 + $0x3f8] sm:$0xf]
      %v459 = vld [vmem:[%s186 + $0x3fc] sm:$0xf]
      %v460 = vld [vmem:[%s192] sm:$0xf]
      %v461 = vld [vmem:[%s192 + $0x4] sm:$0xf]
      %v462 = vld [vmem:[%s192 + $0x8] sm:$0xf]
      %v463 = vld [vmem:[%s192 + $0xc] sm:$0xf]
      %v464 = vld [vmem:[%s192 + $0x10] sm:$0xf]
      %v465 = vld [vmem:[%s192 + $0x14] sm:$0xf]
      %v466 = vld [vmem:[%s192 + $0x18] sm:$0xf]
      %v467 = vld [vmem:[%s192 + $0x1c] sm:$0xf]
      %v468 = vld [vmem:[%s192 + $0x20] sm:$0xf]
      %v469 = vld [vmem:[%s192 + $0x24] sm:$0xf]
      %v470 = vld [vmem:[%s192 + $0x28] sm:$0xf]
      %v471 = vld [vmem:[%s192 + $0x2c] sm:$0xf]
      %v472 = vld [vmem:[%s192 + $0x30] sm:$0xf]
      %v473 = vld [vmem:[%s192 + $0x34] sm:$0xf]
      %v474 = vld [vmem:[%s192 + $0x38] sm:$0xf]
      %v475 = vld [vmem:[%s192 + $0x3c] sm:$0xf]
      %v732 = vunpack.c.l.b16 %v204
      %v733 = vunpack.c.l.b16 %v205
      %v734 = vunpack.c.l.b16 %v206
      %v735 = vunpack.c.l.b16 %v207
      %v736 = vunpack.c.l.b16 %v208
      %v737 = vunpack.c.l.b16 %v209
      %v738 = vunpack.c.l.b16 %v210
      %v739 = vunpack.c.l.b16 %v211
      %v740 = vunpack.c.l.b16 %v212
      %v741 = vunpack.c.l.b16 %v213
      %v742 = vunpack.c.l.b16 %v214
      %v743 = vunpack.c.l.b16 %v215
      %v744 = vunpack.c.l.b16 %v216
      %v745 = vunpack.c.l.b16 %v217
      %v746 = vunpack.c.l.b16 %v218
      %v747 = vunpack.c.l.b16 %v219
      %v748 = vunpack.c.l.b16 %v220
      %v749 = vunpack.c.l.b16 %v221
      %v750 = vunpack.c.l.b16 %v222
      %v751 = vunpack.c.l.b16 %v223
      %v752 = vunpack.c.l.b16 %v224
      %v753 = vunpack.c.l.b16 %v225
      %v754 = vunpack.c.l.b16 %v226
      %v755 = vunpack.c.l.b16 %v227
      %v756 = vunpack.c.l.b16 %v228
      %v757 = vunpack.c.l.b16 %v229
      %v758 = vunpack.c.l.b16 %v230
      %v759 = vunpack.c.l.b16 %v231
      %v760 = vunpack.c.l.b16 %v232
      %v761 = vunpack.c.l.b16 %v233
      %v762 = vunpack.c.l.b16 %v234
      %v763 = vunpack.c.l.b16 %v235
      %v764 = vunpack.c.l.b16 %v236
      %v765 = vunpack.c.l.b16 %v237
      %v766 = vunpack.c.l.b16 %v238
      %v767 = vunpack.c.l.b16 %v239
      %v768 = vunpack.c.l.b16 %v240
      %v769 = vunpack.c.l.b16 %v241
      %v770 = vunpack.c.l.b16 %v242
      %v771 = vunpack.c.l.b16 %v243
      %v772 = vunpack.c.l.b16 %v244
      %v773 = vunpack.c.l.b16 %v245
      %v774 = vunpack.c.l.b16 %v246
      %v775 = vunpack.c.l.b16 %v247
      %v776 = vunpack.c.l.b16 %v248
      %v777 = vunpack.c.l.b16 %v249
      %v778 = vunpack.c.l.b16 %v250
      %v779 = vunpack.c.l.b16 %v251
      %v780 = vunpack.c.l.b16 %v252
      %v781 = vunpack.c.l.b16 %v253
      %v782 = vunpack.c.l.b16 %v254
      %v783 = vunpack.c.l.b16 %v255
      %v784 = vunpack.c.l.b16 %v256
      %v785 = vunpack.c.l.b16 %v257
      %v786 = vunpack.c.l.b16 %v258
      %v787 = vunpack.c.l.b16 %v259
      %v788 = vunpack.c.l.b16 %v260
      %v789 = vunpack.c.l.b16 %v261
      %v790 = vunpack.c.l.b16 %v262
      %v791 = vunpack.c.l.b16 %v263
      %v792 = vunpack.c.l.b16 %v264
      %v793 = vunpack.c.l.b16 %v265
      %v794 = vunpack.c.l.b16 %v266
      %v795 = vunpack.c.l.b16 %v267
      %v796 = vunpack.c.l.b16 %v268
      %v797 = vunpack.c.l.b16 %v269
      %v798 = vunpack.c.l.b16 %v270
      %v799 = vunpack.c.l.b16 %v271
      %v800 = vunpack.c.l.b16 %v272
      %v801 = vunpack.c.l.b16 %v273
      %v802 = vunpack.c.l.b16 %v274
      %v803 = vunpack.c.l.b16 %v275
      %v804 = vunpack.c.l.b16 %v276
      %v805 = vunpack.c.l.b16 %v277
      %v806 = vunpack.c.l.b16 %v278
      %v807 = vunpack.c.l.b16 %v279
      %v808 = vunpack.c.l.b16 %v280
      %v809 = vunpack.c.l.b16 %v281
      %v810 = vunpack.c.l.b16 %v282
      %v811 = vunpack.c.l.b16 %v283
      %v812 = vunpack.c.l.b16 %v284
      %v813 = vunpack.c.l.b16 %v285
      %v814 = vunpack.c.l.b16 %v286
      %v815 = vunpack.c.l.b16 %v287
      %v816 = vunpack.c.l.b16 %v288
      %v817 = vunpack.c.l.b16 %v289
      %v818 = vunpack.c.l.b16 %v290
      %v819 = vunpack.c.l.b16 %v291
      %v820 = vunpack.c.l.b16 %v292
      %v821 = vunpack.c.l.b16 %v293
      %v822 = vunpack.c.l.b16 %v294
      %v823 = vunpack.c.l.b16 %v295
      %v824 = vunpack.c.l.b16 %v296
      %v825 = vunpack.c.l.b16 %v297
      %v826 = vunpack.c.l.b16 %v298
      %v827 = vunpack.c.l.b16 %v299
      %v828 = vunpack.c.l.b16 %v300
      %v829 = vunpack.c.l.b16 %v301
      %v830 = vunpack.c.l.b16 %v302
      %v831 = vunpack.c.l.b16 %v303
      %v832 = vunpack.c.l.b16 %v304
      %v833 = vunpack.c.l.b16 %v305
      %v834 = vunpack.c.l.b16 %v306
      %v835 = vunpack.c.l.b16 %v307
      %v836 = vunpack.c.l.b16 %v308
      %v837 = vunpack.c.l.b16 %v309
      %v838 = vunpack.c.l.b16 %v310
      %v839 = vunpack.c.l.b16 %v311
      %v840 = vunpack.c.l.b16 %v312
      %v841 = vunpack.c.l.b16 %v313
      %v842 = vunpack.c.l.b16 %v314
      %v843 = vunpack.c.l.b16 %v315
      %v844 = vunpack.c.l.b16 %v316
      %v845 = vunpack.c.l.b16 %v317
      %v846 = vunpack.c.l.b16 %v318
      %v847 = vunpack.c.l.b16 %v319
      %v848 = vunpack.c.l.b16 %v320
      %v849 = vunpack.c.l.b16 %v321
      %v850 = vunpack.c.l.b16 %v322
      %v851 = vunpack.c.l.b16 %v323
      %v852 = vunpack.c.l.b16 %v324
      %v853 = vunpack.c.l.b16 %v325
      %v854 = vunpack.c.l.b16 %v326
      %v855 = vunpack.c.l.b16 %v327
      %v856 = vunpack.c.l.b16 %v328
      %v857 = vunpack.c.l.b16 %v329
      %v858 = vunpack.c.l.b16 %v330
      %v859 = vunpack.c.l.b16 %v331
      %v860 = vunpack.c.l.b16 %v332
      %v861 = vunpack.c.l.b16 %v333
      %v862 = vunpack.c.l.b16 %v334
      %v863 = vunpack.c.l.b16 %v335
      %v864 = vunpack.c.l.b16 %v336
      %v865 = vunpack.c.l.b16 %v337
      %v866 = vunpack.c.l.b16 %v338
      %v867 = vunpack.c.l.b16 %v339
      %v868 = vunpack.c.l.b16 %v340
      %v869 = vunpack.c.l.b16 %v341
      %v870 = vunpack.c.l.b16 %v342
      %v871 = vunpack.c.l.b16 %v343
      %v872 = vunpack.c.l.b16 %v344
      %v873 = vunpack.c.l.b16 %v345
      %v874 = vunpack.c.l.b16 %v346
      %v875 = vunpack.c.l.b16 %v347
      %v876 = vunpack.c.l.b16 %v348
      %v877 = vunpack.c.l.b16 %v349
      %v878 = vunpack.c.l.b16 %v350
      %v879 = vunpack.c.l.b16 %v351
      %v880 = vunpack.c.l.b16 %v352
      %v881 = vunpack.c.l.b16 %v353
      %v882 = vunpack.c.l.b16 %v354
      %v883 = vunpack.c.l.b16 %v355
      %v884 = vunpack.c.l.b16 %v356
      %v885 = vunpack.c.l.b16 %v357
      %v886 = vunpack.c.l.b16 %v358
      %v887 = vunpack.c.l.b16 %v359
      %v888 = vunpack.c.l.b16 %v360
      %v889 = vunpack.c.l.b16 %v361
      %v890 = vunpack.c.l.b16 %v362
      %v891 = vunpack.c.l.b16 %v363
      %v892 = vunpack.c.l.b16 %v364
      %v893 = vunpack.c.l.b16 %v365
      %v894 = vunpack.c.l.b16 %v366
      %v895 = vunpack.c.l.b16 %v367
      %v896 = vunpack.c.l.b16 %v368
      %v897 = vunpack.c.l.b16 %v369
      %v898 = vunpack.c.l.b16 %v370
      %v899 = vunpack.c.l.b16 %v371
      %v900 = vunpack.c.l.b16 %v372
      %v901 = vunpack.c.l.b16 %v373
      %v902 = vunpack.c.l.b16 %v374
      %v903 = vunpack.c.l.b16 %v375
      %v904 = vunpack.c.l.b16 %v376
      %v905 = vunpack.c.l.b16 %v377
      %v906 = vunpack.c.l.b16 %v378
      %v907 = vunpack.c.l.b16 %v379
      %v908 = vunpack.c.l.b16 %v380
      %v909 = vunpack.c.l.b16 %v381
      %v910 = vunpack.c.l.b16 %v382
      %v911 = vunpack.c.l.b16 %v383
      %v912 = vunpack.c.l.b16 %v384
      %v913 = vunpack.c.l.b16 %v385
      %v914 = vunpack.c.l.b16 %v386
      %v915 = vunpack.c.l.b16 %v387
      %v916 = vunpack.c.l.b16 %v388
      %v917 = vunpack.c.l.b16 %v389
      %v918 = vunpack.c.l.b16 %v390
      %v919 = vunpack.c.l.b16 %v391
      %v920 = vunpack.c.l.b16 %v392
      %v921 = vunpack.c.l.b16 %v393
      %v922 = vunpack.c.l.b16 %v394
      %v923 = vunpack.c.l.b16 %v395
      %v924 = vunpack.c.l.b16 %v396
      %v925 = vunpack.c.l.b16 %v397
      %v926 = vunpack.c.l.b16 %v398
      %v927 = vunpack.c.l.b16 %v399
      %v928 = vunpack.c.l.b16 %v400
      %v929 = vunpack.c.l.b16 %v401
      %v930 = vunpack.c.l.b16 %v402
      %v931 = vunpack.c.l.b16 %v403
      %v932 = vunpack.c.l.b16 %v404
      %v933 = vunpack.c.l.b16 %v405
      %v934 = vunpack.c.l.b16 %v406
      %v935 = vunpack.c.l.b16 %v407
      %v936 = vunpack.c.l.b16 %v408
      %v937 = vunpack.c.l.b16 %v409
      %v938 = vunpack.c.l.b16 %v410
      %v939 = vunpack.c.l.b16 %v411
      %v940 = vunpack.c.l.b16 %v412
      %v941 = vunpack.c.l.b16 %v413
      %v942 = vunpack.c.l.b16 %v414
      %v943 = vunpack.c.l.b16 %v415
      %v944 = vunpack.c.l.b16 %v416
      %v945 = vunpack.c.l.b16 %v417
      %v946 = vunpack.c.l.b16 %v418
      %v947 = vunpack.c.l.b16 %v419
      %v948 = vunpack.c.l.b16 %v420
      %v949 = vunpack.c.l.b16 %v421
      %v950 = vunpack.c.l.b16 %v422
      %v951 = vunpack.c.l.b16 %v423
      %v952 = vunpack.c.l.b16 %v424
      %v953 = vunpack.c.l.b16 %v425
      %v954 = vunpack.c.l.b16 %v426
      %v955 = vunpack.c.l.b16 %v427
      %v956 = vunpack.c.l.b16 %v428
      %v957 = vunpack.c.l.b16 %v429
      %v958 = vunpack.c.l.b16 %v430
      %v959 = vunpack.c.l.b16 %v431
      %v960 = vunpack.c.l.b16 %v432
      %v961 = vunpack.c.l.b16 %v433
      %v962 = vunpack.c.l.b16 %v434
      %v963 = vunpack.c.l.b16 %v435
      %v964 = vunpack.c.l.b16 %v436
      %v965 = vunpack.c.l.b16 %v437
      %v966 = vunpack.c.l.b16 %v438
      %v967 = vunpack.c.l.b16 %v439
      %v968 = vunpack.c.l.b16 %v440
      %v969 = vunpack.c.l.b16 %v441
      %v970 = vunpack.c.l.b16 %v442
      %v971 = vunpack.c.l.b16 %v443
      %v972 = vunpack.c.l.b16 %v444
      %v973 = vunpack.c.l.b16 %v445
      %v974 = vunpack.c.l.b16 %v446
      %v975 = vunpack.c.l.b16 %v447
      %v976 = vunpack.c.l.b16 %v448
      %v977 = vunpack.c.l.b16 %v449
      %v978 = vunpack.c.l.b16 %v450
      %v979 = vunpack.c.l.b16 %v451
      %v980 = vunpack.c.l.b16 %v452
      %v981 = vunpack.c.l.b16 %v453
      %v982 = vunpack.c.l.b16 %v454
      %v983 = vunpack.c.l.b16 %v455
      %v984 = vunpack.c.l.b16 %v456
      %v985 = vunpack.c.l.b16 %v457
      %v986 = vunpack.c.l.b16 %v458
      %v987 = vunpack.c.l.b16 %v459
      %v988 = vpack.c.b16 %v733, %v732
      %v989 = vpack.c.b16 %v735, %v734
      %v990 = vpack.c.b16 %v737, %v736
      %v991 = vpack.c.b16 %v739, %v738
      %v992 = vpack.c.b16 %v741, %v740
      %v993 = vpack.c.b16 %v743, %v742
      %v994 = vpack.c.b16 %v745, %v744
      %v995 = vpack.c.b16 %v747, %v746
      %v996 = vpack.c.b16 %v749, %v748
      %v997 = vpack.c.b16 %v751, %v750
      %v998 = vpack.c.b16 %v753, %v752
      %v999 = vpack.c.b16 %v755, %v754
      %v1000 = vpack.c.b16 %v757, %v756
      %v1001 = vpack.c.b16 %v759, %v758
      %v1002 = vpack.c.b16 %v761, %v760
      %v1003 = vpack.c.b16 %v763, %v762
      %v1004 = vpack.c.b16 %v765, %v764
      %v1005 = vpack.c.b16 %v767, %v766
      %v1006 = vpack.c.b16 %v769, %v768
      %v1007 = vpack.c.b16 %v771, %v770
      %v1008 = vpack.c.b16 %v773, %v772
      %v1009 = vpack.c.b16 %v775, %v774
      %v1010 = vpack.c.b16 %v777, %v776
      %v1011 = vpack.c.b16 %v779, %v778
      %v1012 = vpack.c.b16 %v781, %v780
      %v1013 = vpack.c.b16 %v783, %v782
      %v1014 = vpack.c.b16 %v785, %v784
      %v1015 = vpack.c.b16 %v787, %v786
      %v1016 = vpack.c.b16 %v789, %v788
      %v1017 = vpack.c.b16 %v791, %v790
      %v1018 = vpack.c.b16 %v793, %v792
      %v1019 = vpack.c.b16 %v795, %v794
      %v1020 = vpack.c.b16 %v797, %v796
      %v1021 = vpack.c.b16 %v799, %v798
      %v1022 = vpack.c.b16 %v801, %v800
      %v1023 = vpack.c.b16 %v803, %v802
      %v1024 = vpack.c.b16 %v805, %v804
      %v1025 = vpack.c.b16 %v807, %v806
      %v1026 = vpack.c.b16 %v809, %v808
      %v1027 = vpack.c.b16 %v811, %v810
      %v1028 = vpack.c.b16 %v813, %v812
      %v1029 = vpack.c.b16 %v815, %v814
      %v1030 = vpack.c.b16 %v817, %v816
      %v1031 = vpack.c.b16 %v819, %v818
      %v1032 = vpack.c.b16 %v821, %v820
      %v1033 = vpack.c.b16 %v823, %v822
      %v1034 = vpack.c.b16 %v825, %v824
      %v1035 = vpack.c.b16 %v827, %v826
      %v1036 = vpack.c.b16 %v829, %v828
      %v1037 = vpack.c.b16 %v831, %v830
      %v1038 = vpack.c.b16 %v833, %v832
      %v1039 = vpack.c.b16 %v835, %v834
      %v1040 = vpack.c.b16 %v837, %v836
      %v1041 = vpack.c.b16 %v839, %v838
      %v1042 = vpack.c.b16 %v841, %v840
      %v1043 = vpack.c.b16 %v843, %v842
      %v1044 = vpack.c.b16 %v845, %v844
      %v1045 = vpack.c.b16 %v847, %v846
      %v1046 = vpack.c.b16 %v849, %v848
      %v1047 = vpack.c.b16 %v851, %v850
      %v1048 = vpack.c.b16 %v853, %v852
      %v1049 = vpack.c.b16 %v855, %v854
      %v1050 = vpack.c.b16 %v857, %v856
      %v1051 = vpack.c.b16 %v859, %v858
      %v1052 = vpack.c.b16 %v861, %v860
      %v1053 = vpack.c.b16 %v863, %v862
      %v1054 = vpack.c.b16 %v865, %v864
      %v1055 = vpack.c.b16 %v867, %v866
      %v1056 = vpack.c.b16 %v869, %v868
      %v1057 = vpack.c.b16 %v871, %v870
      %v1058 = vpack.c.b16 %v873, %v872
      %v1059 = vpack.c.b16 %v875, %v874
      %v1060 = vpack.c.b16 %v877, %v876
      %v1061 = vpack.c.b16 %v879, %v878
      %v1062 = vpack.c.b16 %v881, %v880
      %v1063 = vpack.c.b16 %v883, %v882
      %v1064 = vpack.c.b16 %v885, %v884
      %v1065 = vpack.c.b16 %v887, %v886
      %v1066 = vpack.c.b16 %v889, %v888
      %v1067 = vpack.c.b16 %v891, %v890
      %v1068 = vpack.c.b16 %v893, %v892
      %v1069 = vpack.c.b16 %v895, %v894
      %v1070 = vpack.c.b16 %v897, %v896
      %v1071 = vpack.c.b16 %v899, %v898
      %v1072 = vpack.c.b16 %v901, %v900
      %v1073 = vpack.c.b16 %v903, %v902
      %v1074 = vpack.c.b16 %v905, %v904
      %v1075 = vpack.c.b16 %v907, %v906
      %v1076 = vpack.c.b16 %v909, %v908
      %v1077 = vpack.c.b16 %v911, %v910
      %v1078 = vpack.c.b16 %v913, %v912
      %v1079 = vpack.c.b16 %v915, %v914
      %v1080 = vpack.c.b16 %v917, %v916
      %v1081 = vpack.c.b16 %v919, %v918
      %v1082 = vpack.c.b16 %v921, %v920
      %v1083 = vpack.c.b16 %v923, %v922
      %v1084 = vpack.c.b16 %v925, %v924
      %v1085 = vpack.c.b16 %v927, %v926
      %v1086 = vpack.c.b16 %v929, %v928
      %v1087 = vpack.c.b16 %v931, %v930
      %v1088 = vpack.c.b16 %v933, %v932
      %v1089 = vpack.c.b16 %v935, %v934
      %v1090 = vpack.c.b16 %v937, %v936
      %v1091 = vpack.c.b16 %v939, %v938
      %v1092 = vpack.c.b16 %v941, %v940
      %v1093 = vpack.c.b16 %v943, %v942
      %v1094 = vpack.c.b16 %v945, %v944
      %v1095 = vpack.c.b16 %v947, %v946
      %v1096 = vpack.c.b16 %v949, %v948
      %v1097 = vpack.c.b16 %v951, %v950
      %v1098 = vpack.c.b16 %v953, %v952
      %v1099 = vpack.c.b16 %v955, %v954
      %v1100 = vpack.c.b16 %v957, %v956
      %v1101 = vpack.c.b16 %v959, %v958
      %v1102 = vpack.c.b16 %v961, %v960
      %v1103 = vpack.c.b16 %v963, %v962
      %v1104 = vpack.c.b16 %v965, %v964
      %v1105 = vpack.c.b16 %v967, %v966
      %v1106 = vpack.c.b16 %v969, %v968
      %v1107 = vpack.c.b16 %v971, %v970
      %v1108 = vpack.c.b16 %v973, %v972
      %v1109 = vpack.c.b16 %v975, %v974
      %v1110 = vpack.c.b16 %v977, %v976
      %v1111 = vpack.c.b16 %v979, %v978
      %v1112 = vpack.c.b16 %v981, %v980
      %v1113 = vpack.c.b16 %v983, %v982
      %v1114 = vpack.c.b16 %v985, %v984
      %v1115 = vpack.c.b16 %v987, %v986
      %v1260 = vunpack.c.l.b16 %v460
      %v1261 = vunpack.c.l.b16 %v461
      %v1262 = vunpack.c.l.b16 %v462
      %v1263 = vunpack.c.l.b16 %v463
      %v1264 = vunpack.c.l.b16 %v464
      %v1265 = vunpack.c.l.b16 %v465
      %v1266 = vunpack.c.l.b16 %v466
      %v1267 = vunpack.c.l.b16 %v467
      %v1268 = vunpack.c.l.b16 %v468
      %v1269 = vunpack.c.l.b16 %v469
      %v1270 = vunpack.c.l.b16 %v470
      %v1271 = vunpack.c.l.b16 %v471
      %v1272 = vunpack.c.l.b16 %v472
      %v1273 = vunpack.c.l.b16 %v473
      %v1274 = vunpack.c.l.b16 %v474
      %v1275 = vunpack.c.l.b16 %v475
      %v1276 = vpack.c.b16 %v1261, %v1260
      %v1277 = vpack.c.b16 %v1263, %v1262
      %v1278 = vpack.c.b16 %v1265, %v1264
      %v1279 = vpack.c.b16 %v1267, %v1266
      %v1280 = vpack.c.b16 %v1269, %v1268
      %v1281 = vpack.c.b16 %v1271, %v1270
      %v1282 = vpack.c.b16 %v1273, %v1272
      %v1283 = vpack.c.b16 %v1275, %v1274
      %1292 = vmatprep.subr.bf16.mxu0 0
      %1293 = vmatpush1.bf16.msra.mxu0 %v1276
      %1294 = vmatprep.subr.bf16.mxu0 0
      %1295 = vmatpush1.bf16.msra.mxu0 %v1277
      %1296 = vmatprep.subr.bf16.mxu0 0
      %1297 = vmatpush1.bf16.msra.mxu0 %v1278
      %1298 = vmatprep.subr.bf16.mxu0 0
      %1299 = vmatpush1.bf16.msra.mxu0 %v1279
      %1300 = vmatprep.subr.bf16.mxu0 0
      %1301 = vmatpush1.bf16.msra.mxu0 %v1280
      %1302 = vmatprep.subr.bf16.mxu0 0
      %1303 = vmatpush1.bf16.msra.mxu0 %v1281
      %1304 = vmatprep.subr.bf16.mxu0 0
      %1305 = vmatpush1.bf16.msra.mxu0 %v1282
      %1306 = vmatprep.subr.bf16.mxu0 0
      %1307 = vmatpush1.bf16.msra.mxu0 %v1283
      %1308 = vmatprep.subr.bf16.mxu0 0
      %1309 = vmatpush1.bf16.msra.mxu0 0
      %1310 = vmatprep.subr.bf16.mxu0 0
      %1311 = vmatpush1.bf16.msra.mxu0 0
      %1312 = vmatprep.subr.bf16.mxu0 0
      %1313 = vmatpush1.bf16.msra.mxu0 0
      %1314 = vmatprep.subr.bf16.mxu0 0
      %1315 = vmatpush1.bf16.msra.mxu0 0
      %1316 = vmatprep.subr.bf16.mxu0 0
      %1317 = vmatpush1.bf16.msra.mxu0 0
      %1318 = vmatprep.subr.bf16.mxu0 0
      %1319 = vmatpush1.bf16.msra.mxu0 0
      %1320 = vmatprep.subr.bf16.mxu0 0
      %1321 = vmatpush1.bf16.msra.mxu0 0
      %1322 = vmatprep.subr.bf16.mxu0 0
      %1323 = vmatpush1.bf16.msra.mxu0 0
      %1324 = vmatprep.mubr.bf16.mxu0 0
      %1325 = vmatmul.mubr.bf16.gmra.mrb[0].mxu0 %v988
      %v1326 = vpop.f32.mrb[0].mxu0
      %v1327 = vadd.f32 0.0, %v1326
      %v1328 = vpop.f32.mrb[0].mxu0
      %v1329 = vpop.f32.mrb[0].mxu0
      %v1330 = vadd.f32 0.0, %v1329
      %v1331 = vpop.f32.mrb[0].mxu0
      %1332 = vmatprep.mubr.bf16.mxu0 0
      %1333 = vmatmul.mubr.bf16.gmra.mrb[0].mxu0 %v989
      %v1334 = vpop.f32.mrb[0].mxu0
      %v1335 = vadd.f32 0.0, %v1334
      %v1336 = vpop.f32.mrb[0].mxu0
      %v1337 = vpop.f32.mrb[0].mxu0
      %v1338 = vadd.f32 0.0, %v1337
      %v1339 = vpop.f32.mrb[0].mxu0
      %1340 = vmatprep.mubr.bf16.mxu0 0
      %1341 = vmatmul.mubr.bf16.gmra.mrb[0].mxu0 %v990
      %v1342 = vpop.f32.mrb[0].mxu0
      %v1343 = vadd.f32 0.0, %v1342
      %v1344 = vpop.f32.mrb[0].mxu0
      %v1345 = vpop.f32.mrb[0].mxu0
      %v1346 = vadd.f32 0.0, %v1345
      %v1347 = vpop.f32.mrb[0].mxu0
      %1348 = vmatprep.mubr.bf16.mxu0 0
      %1349 = vmatmul.mubr.bf16.gmra.mrb[0].mxu0 %v991
      %v1350 = vpop.f32.mrb[0].mxu0
      %v1351 = vadd.f32 0.0, %v1350
      %v1352 = vpop.f32.mrb[0].mxu0
      %v1353 = vpop.f32.mrb[0].mxu0
      %v1354 = vadd.f32 0.0, %v1353
      %v1355 = vpop.f32.mrb[0].mxu0
      %1356 = vmatprep.mubr.bf16.mxu0 0
      %1357 = vmatmul.mubr.bf16.gmra.mrb[0].mxu0 %v992
      %v1358 = vpop.f32.mrb[0].mxu0
      %v1359 = vadd.f32 0.0, %v1358
      %v1360 = vpop.f32.mrb[0].mxu0
      %v1361 = vpop.f32.mrb[0].mxu0
      %v1362 = vadd.f32 0.0, %v1361
      %v1363 = vpop.f32.mrb[0].mxu0
      %1364 = vmatprep.mubr.bf16.mxu0 0
      %1365 = vmatmul.mubr.bf16.gmra.mrb[0].mxu0 %v993
      %v1366 = vpop.f32.mrb[0].mxu0
      %v1367 = vadd.f32 0.0, %v1366
      %v1368 = vpop.f32.mrb[0].mxu0
      %v1369 = vpop.f32.mrb[0].mxu0
      %v1370 = vadd.f32 0.0, %v1369
      %v1371 = vpop.f32.mrb[0].mxu0
      %1372 = vmatprep.mubr.bf16.mxu0 0
      %1373 = vmatmul.mubr.bf16.gmra.mrb[0].mxu0 %v994
      %v1374 = vpop.f32.mrb[0].mxu0
      %v1375 = vadd.f32 0.0, %v1374
      %v1376 = vpop.f32.mrb[0].mxu0
      %v1377 = vpop.f32.mrb[0].mxu0
      %v1378 = vadd.f32 0.0, %v1377
      %v1379 = vpop.f32.mrb[0].mxu0
      %1380 = vmatprep.mubr.bf16.mxu0 0
      %1381 = vmatmul.mubr.bf16.gmra.mrb[0].mxu0 %v995
      %v1382 = vpop.f32.mrb[0].mxu0
      %v1383 = vadd.f32 0.0, %v1382
      %v1384 = vpop.f32.mrb[0].mxu0
      %v1385 = vpop.f32.mrb[0].mxu0
      %v1386 = vadd.f32 0.0, %v1385
      %v1387 = vpop.f32.mrb[0].mxu0
      %1388 = vmatprep.mubr.bf16.mxu0 0
      %1389 = vmatmul.mubr.bf16.gmra.mrb[0].mxu0 %v996
      %v1390 = vpop.f32.mrb[0].mxu0
      %v1391 = vadd.f32 0.0, %v1390
      %v1392 = vpop.f32.mrb[0].mxu0
      %v1393 = vpop.f32.mrb[0].mxu0
      %v1394 = vadd.f32 0.0, %v1393
      %v1395 = vpop.f32.mrb[0].mxu0
      %1396 = vmatprep.mubr.bf16.mxu0 0
      %1397 = vmatmul.mubr.bf16.gmra.mrb[0].mxu0 %v997
      %v1398 = vpop.f32.mrb[0].mxu0
      %v1399 = vadd.f32 0.0, %v1398
      %v1400 = vpop.f32.mrb[0].mxu0
      %v1401 = vpop.f32.mrb[0].mxu0
      %v1402 = vadd.f32 0.0, %v1401
      %v1403 = vpop.f32.mrb[0].mxu0
      %1404 = vmatprep.mubr.bf16.mxu0 0
      %1405 = vmatmul.mubr.bf16.gmra.mrb[0].mxu0 %v998
      %v1406 = vpop.f32.mrb[0].mxu0
      %v1407 = vadd.f32 0.0, %v1406
      %v1408 = vpop.f32.mrb[0].mxu0
      %v1409 = vpop.f32.mrb[0].mxu0
      %v1410 = vadd.f32 0.0, %v1409
      %v1411 = vpop.f32.mrb[0].mxu0
      %1412 = vmatprep.mubr.bf16.mxu0 0
      %1413 = vmatmul.mubr.bf16.gmra.mrb[0].mxu0 %v999
      %v1414 = vpop.f32.mrb[0].mxu0
      %v1415 = vadd.f32 0.0, %v1414
      %v1416 = vpop.f32.mrb[0].mxu0
      %v1417 = vpop.f32.mrb[0].mxu0
      %v1418 = vadd.f32 0.0, %v1417
      %v1419 = vpop.f32.mrb[0].mxu0
      %1420 = vmatprep.mubr.bf16.mxu0 0
      %1421 = vmatmul.mubr.bf16.gmra.mrb[0].mxu0 %v1000
      %v1422 = vpop.f32.mrb[0].mxu0
      %v1423 = vadd.f32 0.0, %v1422
      %v1424 = vpop.f32.mrb[0].mxu0
      %v1425 = vpop.f32.mrb[0].mxu0
      %v1426 = vadd.f32 0.0, %v1425
      %v1427 = vpop.f32.mrb[0].mxu0
      %1428 = vmatprep.mubr.bf16.mxu0 0
      %1429 = vmatmul.mubr.bf16.gmra.mrb[0].mxu0 %v1001
      %v1430 = vpop.f32.mrb[0].mxu0
      %v1431 = vadd.f32 0.0, %v1430
      %v1432 = vpop.f32.mrb[0].mxu0
      %v1433 = vpop.f32.mrb[0].mxu0
      %v1434 = vadd.f32 0.0, %v1433
      %v1435 = vpop.f32.mrb[0].mxu0
      %1436 = vmatprep.mubr.bf16.mxu0 0
      %1437 = vmatmul.mubr.bf16.gmra.mrb[0].mxu0 %v1002
      %v1438 = vpop.f32.mrb[0].mxu0
      %v1439 = vadd.f32 0.0, %v1438
      %v1440 = vpop.f32.mrb[0].mxu0
      %v1441 = vpop.f32.mrb[0].mxu0
      %v1442 = vadd.f32 0.0, %v1441
      %v1443 = vpop.f32.mrb[0].mxu0
      %1444 = vmatprep.mubr.bf16.mxu0 0
      %1445 = vmatmul.mubr.bf16.gmra.mrb[0].mxu0 %v1003
      %v1446 = vpop.f32.mrb[0].mxu0
      %v1447 = vadd.f32 0.0, %v1446
      %v1448 = vpop.f32.mrb[0].mxu0
      %v1449 = vpop.f32.mrb[0].mxu0
      %v1450 = vadd.f32 0.0, %v1449
      %v1451 = vpop.f32.mrb[0].mxu0
      %1452 = vmatprep.mubr.bf16.mxu0 0
      %1453 = vmatmul.mubr.bf16.gmra.mrb[0].mxu0 %v1004
      %v1454 = vpop.f32.mrb[0].mxu0
      %v1455 = vadd.f32 0.0, %v1454
      %v1456 = vpop.f32.mrb[0].mxu0
      %v1457 = vpop.f32.mrb[0].mxu0
      %v1458 = vadd.f32 0.0, %v1457
      %v1459 = vpop.f32.mrb[0].mxu0
      %1460 = vmatprep.mubr.bf16.mxu0 0
      %1461 = vmatmul.mubr.bf16.gmra.mrb[0].mxu0 %v1005
      %v1462 = vpop.f32.mrb[0].mxu0
      %v1463 = vadd.f32 0.0, %v1462
      %v1464 = vpop.f32.mrb[0].mxu0
      %v1465 = vpop.f32.mrb[0].mxu0
      %v1466 = vadd.f32 0.0, %v1465
      %v1467 = vpop.f32.mrb[0].mxu0
      %1468 = vmatprep.mubr.bf16.mxu0 0
      %1469 = vmatmul.mubr.bf16.gmra.mrb[0].mxu0 %v1006
      %v1470 = vpop.f32.mrb[0].mxu0
      %v1471 = vadd.f32 0.0, %v1470
      %v1472 = vpop.f32.mrb[0].mxu0
      %v1473 = vpop.f32.mrb[0].mxu0
      %v1474 = vadd.f32 0.0, %v1473
      %v1475 = vpop.f32.mrb[0].mxu0
      %1476 = vmatprep.mubr.bf16.mxu0 0
      %1477 = vmatmul.mubr.bf16.gmra.mrb[0].mxu0 %v1007
      %v1478 = vpop.f32.mrb[0].mxu0
      %v1479 = vadd.f32 0.0, %v1478
      %v1480 = vpop.f32.mrb[0].mxu0
      %v1481 = vpop.f32.mrb[0].mxu0
      %v1482 = vadd.f32 0.0, %v1481
      %v1483 = vpop.f32.mrb[0].mxu0
      %1484 = vmatprep.mubr.bf16.mxu0 0
      %1485 = vmatmul.mubr.bf16.gmra.mrb[0].mxu0 %v1008
      %v1486 = vpop.f32.mrb[0].mxu0
      %v1487 = vadd.f32 0.0, %v1486
      %v1488 = vpop.f32.mrb[0].mxu0
      %v1489 = vpop.f32.mrb[0].mxu0
      %v1490 = vadd.f32 0.0, %v1489
      %v1491 = vpop.f32.mrb[0].mxu0
      %1492 = vmatprep.mubr.bf16.mxu0 0
      %1493 = vmatmul.mubr.bf16.gmra.mrb[0].mxu0 %v1009
      %v1494 = vpop.f32.mrb[0].mxu0
      %v1495 = vadd.f32 0.0, %v1494
      %v1496 = vpop.f32.mrb[0].mxu0
      %v1497 = vpop.f32.mrb[0].mxu0
      %v1498 = vadd.f32 0.0, %v1497
      %v1499 = vpop.f32.mrb[0].mxu0
      %1500 = vmatprep.mubr.bf16.mxu0 0
      %1501 = vmatmul.mubr.bf16.gmra.mrb[0].mxu0 %v1010
      %v1502 = vpop.f32.mrb[0].mxu0
      %v1503 = vadd.f32 0.0, %v1502
      %v1504 = vpop.f32.mrb[0].mxu0
      %v1505 = vpop.f32.mrb[0].mxu0
      %v1506 = vadd.f32 0.0, %v1505
      %v1507 = vpop.f32.mrb[0].mxu0
      %1508 = vmatprep.mubr.bf16.mxu0 0
      %1509 = vmatmul.mubr.bf16.gmra.mrb[0].mxu0 %v1011
      %v1510 = vpop.f32.mrb[0].mxu0
      %v1511 = vadd.f32 0.0, %v1510
      %v1512 = vpop.f32.mrb[0].mxu0
      %v1513 = vpop.f32.mrb[0].mxu0
      %v1514 = vadd.f32 0.0, %v1513
      %v1515 = vpop.f32.mrb[0].mxu0
      %1516 = vmatprep.mubr.bf16.mxu0 0
      %1517 = vmatmul.mubr.bf16.gmra.mrb[0].mxu0 %v1012
      %v1518 = vpop.f32.mrb[0].mxu0
      %v1519 = vadd.f32 0.0, %v1518
      %v1520 = vpop.f32.mrb[0].mxu0
      %v1521 = vpop.f32.mrb[0].mxu0
      %v1522 = vadd.f32 0.0, %v1521
      %v1523 = vpop.f32.mrb[0].mxu0
      %1524 = vmatprep.mubr.bf16.mxu0 0
      %1525 = vmatmul.mubr.bf16.gmra.mrb[0].mxu0 %v1013
      %v1526 = vpop.f32.mrb[0].mxu0
      %v1527 = vadd.f32 0.0, %v1526
      %v1528 = vpop.f32.mrb[0].mxu0
      %v1529 = vpop.f32.mrb[0].mxu0
      %v1530 = vadd.f32 0.0, %v1529
      %v1531 = vpop.f32.mrb[0].mxu0
      %1532 = vmatprep.mubr.bf16.mxu0 0
      %1533 = vmatmul.mubr.bf16.gmra.mrb[0].mxu0 %v1014
      %v1534 = vpop.f32.mrb[0].mxu0
      %v1535 = vadd.f32 0.0, %v1534
      %v1536 = vpop.f32.mrb[0].mxu0
      %v1537 = vpop.f32.mrb[0].mxu0
      %v1538 = vadd.f32 0.0, %v1537
      %v1539 = vpop.f32.mrb[0].mxu0
      %1540 = vmatprep.mubr.bf16.mxu0 0
      %1541 = vmatmul.mubr.bf16.gmra.mrb[0].mxu0 %v1015
      %v1542 = vpop.f32.mrb[0].mxu0
      %v1543 = vadd.f32 0.0, %v1542
      %v1544 = vpop.f32.mrb[0].mxu0
      %v1545 = vpop.f32.mrb[0].mxu0
      %v1546 = vadd.f32 0.0, %v1545
      %v1547 = vpop.f32.mrb[0].mxu0
      %1548 = vmatprep.mubr.bf16.mxu0 0
      %1549 = vmatmul.mubr.bf16.gmra.mrb[0].mxu0 %v1016
      %v1550 = vpop.f32.mrb[0].mxu0
      %v1551 = vadd.f32 0.0, %v1550
      %v1552 = vpop.f32.mrb[0].mxu0
      %v1553 = vpop.f32.mrb[0].mxu0
      %v1554 = vadd.f32 0.0, %v1553
      %v1555 = vpop.f32.mrb[0].mxu0
      %1556 = vmatprep.mubr.bf16.mxu0 0
      %1557 = vmatmul.mubr.bf16.gmra.mrb[0].mxu0 %v1017
      %v1558 = vpop.f32.mrb[0].mxu0
      %v1559 = vadd.f32 0.0, %v1558
      %v1560 = vpop.f32.mrb[0].mxu0
      %v1561 = vpop.f32.mrb[0].mxu0
      %v1562 = vadd.f32 0.0, %v1561
      %v1563 = vpop.f32.mrb[0].mxu0
      %1564 = vmatprep.mubr.bf16.mxu0 0
      %1565 = vmatmul.mubr.bf16.gmra.mrb[0].mxu0 %v1018
      %v1566 = vpop.f32.mrb[0].mxu0
      %v1567 = vadd.f32 0.0, %v1566
      %v1568 = vpop.f32.mrb[0].mxu0
      %v1569 = vpop.f32.mrb[0].mxu0
      %v1570 = vadd.f32 0.0, %v1569
      %v1571 = vpop.f32.mrb[0].mxu0
      %1572 = vmatprep.mubr.bf16.mxu0 0
      %1573 = vmatmul.mubr.bf16.gmra.mrb[0].mxu0 %v1019
      %v1574 = vpop.f32.mrb[0].mxu0
      %v1575 = vadd.f32 0.0, %v1574
      %v1576 = vpop.f32.mrb[0].mxu0
      %v1577 = vpop.f32.mrb[0].mxu0
      %v1578 = vadd.f32 0.0, %v1577
      %v1579 = vpop.f32.mrb[0].mxu0
      %1580 = vmatprep.mubr.bf16.mxu0 0
      %1581 = vmatmul.mubr.bf16.gmra.mrb[0].mxu0 %v1020
      %v1582 = vpop.f32.mrb[0].mxu0
      %v1583 = vadd.f32 0.0, %v1582
      %v1584 = vpop.f32.mrb[0].mxu0
      %v1585 = vpop.f32.mrb[0].mxu0
      %v1586 = vadd.f32 0.0, %v1585
      %v1587 = vpop.f32.mrb[0].mxu0
      %1588 = vmatprep.mubr.bf16.mxu0 0
      %1589 = vmatmul.mubr.bf16.gmra.mrb[0].mxu0 %v1021
      %v1590 = vpop.f32.mrb[0].mxu0
      %v1591 = vadd.f32 0.0, %v1590
      %v1592 = vpop.f32.mrb[0].mxu0
      %v1593 = vpop.f32.mrb[0].mxu0
      %v1594 = vadd.f32 0.0, %v1593
      %v1595 = vpop.f32.mrb[0].mxu0
      %1596 = vmatprep.mubr.bf16.mxu0 0
      %1597 = vmatmul.mubr.bf16.gmra.mrb[0].mxu0 %v1022
      %v1598 = vpop.f32.mrb[0].mxu0
      %v1599 = vadd.f32 0.0, %v1598
      %v1600 = vpop.f32.mrb[0].mxu0
      %v1601 = vpop.f32.mrb[0].mxu0
      %v1602 = vadd.f32 0.0, %v1601
      %v1603 = vpop.f32.mrb[0].mxu0
      %1604 = vmatprep.mubr.bf16.mxu0 0
      %1605 = vmatmul.mubr.bf16.gmra.mrb[0].mxu0 %v1023
      %v1606 = vpop.f32.mrb[0].mxu0
      %v1607 = vadd.f32 0.0, %v1606
      %v1608 = vpop.f32.mrb[0].mxu0
      %v1609 = vpop.f32.mrb[0].mxu0
      %v1610 = vadd.f32 0.0, %v1609
      %v1611 = vpop.f32.mrb[0].mxu0
      %1612 = vmatprep.mubr.bf16.mxu0 0
      %1613 = vmatmul.mubr.bf16.gmra.mrb[0].mxu0 %v1024
      %v1614 = vpop.f32.mrb[0].mxu0
      %v1615 = vadd.f32 0.0, %v1614
      %v1616 = vpop.f32.mrb[0].mxu0
      %v1617 = vpop.f32.mrb[0].mxu0
      %v1618 = vadd.f32 0.0, %v1617
      %v1619 = vpop.f32.mrb[0].mxu0
      %1620 = vmatprep.mubr.bf16.mxu0 0
      %1621 = vmatmul.mubr.bf16.gmra.mrb[0].mxu0 %v1025
      %v1622 = vpop.f32.mrb[0].mxu0
      %v1623 = vadd.f32 0.0, %v1622
      %v1624 = vpop.f32.mrb[0].mxu0
      %v1625 = vpop.f32.mrb[0].mxu0
      %v1626 = vadd.f32 0.0, %v1625
      %v1627 = vpop.f32.mrb[0].mxu0
      %1628 = vmatprep.mubr.bf16.mxu0 0
      %1629 = vmatmul.mubr.bf16.gmra.mrb[0].mxu0 %v1026
      %v1630 = vpop.f32.mrb[0].mxu0
      %v1631 = vadd.f32 0.0, %v1630
      %v1632 = vpop.f32.mrb[0].mxu0
      %v1633 = vpop.f32.mrb[0].mxu0
      %v1634 = vadd.f32 0.0, %v1633
      %v1635 = vpop.f32.mrb[0].mxu0
      %1636 = vmatprep.mubr.bf16.mxu0 0
      %1637 = vmatmul.mubr.bf16.gmra.mrb[0].mxu0 %v1027
      %v1638 = vpop.f32.mrb[0].mxu0
      %v1639 = vadd.f32 0.0, %v1638
      %v1640 = vpop.f32.mrb[0].mxu0
      %v1641 = vpop.f32.mrb[0].mxu0
      %v1642 = vadd.f32 0.0, %v1641
      %v1643 = vpop.f32.mrb[0].mxu0
      %1644 = vmatprep.mubr.bf16.mxu0 0
      %1645 = vmatmul.mubr.bf16.gmra.mrb[0].mxu0 %v1028
      %v1646 = vpop.f32.mrb[0].mxu0
      %v1647 = vadd.f32 0.0, %v1646
      %v1648 = vpop.f32.mrb[0].mxu0
      %v1649 = vpop.f32.mrb[0].mxu0
      %v1650 = vadd.f32 0.0, %v1649
      %v1651 = vpop.f32.mrb[0].mxu0
      %1652 = vmatprep.mubr.bf16.mxu0 0
      %1653 = vmatmul.mubr.bf16.gmra.mrb[0].mxu0 %v1029
      %v1654 = vpop.f32.mrb[0].mxu0
      %v1655 = vadd.f32 0.0, %v1654
      %v1656 = vpop.f32.mrb[0].mxu0
      %v1657 = vpop.f32.mrb[0].mxu0
      %v1658 = vadd.f32 0.0, %v1657
      %v1659 = vpop.f32.mrb[0].mxu0
      %1660 = vmatprep.mubr.bf16.mxu0 0
      %1661 = vmatmul.mubr.bf16.gmra.mrb[0].mxu0 %v1030
      %v1662 = vpop.f32.mrb[0].mxu0
      %v1663 = vadd.f32 0.0, %v1662
      %v1664 = vpop.f32.mrb[0].mxu0
      %v1665 = vpop.f32.mrb[0].mxu0
      %v1666 = vadd.f32 0.0, %v1665
      %v1667 = vpop.f32.mrb[0].mxu0
      %1668 = vmatprep.mubr.bf16.mxu0 0
      %1669 = vmatmul.mubr.bf16.gmra.mrb[0].mxu0 %v1031
      %v1670 = vpop.f32.mrb[0].mxu0
      %v1671 = vadd.f32 0.0, %v1670
      %v1672 = vpop.f32.mrb[0].mxu0
      %v1673 = vpop.f32.mrb[0].mxu0
      %v1674 = vadd.f32 0.0, %v1673
      %v1675 = vpop.f32.mrb[0].mxu0
      %1676 = vmatprep.mubr.bf16.mxu0 0
      %1677 = vmatmul.mubr.bf16.gmra.mrb[0].mxu0 %v1032
      %v1678 = vpop.f32.mrb[0].mxu0
      %v1679 = vadd.f32 0.0, %v1678
      %v1680 = vpop.f32.mrb[0].mxu0
      %v1681 = vpop.f32.mrb[0].mxu0
      %v1682 = vadd.f32 0.0, %v1681
      %v1683 = vpop.f32.mrb[0].mxu0
      %1684 = vmatprep.mubr.bf16.mxu0 0
      %1685 = vmatmul.mubr.bf16.gmra.mrb[0].mxu0 %v1033
      %v1686 = vpop.f32.mrb[0].mxu0
      %v1687 = vadd.f32 0.0, %v1686
      %v1688 = vpop.f32.mrb[0].mxu0
      %v1689 = vpop.f32.mrb[0].mxu0
      %v1690 = vadd.f32 0.0, %v1689
      %v1691 = vpop.f32.mrb[0].mxu0
      %1692 = vmatprep.mubr.bf16.mxu0 0
      %1693 = vmatmul.mubr.bf16.gmra.mrb[0].mxu0 %v1034
      %v1694 = vpop.f32.mrb[0].mxu0
      %v1695 = vadd.f32 0.0, %v1694
      %v1696 = vpop.f32.mrb[0].mxu0
      %v1697 = vpop.f32.mrb[0].mxu0
      %v1698 = vadd.f32 0.0, %v1697
      %v1699 = vpop.f32.mrb[0].mxu0
      %1700 = vmatprep.mubr.bf16.mxu0 0
      %1701 = vmatmul.mubr.bf16.gmra.mrb[0].mxu0 %v1035
      %v1702 = vpop.f32.mrb[0].mxu0
      %v1703 = vadd.f32 0.0, %v1702
      %v1704 = vpop.f32.mrb[0].mxu0
      %v1705 = vpop.f32.mrb[0].mxu0
      %v1706 = vadd.f32 0.0, %v1705
      %v1707 = vpop.f32.mrb[0].mxu0
      %1708 = vmatprep.mubr.bf16.mxu0 0
      %1709 = vmatmul.mubr.bf16.gmra.mrb[0].mxu0 %v1036
      %v1710 = vpop.f32.mrb[0].mxu0
      %v1711 = vadd.f32 0.0, %v1710
      %v1712 = vpop.f32.mrb[0].mxu0
      %v1713 = vpop.f32.mrb[0].mxu0
      %v1714 = vadd.f32 0.0, %v1713
      %v1715 = vpop.f32.mrb[0].mxu0
      %1716 = vmatprep.mubr.bf16.mxu0 0
      %1717 = vmatmul.mubr.bf16.gmra.mrb[0].mxu0 %v1037
      %v1718 = vpop.f32.mrb[0].mxu0
      %v1719 = vadd.f32 0.0, %v1718
      %v1720 = vpop.f32.mrb[0].mxu0
      %v1721 = vpop.f32.mrb[0].mxu0
      %v1722 = vadd.f32 0.0, %v1721
      %v1723 = vpop.f32.mrb[0].mxu0
      %1724 = vmatprep.mubr.bf16.mxu0 0
      %1725 = vmatmul.mubr.bf16.gmra.mrb[0].mxu0 %v1038
      %v1726 = vpop.f32.mrb[0].mxu0
      %v1727 = vadd.f32 0.0, %v1726
      %v1728 = vpop.f32.mrb[0].mxu0
      %v1729 = vpop.f32.mrb[0].mxu0
      %v1730 = vadd.f32 0.0, %v1729
      %v1731 = vpop.f32.mrb[0].mxu0
      %1732 = vmatprep.mubr.bf16.mxu0 0
      %1733 = vmatmul.mubr.bf16.gmra.mrb[0].mxu0 %v1039
      %v1734 = vpop.f32.mrb[0].mxu0
      %v1735 = vadd.f32 0.0, %v1734
      %v1736 = vpop.f32.mrb[0].mxu0
      %v1737 = vpop.f32.mrb[0].mxu0
      %v1738 = vadd.f32 0.0, %v1737
      %v1739 = vpop.f32.mrb[0].mxu0
      %1740 = vmatprep.mubr.bf16.mxu0 0
      %1741 = vmatmul.mubr.bf16.gmra.mrb[0].mxu0 %v1040
      %v1742 = vpop.f32.mrb[0].mxu0
      %v1743 = vadd.f32 0.0, %v1742
      %v1744 = vpop.f32.mrb[0].mxu0
      %v1745 = vpop.f32.mrb[0].mxu0
      %v1746 = vadd.f32 0.0, %v1745
      %v1747 = vpop.f32.mrb[0].mxu0
      %1748 = vmatprep.mubr.bf16.mxu0 0
      %1749 = vmatmul.mubr.bf16.gmra.mrb[0].mxu0 %v1041
      %v1750 = vpop.f32.mrb[0].mxu0
      %v1751 = vadd.f32 0.0, %v1750
      %v1752 = vpop.f32.mrb[0].mxu0
      %v1753 = vpop.f32.mrb[0].mxu0
      %v1754 = vadd.f32 0.0, %v1753
      %v1755 = vpop.f32.mrb[0].mxu0
      %1756 = vmatprep.mubr.bf16.mxu0 0
      %1757 = vmatmul.mubr.bf16.gmra.mrb[0].mxu0 %v1042
      %v1758 = vpop.f32.mrb[0].mxu0
      %v1759 = vadd.f32 0.0, %v1758
      %v1760 = vpop.f32.mrb[0].mxu0
      %v1761 = vpop.f32.mrb[0].mxu0
      %v1762 = vadd.f32 0.0, %v1761
      %v1763 = vpop.f32.mrb[0].mxu0
      %1764 = vmatprep.mubr.bf16.mxu0 0
      %1765 = vmatmul.mubr.bf16.gmra.mrb[0].mxu0 %v1043
      %v1766 = vpop.f32.mrb[0].mxu0
      %v1767 = vadd.f32 0.0, %v1766
      %v1768 = vpop.f32.mrb[0].mxu0
      %v1769 = vpop.f32.mrb[0].mxu0
      %v1770 = vadd.f32 0.0, %v1769
      %v1771 = vpop.f32.mrb[0].mxu0
      %1772 = vmatprep.mubr.bf16.mxu0 0
      %1773 = vmatmul.mubr.bf16.gmra.mrb[0].mxu0 %v1044
      %v1774 = vpop.f32.mrb[0].mxu0
      %v1775 = vadd.f32 0.0, %v1774
      %v1776 = vpop.f32.mrb[0].mxu0
      %v1777 = vpop.f32.mrb[0].mxu0
      %v1778 = vadd.f32 0.0, %v1777
      %v1779 = vpop.f32.mrb[0].mxu0
      %1780 = vmatprep.mubr.bf16.mxu0 0
      %1781 = vmatmul.mubr.bf16.gmra.mrb[0].mxu0 %v1045
      %v1782 = vpop.f32.mrb[0].mxu0
      %v1783 = vadd.f32 0.0, %v1782
      %v1784 = vpop.f32.mrb[0].mxu0
      %v1785 = vpop.f32.mrb[0].mxu0
      %v1786 = vadd.f32 0.0, %v1785
      %v1787 = vpop.f32.mrb[0].mxu0
      %1788 = vmatprep.mubr.bf16.mxu0 0
      %1789 = vmatmul.mubr.bf16.gmra.mrb[0].mxu0 %v1046
      %v1790 = vpop.f32.mrb[0].mxu0
      %v1791 = vadd.f32 0.0, %v1790
      %v1792 = vpop.f32.mrb[0].mxu0
      %v1793 = vpop.f32.mrb[0].mxu0
      %v1794 = vadd.f32 0.0, %v1793
      %v1795 = vpop.f32.mrb[0].mxu0
      %1796 = vmatprep.mubr.bf16.mxu0 0
      %1797 = vmatmul.mubr.bf16.gmra.mrb[0].mxu0 %v1047
      %v1798 = vpop.f32.mrb[0].mxu0
      %v1799 = vadd.f32 0.0, %v1798
      %v1800 = vpop.f32.mrb[0].mxu0
      %v1801 = vpop.f32.mrb[0].mxu0
      %v1802 = vadd.f32 0.0, %v1801
      %v1803 = vpop.f32.mrb[0].mxu0
      %1804 = vmatprep.mubr.bf16.mxu0 0
      %1805 = vmatmul.mubr.bf16.gmra.mrb[0].mxu0 %v1048
      %v1806 = vpop.f32.mrb[0].mxu0
      %v1807 = vadd.f32 0.0, %v1806
      %v1808 = vpop.f32.mrb[0].mxu0
      %v1809 = vpop.f32.mrb[0].mxu0
      %v1810 = vadd.f32 0.0, %v1809
      %v1811 = vpop.f32.mrb[0].mxu0
      %1812 = vmatprep.mubr.bf16.mxu0 0
      %1813 = vmatmul.mubr.bf16.gmra.mrb[0].mxu0 %v1049
      %v1814 = vpop.f32.mrb[0].mxu0
      %v1815 = vadd.f32 0.0, %v1814
      %v1816 = vpop.f32.mrb[0].mxu0
      %v1817 = vpop.f32.mrb[0].mxu0
      %v1818 = vadd.f32 0.0, %v1817
      %v1819 = vpop.f32.mrb[0].mxu0
      %1820 = vmatprep.mubr.bf16.mxu0 0
      %1821 = vmatmul.mubr.bf16.gmra.mrb[0].mxu0 %v1050
      %v1822 = vpop.f32.mrb[0].mxu0
      %v1823 = vadd.f32 0.0, %v1822
      %v1824 = vpop.f32.mrb[0].mxu0
      %v1825 = vpop.f32.mrb[0].mxu0
      %v1826 = vadd.f32 0.0, %v1825
      %v1827 = vpop.f32.mrb[0].mxu0
      %1828 = vmatprep.mubr.bf16.mxu0 0
      %1829 = vmatmul.mubr.bf16.gmra.mrb[0].mxu0 %v1051
      %v1830 = vpop.f32.mrb[0].mxu0
      %v1831 = vadd.f32 0.0, %v1830
      %v1832 = vpop.f32.mrb[0].mxu0
      %v1833 = vpop.f32.mrb[0].mxu0
      %v1834 = vadd.f32 0.0, %v1833
      %v1835 = vpop.f32.mrb[0].mxu0
      %1836 = vmatprep.mubr.bf16.mxu0 0
      %1837 = vmatmul.mubr.bf16.gmra.mrb[0].mxu0 %v1052
      %v1838 = vpop.f32.mrb[0].mxu0
      %v1839 = vadd.f32 0.0, %v1838
      %v1840 = vpop.f32.mrb[0].mxu0
      %v1841 = vpop.f32.mrb[0].mxu0
      %v1842 = vadd.f32 0.0, %v1841
      %v1843 = vpop.f32.mrb[0].mxu0
      %1844 = vmatprep.mubr.bf16.mxu0 0
      %1845 = vmatmul.mubr.bf16.gmra.mrb[0].mxu0 %v1053
      %v1846 = vpop.f32.mrb[0].mxu0
      %v1847 = vadd.f32 0.0, %v1846
      %v1848 = vpop.f32.mrb[0].mxu0
      %v1849 = vpop.f32.mrb[0].mxu0
      %v1850 = vadd.f32 0.0, %v1849
      %v1851 = vpop.f32.mrb[0].mxu0
      %1852 = vmatprep.mubr.bf16.mxu0 0
      %1853 = vmatmul.mubr.bf16.gmra.mrb[0].mxu0 %v1054
      %v1854 = vpop.f32.mrb[0].mxu0
      %v1855 = vadd.f32 0.0, %v1854
      %v1856 = vpop.f32.mrb[0].mxu0
      %v1857 = vpop.f32.mrb[0].mxu0
      %v1858 = vadd.f32 0.0, %v1857
      %v1859 = vpop.f32.mrb[0].mxu0
      %1860 = vmatprep.mubr.bf16.mxu0 0
      %1861 = vmatmul.mubr.bf16.gmra.mrb[0].mxu0 %v1055
      %v1862 = vpop.f32.mrb[0].mxu0
      %v1863 = vadd.f32 0.0, %v1862
      %v1864 = vpop.f32.mrb[0].mxu0
      %v1865 = vpop.f32.mrb[0].mxu0
      %v1866 = vadd.f32 0.0, %v1865
      %v1867 = vpop.f32.mrb[0].mxu0
      %1868 = vmatprep.mubr.bf16.mxu0 0
      %1869 = vmatmul.mubr.bf16.gmra.mrb[0].mxu0 %v1056
      %v1870 = vpop.f32.mrb[0].mxu0
      %v1871 = vadd.f32 0.0, %v1870
      %v1872 = vpop.f32.mrb[0].mxu0
      %v1873 = vpop.f32.mrb[0].mxu0
      %v1874 = vadd.f32 0.0, %v1873
      %v1875 = vpop.f32.mrb[0].mxu0
      %1876 = vmatprep.mubr.bf16.mxu0 0
      %1877 = vmatmul.mubr.bf16.gmra.mrb[0].mxu0 %v1057
      %v1878 = vpop.f32.mrb[0].mxu0
      %v1879 = vadd.f32 0.0, %v1878
      %v1880 = vpop.f32.mrb[0].mxu0
      %v1881 = vpop.f32.mrb[0].mxu0
      %v1882 = vadd.f32 0.0, %v1881
      %v1883 = vpop.f32.mrb[0].mxu0
      %1884 = vmatprep.mubr.bf16.mxu0 0
      %1885 = vmatmul.mubr.bf16.gmra.mrb[0].mxu0 %v1058
      %v1886 = vpop.f32.mrb[0].mxu0
      %v1887 = vadd.f32 0.0, %v1886
      %v1888 = vpop.f32.mrb[0].mxu0
      %v1889 = vpop.f32.mrb[0].mxu0
      %v1890 = vadd.f32 0.0, %v1889
      %v1891 = vpop.f32.mrb[0].mxu0
      %1892 = vmatprep.mubr.bf16.mxu0 0
      %1893 = vmatmul.mubr.bf16.gmra.mrb[0].mxu0 %v1059
      %v1894 = vpop.f32.mrb[0].mxu0
      %v1895 = vadd.f32 0.0, %v1894
      %v1896 = vpop.f32.mrb[0].mxu0
      %v1897 = vpop.f32.mrb[0].mxu0
      %v1898 = vadd.f32 0.0, %v1897
      %v1899 = vpop.f32.mrb[0].mxu0
      %1900 = vmatprep.mubr.bf16.mxu0 0
      %1901 = vmatmul.mubr.bf16.gmra.mrb[0].mxu0 %v1060
      %v1902 = vpop.f32.mrb[0].mxu0
      %v1903 = vadd.f32 0.0, %v1902
      %v1904 = vpop.f32.mrb[0].mxu0
      %v1905 = vpop.f32.mrb[0].mxu0
      %v1906 = vadd.f32 0.0, %v1905
      %v1907 = vpop.f32.mrb[0].mxu0
      %1908 = vmatprep.mubr.bf16.mxu0 0
      %1909 = vmatmul.mubr.bf16.gmra.mrb[0].mxu0 %v1061
      %v1910 = vpop.f32.mrb[0].mxu0
      %v1911 = vadd.f32 0.0, %v1910
      %v1912 = vpop.f32.mrb[0].mxu0
      %v1913 = vpop.f32.mrb[0].mxu0
      %v1914 = vadd.f32 0.0, %v1913
      %v1915 = vpop.f32.mrb[0].mxu0
      %1916 = vmatprep.mubr.bf16.mxu0 0
      %1917 = vmatmul.mubr.bf16.gmra.mrb[0].mxu0 %v1062
      %v1918 = vpop.f32.mrb[0].mxu0
      %v1919 = vadd.f32 0.0, %v1918
      %v1920 = vpop.f32.mrb[0].mxu0
      %v1921 = vpop.f32.mrb[0].mxu0
      %v1922 = vadd.f32 0.0, %v1921
      %v1923 = vpop.f32.mrb[0].mxu0
      %1924 = vmatprep.mubr.bf16.mxu0 0
      %1925 = vmatmul.mubr.bf16.gmra.mrb[0].mxu0 %v1063
      %v1926 = vpop.f32.mrb[0].mxu0
      %v1927 = vadd.f32 0.0, %v1926
      %v1928 = vpop.f32.mrb[0].mxu0
      %v1929 = vpop.f32.mrb[0].mxu0
      %v1930 = vadd.f32 0.0, %v1929
      %v1931 = vpop.f32.mrb[0].mxu0
      %1932 = vmatprep.mubr.bf16.mxu0 0
      %1933 = vmatmul.mubr.bf16.gmra.mrb[0].mxu0 %v1064
      %v1934 = vpop.f32.mrb[0].mxu0
      %v1935 = vadd.f32 0.0, %v1934
      %v1936 = vpop.f32.mrb[0].mxu0
      %v1937 = vpop.f32.mrb[0].mxu0
      %v1938 = vadd.f32 0.0, %v1937
      %v1939 = vpop.f32.mrb[0].mxu0
      %1940 = vmatprep.mubr.bf16.mxu0 0
      %1941 = vmatmul.mubr.bf16.gmra.mrb[0].mxu0 %v1065
      %v1942 = vpop.f32.mrb[0].mxu0
      %v1943 = vadd.f32 0.0, %v1942
      %v1944 = vpop.f32.mrb[0].mxu0
      %v1945 = vpop.f32.mrb[0].mxu0
      %v1946 = vadd.f32 0.0, %v1945
      %v1947 = vpop.f32.mrb[0].mxu0
      %1948 = vmatprep.mubr.bf16.mxu0 0
      %1949 = vmatmul.mubr.bf16.gmra.mrb[0].mxu0 %v1066
      %v1950 = vpop.f32.mrb[0].mxu0
      %v1951 = vadd.f32 0.0, %v1950
      %v1952 = vpop.f32.mrb[0].mxu0
      %v1953 = vpop.f32.mrb[0].mxu0
      %v1954 = vadd.f32 0.0, %v1953
      %v1955 = vpop.f32.mrb[0].mxu0
      %1956 = vmatprep.mubr.bf16.mxu0 0
      %1957 = vmatmul.mubr.bf16.gmra.mrb[0].mxu0 %v1067
      %v1958 = vpop.f32.mrb[0].mxu0
      %v1959 = vadd.f32 0.0, %v1958
      %v1960 = vpop.f32.mrb[0].mxu0
      %v1961 = vpop.f32.mrb[0].mxu0
      %v1962 = vadd.f32 0.0, %v1961
      %v1963 = vpop.f32.mrb[0].mxu0
      %1964 = vmatprep.mubr.bf16.mxu0 0
      %1965 = vmatmul.mubr.bf16.gmra.mrb[0].mxu0 %v1068
      %v1966 = vpop.f32.mrb[0].mxu0
      %v1967 = vadd.f32 0.0, %v1966
      %v1968 = vpop.f32.mrb[0].mxu0
      %v1969 = vpop.f32.mrb[0].mxu0
      %v1970 = vadd.f32 0.0, %v1969
      %v1971 = vpop.f32.mrb[0].mxu0
      %1972 = vmatprep.mubr.bf16.mxu0 0
      %1973 = vmatmul.mubr.bf16.gmra.mrb[0].mxu0 %v1069
      %v1974 = vpop.f32.mrb[0].mxu0
      %v1975 = vadd.f32 0.0, %v1974
      %v1976 = vpop.f32.mrb[0].mxu0
      %v1977 = vpop.f32.mrb[0].mxu0
      %v1978 = vadd.f32 0.0, %v1977
      %v1979 = vpop.f32.mrb[0].mxu0
      %1980 = vmatprep.mubr.bf16.mxu0 0
      %1981 = vmatmul.mubr.bf16.gmra.mrb[0].mxu0 %v1070
      %v1982 = vpop.f32.mrb[0].mxu0
      %v1983 = vadd.f32 0.0, %v1982
      %v1984 = vpop.f32.mrb[0].mxu0
      %v1985 = vpop.f32.mrb[0].mxu0
      %v1986 = vadd.f32 0.0, %v1985
      %v1987 = vpop.f32.mrb[0].mxu0
      %1988 = vmatprep.mubr.bf16.mxu0 0
      %1989 = vmatmul.mubr.bf16.gmra.mrb[0].mxu0 %v1071
      %v1990 = vpop.f32.mrb[0].mxu0
      %v1991 = vadd.f32 0.0, %v1990
      %v1992 = vpop.f32.mrb[0].mxu0
      %v1993 = vpop.f32.mrb[0].mxu0
      %v1994 = vadd.f32 0.0, %v1993
      %v1995 = vpop.f32.mrb[0].mxu0
      %1996 = vmatprep.mubr.bf16.mxu0 0
      %1997 = vmatmul.mubr.bf16.gmra.mrb[0].mxu0 %v1072
      %v1998 = vpop.f32.mrb[0].mxu0
      %v1999 = vadd.f32 0.0, %v1998
      %v2000 = vpop.f32.mrb[0].mxu0
      %v2001 = vpop.f32.mrb[0].mxu0
      %v2002 = vadd.f32 0.0, %v2001
      %v2003 = vpop.f32.mrb[0].mxu0
      %2004 = vmatprep.mubr.bf16.mxu0 0
      %2005 = vmatmul.mubr.bf16.gmra.mrb[0].mxu0 %v1073
      %v2006 = vpop.f32.mrb[0].mxu0
      %v2007 = vadd.f32 0.0, %v2006
      %v2008 = vpop.f32.mrb[0].mxu0
      %v2009 = vpop.f32.mrb[0].mxu0
      %v2010 = vadd.f32 0.0, %v2009
      %v2011 = vpop.f32.mrb[0].mxu0
      %2012 = vmatprep.mubr.bf16.mxu0 0
      %2013 = vmatmul.mubr.bf16.gmra.mrb[0].mxu0 %v1074
      %v2014 = vpop.f32.mrb[0].mxu0
      %v2015 = vadd.f32 0.0, %v2014
      %v2016 = vpop.f32.mrb[0].mxu0
      %v2017 = vpop.f32.mrb[0].mxu0
      %v2018 = vadd.f32 0.0, %v2017
      %v2019 = vpop.f32.mrb[0].mxu0
      %2020 = vmatprep.mubr.bf16.mxu0 0
      %2021 = vmatmul.mubr.bf16.gmra.mrb[0].mxu0 %v1075
      %v2022 = vpop.f32.mrb[0].mxu0
      %v2023 = vadd.f32 0.0, %v2022
      %v2024 = vpop.f32.mrb[0].mxu0
      %v2025 = vpop.f32.mrb[0].mxu0
      %v2026 = vadd.f32 0.0, %v2025
      %v2027 = vpop.f32.mrb[0].mxu0
      %2028 = vmatprep.mubr.bf16.mxu0 0
      %2029 = vmatmul.mubr.bf16.gmra.mrb[0].mxu0 %v1076
      %v2030 = vpop.f32.mrb[0].mxu0
      %v2031 = vadd.f32 0.0, %v2030
      %v2032 = vpop.f32.mrb[0].mxu0
      %v2033 = vpop.f32.mrb[0].mxu0
      %v2034 = vadd.f32 0.0, %v2033
      %v2035 = vpop.f32.mrb[0].mxu0
      %2036 = vmatprep.mubr.bf16.mxu0 0
      %2037 = vmatmul.mubr.bf16.gmra.mrb[0].mxu0 %v1077
      %v2038 = vpop.f32.mrb[0].mxu0
      %v2039 = vadd.f32 0.0, %v2038
      %v2040 = vpop.f32.mrb[0].mxu0
      %v2041 = vpop.f32.mrb[0].mxu0
      %v2042 = vadd.f32 0.0, %v2041
      %v2043 = vpop.f32.mrb[0].mxu0
      %2044 = vmatprep.mubr.bf16.mxu0 0
      %2045 = vmatmul.mubr.bf16.gmra.mrb[0].mxu0 %v1078
      %v2046 = vpop.f32.mrb[0].mxu0
      %v2047 = vadd.f32 0.0, %v2046
      %v2048 = vpop.f32.mrb[0].mxu0
      %v2049 = vpop.f32.mrb[0].mxu0
      %v2050 = vadd.f32 0.0, %v2049
      %v2051 = vpop.f32.mrb[0].mxu0
      %2052 = vmatprep.mubr.bf16.mxu0 0
      %2053 = vmatmul.mubr.bf16.gmra.mrb[0].mxu0 %v1079
      %v2054 = vpop.f32.mrb[0].mxu0
      %v2055 = vadd.f32 0.0, %v2054
      %v2056 = vpop.f32.mrb[0].mxu0
      %v2057 = vpop.f32.mrb[0].mxu0
      %v2058 = vadd.f32 0.0, %v2057
      %v2059 = vpop.f32.mrb[0].mxu0
      %2060 = vmatprep.mubr.bf16.mxu0 0
      %2061 = vmatmul.mubr.bf16.gmra.mrb[0].mxu0 %v1080
      %v2062 = vpop.f32.mrb[0].mxu0
      %v2063 = vadd.f32 0.0, %v2062
      %v2064 = vpop.f32.mrb[0].mxu0
      %v2065 = vpop.f32.mrb[0].mxu0
      %v2066 = vadd.f32 0.0, %v2065
      %v2067 = vpop.f32.mrb[0].mxu0
      %2068 = vmatprep.mubr.bf16.mxu0 0
      %2069 = vmatmul.mubr.bf16.gmra.mrb[0].mxu0 %v1081
      %v2070 = vpop.f32.mrb[0].mxu0
      %v2071 = vadd.f32 0.0, %v2070
      %v2072 = vpop.f32.mrb[0].mxu0
      %v2073 = vpop.f32.mrb[0].mxu0
      %v2074 = vadd.f32 0.0, %v2073
      %v2075 = vpop.f32.mrb[0].mxu0
      %2076 = vmatprep.mubr.bf16.mxu0 0
      %2077 = vmatmul.mubr.bf16.gmra.mrb[0].mxu0 %v1082
      %v2078 = vpop.f32.mrb[0].mxu0
      %v2079 = vadd.f32 0.0, %v2078
      %v2080 = vpop.f32.mrb[0].mxu0
      %v2081 = vpop.f32.mrb[0].mxu0
      %v2082 = vadd.f32 0.0, %v2081
      %v2083 = vpop.f32.mrb[0].mxu0
      %2084 = vmatprep.mubr.bf16.mxu0 0
      %2085 = vmatmul.mubr.bf16.gmra.mrb[0].mxu0 %v1083
      %v2086 = vpop.f32.mrb[0].mxu0
      %v2087 = vadd.f32 0.0, %v2086
      %v2088 = vpop.f32.mrb[0].mxu0
      %v2089 = vpop.f32.mrb[0].mxu0
      %v2090 = vadd.f32 0.0, %v2089
      %v2091 = vpop.f32.mrb[0].mxu0
      %2092 = vmatprep.mubr.bf16.mxu0 0
      %2093 = vmatmul.mubr.bf16.gmra.mrb[0].mxu0 %v1084
      %v2094 = vpop.f32.mrb[0].mxu0
      %v2095 = vadd.f32 0.0, %v2094
      %v2096 = vpop.f32.mrb[0].mxu0
      %v2097 = vpop.f32.mrb[0].mxu0
      %v2098 = vadd.f32 0.0, %v2097
      %v2099 = vpop.f32.mrb[0].mxu0
      %2100 = vmatprep.mubr.bf16.mxu0 0
      %2101 = vmatmul.mubr.bf16.gmra.mrb[0].mxu0 %v1085
      %v2102 = vpop.f32.mrb[0].mxu0
      %v2103 = vadd.f32 0.0, %v2102
      %v2104 = vpop.f32.mrb[0].mxu0
      %v2105 = vpop.f32.mrb[0].mxu0
      %v2106 = vadd.f32 0.0, %v2105
      %v2107 = vpop.f32.mrb[0].mxu0
      %2108 = vmatprep.mubr.bf16.mxu0 0
      %2109 = vmatmul.mubr.bf16.gmra.mrb[0].mxu0 %v1086
      %v2110 = vpop.f32.mrb[0].mxu0
      %v2111 = vadd.f32 0.0, %v2110
      %v2112 = vpop.f32.mrb[0].mxu0
      %v2113 = vpop.f32.mrb[0].mxu0
      %v2114 = vadd.f32 0.0, %v2113
      %v2115 = vpop.f32.mrb[0].mxu0
      %2116 = vmatprep.mubr.bf16.mxu0 0
      %2117 = vmatmul.mubr.bf16.gmra.mrb[0].mxu0 %v1087
      %v2118 = vpop.f32.mrb[0].mxu0
      %v2119 = vadd.f32 0.0, %v2118
      %v2120 = vpop.f32.mrb[0].mxu0
      %v2121 = vpop.f32.mrb[0].mxu0
      %v2122 = vadd.f32 0.0, %v2121
      %v2123 = vpop.f32.mrb[0].mxu0
      %2124 = vmatprep.mubr.bf16.mxu0 0
      %2125 = vmatmul.mubr.bf16.gmra.mrb[0].mxu0 %v1088
      %v2126 = vpop.f32.mrb[0].mxu0
      %v2127 = vadd.f32 0.0, %v2126
      %v2128 = vpop.f32.mrb[0].mxu0
      %v2129 = vpop.f32.mrb[0].mxu0
      %v2130 = vadd.f32 0.0, %v2129
      %v2131 = vpop.f32.mrb[0].mxu0
      %2132 = vmatprep.mubr.bf16.mxu0 0
      %2133 = vmatmul.mubr.bf16.gmra.mrb[0].mxu0 %v1089
      %v2134 = vpop.f32.mrb[0].mxu0
      %v2135 = vadd.f32 0.0, %v2134
      %v2136 = vpop.f32.mrb[0].mxu0
      %v2137 = vpop.f32.mrb[0].mxu0
      %v2138 = vadd.f32 0.0, %v2137
      %v2139 = vpop.f32.mrb[0].mxu0
      %2140 = vmatprep.mubr.bf16.mxu0 0
      %2141 = vmatmul.mubr.bf16.gmra.mrb[0].mxu0 %v1090
      %v2142 = vpop.f32.mrb[0].mxu0
      %v2143 = vadd.f32 0.0, %v2142
      %v2144 = vpop.f32.mrb[0].mxu0
      %v2145 = vpop.f32.mrb[0].mxu0
      %v2146 = vadd.f32 0.0, %v2145
      %v2147 = vpop.f32.mrb[0].mxu0
      %2148 = vmatprep.mubr.bf16.mxu0 0
      %2149 = vmatmul.mubr.bf16.gmra.mrb[0].mxu0 %v1091
      %v2150 = vpop.f32.mrb[0].mxu0
      %v2151 = vadd.f32 0.0, %v2150
      %v2152 = vpop.f32.mrb[0].mxu0
      %v2153 = vpop.f32.mrb[0].mxu0
      %v2154 = vadd.f32 0.0, %v2153
      %v2155 = vpop.f32.mrb[0].mxu0
      %2156 = vmatprep.mubr.bf16.mxu0 0
      %2157 = vmatmul.mubr.bf16.gmra.mrb[0].mxu0 %v1092
      %v2158 = vpop.f32.mrb[0].mxu0
      %v2159 = vadd.f32 0.0, %v2158
      %v2160 = vpop.f32.mrb[0].mxu0
      %v2161 = vpop.f32.mrb[0].mxu0
      %v2162 = vadd.f32 0.0, %v2161
      %v2163 = vpop.f32.mrb[0].mxu0
      %2164 = vmatprep.mubr.bf16.mxu0 0
      %2165 = vmatmul.mubr.bf16.gmra.mrb[0].mxu0 %v1093
      %v2166 = vpop.f32.mrb[0].mxu0
      %v2167 = vadd.f32 0.0, %v2166
      %v2168 = vpop.f32.mrb[0].mxu0
      %v2169 = vpop.f32.mrb[0].mxu0
      %v2170 = vadd.f32 0.0, %v2169
      %v2171 = vpop.f32.mrb[0].mxu0
      %2172 = vmatprep.mubr.bf16.mxu0 0
      %2173 = vmatmul.mubr.bf16.gmra.mrb[0].mxu0 %v1094
      %v2174 = vpop.f32.mrb[0].mxu0
      %v2175 = vadd.f32 0.0, %v2174
      %v2176 = vpop.f32.mrb[0].mxu0
      %v2177 = vpop.f32.mrb[0].mxu0
      %v2178 = vadd.f32 0.0, %v2177
      %v2179 = vpop.f32.mrb[0].mxu0
      %2180 = vmatprep.mubr.bf16.mxu0 0
      %2181 = vmatmul.mubr.bf16.gmra.mrb[0].mxu0 %v1095
      %v2182 = vpop.f32.mrb[0].mxu0
      %v2183 = vadd.f32 0.0, %v2182
      %v2184 = vpop.f32.mrb[0].mxu0
      %v2185 = vpop.f32.mrb[0].mxu0
      %v2186 = vadd.f32 0.0, %v2185
      %v2187 = vpop.f32.mrb[0].mxu0
      %2188 = vmatprep.mubr.bf16.mxu0 0
      %2189 = vmatmul.mubr.bf16.gmra.mrb[0].mxu0 %v1096
      %v2190 = vpop.f32.mrb[0].mxu0
      %v2191 = vadd.f32 0.0, %v2190
      %v2192 = vpop.f32.mrb[0].mxu0
      %v2193 = vpop.f32.mrb[0].mxu0
      %v2194 = vadd.f32 0.0, %v2193
      %v2195 = vpop.f32.mrb[0].mxu0
      %2196 = vmatprep.mubr.bf16.mxu0 0
      %2197 = vmatmul.mubr.bf16.gmra.mrb[0].mxu0 %v1097
      %v2198 = vpop.f32.mrb[0].mxu0
      %v2199 = vadd.f32 0.0, %v2198
      %v2200 = vpop.f32.mrb[0].mxu0
      %v2201 = vpop.f32.mrb[0].mxu0
      %v2202 = vadd.f32 0.0, %v2201
      %v2203 = vpop.f32.mrb[0].mxu0
      %2204 = vmatprep.mubr.bf16.mxu0 0
      %2205 = vmatmul.mubr.bf16.gmra.mrb[0].mxu0 %v1098
      %v2206 = vpop.f32.mrb[0].mxu0
      %v2207 = vadd.f32 0.0, %v2206
      %v2208 = vpop.f32.mrb[0].mxu0
      %v2209 = vpop.f32.mrb[0].mxu0
      %v2210 = vadd.f32 0.0, %v2209
      %v2211 = vpop.f32.mrb[0].mxu0
      %2212 = vmatprep.mubr.bf16.mxu0 0
      %2213 = vmatmul.mubr.bf16.gmra.mrb[0].mxu0 %v1099
      %v2214 = vpop.f32.mrb[0].mxu0
      %v2215 = vadd.f32 0.0, %v2214
      %v2216 = vpop.f32.mrb[0].mxu0
      %v2217 = vpop.f32.mrb[0].mxu0
      %v2218 = vadd.f32 0.0, %v2217
      %v2219 = vpop.f32.mrb[0].mxu0
      %2220 = vmatprep.mubr.bf16.mxu0 0
      %2221 = vmatmul.mubr.bf16.gmra.mrb[0].mxu0 %v1100
      %v2222 = vpop.f32.mrb[0].mxu0
      %v2223 = vadd.f32 0.0, %v2222
      %v2224 = vpop.f32.mrb[0].mxu0
      %v2225 = vpop.f32.mrb[0].mxu0
      %v2226 = vadd.f32 0.0, %v2225
      %v2227 = vpop.f32.mrb[0].mxu0
      %2228 = vmatprep.mubr.bf16.mxu0 0
      %2229 = vmatmul.mubr.bf16.gmra.mrb[0].mxu0 %v1101
      %v2230 = vpop.f32.mrb[0].mxu0
      %v2231 = vadd.f32 0.0, %v2230
      %v2232 = vpop.f32.mrb[0].mxu0
      %v2233 = vpop.f32.mrb[0].mxu0
      %v2234 = vadd.f32 0.0, %v2233
      %v2235 = vpop.f32.mrb[0].mxu0
      %2236 = vmatprep.mubr.bf16.mxu0 0
      %2237 = vmatmul.mubr.bf16.gmra.mrb[0].mxu0 %v1102
      %v2238 = vpop.f32.mrb[0].mxu0
      %v2239 = vadd.f32 0.0, %v2238
      %v2240 = vpop.f32.mrb[0].mxu0
      %v2241 = vpop.f32.mrb[0].mxu0
      %v2242 = vadd.f32 0.0, %v2241
      %v2243 = vpop.f32.mrb[0].mxu0
      %2244 = vmatprep.mubr.bf16.mxu0 0
      %2245 = vmatmul.mubr.bf16.gmra.mrb[0].mxu0 %v1103
      %v2246 = vpop.f32.mrb[0].mxu0
      %v2247 = vadd.f32 0.0, %v2246
      %v2248 = vpop.f32.mrb[0].mxu0
      %v2249 = vpop.f32.mrb[0].mxu0
      %v2250 = vadd.f32 0.0, %v2249
      %v2251 = vpop.f32.mrb[0].mxu0
      %2252 = vmatprep.mubr.bf16.mxu0 0
      %2253 = vmatmul.mubr.bf16.gmra.mrb[0].mxu0 %v1104
      %v2254 = vpop.f32.mrb[0].mxu0
      %v2255 = vadd.f32 0.0, %v2254
      %v2256 = vpop.f32.mrb[0].mxu0
      %v2257 = vpop.f32.mrb[0].mxu0
      %v2258 = vadd.f32 0.0, %v2257
      %v2259 = vpop.f32.mrb[0].mxu0
      %2260 = vmatprep.mubr.bf16.mxu0 0
      %2261 = vmatmul.mubr.bf16.gmra.mrb[0].mxu0 %v1105
      %v2262 = vpop.f32.mrb[0].mxu0
      %v2263 = vadd.f32 0.0, %v2262
      %v2264 = vpop.f32.mrb[0].mxu0
      %v2265 = vpop.f32.mrb[0].mxu0
      %v2266 = vadd.f32 0.0, %v2265
      %v2267 = vpop.f32.mrb[0].mxu0
      %2268 = vmatprep.mubr.bf16.mxu0 0
      %2269 = vmatmul.mubr.bf16.gmra.mrb[0].mxu0 %v1106
      %v2270 = vpop.f32.mrb[0].mxu0
      %v2271 = vadd.f32 0.0, %v2270
      %v2272 = vpop.f32.mrb[0].mxu0
      %v2273 = vpop.f32.mrb[0].mxu0
      %v2274 = vadd.f32 0.0, %v2273
      %v2275 = vpop.f32.mrb[0].mxu0
      %2276 = vmatprep.mubr.bf16.mxu0 0
      %2277 = vmatmul.mubr.bf16.gmra.mrb[0].mxu0 %v1107
      %v2278 = vpop.f32.mrb[0].mxu0
      %v2279 = vadd.f32 0.0, %v2278
      %v2280 = vpop.f32.mrb[0].mxu0
      %v2281 = vpop.f32.mrb[0].mxu0
      %v2282 = vadd.f32 0.0, %v2281
      %v2283 = vpop.f32.mrb[0].mxu0
      %2284 = vmatprep.mubr.bf16.mxu0 0
      %2285 = vmatmul.mubr.bf16.gmra.mrb[0].mxu0 %v1108
      %v2286 = vpop.f32.mrb[0].mxu0
      %v2287 = vadd.f32 0.0, %v2286
      %v2288 = vpop.f32.mrb[0].mxu0
      %v2289 = vpop.f32.mrb[0].mxu0
      %v2290 = vadd.f32 0.0, %v2289
      %v2291 = vpop.f32.mrb[0].mxu0
      %2292 = vmatprep.mubr.bf16.mxu0 0
      %2293 = vmatmul.mubr.bf16.gmra.mrb[0].mxu0 %v1109
      %v2294 = vpop.f32.mrb[0].mxu0
      %v2295 = vadd.f32 0.0, %v2294
      %v2296 = vpop.f32.mrb[0].mxu0
      %v2297 = vpop.f32.mrb[0].mxu0
      %v2298 = vadd.f32 0.0, %v2297
      %v2299 = vpop.f32.mrb[0].mxu0
      %2300 = vmatprep.mubr.bf16.mxu0 0
      %2301 = vmatmul.mubr.bf16.gmra.mrb[0].mxu0 %v1110
      %v2302 = vpop.f32.mrb[0].mxu0
      %v2303 = vadd.f32 0.0, %v2302
      %v2304 = vpop.f32.mrb[0].mxu0
      %v2305 = vpop.f32.mrb[0].mxu0
      %v2306 = vadd.f32 0.0, %v2305
      %v2307 = vpop.f32.mrb[0].mxu0
      %2308 = vmatprep.mubr.bf16.mxu0 0
      %2309 = vmatmul.mubr.bf16.gmra.mrb[0].mxu0 %v1111
      %v2310 = vpop.f32.mrb[0].mxu0
      %v2311 = vadd.f32 0.0, %v2310
      %v2312 = vpop.f32.mrb[0].mxu0
      %v2313 = vpop.f32.mrb[0].mxu0
      %v2314 = vadd.f32 0.0, %v2313
      %v2315 = vpop.f32.mrb[0].mxu0
      %2316 = vmatprep.mubr.bf16.mxu0 0
      %2317 = vmatmul.mubr.bf16.gmra.mrb[0].mxu0 %v1112
      %v2318 = vpop.f32.mrb[0].mxu0
      %v2319 = vadd.f32 0.0, %v2318
      %v2320 = vpop.f32.mrb[0].mxu0
      %v2321 = vpop.f32.mrb[0].mxu0
      %v2322 = vadd.f32 0.0, %v2321
      %v2323 = vpop.f32.mrb[0].mxu0
      %2324 = vmatprep.mubr.bf16.mxu0 0
      %2325 = vmatmul.mubr.bf16.gmra.mrb[0].mxu0 %v1113
      %v2326 = vpop.f32.mrb[0].mxu0
      %v2327 = vadd.f32 0.0, %v2326
      %v2328 = vpop.f32.mrb[0].mxu0
      %v2329 = vpop.f32.mrb[0].mxu0
      %v2330 = vadd.f32 0.0, %v2329
      %v2331 = vpop.f32.mrb[0].mxu0
      %2332 = vmatprep.mubr.bf16.mxu0 0
      %2333 = vmatmul.mubr.bf16.gmra.mrb[0].mxu0 %v1114
      %v2334 = vpop.f32.mrb[0].mxu0
      %v2335 = vadd.f32 0.0, %v2334
      %v2336 = vpop.f32.mrb[0].mxu0
      %v2337 = vpop.f32.mrb[0].mxu0
      %v2338 = vadd.f32 0.0, %v2337
      %v2339 = vpop.f32.mrb[0].mxu0
      %2340 = vmatprep.mubr.bf16.mxu0 0
      %2341 = vmatmul.mubr.bf16.gmra.mrb[0].mxu0 %v1115
      %v2342 = vpop.f32.mrb[0].mxu0
      %v2343 = vadd.f32 0.0, %v2342
      %v2344 = vpop.f32.mrb[0].mxu0
      %v2345 = vpop.f32.mrb[0].mxu0
      %v2346 = vadd.f32 0.0, %v2345
      %v2347 = vpop.f32.mrb[0].mxu0
      %2348 = vdwg.mxu0
      %v2349 = vtanh.pop %v1327
      %v2350 = vtanh.pop %v1330
      %v2351 = vtanh.pop %v1335
      %v2352 = vtanh.pop %v1338
      %v2353 = vtanh.pop %v1343
      %v2354 = vtanh.pop %v1346
      %v2355 = vtanh.pop %v1351
      %v2356 = vtanh.pop %v1354
      %v2357 = vtanh.pop %v1359
      %v2358 = vtanh.pop %v1362
      %v2359 = vtanh.pop %v1367
      %v2360 = vtanh.pop %v1370
      %v2361 = vtanh.pop %v1375
      %v2362 = vtanh.pop %v1378
      %v2363 = vtanh.pop %v1383
      %v2364 = vtanh.pop %v1386
      %v2365 = vtanh.pop %v1391
      %v2366 = vtanh.pop %v1394
      %v2367 = vtanh.pop %v1399
      %v2368 = vtanh.pop %v1402
      %v2369 = vtanh.pop %v1407
      %v2370 = vtanh.pop %v1410
      %v2371 = vtanh.pop %v1415
      %v2372 = vtanh.pop %v1418
      %v2373 = vtanh.pop %v1423
      %v2374 = vtanh.pop %v1426
      %v2375 = vtanh.pop %v1431
      %v2376 = vtanh.pop %v1434
      %v2377 = vtanh.pop %v1439
      %v2378 = vtanh.pop %v1442
      %v2379 = vtanh.pop %v1447
      %v2380 = vtanh.pop %v1450
      %v2381 = vtanh.pop %v1455
      %v2382 = vtanh.pop %v1458
      %v2383 = vtanh.pop %v1463
      %v2384 = vtanh.pop %v1466
      %v2385 = vtanh.pop %v1471
      %v2386 = vtanh.pop %v1474
      %v2387 = vtanh.pop %v1479
      %v2388 = vtanh.pop %v1482
      %v2389 = vtanh.pop %v1487
      %v2390 = vtanh.pop %v1490
      %v2391 = vtanh.pop %v1495
      %v2392 = vtanh.pop %v1498
      %v2393 = vtanh.pop %v1503
      %v2394 = vtanh.pop %v1506
      %v2395 = vtanh.pop %v1511
      %v2396 = vtanh.pop %v1514
      %v2397 = vtanh.pop %v1519
      %v2398 = vtanh.pop %v1522
      %v2399 = vtanh.pop %v1527
      %v2400 = vtanh.pop %v1530
      %v2401 = vtanh.pop %v1535
      %v2402 = vtanh.pop %v1538
      %v2403 = vtanh.pop %v1543
      %v2404 = vtanh.pop %v1546
      %v2405 = vtanh.pop %v1551
      %v2406 = vtanh.pop %v1554
      %v2407 = vtanh.pop %v1559
      %v2408 = vtanh.pop %v1562
      %v2409 = vtanh.pop %v1567
      %v2410 = vtanh.pop %v1570
      %v2411 = vtanh.pop %v1575
      %v2412 = vtanh.pop %v1578
      %v2413 = vtanh.pop %v1583
      %v2414 = vtanh.pop %v1586
      %v2415 = vtanh.pop %v1591
      %v2416 = vtanh.pop %v1594
      %v2417 = vtanh.pop %v1599
      %v2418 = vtanh.pop %v1602
      %v2419 = vtanh.pop %v1607
      %v2420 = vtanh.pop %v1610
      %v2421 = vtanh.pop %v1615
      %v2422 = vtanh.pop %v1618
      %v2423 = vtanh.pop %v1623
      %v2424 = vtanh.pop %v1626
      %v2425 = vtanh.pop %v1631
      %v2426 = vtanh.pop %v1634
      %v2427 = vtanh.pop %v1639
      %v2428 = vtanh.pop %v1642
      %v2429 = vtanh.pop %v1647
      %v2430 = vtanh.pop %v1650
      %v2431 = vtanh.pop %v1655
      %v2432 = vtanh.pop %v1658
      %v2433 = vtanh.pop %v1663
      %v2434 = vtanh.pop %v1666
      %v2435 = vtanh.pop %v1671
      %v2436 = vtanh.pop %v1674
      %v2437 = vtanh.pop %v1679
      %v2438 = vtanh.pop %v1682
      %v2439 = vtanh.pop %v1687
      %v2440 = vtanh.pop %v1690
      %v2441 = vtanh.pop %v1695
      %v2442 = vtanh.pop %v1698
      %v2443 = vtanh.pop %v1703
      %v2444 = vtanh.pop %v1706
      %v2445 = vtanh.pop %v1711
      %v2446 = vtanh.pop %v1714
      %v2447 = vtanh.pop %v1719
      %v2448 = vtanh.pop %v1722
      %v2449 = vtanh.pop %v1727
      %v2450 = vtanh.pop %v1730
      %v2451 = vtanh.pop %v1735
      %v2452 = vtanh.pop %v1738
      %v2453 = vtanh.pop %v1743
      %v2454 = vtanh.pop %v1746
      %v2455 = vtanh.pop %v1751
      %v2456 = vtanh.pop %v1754
      %v2457 = vtanh.pop %v1759
      %v2458 = vtanh.pop %v1762
      %v2459 = vtanh.pop %v1767
      %v2460 = vtanh.pop %v1770
      %v2461 = vtanh.pop %v1775
      %v2462 = vtanh.pop %v1778
      %v2463 = vtanh.pop %v1783
      %v2464 = vtanh.pop %v1786
      %v2465 = vtanh.pop %v1791
      %v2466 = vtanh.pop %v1794
      %v2467 = vtanh.pop %v1799
      %v2468 = vtanh.pop %v1802
      %v2469 = vtanh.pop %v1807
      %v2470 = vtanh.pop %v1810
      %v2471 = vtanh.pop %v1815
      %v2472 = vtanh.pop %v1818
      %v2473 = vtanh.pop %v1823
      %v2474 = vtanh.pop %v1826
      %v2475 = vtanh.pop %v1831
      %v2476 = vtanh.pop %v1834
      %v2477 = vtanh.pop %v1839
      %v2478 = vtanh.pop %v1842
      %v2479 = vtanh.pop %v1847
      %v2480 = vtanh.pop %v1850
      %v2481 = vtanh.pop %v1855
      %v2482 = vtanh.pop %v1858
      %v2483 = vtanh.pop %v1863
      %v2484 = vtanh.pop %v1866
      %v2485 = vtanh.pop %v1871
      %v2486 = vtanh.pop %v1874
      %v2487 = vtanh.pop %v1879
      %v2488 = vtanh.pop %v1882
      %v2489 = vtanh.pop %v1887
      %v2490 = vtanh.pop %v1890
      %v2491 = vtanh.pop %v1895
      %v2492 = vtanh.pop %v1898
      %v2493 = vtanh.pop %v1903
      %v2494 = vtanh.pop %v1906
      %v2495 = vtanh.pop %v1911
      %v2496 = vtanh.pop %v1914
      %v2497 = vtanh.pop %v1919
      %v2498 = vtanh.pop %v1922
      %v2499 = vtanh.pop %v1927
      %v2500 = vtanh.pop %v1930
      %v2501 = vtanh.pop %v1935
      %v2502 = vtanh.pop %v1938
      %v2503 = vtanh.pop %v1943
      %v2504 = vtanh.pop %v1946
      %v2505 = vtanh.pop %v1951
      %v2506 = vtanh.pop %v1954
      %v2507 = vtanh.pop %v1959
      %v2508 = vtanh.pop %v1962
      %v2509 = vtanh.pop %v1967
      %v2510 = vtanh.pop %v1970
      %v2511 = vtanh.pop %v1975
      %v2512 = vtanh.pop %v1978
      %v2513 = vtanh.pop %v1983
      %v2514 = vtanh.pop %v1986
      %v2515 = vtanh.pop %v1991
      %v2516 = vtanh.pop %v1994
      %v2517 = vtanh.pop %v1999
      %v2518 = vtanh.pop %v2002
      %v2519 = vtanh.pop %v2007
      %v2520 = vtanh.pop %v2010
      %v2521 = vtanh.pop %v2015
      %v2522 = vtanh.pop %v2018
      %v2523 = vtanh.pop %v2023
      %v2524 = vtanh.pop %v2026
      %v2525 = vtanh.pop %v2031
      %v2526 = vtanh.pop %v2034
      %v2527 = vtanh.pop %v2039
      %v2528 = vtanh.pop %v2042
      %v2529 = vtanh.pop %v2047
      %v2530 = vtanh.pop %v2050
      %v2531 = vtanh.pop %v2055
      %v2532 = vtanh.pop %v2058
      %v2533 = vtanh.pop %v2063
      %v2534 = vtanh.pop %v2066
      %v2535 = vtanh.pop %v2071
      %v2536 = vtanh.pop %v2074
      %v2537 = vtanh.pop %v2079
      %v2538 = vtanh.pop %v2082
      %v2539 = vtanh.pop %v2087
      %v2540 = vtanh.pop %v2090
      %v2541 = vtanh.pop %v2095
      %v2542 = vtanh.pop %v2098
      %v2543 = vtanh.pop %v2103
      %v2544 = vtanh.pop %v2106
      %v2545 = vtanh.pop %v2111
      %v2546 = vtanh.pop %v2114
      %v2547 = vtanh.pop %v2119
      %v2548 = vtanh.pop %v2122
      %v2549 = vtanh.pop %v2127
      %v2550 = vtanh.pop %v2130
      %v2551 = vtanh.pop %v2135
      %v2552 = vtanh.pop %v2138
      %v2553 = vtanh.pop %v2143
      %v2554 = vtanh.pop %v2146
      %v2555 = vtanh.pop %v2151
      %v2556 = vtanh.pop %v2154
      %v2557 = vtanh.pop %v2159
      %v2558 = vtanh.pop %v2162
      %v2559 = vtanh.pop %v2167
      %v2560 = vtanh.pop %v2170
      %v2561 = vtanh.pop %v2175
      %v2562 = vtanh.pop %v2178
      %v2563 = vtanh.pop %v2183
      %v2564 = vtanh.pop %v2186
      %v2565 = vtanh.pop %v2191
      %v2566 = vtanh.pop %v2194
      %v2567 = vtanh.pop %v2199
      %v2568 = vtanh.pop %v2202
      %v2569 = vtanh.pop %v2207
      %v2570 = vtanh.pop %v2210
      %v2571 = vtanh.pop %v2215
      %v2572 = vtanh.pop %v2218
      %v2573 = vtanh.pop %v2223
      %v2574 = vtanh.pop %v2226
      %v2575 = vtanh.pop %v2231
      %v2576 = vtanh.pop %v2234
      %v2577 = vtanh.pop %v2239
      %v2578 = vtanh.pop %v2242
      %v2579 = vtanh.pop %v2247
      %v2580 = vtanh.pop %v2250
      %v2581 = vtanh.pop %v2255
      %v2582 = vtanh.pop %v2258
      %v2583 = vtanh.pop %v2263
      %v2584 = vtanh.pop %v2266
      %v2585 = vtanh.pop %v2271
      %v2586 = vtanh.pop %v2274
      %v2587 = vtanh.pop %v2279
      %v2588 = vtanh.pop %v2282
      %v2589 = vtanh.pop %v2287
      %v2590 = vtanh.pop %v2290
      %v2591 = vtanh.pop %v2295
      %v2592 = vtanh.pop %v2298
      %v2593 = vtanh.pop %v2303
      %v2594 = vtanh.pop %v2306
      %v2595 = vtanh.pop %v2311
      %v2596 = vtanh.pop %v2314
      %v2597 = vtanh.pop %v2319
      %v2598 = vtanh.pop %v2322
      %v2599 = vtanh.pop %v2327
      %v2600 = vtanh.pop %v2330
      %v2601 = vtanh.pop %v2335
      %v2602 = vtanh.pop %v2338
      %v2603 = vtanh.pop %v2343
      %v2604 = vtanh.pop %v2346
      %v2605 = vpack.c.bf16 %v2350, %v2349
      %v2606 = vpack.c.bf16 %v2352, %v2351
      %v2607 = vpack.c.bf16 %v2354, %v2353
      %v2608 = vpack.c.bf16 %v2356, %v2355
      %v2609 = vpack.c.bf16 %v2358, %v2357
      %v2610 = vpack.c.bf16 %v2360, %v2359
      %v2611 = vpack.c.bf16 %v2362, %v2361
      %v2612 = vpack.c.bf16 %v2364, %v2363
      %v2613 = vpack.c.bf16 %v2366, %v2365
      %v2614 = vpack.c.bf16 %v2368, %v2367
      %v2615 = vpack.c.bf16 %v2370, %v2369
      %v2616 = vpack.c.bf16 %v2372, %v2371
      %v2617 = vpack.c.bf16 %v2374, %v2373
      %v2618 = vpack.c.bf16 %v2376, %v2375
      %v2619 = vpack.c.bf16 %v2378, %v2377
      %v2620 = vpack.c.bf16 %v2380, %v2379
      %v2621 = vpack.c.bf16 %v2382, %v2381
      %v2622 = vpack.c.bf16 %v2384, %v2383
      %v2623 = vpack.c.bf16 %v2386, %v2385
      %v2624 = vpack.c.bf16 %v2388, %v2387
      %v2625 = vpack.c.bf16 %v2390, %v2389
      %v2626 = vpack.c.bf16 %v2392, %v2391
      %v2627 = vpack.c.bf16 %v2394, %v2393
      %v2628 = vpack.c.bf16 %v2396, %v2395
      %v2629 = vpack.c.bf16 %v2398, %v2397
      %v2630 = vpack.c.bf16 %v2400, %v2399
      %v2631 = vpack.c.bf16 %v2402, %v2401
      %v2632 = vpack.c.bf16 %v2404, %v2403
      %v2633 = vpack.c.bf16 %v2406, %v2405
      %v2634 = vpack.c.bf16 %v2408, %v2407
      %v2635 = vpack.c.bf16 %v2410, %v2409
      %v2636 = vpack.c.bf16 %v2412, %v2411
      %v2637 = vpack.c.bf16 %v2414, %v2413
      %v2638 = vpack.c.bf16 %v2416, %v2415
      %v2639 = vpack.c.bf16 %v2418, %v2417
      %v2640 = vpack.c.bf16 %v2420, %v2419
      %v2641 = vpack.c.bf16 %v2422, %v2421
      %v2642 = vpack.c.bf16 %v2424, %v2423
      %v2643 = vpack.c.bf16 %v2426, %v2425
      %v2644 = vpack.c.bf16 %v2428, %v2427
      %v2645 = vpack.c.bf16 %v2430, %v2429
      %v2646 = vpack.c.bf16 %v2432, %v2431
      %v2647 = vpack.c.bf16 %v2434, %v2433
      %v2648 = vpack.c.bf16 %v2436, %v2435
      %v2649 = vpack.c.bf16 %v2438, %v2437
      %v2650 = vpack.c.bf16 %v2440, %v2439
      %v2651 = vpack.c.bf16 %v2442, %v2441
      %v2652 = vpack.c.bf16 %v2444, %v2443
      %v2653 = vpack.c.bf16 %v2446, %v2445
      %v2654 = vpack.c.bf16 %v2448, %v2447
      %v2655 = vpack.c.bf16 %v2450, %v2449
      %v2656 = vpack.c.bf16 %v2452, %v2451
      %v2657 = vpack.c.bf16 %v2454, %v2453
      %v2658 = vpack.c.bf16 %v2456, %v2455
      %v2659 = vpack.c.bf16 %v2458, %v2457
      %v2660 = vpack.c.bf16 %v2460, %v2459
      %v2661 = vpack.c.bf16 %v2462, %v2461
      %v2662 = vpack.c.bf16 %v2464, %v2463
      %v2663 = vpack.c.bf16 %v2466, %v2465
      %v2664 = vpack.c.bf16 %v2468, %v2467
      %v2665 = vpack.c.bf16 %v2470, %v2469
      %v2666 = vpack.c.bf16 %v2472, %v2471
      %v2667 = vpack.c.bf16 %v2474, %v2473
      %v2668 = vpack.c.bf16 %v2476, %v2475
      %v2669 = vpack.c.bf16 %v2478, %v2477
      %v2670 = vpack.c.bf16 %v2480, %v2479
      %v2671 = vpack.c.bf16 %v2482, %v2481
      %v2672 = vpack.c.bf16 %v2484, %v2483
      %v2673 = vpack.c.bf16 %v2486, %v2485
      %v2674 = vpack.c.bf16 %v2488, %v2487
      %v2675 = vpack.c.bf16 %v2490, %v2489
      %v2676 = vpack.c.bf16 %v2492, %v2491
      %v2677 = vpack.c.bf16 %v2494, %v2493
      %v2678 = vpack.c.bf16 %v2496, %v2495
      %v2679 = vpack.c.bf16 %v2498, %v2497
      %v2680 = vpack.c.bf16 %v2500, %v2499
      %v2681 = vpack.c.bf16 %v2502, %v2501
      %v2682 = vpack.c.bf16 %v2504, %v2503
      %v2683 = vpack.c.bf16 %v2506, %v2505
      %v2684 = vpack.c.bf16 %v2508, %v2507
      %v2685 = vpack.c.bf16 %v2510, %v2509
      %v2686 = vpack.c.bf16 %v2512, %v2511
      %v2687 = vpack.c.bf16 %v2514, %v2513
      %v2688 = vpack.c.bf16 %v2516, %v2515
      %v2689 = vpack.c.bf16 %v2518, %v2517
      %v2690 = vpack.c.bf16 %v2520, %v2519
      %v2691 = vpack.c.bf16 %v2522, %v2521
      %v2692 = vpack.c.bf16 %v2524, %v2523
      %v2693 = vpack.c.bf16 %v2526, %v2525
      %v2694 = vpack.c.bf16 %v2528, %v2527
      %v2695 = vpack.c.bf16 %v2530, %v2529
      %v2696 = vpack.c.bf16 %v2532, %v2531
      %v2697 = vpack.c.bf16 %v2534, %v2533
      %v2698 = vpack.c.bf16 %v2536, %v2535
      %v2699 = vpack.c.bf16 %v2538, %v2537
      %v2700 = vpack.c.bf16 %v2540, %v2539
      %v2701 = vpack.c.bf16 %v2542, %v2541
      %v2702 = vpack.c.bf16 %v2544, %v2543
      %v2703 = vpack.c.bf16 %v2546, %v2545
      %v2704 = vpack.c.bf16 %v2548, %v2547
      %v2705 = vpack.c.bf16 %v2550, %v2549
      %v2706 = vpack.c.bf16 %v2552, %v2551
      %v2707 = vpack.c.bf16 %v2554, %v2553
      %v2708 = vpack.c.bf16 %v2556, %v2555
      %v2709 = vpack.c.bf16 %v2558, %v2557
      %v2710 = vpack.c.bf16 %v2560, %v2559
      %v2711 = vpack.c.bf16 %v2562, %v2561
      %v2712 = vpack.c.bf16 %v2564, %v2563
      %v2713 = vpack.c.bf16 %v2566, %v2565
      %v2714 = vpack.c.bf16 %v2568, %v2567
      %v2715 = vpack.c.bf16 %v2570, %v2569
      %v2716 = vpack.c.bf16 %v2572, %v2571
      %v2717 = vpack.c.bf16 %v2574, %v2573
      %v2718 = vpack.c.bf16 %v2576, %v2575
      %v2719 = vpack.c.bf16 %v2578, %v2577
      %v2720 = vpack.c.bf16 %v2580, %v2579
      %v2721 = vpack.c.bf16 %v2582, %v2581
      %v2722 = vpack.c.bf16 %v2584, %v2583
      %v2723 = vpack.c.bf16 %v2586, %v2585
      %v2724 = vpack.c.bf16 %v2588, %v2587
      %v2725 = vpack.c.bf16 %v2590, %v2589
      %v2726 = vpack.c.bf16 %v2592, %v2591
      %v2727 = vpack.c.bf16 %v2594, %v2593
      %v2728 = vpack.c.bf16 %v2596, %v2595
      %v2729 = vpack.c.bf16 %v2598, %v2597
      %v2730 = vpack.c.bf16 %v2600, %v2599
      %v2731 = vpack.c.bf16 %v2602, %v2601
      %v2732 = vpack.c.bf16 %v2604, %v2603
      %v2861 = vunpack.c.l.b16 %v2605
      %v2862 = vunpack.c.h.b16 %v2605
      %v2863 = vunpack.c.l.b16 %v2606
      %v2864 = vunpack.c.h.b16 %v2606
      %v2865 = vunpack.c.l.b16 %v2607
      %v2866 = vunpack.c.h.b16 %v2607
      %v2867 = vunpack.c.l.b16 %v2608
      %v2868 = vunpack.c.h.b16 %v2608
      %v2869 = vunpack.c.l.b16 %v2609
      %v2870 = vunpack.c.h.b16 %v2609
      %v2871 = vunpack.c.l.b16 %v2610
      %v2872 = vunpack.c.h.b16 %v2610
      %v2873 = vunpack.c.l.b16 %v2611
      %v2874 = vunpack.c.h.b16 %v2611
      %v2875 = vunpack.c.l.b16 %v2612
      %v2876 = vunpack.c.h.b16 %v2612
      %v2877 = vunpack.c.l.b16 %v2613
      %v2878 = vunpack.c.h.b16 %v2613
      %v2879 = vunpack.c.l.b16 %v2614
      %v2880 = vunpack.c.h.b16 %v2614
      %v2881 = vunpack.c.l.b16 %v2615
      %v2882 = vunpack.c.h.b16 %v2615
      %v2883 = vunpack.c.l.b16 %v2616
      %v2884 = vunpack.c.h.b16 %v2616
      %v2885 = vunpack.c.l.b16 %v2617
      %v2886 = vunpack.c.h.b16 %v2617
      %v2887 = vunpack.c.l.b16 %v2618
      %v2888 = vunpack.c.h.b16 %v2618
      %v2889 = vunpack.c.l.b16 %v2619
      %v2890 = vunpack.c.h.b16 %v2619
      %v2891 = vunpack.c.l.b16 %v2620
      %v2892 = vunpack.c.h.b16 %v2620
      %v2893 = vunpack.c.l.b16 %v2621
      %v2894 = vunpack.c.h.b16 %v2621
      %v2895 = vunpack.c.l.b16 %v2622
      %v2896 = vunpack.c.h.b16 %v2622
      %v2897 = vunpack.c.l.b16 %v2623
      %v2898 = vunpack.c.h.b16 %v2623
      %v2899 = vunpack.c.l.b16 %v2624
      %v2900 = vunpack.c.h.b16 %v2624
      %v2901 = vunpack.c.l.b16 %v2625
      %v2902 = vunpack.c.h.b16 %v2625
      %v2903 = vunpack.c.l.b16 %v2626
      %v2904 = vunpack.c.h.b16 %v2626
      %v2905 = vunpack.c.l.b16 %v2627
      %v2906 = vunpack.c.h.b16 %v2627
      %v2907 = vunpack.c.l.b16 %v2628
      %v2908 = vunpack.c.h.b16 %v2628
      %v2909 = vunpack.c.l.b16 %v2629
      %v2910 = vunpack.c.h.b16 %v2629
      %v2911 = vunpack.c.l.b16 %v2630
      %v2912 = vunpack.c.h.b16 %v2630
      %v2913 = vunpack.c.l.b16 %v2631
      %v2914 = vunpack.c.h.b16 %v2631
      %v2915 = vunpack.c.l.b16 %v2632
      %v2916 = vunpack.c.h.b16 %v2632
      %v2917 = vunpack.c.l.b16 %v2633
      %v2918 = vunpack.c.h.b16 %v2633
      %v2919 = vunpack.c.l.b16 %v2634
      %v2920 = vunpack.c.h.b16 %v2634
      %v2921 = vunpack.c.l.b16 %v2635
      %v2922 = vunpack.c.h.b16 %v2635
      %v2923 = vunpack.c.l.b16 %v2636
      %v2924 = vunpack.c.h.b16 %v2636
      %v2925 = vunpack.c.l.b16 %v2637
      %v2926 = vunpack.c.h.b16 %v2637
      %v2927 = vunpack.c.l.b16 %v2638
      %v2928 = vunpack.c.h.b16 %v2638
      %v2929 = vunpack.c.l.b16 %v2639
      %v2930 = vunpack.c.h.b16 %v2639
      %v2931 = vunpack.c.l.b16 %v2640
      %v2932 = vunpack.c.h.b16 %v2640
      %v2933 = vunpack.c.l.b16 %v2641
      %v2934 = vunpack.c.h.b16 %v2641
      %v2935 = vunpack.c.l.b16 %v2642
      %v2936 = vunpack.c.h.b16 %v2642
      %v2937 = vunpack.c.l.b16 %v2643
      %v2938 = vunpack.c.h.b16 %v2643
      %v2939 = vunpack.c.l.b16 %v2644
      %v2940 = vunpack.c.h.b16 %v2644
      %v2941 = vunpack.c.l.b16 %v2645
      %v2942 = vunpack.c.h.b16 %v2645
      %v2943 = vunpack.c.l.b16 %v2646
      %v2944 = vunpack.c.h.b16 %v2646
      %v2945 = vunpack.c.l.b16 %v2647
      %v2946 = vunpack.c.h.b16 %v2647
      %v2947 = vunpack.c.l.b16 %v2648
      %v2948 = vunpack.c.h.b16 %v2648
      %v2949 = vunpack.c.l.b16 %v2649
      %v2950 = vunpack.c.h.b16 %v2649
      %v2951 = vunpack.c.l.b16 %v2650
      %v2952 = vunpack.c.h.b16 %v2650
      %v2953 = vunpack.c.l.b16 %v2651
      %v2954 = vunpack.c.h.b16 %v2651
      %v2955 = vunpack.c.l.b16 %v2652
      %v2956 = vunpack.c.h.b16 %v2652
      %v2957 = vunpack.c.l.b16 %v2653
      %v2958 = vunpack.c.h.b16 %v2653
      %v2959 = vunpack.c.l.b16 %v2654
      %v2960 = vunpack.c.h.b16 %v2654
      %v2961 = vunpack.c.l.b16 %v2655
      %v2962 = vunpack.c.h.b16 %v2655
      %v2963 = vunpack.c.l.b16 %v2656
      %v2964 = vunpack.c.h.b16 %v2656
      %v2965 = vunpack.c.l.b16 %v2657
      %v2966 = vunpack.c.h.b16 %v2657
      %v2967 = vunpack.c.l.b16 %v2658
      %v2968 = vunpack.c.h.b16 %v2658
      %v2969 = vunpack.c.l.b16 %v2659
      %v2970 = vunpack.c.h.b16 %v2659
      %v2971 = vunpack.c.l.b16 %v2660
      %v2972 = vunpack.c.h.b16 %v2660
      %v2973 = vunpack.c.l.b16 %v2661
      %v2974 = vunpack.c.h.b16 %v2661
      %v2975 = vunpack.c.l.b16 %v2662
      %v2976 = vunpack.c.h.b16 %v2662
      %v2977 = vunpack.c.l.b16 %v2663
      %v2978 = vunpack.c.h.b16 %v2663
      %v2979 = vunpack.c.l.b16 %v2664
      %v2980 = vunpack.c.h.b16 %v2664
      %v2981 = vunpack.c.l.b16 %v2665
      %v2982 = vunpack.c.h.b16 %v2665
      %v2983 = vunpack.c.l.b16 %v2666
      %v2984 = vunpack.c.h.b16 %v2666
      %v2985 = vunpack.c.l.b16 %v2667
      %v2986 = vunpack.c.h.b16 %v2667
      %v2987 = vunpack.c.l.b16 %v2668
      %v2988 = vunpack.c.h.b16 %v2668
      %v2989 = vunpack.c.l.b16 %v2669
      %v2990 = vunpack.c.h.b16 %v2669
      %v2991 = vunpack.c.l.b16 %v2670
      %v2992 = vunpack.c.h.b16 %v2670
      %v2993 = vunpack.c.l.b16 %v2671
      %v2994 = vunpack.c.h.b16 %v2671
      %v2995 = vunpack.c.l.b16 %v2672
      %v2996 = vunpack.c.h.b16 %v2672
      %v2997 = vunpack.c.l.b16 %v2673
      %v2998 = vunpack.c.h.b16 %v2673
      %v2999 = vunpack.c.l.b16 %v2674
      %v3000 = vunpack.c.h.b16 %v2674
      %v3001 = vunpack.c.l.b16 %v2675
      %v3002 = vunpack.c.h.b16 %v2675
      %v3003 = vunpack.c.l.b16 %v2676
      %v3004 = vunpack.c.h.b16 %v2676
      %v3005 = vunpack.c.l.b16 %v2677
      %v3006 = vunpack.c.h.b16 %v2677
      %v3007 = vunpack.c.l.b16 %v2678
      %v3008 = vunpack.c.h.b16 %v2678
      %v3009 = vunpack.c.l.b16 %v2679
      %v3010 = vunpack.c.h.b16 %v2679
      %v3011 = vunpack.c.l.b16 %v2680
      %v3012 = vunpack.c.h.b16 %v2680
      %v3013 = vunpack.c.l.b16 %v2681
      %v3014 = vunpack.c.h.b16 %v2681
      %v3015 = vunpack.c.l.b16 %v2682
      %v3016 = vunpack.c.h.b16 %v2682
      %v3017 = vunpack.c.l.b16 %v2683
      %v3018 = vunpack.c.h.b16 %v2683
      %v3019 = vunpack.c.l.b16 %v2684
      %v3020 = vunpack.c.h.b16 %v2684
      %v3021 = vunpack.c.l.b16 %v2685
      %v3022 = vunpack.c.h.b16 %v2685
      %v3023 = vunpack.c.l.b16 %v2686
      %v3024 = vunpack.c.h.b16 %v2686
      %v3025 = vunpack.c.l.b16 %v2687
      %v3026 = vunpack.c.h.b16 %v2687
      %v3027 = vunpack.c.l.b16 %v2688
      %v3028 = vunpack.c.h.b16 %v2688
      %v3029 = vunpack.c.l.b16 %v2689
      %v3030 = vunpack.c.h.b16 %v2689
      %v3031 = vunpack.c.l.b16 %v2690
      %v3032 = vunpack.c.h.b16 %v2690
      %v3033 = vunpack.c.l.b16 %v2691
      %v3034 = vunpack.c.h.b16 %v2691
      %v3035 = vunpack.c.l.b16 %v2692
      %v3036 = vunpack.c.h.b16 %v2692
      %v3037 = vunpack.c.l.b16 %v2693
      %v3038 = vunpack.c.h.b16 %v2693
      %v3039 = vunpack.c.l.b16 %v2694
      %v3040 = vunpack.c.h.b16 %v2694
      %v3041 = vunpack.c.l.b16 %v2695
      %v3042 = vunpack.c.h.b16 %v2695
      %v3043 = vunpack.c.l.b16 %v2696
      %v3044 = vunpack.c.h.b16 %v2696
      %v3045 = vunpack.c.l.b16 %v2697
      %v3046 = vunpack.c.h.b16 %v2697
      %v3047 = vunpack.c.l.b16 %v2698
      %v3048 = vunpack.c.h.b16 %v2698
      %v3049 = vunpack.c.l.b16 %v2699
      %v3050 = vunpack.c.h.b16 %v2699
      %v3051 = vunpack.c.l.b16 %v2700
      %v3052 = vunpack.c.h.b16 %v2700
      %v3053 = vunpack.c.l.b16 %v2701
      %v3054 = vunpack.c.h.b16 %v2701
      %v3055 = vunpack.c.l.b16 %v2702
      %v3056 = vunpack.c.h.b16 %v2702
      %v3057 = vunpack.c.l.b16 %v2703
      %v3058 = vunpack.c.h.b16 %v2703
      %v3059 = vunpack.c.l.b16 %v2704
      %v3060 = vunpack.c.h.b16 %v2704
      %v3061 = vunpack.c.l.b16 %v2705
      %v3062 = vunpack.c.h.b16 %v2705
      %v3063 = vunpack.c.l.b16 %v2706
      %v3064 = vunpack.c.h.b16 %v2706
      %v3065 = vunpack.c.l.b16 %v2707
      %v3066 = vunpack.c.h.b16 %v2707
      %v3067 = vunpack.c.l.b16 %v2708
      %v3068 = vunpack.c.h.b16 %v2708
      %v3069 = vunpack.c.l.b16 %v2709
      %v3070 = vunpack.c.h.b16 %v2709
      %v3071 = vunpack.c.l.b16 %v2710
      %v3072 = vunpack.c.h.b16 %v2710
      %v3073 = vunpack.c.l.b16 %v2711
      %v3074 = vunpack.c.h.b16 %v2711
      %v3075 = vunpack.c.l.b16 %v2712
      %v3076 = vunpack.c.h.b16 %v2712
      %v3077 = vunpack.c.l.b16 %v2713
      %v3078 = vunpack.c.h.b16 %v2713
      %v3079 = vunpack.c.l.b16 %v2714
      %v3080 = vunpack.c.h.b16 %v2714
      %v3081 = vunpack.c.l.b16 %v2715
      %v3082 = vunpack.c.h.b16 %v2715
      %v3083 = vunpack.c.l.b16 %v2716
      %v3084 = vunpack.c.h.b16 %v2716
      %v3085 = vunpack.c.l.b16 %v2717
      %v3086 = vunpack.c.h.b16 %v2717
      %v3087 = vunpack.c.l.b16 %v2718
      %v3088 = vunpack.c.h.b16 %v2718
      %v3089 = vunpack.c.l.b16 %v2719
      %v3090 = vunpack.c.h.b16 %v2719
      %v3091 = vunpack.c.l.b16 %v2720
      %v3092 = vunpack.c.h.b16 %v2720
      %v3093 = vunpack.c.l.b16 %v2721
      %v3094 = vunpack.c.h.b16 %v2721
      %v3095 = vunpack.c.l.b16 %v2722
      %v3096 = vunpack.c.h.b16 %v2722
      %v3097 = vunpack.c.l.b16 %v2723
      %v3098 = vunpack.c.h.b16 %v2723
      %v3099 = vunpack.c.l.b16 %v2724
      %v3100 = vunpack.c.h.b16 %v2724
      %v3101 = vunpack.c.l.b16 %v2725
      %v3102 = vunpack.c.h.b16 %v2725
      %v3103 = vunpack.c.l.b16 %v2726
      %v3104 = vunpack.c.h.b16 %v2726
      %v3105 = vunpack.c.l.b16 %v2727
      %v3106 = vunpack.c.h.b16 %v2727
      %v3107 = vunpack.c.l.b16 %v2728
      %v3108 = vunpack.c.h.b16 %v2728
      %v3109 = vunpack.c.l.b16 %v2729
      %v3110 = vunpack.c.h.b16 %v2729
      %v3111 = vunpack.c.l.b16 %v2730
      %v3112 = vunpack.c.h.b16 %v2730
      %v3113 = vunpack.c.l.b16 %v2731
      %v3114 = vunpack.c.h.b16 %v2731
      %v3115 = vunpack.c.l.b16 %v2732
      %v3116 = vunpack.c.h.b16 %v2732
      %v3117 = vpack.c.b16 %v2861, %v2861
      %v3118 = vpack.c.b16 %v2862, %v2862
      %v3119 = vpack.c.b16 %v2863, %v2863
      %v3120 = vpack.c.b16 %v2864, %v2864
      %v3121 = vpack.c.b16 %v2865, %v2865
      %v3122 = vpack.c.b16 %v2866, %v2866
      %v3123 = vpack.c.b16 %v2867, %v2867
      %v3124 = vpack.c.b16 %v2868, %v2868
      %v3125 = vpack.c.b16 %v2869, %v2869
      %v3126 = vpack.c.b16 %v2870, %v2870
      %v3127 = vpack.c.b16 %v2871, %v2871
      %v3128 = vpack.c.b16 %v2872, %v2872
      %v3129 = vpack.c.b16 %v2873, %v2873
      %v3130 = vpack.c.b16 %v2874, %v2874
      %v3131 = vpack.c.b16 %v2875, %v2875
      %v3132 = vpack.c.b16 %v2876, %v2876
      %v3133 = vpack.c.b16 %v2877, %v2877
      %v3134 = vpack.c.b16 %v2878, %v2878
      %v3135 = vpack.c.b16 %v2879, %v2879
      %v3136 = vpack.c.b16 %v2880, %v2880
      %v3137 = vpack.c.b16 %v2881, %v2881
      %v3138 = vpack.c.b16 %v2882, %v2882
      %v3139 = vpack.c.b16 %v2883, %v2883
      %v3140 = vpack.c.b16 %v2884, %v2884
      %v3141 = vpack.c.b16 %v2885, %v2885
      %v3142 = vpack.c.b16 %v2886, %v2886
      %v3143 = vpack.c.b16 %v2887, %v2887
      %v3144 = vpack.c.b16 %v2888, %v2888
      %v3145 = vpack.c.b16 %v2889, %v2889
      %v3146 = vpack.c.b16 %v2890, %v2890
      %v3147 = vpack.c.b16 %v2891, %v2891
      %v3148 = vpack.c.b16 %v2892, %v2892
      %v3149 = vpack.c.b16 %v2893, %v2893
      %v3150 = vpack.c.b16 %v2894, %v2894
      %v3151 = vpack.c.b16 %v2895, %v2895
      %v3152 = vpack.c.b16 %v2896, %v2896
      %v3153 = vpack.c.b16 %v2897, %v2897
      %v3154 = vpack.c.b16 %v2898, %v2898
      %v3155 = vpack.c.b16 %v2899, %v2899
      %v3156 = vpack.c.b16 %v2900, %v2900
      %v3157 = vpack.c.b16 %v2901, %v2901
      %v3158 = vpack.c.b16 %v2902, %v2902
      %v3159 = vpack.c.b16 %v2903, %v2903
      %v3160 = vpack.c.b16 %v2904, %v2904
      %v3161 = vpack.c.b16 %v2905, %v2905
      %v3162 = vpack.c.b16 %v2906, %v2906
      %v3163 = vpack.c.b16 %v2907, %v2907
      %v3164 = vpack.c.b16 %v2908, %v2908
      %v3165 = vpack.c.b16 %v2909, %v2909
      %v3166 = vpack.c.b16 %v2910, %v2910
      %v3167 = vpack.c.b16 %v2911, %v2911
      %v3168 = vpack.c.b16 %v2912, %v2912
      %v3169 = vpack.c.b16 %v2913, %v2913
      %v3170 = vpack.c.b16 %v2914, %v2914
      %v3171 = vpack.c.b16 %v2915, %v2915
      %v3172 = vpack.c.b16 %v2916, %v2916
      %v3173 = vpack.c.b16 %v2917, %v2917
      %v3174 = vpack.c.b16 %v2918, %v2918
      %v3175 = vpack.c.b16 %v2919, %v2919
      %v3176 = vpack.c.b16 %v2920, %v2920
      %v3177 = vpack.c.b16 %v2921, %v2921
      %v3178 = vpack.c.b16 %v2922, %v2922
      %v3179 = vpack.c.b16 %v2923, %v2923
      %v3180 = vpack.c.b16 %v2924, %v2924
      %v3181 = vpack.c.b16 %v2925, %v2925
      %v3182 = vpack.c.b16 %v2926, %v2926
      %v3183 = vpack.c.b16 %v2927, %v2927
      %v3184 = vpack.c.b16 %v2928, %v2928
      %v3185 = vpack.c.b16 %v2929, %v2929
      %v3186 = vpack.c.b16 %v2930, %v2930
      %v3187 = vpack.c.b16 %v2931, %v2931
      %v3188 = vpack.c.b16 %v2932, %v2932
      %v3189 = vpack.c.b16 %v2933, %v2933
      %v3190 = vpack.c.b16 %v2934, %v2934
      %v3191 = vpack.c.b16 %v2935, %v2935
      %v3192 = vpack.c.b16 %v2936, %v2936
      %v3193 = vpack.c.b16 %v2937, %v2937
      %v3194 = vpack.c.b16 %v2938, %v2938
      %v3195 = vpack.c.b16 %v2939, %v2939
      %v3196 = vpack.c.b16 %v2940, %v2940
      %v3197 = vpack.c.b16 %v2941, %v2941
      %v3198 = vpack.c.b16 %v2942, %v2942
      %v3199 = vpack.c.b16 %v2943, %v2943
      %v3200 = vpack.c.b16 %v2944, %v2944
      %v3201 = vpack.c.b16 %v2945, %v2945
      %v3202 = vpack.c.b16 %v2946, %v2946
      %v3203 = vpack.c.b16 %v2947, %v2947
      %v3204 = vpack.c.b16 %v2948, %v2948
      %v3205 = vpack.c.b16 %v2949, %v2949
      %v3206 = vpack.c.b16 %v2950, %v2950
      %v3207 = vpack.c.b16 %v2951, %v2951
      %v3208 = vpack.c.b16 %v2952, %v2952
      %v3209 = vpack.c.b16 %v2953, %v2953
      %v3210 = vpack.c.b16 %v2954, %v2954
      %v3211 = vpack.c.b16 %v2955, %v2955
      %v3212 = vpack.c.b16 %v2956, %v2956
      %v3213 = vpack.c.b16 %v2957, %v2957
      %v3214 = vpack.c.b16 %v2958, %v2958
      %v3215 = vpack.c.b16 %v2959, %v2959
      %v3216 = vpack.c.b16 %v2960, %v2960
      %v3217 = vpack.c.b16 %v2961, %v2961
      %v3218 = vpack.c.b16 %v2962, %v2962
      %v3219 = vpack.c.b16 %v2963, %v2963
      %v3220 = vpack.c.b16 %v2964, %v2964
      %v3221 = vpack.c.b16 %v2965, %v2965
      %v3222 = vpack.c.b16 %v2966, %v2966
      %v3223 = vpack.c.b16 %v2967, %v2967
      %v3224 = vpack.c.b16 %v2968, %v2968
      %v3225 = vpack.c.b16 %v2969, %v2969
      %v3226 = vpack.c.b16 %v2970, %v2970
      %v3227 = vpack.c.b16 %v2971, %v2971
      %v3228 = vpack.c.b16 %v2972, %v2972
      %v3229 = vpack.c.b16 %v2973, %v2973
      %v3230 = vpack.c.b16 %v2974, %v2974
      %v3231 = vpack.c.b16 %v2975, %v2975
      %v3232 = vpack.c.b16 %v2976, %v2976
      %v3233 = vpack.c.b16 %v2977, %v2977
      %v3234 = vpack.c.b16 %v2978, %v2978
      %v3235 = vpack.c.b16 %v2979, %v2979
      %v3236 = vpack.c.b16 %v2980, %v2980
      %v3237 = vpack.c.b16 %v2981, %v2981
      %v3238 = vpack.c.b16 %v2982, %v2982
      %v3239 = vpack.c.b16 %v2983, %v2983
      %v3240 = vpack.c.b16 %v2984, %v2984
      %v3241 = vpack.c.b16 %v2985, %v2985
      %v3242 = vpack.c.b16 %v2986, %v2986
      %v3243 = vpack.c.b16 %v2987, %v2987
      %v3244 = vpack.c.b16 %v2988, %v2988
      %v3245 = vpack.c.b16 %v2989, %v2989
      %v3246 = vpack.c.b16 %v2990, %v2990
      %v3247 = vpack.c.b16 %v2991, %v2991
      %v3248 = vpack.c.b16 %v2992, %v2992
      %v3249 = vpack.c.b16 %v2993, %v2993
      %v3250 = vpack.c.b16 %v2994, %v2994
      %v3251 = vpack.c.b16 %v2995, %v2995
      %v3252 = vpack.c.b16 %v2996, %v2996
      %v3253 = vpack.c.b16 %v2997, %v2997
      %v3254 = vpack.c.b16 %v2998, %v2998
      %v3255 = vpack.c.b16 %v2999, %v2999
      %v3256 = vpack.c.b16 %v3000, %v3000
      %v3257 = vpack.c.b16 %v3001, %v3001
      %v3258 = vpack.c.b16 %v3002, %v3002
      %v3259 = vpack.c.b16 %v3003, %v3003
      %v3260 = vpack.c.b16 %v3004, %v3004
      %v3261 = vpack.c.b16 %v3005, %v3005
      %v3262 = vpack.c.b16 %v3006, %v3006
      %v3263 = vpack.c.b16 %v3007, %v3007
      %v3264 = vpack.c.b16 %v3008, %v3008
      %v3265 = vpack.c.b16 %v3009, %v3009
      %v3266 = vpack.c.b16 %v3010, %v3010
      %v3267 = vpack.c.b16 %v3011, %v3011
      %v3268 = vpack.c.b16 %v3012, %v3012
      %v3269 = vpack.c.b16 %v3013, %v3013
      %v3270 = vpack.c.b16 %v3014, %v3014
      %v3271 = vpack.c.b16 %v3015, %v3015
      %v3272 = vpack.c.b16 %v3016, %v3016
      %v3273 = vpack.c.b16 %v3017, %v3017
      %v3274 = vpack.c.b16 %v3018, %v3018
      %v3275 = vpack.c.b16 %v3019, %v3019
      %v3276 = vpack.c.b16 %v3020, %v3020
      %v3277 = vpack.c.b16 %v3021, %v3021
      %v3278 = vpack.c.b16 %v3022, %v3022
      %v3279 = vpack.c.b16 %v3023, %v3023
      %v3280 = vpack.c.b16 %v3024, %v3024
      %v3281 = vpack.c.b16 %v3025, %v3025
      %v3282 = vpack.c.b16 %v3026, %v3026
      %v3283 = vpack.c.b16 %v3027, %v3027
      %v3284 = vpack.c.b16 %v3028, %v3028
      %v3285 = vpack.c.b16 %v3029, %v3029
      %v3286 = vpack.c.b16 %v3030, %v3030
      %v3287 = vpack.c.b16 %v3031, %v3031
      %v3288 = vpack.c.b16 %v3032, %v3032
      %v3289 = vpack.c.b16 %v3033, %v3033
      %v3290 = vpack.c.b16 %v3034, %v3034
      %v3291 = vpack.c.b16 %v3035, %v3035
      %v3292 = vpack.c.b16 %v3036, %v3036
      %v3293 = vpack.c.b16 %v3037, %v3037
      %v3294 = vpack.c.b16 %v3038, %v3038
      %v3295 = vpack.c.b16 %v3039, %v3039
      %v3296 = vpack.c.b16 %v3040, %v3040
      %v3297 = vpack.c.b16 %v3041, %v3041
      %v3298 = vpack.c.b16 %v3042, %v3042
      %v3299 = vpack.c.b16 %v3043, %v3043
      %v3300 = vpack.c.b16 %v3044, %v3044
      %v3301 = vpack.c.b16 %v3045, %v3045
      %v3302 = vpack.c.b16 %v3046, %v3046
      %v3303 = vpack.c.b16 %v3047, %v3047
      %v3304 = vpack.c.b16 %v3048, %v3048
      %v3305 = vpack.c.b16 %v3049, %v3049
      %v3306 = vpack.c.b16 %v3050, %v3050
      %v3307 = vpack.c.b16 %v3051, %v3051
      %v3308 = vpack.c.b16 %v3052, %v3052
      %v3309 = vpack.c.b16 %v3053, %v3053
      %v3310 = vpack.c.b16 %v3054, %v3054
      %v3311 = vpack.c.b16 %v3055, %v3055
      %v3312 = vpack.c.b16 %v3056, %v3056
      %v3313 = vpack.c.b16 %v3057, %v3057
      %v3314 = vpack.c.b16 %v3058, %v3058
      %v3315 = vpack.c.b16 %v3059, %v3059
      %v3316 = vpack.c.b16 %v3060, %v3060
      %v3317 = vpack.c.b16 %v3061, %v3061
      %v3318 = vpack.c.b16 %v3062, %v3062
      %v3319 = vpack.c.b16 %v3063, %v3063
      %v3320 = vpack.c.b16 %v3064, %v3064
      %v3321 = vpack.c.b16 %v3065, %v3065
      %v3322 = vpack.c.b16 %v3066, %v3066
      %v3323 = vpack.c.b16 %v3067, %v3067
      %v3324 = vpack.c.b16 %v3068, %v3068
      %v3325 = vpack.c.b16 %v3069, %v3069
      %v3326 = vpack.c.b16 %v3070, %v3070
      %v3327 = vpack.c.b16 %v3071, %v3071
      %v3328 = vpack.c.b16 %v3072, %v3072
      %v3329 = vpack.c.b16 %v3073, %v3073
      %v3330 = vpack.c.b16 %v3074, %v3074
      %v3331 = vpack.c.b16 %v3075, %v3075
      %v3332 = vpack.c.b16 %v3076, %v3076
      %v3333 = vpack.c.b16 %v3077, %v3077
      %v3334 = vpack.c.b16 %v3078, %v3078
      %v3335 = vpack.c.b16 %v3079, %v3079
      %v3336 = vpack.c.b16 %v3080, %v3080
      %v3337 = vpack.c.b16 %v3081, %v3081
      %v3338 = vpack.c.b16 %v3082, %v3082
      %v3339 = vpack.c.b16 %v3083, %v3083
      %v3340 = vpack.c.b16 %v3084, %v3084
      %v3341 = vpack.c.b16 %v3085, %v3085
      %v3342 = vpack.c.b16 %v3086, %v3086
      %v3343 = vpack.c.b16 %v3087, %v3087
      %v3344 = vpack.c.b16 %v3088, %v3088
      %v3345 = vpack.c.b16 %v3089, %v3089
      %v3346 = vpack.c.b16 %v3090, %v3090
      %v3347 = vpack.c.b16 %v3091, %v3091
      %v3348 = vpack.c.b16 %v3092, %v3092
      %v3349 = vpack.c.b16 %v3093, %v3093
      %v3350 = vpack.c.b16 %v3094, %v3094
      %v3351 = vpack.c.b16 %v3095, %v3095
      %v3352 = vpack.c.b16 %v3096, %v3096
      %v3353 = vpack.c.b16 %v3097, %v3097
      %v3354 = vpack.c.b16 %v3098, %v3098
      %v3355 = vpack.c.b16 %v3099, %v3099
      %v3356 = vpack.c.b16 %v3100, %v3100
      %v3357 = vpack.c.b16 %v3101, %v3101
      %v3358 = vpack.c.b16 %v3102, %v3102
      %v3359 = vpack.c.b16 %v3103, %v3103
      %v3360 = vpack.c.b16 %v3104, %v3104
      %v3361 = vpack.c.b16 %v3105, %v3105
      %v3362 = vpack.c.b16 %v3106, %v3106
      %v3363 = vpack.c.b16 %v3107, %v3107
      %v3364 = vpack.c.b16 %v3108, %v3108
      %v3365 = vpack.c.b16 %v3109, %v3109
      %v3366 = vpack.c.b16 %v3110, %v3110
      %v3367 = vpack.c.b16 %v3111, %v3111
      %v3368 = vpack.c.b16 %v3112, %v3112
      %v3369 = vpack.c.b16 %v3113, %v3113
      %v3370 = vpack.c.b16 %v3114, %v3114
      %v3371 = vpack.c.b16 %v3115, %v3115
      %v3372 = vpack.c.b16 %v3116, %v3116
      %3629 = vst [vmem:[%s201] sm:$0xf] %v3117
      %3630 = vst [vmem:[%s201 + $0x4] sm:$0xf] %v3118
      %3631 = vst [vmem:[%s201 + $0x8] sm:$0xf] %v3119
      %3632 = vst [vmem:[%s201 + $0xc] sm:$0xf] %v3120
      %3633 = vst [vmem:[%s201 + $0x10] sm:$0xf] %v3121
      %3634 = vst [vmem:[%s201 + $0x14] sm:$0xf] %v3122
      %3635 = vst [vmem:[%s201 + $0x18] sm:$0xf] %v3123
      %3636 = vst [vmem:[%s201 + $0x1c] sm:$0xf] %v3124
      %3637 = vst [vmem:[%s201 + $0x20] sm:$0xf] %v3125
      %3638 = vst [vmem:[%s201 + $0x24] sm:$0xf] %v3126
      %3639 = vst [vmem:[%s201 + $0x28] sm:$0xf] %v3127
      %3640 = vst [vmem:[%s201 + $0x2c] sm:$0xf] %v3128
      %3641 = vst [vmem:[%s201 + $0x30] sm:$0xf] %v3129
      %3642 = vst [vmem:[%s201 + $0x34] sm:$0xf] %v3130
      %3643 = vst [vmem:[%s201 + $0x38] sm:$0xf] %v3131
      %3644 = vst [vmem:[%s201 + $0x3c] sm:$0xf] %v3132
      %3645 = vst [vmem:[%s201 + $0x40] sm:$0xf] %v3133
      %3646 = vst [vmem:[%s201 + $0x44] sm:$0xf] %v3134
      %3647 = vst [vmem:[%s201 + $0x48] sm:$0xf] %v3135
      %3648 = vst [vmem:[%s201 + $0x4c] sm:$0xf] %v3136
      %3649 = vst [vmem:[%s201 + $0x50] sm:$0xf] %v3137
      %3650 = vst [vmem:[%s201 + $0x54] sm:$0xf] %v3138
      %3651 = vst [vmem:[%s201 + $0x58] sm:$0xf] %v3139
      %3652 = vst [vmem:[%s201 + $0x5c] sm:$0xf] %v3140
      %3653 = vst [vmem:[%s201 + $0x60] sm:$0xf] %v3141
      %3654 = vst [vmem:[%s201 + $0x64] sm:$0xf] %v3142
      %3655 = vst [vmem:[%s201 + $0x68] sm:$0xf] %v3143
      %3656 = vst [vmem:[%s201 + $0x6c] sm:$0xf] %v3144
      %3657 = vst [vmem:[%s201 + $0x70] sm:$0xf] %v3145
      %3658 = vst [vmem:[%s201 + $0x74] sm:$0xf] %v3146
      %3659 = vst [vmem:[%s201 + $0x78] sm:$0xf] %v3147
      %3660 = vst [vmem:[%s201 + $0x7c] sm:$0xf] %v3148
      %3661 = vst [vmem:[%s201 + $0x80] sm:$0xf] %v3149
      %3662 = vst [vmem:[%s201 + $0x84] sm:$0xf] %v3150
      %3663 = vst [vmem:[%s201 + $0x88] sm:$0xf] %v3151
      %3664 = vst [vmem:[%s201 + $0x8c] sm:$0xf] %v3152
      %3665 = vst [vmem:[%s201 + $0x90] sm:$0xf] %v3153
      %3666 = vst [vmem:[%s201 + $0x94] sm:$0xf] %v3154
      %3667 = vst [vmem:[%s201 + $0x98] sm:$0xf] %v3155
      %3668 = vst [vmem:[%s201 + $0x9c] sm:$0xf] %v3156
      %3669 = vst [vmem:[%s201 + $0xa0] sm:$0xf] %v3157
      %3670 = vst [vmem:[%s201 + $0xa4] sm:$0xf] %v3158
      %3671 = vst [vmem:[%s201 + $0xa8] sm:$0xf] %v3159
      %3672 = vst [vmem:[%s201 + $0xac] sm:$0xf] %v3160
      %3673 = vst [vmem:[%s201 + $0xb0] sm:$0xf] %v3161
      %3674 = vst [vmem:[%s201 + $0xb4] sm:$0xf] %v3162
      %3675 = vst [vmem:[%s201 + $0xb8] sm:$0xf] %v3163
      %3676 = vst [vmem:[%s201 + $0xbc] sm:$0xf] %v3164
      %3677 = vst [vmem:[%s201 + $0xc0] sm:$0xf] %v3165
      %3678 = vst [vmem:[%s201 + $0xc4] sm:$0xf] %v3166
      %3679 = vst [vmem:[%s201 + $0xc8] sm:$0xf] %v3167
      %3680 = vst [vmem:[%s201 + $0xcc] sm:$0xf] %v3168
      %3681 = vst [vmem:[%s201 + $0xd0] sm:$0xf] %v3169
      %3682 = vst [vmem:[%s201 + $0xd4] sm:$0xf] %v3170
      %3683 = vst [vmem:[%s201 + $0xd8] sm:$0xf] %v3171
      %3684 = vst [vmem:[%s201 + $0xdc] sm:$0xf] %v3172
      %3685 = vst [vmem:[%s201 + $0xe0] sm:$0xf] %v3173
      %3686 = vst [vmem:[%s201 + $0xe4] sm:$0xf] %v3174
      %3687 = vst [vmem:[%s201 + $0xe8] sm:$0xf] %v3175
      %3688 = vst [vmem:[%s201 + $0xec] sm:$0xf] %v3176
      %3689 = vst [vmem:[%s201 + $0xf0] sm:$0xf] %v3177
      %3690 = vst [vmem:[%s201 + $0xf4] sm:$0xf] %v3178
      %3691 = vst [vmem:[%s201 + $0xf8] sm:$0xf] %v3179
      %3692 = vst [vmem:[%s201 + $0xfc] sm:$0xf] %v3180
      %3693 = vst [vmem:[%s201 + $0x100] sm:$0xf] %v3181
      %3694 = vst [vmem:[%s201 + $0x104] sm:$0xf] %v3182
      %3695 = vst [vmem:[%s201 + $0x108] sm:$0xf] %v3183
      %3696 = vst [vmem:[%s201 + $0x10c] sm:$0xf] %v3184
      %3697 = vst [vmem:[%s201 + $0x110] sm:$0xf] %v3185
      %3698 = vst [vmem:[%s201 + $0x114] sm:$0xf] %v3186
      %3699 = vst [vmem:[%s201 + $0x118] sm:$0xf] %v3187
      %3700 = vst [vmem:[%s201 + $0x11c] sm:$0xf] %v3188
      %3701 = vst [vmem:[%s201 + $0x120] sm:$0xf] %v3189
      %3702 = vst [vmem:[%s201 + $0x124] sm:$0xf] %v3190
      %3703 = vst [vmem:[%s201 + $0x128] sm:$0xf] %v3191
      %3704 = vst [vmem:[%s201 + $0x12c] sm:$0xf] %v3192
      %3705 = vst [vmem:[%s201 + $0x130] sm:$0xf] %v3193
      %3706 = vst [vmem:[%s201 + $0x134] sm:$0xf] %v3194
      %3707 = vst [vmem:[%s201 + $0x138] sm:$0xf] %v3195
      %3708 = vst [vmem:[%s201 + $0x13c] sm:$0xf] %v3196
      %3709 = vst [vmem:[%s201 + $0x140] sm:$0xf] %v3197
      %3710 = vst [vmem:[%s201 + $0x144] sm:$0xf] %v3198
      %3711 = vst [vmem:[%s201 + $0x148] sm:$0xf] %v3199
      %3712 = vst [vmem:[%s201 + $0x14c] sm:$0xf] %v3200
      %3713 = vst [vmem:[%s201 + $0x150] sm:$0xf] %v3201
      %3714 = vst [vmem:[%s201 + $0x154] sm:$0xf] %v3202
      %3715 = vst [vmem:[%s201 + $0x158] sm:$0xf] %v3203
      %3716 = vst [vmem:[%s201 + $0x15c] sm:$0xf] %v3204
      %3717 = vst [vmem:[%s201 + $0x160] sm:$0xf] %v3205
      %3718 = vst [vmem:[%s201 + $0x164] sm:$0xf] %v3206
      %3719 = vst [vmem:[%s201 + $0x168] sm:$0xf] %v3207
      %3720 = vst [vmem:[%s201 + $0x16c] sm:$0xf] %v3208
      %3721 = vst [vmem:[%s201 + $0x170] sm:$0xf] %v3209
      %3722 = vst [vmem:[%s201 + $0x174] sm:$0xf] %v3210
      %3723 = vst [vmem:[%s201 + $0x178] sm:$0xf] %v3211
      %3724 = vst [vmem:[%s201 + $0x17c] sm:$0xf] %v3212
      %3725 = vst [vmem:[%s201 + $0x180] sm:$0xf] %v3213
      %3726 = vst [vmem:[%s201 + $0x184] sm:$0xf] %v3214
      %3727 = vst [vmem:[%s201 + $0x188] sm:$0xf] %v3215
      %3728 = vst [vmem:[%s201 + $0x18c] sm:$0xf] %v3216
      %3729 = vst [vmem:[%s201 + $0x190] sm:$0xf] %v3217
      %3730 = vst [vmem:[%s201 + $0x194] sm:$0xf] %v3218
      %3731 = vst [vmem:[%s201 + $0x198] sm:$0xf] %v3219
      %3732 = vst [vmem:[%s201 + $0x19c] sm:$0xf] %v3220
      %3733 = vst [vmem:[%s201 + $0x1a0] sm:$0xf] %v3221
      %3734 = vst [vmem:[%s201 + $0x1a4] sm:$0xf] %v3222
      %3735 = vst [vmem:[%s201 + $0x1a8] sm:$0xf] %v3223
      %3736 = vst [vmem:[%s201 + $0x1ac] sm:$0xf] %v3224
      %3737 = vst [vmem:[%s201 + $0x1b0] sm:$0xf] %v3225
      %3738 = vst [vmem:[%s201 + $0x1b4] sm:$0xf] %v3226
      %3739 = vst [vmem:[%s201 + $0x1b8] sm:$0xf] %v3227
      %3740 = vst [vmem:[%s201 + $0x1bc] sm:$0xf] %v3228
      %3741 = vst [vmem:[%s201 + $0x1c0] sm:$0xf] %v3229
      %3742 = vst [vmem:[%s201 + $0x1c4] sm:$0xf] %v3230
      %3743 = vst [vmem:[%s201 + $0x1c8] sm:$0xf] %v3231
      %3744 = vst [vmem:[%s201 + $0x1cc] sm:$0xf] %v3232
      %3745 = vst [vmem:[%s201 + $0x1d0] sm:$0xf] %v3233
      %3746 = vst [vmem:[%s201 + $0x1d4] sm:$0xf] %v3234
      %3747 = vst [vmem:[%s201 + $0x1d8] sm:$0xf] %v3235
      %3748 = vst [vmem:[%s201 + $0x1dc] sm:$0xf] %v3236
      %3749 = vst [vmem:[%s201 + $0x1e0] sm:$0xf] %v3237
      %3750 = vst [vmem:[%s201 + $0x1e4] sm:$0xf] %v3238
      %3751 = vst [vmem:[%s201 + $0x1e8] sm:$0xf] %v3239
      %3752 = vst [vmem:[%s201 + $0x1ec] sm:$0xf] %v3240
      %3753 = vst [vmem:[%s201 + $0x1f0] sm:$0xf] %v3241
      %3754 = vst [vmem:[%s201 + $0x1f4] sm:$0xf] %v3242
      %3755 = vst [vmem:[%s201 + $0x1f8] sm:$0xf] %v3243
      %3756 = vst [vmem:[%s201 + $0x1fc] sm:$0xf] %v3244
      %3757 = vst [vmem:[%s201 + $0x200] sm:$0xf] %v3245
      %3758 = vst [vmem:[%s201 + $0x204] sm:$0xf] %v3246
      %3759 = vst [vmem:[%s201 + $0x208] sm:$0xf] %v3247
      %3760 = vst [vmem:[%s201 + $0x20c] sm:$0xf] %v3248
      %3761 = vst [vmem:[%s201 + $0x210] sm:$0xf] %v3249
      %3762 = vst [vmem:[%s201 + $0x214] sm:$0xf] %v3250
      %3763 = vst [vmem:[%s201 + $0x218] sm:$0xf] %v3251
      %3764 = vst [vmem:[%s201 + $0x21c] sm:$0xf] %v3252
      %3765 = vst [vmem:[%s201 + $0x220] sm:$0xf] %v3253
      %3766 = vst [vmem:[%s201 + $0x224] sm:$0xf] %v3254
      %3767 = vst [vmem:[%s201 + $0x228] sm:$0xf] %v3255
      %3768 = vst [vmem:[%s201 + $0x22c] sm:$0xf] %v3256
      %3769 = vst [vmem:[%s201 + $0x230] sm:$0xf] %v3257
      %3770 = vst [vmem:[%s201 + $0x234] sm:$0xf] %v3258
      %3771 = vst [vmem:[%s201 + $0x238] sm:$0xf] %v3259
      %3772 = vst [vmem:[%s201 + $0x23c] sm:$0xf] %v3260
      %3773 = vst [vmem:[%s201 + $0x240] sm:$0xf] %v3261
      %3774 = vst [vmem:[%s201 + $0x244] sm:$0xf] %v3262
      %3775 = vst [vmem:[%s201 + $0x248] sm:$0xf] %v3263
      %3776 = vst [vmem:[%s201 + $0x24c] sm:$0xf] %v3264
      %3777 = vst [vmem:[%s201 + $0x250] sm:$0xf] %v3265
      %3778 = vst [vmem:[%s201 + $0x254] sm:$0xf] %v3266
      %3779 = vst [vmem:[%s201 + $0x258] sm:$0xf] %v3267
      %3780 = vst [vmem:[%s201 + $0x25c] sm:$0xf] %v3268
      %3781 = vst [vmem:[%s201 + $0x260] sm:$0xf] %v3269
      %3782 = vst [vmem:[%s201 + $0x264] sm:$0xf] %v3270
      %3783 = vst [vmem:[%s201 + $0x268] sm:$0xf] %v3271
      %3784 = vst [vmem:[%s201 + $0x26c] sm:$0xf] %v3272
      %3785 = vst [vmem:[%s201 + $0x270] sm:$0xf] %v3273
      %3786 = vst [vmem:[%s201 + $0x274] sm:$0xf] %v3274
      %3787 = vst [vmem:[%s201 + $0x278] sm:$0xf] %v3275
      %3788 = vst [vmem:[%s201 + $0x27c] sm:$0xf] %v3276
      %3789 = vst [vmem:[%s201 + $0x280] sm:$0xf] %v3277
      %3790 = vst [vmem:[%s201 + $0x284] sm:$0xf] %v3278
      %3791 = vst [vmem:[%s201 + $0x288] sm:$0xf] %v3279
      %3792 = vst [vmem:[%s201 + $0x28c] sm:$0xf] %v3280
      %3793 = vst [vmem:[%s201 + $0x290] sm:$0xf] %v3281
      %3794 = vst [vmem:[%s201 + $0x294] sm:$0xf] %v3282
      %3795 = vst [vmem:[%s201 + $0x298] sm:$0xf] %v3283
      %3796 = vst [vmem:[%s201 + $0x29c] sm:$0xf] %v3284
      %3797 = vst [vmem:[%s201 + $0x2a0] sm:$0xf] %v3285
      %3798 = vst [vmem:[%s201 + $0x2a4] sm:$0xf] %v3286
      %3799 = vst [vmem:[%s201 + $0x2a8] sm:$0xf] %v3287
      %3800 = vst [vmem:[%s201 + $0x2ac] sm:$0xf] %v3288
      %3801 = vst [vmem:[%s201 + $0x2b0] sm:$0xf] %v3289
      %3802 = vst [vmem:[%s201 + $0x2b4] sm:$0xf] %v3290
      %3803 = vst [vmem:[%s201 + $0x2b8] sm:$0xf] %v3291
      %3804 = vst [vmem:[%s201 + $0x2bc] sm:$0xf] %v3292
      %3805 = vst [vmem:[%s201 + $0x2c0] sm:$0xf] %v3293
      %3806 = vst [vmem:[%s201 + $0x2c4] sm:$0xf] %v3294
      %3807 = vst [vmem:[%s201 + $0x2c8] sm:$0xf] %v3295
      %3808 = vst [vmem:[%s201 + $0x2cc] sm:$0xf] %v3296
      %3809 = vst [vmem:[%s201 + $0x2d0] sm:$0xf] %v3297
      %3810 = vst [vmem:[%s201 + $0x2d4] sm:$0xf] %v3298
      %3811 = vst [vmem:[%s201 + $0x2d8] sm:$0xf] %v3299
      %3812 = vst [vmem:[%s201 + $0x2dc] sm:$0xf] %v3300
      %3813 = vst [vmem:[%s201 + $0x2e0] sm:$0xf] %v3301
      %3814 = vst [vmem:[%s201 + $0x2e4] sm:$0xf] %v3302
      %3815 = vst [vmem:[%s201 + $0x2e8] sm:$0xf] %v3303
      %3816 = vst [vmem:[%s201 + $0x2ec] sm:$0xf] %v3304
      %3817 = vst [vmem:[%s201 + $0x2f0] sm:$0xf] %v3305
      %3818 = vst [vmem:[%s201 + $0x2f4] sm:$0xf] %v3306
      %3819 = vst [vmem:[%s201 + $0x2f8] sm:$0xf] %v3307
      %3820 = vst [vmem:[%s201 + $0x2fc] sm:$0xf] %v3308
      %3821 = vst [vmem:[%s201 + $0x300] sm:$0xf] %v3309
      %3822 = vst [vmem:[%s201 + $0x304] sm:$0xf] %v3310
      %3823 = vst [vmem:[%s201 + $0x308] sm:$0xf] %v3311
      %3824 = vst [vmem:[%s201 + $0x30c] sm:$0xf] %v3312
      %3825 = vst [vmem:[%s201 + $0x310] sm:$0xf] %v3313
      %3826 = vst [vmem:[%s201 + $0x314] sm:$0xf] %v3314
      %3827 = vst [vmem:[%s201 + $0x318] sm:$0xf] %v3315
      %3828 = vst [vmem:[%s201 + $0x31c] sm:$0xf] %v3316
      %3829 = vst [vmem:[%s201 + $0x320] sm:$0xf] %v3317
      %3830 = vst [vmem:[%s201 + $0x324] sm:$0xf] %v3318
      %3831 = vst [vmem:[%s201 + $0x328] sm:$0xf] %v3319
      %3832 = vst [vmem:[%s201 + $0x32c] sm:$0xf] %v3320
      %3833 = vst [vmem:[%s201 + $0x330] sm:$0xf] %v3321
      %3834 = vst [vmem:[%s201 + $0x334] sm:$0xf] %v3322
      %3835 = vst [vmem:[%s201 + $0x338] sm:$0xf] %v3323
      %3836 = vst [vmem:[%s201 + $0x33c] sm:$0xf] %v3324
      %3837 = vst [vmem:[%s201 + $0x340] sm:$0xf] %v3325
      %3838 = vst [vmem:[%s201 + $0x344] sm:$0xf] %v3326
      %3839 = vst [vmem:[%s201 + $0x348] sm:$0xf] %v3327
      %3840 = vst [vmem:[%s201 + $0x34c] sm:$0xf] %v3328
      %3841 = vst [vmem:[%s201 + $0x350] sm:$0xf] %v3329
      %3842 = vst [vmem:[%s201 + $0x354] sm:$0xf] %v3330
      %3843 = vst [vmem:[%s201 + $0x358] sm:$0xf] %v3331
      %3844 = vst [vmem:[%s201 + $0x35c] sm:$0xf] %v3332
      %3845 = vst [vmem:[%s201 + $0x360] sm:$0xf] %v3333
      %3846 = vst [vmem:[%s201 + $0x364] sm:$0xf] %v3334
      %3847 = vst [vmem:[%s201 + $0x368] sm:$0xf] %v3335
      %3848 = vst [vmem:[%s201 + $0x36c] sm:$0xf] %v3336
      %3849 = vst [vmem:[%s201 + $0x370] sm:$0xf] %v3337
      %3850 = vst [vmem:[%s201 + $0x374] sm:$0xf] %v3338
      %3851 = vst [vmem:[%s201 + $0x378] sm:$0xf] %v3339
      %3852 = vst [vmem:[%s201 + $0x37c] sm:$0xf] %v3340
      %3853 = vst [vmem:[%s201 + $0x380] sm:$0xf] %v3341
      %3854 = vst [vmem:[%s201 + $0x384] sm:$0xf] %v3342
      %3855 = vst [vmem:[%s201 + $0x388] sm:$0xf] %v3343
      %3856 = vst [vmem:[%s201 + $0x38c] sm:$0xf] %v3344
      %3857 = vst [vmem:[%s201 + $0x390] sm:$0xf] %v3345
      %3858 = vst [vmem:[%s201 + $0x394] sm:$0xf] %v3346
      %3859 = vst [vmem:[%s201 + $0x398] sm:$0xf] %v3347
      %3860 = vst [vmem:[%s201 + $0x39c] sm:$0xf] %v3348
      %3861 = vst [vmem:[%s201 + $0x3a0] sm:$0xf] %v3349
      %3862 = vst [vmem:[%s201 + $0x3a4] sm:$0xf] %v3350
      %3863 = vst [vmem:[%s201 + $0x3a8] sm:$0xf] %v3351
      %3864 = vst [vmem:[%s201 + $0x3ac] sm:$0xf] %v3352
      %3865 = vst [vmem:[%s201 + $0x3b0] sm:$0xf] %v3353
      %3866 = vst [vmem:[%s201 + $0x3b4] sm:$0xf] %v3354
      %3867 = vst [vmem:[%s201 + $0x3b8] sm:$0xf] %v3355
      %3868 = vst [vmem:[%s201 + $0x3bc] sm:$0xf] %v3356
      %3869 = vst [vmem:[%s201 + $0x3c0] sm:$0xf] %v3357
      %3870 = vst [vmem:[%s201 + $0x3c4] sm:$0xf] %v3358
      %3871 = vst [vmem:[%s201 + $0x3c8] sm:$0xf] %v3359
      %3872 = vst [vmem:[%s201 + $0x3cc] sm:$0xf] %v3360
      %3873 = vst [vmem:[%s201 + $0x3d0] sm:$0xf] %v3361
      %3874 = vst [vmem:[%s201 + $0x3d4] sm:$0xf] %v3362
      %3875 = vst [vmem:[%s201 + $0x3d8] sm:$0xf] %v3363
      %3876 = vst [vmem:[%s201 + $0x3dc] sm:$0xf] %v3364
      %3877 = vst [vmem:[%s201 + $0x3e0] sm:$0xf] %v3365
      %3878 = vst [vmem:[%s201 + $0x3e4] sm:$0xf] %v3366
      %3879 = vst [vmem:[%s201 + $0x3e8] sm:$0xf] %v3367
      %3880 = vst [vmem:[%s201 + $0x3ec] sm:$0xf] %v3368
      %3881 = vst [vmem:[%s201 + $0x3f0] sm:$0xf] %v3369
      %3882 = vst [vmem:[%s201 + $0x3f4] sm:$0xf] %v3370
      %3883 = vst [vmem:[%s201 + $0x3f8] sm:$0xf] %v3371
      %3884 = vst [vmem:[%s201 + $0x3fc] sm:$0xf] %v3372
      %s3885 = smul.u32 256, %s18
      %p3886 = scmp.lt.s32.totalorder %s17, 3
      %s3887 = scalar_select %p3886, %s17, 3
      %p3888 = scmp.lt.s32.totalorder %s3885, 255
      %s3889 = scalar_select %p3888, %s3885, 255
      %s3890 = smul.addr %s3887, 256
      %s3891 = sadd.s32 %s3889, %s3890
      %s3892 = smul.addr %s3891, 4
      %s3893 = scalar_lea.vmem %s2, %s3892
      // Predicated region
      $region29: #{_generator_forward_impl.17} parent=27 // pred_check
        %p3894 = pneg %p99
      $region30: #{_generator_forward_impl.17} parent=27 // pred_check_branch
        %3896 = sbr.rel (%p3894) target = $region32
      $region31: #{_generator_forward_impl.17} parent=27 // pred_region
        %s3897 = smul.u32 256, %s18
      $region32: #{_generator_forward_impl.17} parent=27 // pred_fallthru
        _
    $region28: #{_generator_forward_impl.17} parent=5 // pred_fallthru
      _
    %p3898 = scmp.le.s32.totalorder 2, %s8
    // Predicated region
    $region33: #{_generator_forward_impl.17} parent=5 // pred_check
      %p3899 = pneg %p3898
    $region34: #{_generator_forward_impl.17} parent=5 // pred_check_branch
      %3901 = sbr.rel (%p3899) target = $region36
    $region35: #{_generator_forward_impl.17} parent=5 // pred_region
      %s3902 = ssub.s32 %s8, 2
      // Predicated region
      $region37: #{_generator_forward_impl.17} parent=35 // pred_check
        %p3903 = pneg %p105
      $region38: #{_generator_forward_impl.17} parent=35 // pred_check_branch
        %3905 = sbr.rel (%p3903) target = $region40
      $region39: #{_generator_forward_impl.17} parent=35 // pred_region
        %s3906 = smul.u32 256, %s20
        %p3907 = scmp.lt.s32.totalorder %s19, 3
        %s3908 = scalar_select %p3907, %s19, 3
        %p3909 = scmp.lt.s32.totalorder %s3906, 255
        %s3910 = scalar_select %p3909, %s3906, 255
        %s3911 = smul.addr %s3908, 256
        %s3912 = sadd.s32 %s3910, %s3911
        %s3913 = smul.addr %s3912, 4
        %s3914 = scalar_lea.vmem %s2, %s3913
      $region40: #{_generator_forward_impl.17} parent=35 // pred_fallthru
        _
    $region36: #{_generator_forward_impl.17} parent=5 // pred_fallthru
      _
  $region6: #{_generator_forward_impl.17} parent=0 // loop_footer
    %s12 = sadd.s32 1, %s8
  $region7: #{_generator_forward_impl.17} parent=0 // loop_footer_branch
    %7 = sbr.rel target = $region3
  $region8: #{_generator_forward_impl.17} parent=0 // loop_exit
    _

</llo_original>
